<compile_context>
chip_gen: v7x
topology: tpu7x:2x2x1
jax: 0.10.0
libtpu: 0.0.40
codegen_flags: <defaults>
</compile_context>

<pallas_src>
import math
from functools import partial

import jax
import jax.numpy as jnp
from jax.experimental import pallas as pl
from jax.experimental.pallas import tpu as pltpu


# ---------------- bilinear resize (align_corners=True), plain JAX ----------------
# TODO(synk): resize is implemented as two tiny interpolation-matrix einsums in
# plain JAX rather than a dedicated Pallas kernel.
def _interp_matrix(n_out, n_in):
    if n_in == 1:
        return jnp.ones((n_out, 1), jnp.float32)
    if n_out == 1:
        src = jnp.zeros((1,), jnp.float32)
    else:
        src = jnp.arange(n_out, dtype=jnp.float32) * ((n_in - 1) / (n_out - 1))
    lo = jnp.floor(src)
    frac = src - lo
    lo = lo.astype(jnp.int32)
    return (jax.nn.one_hot(lo, n_in, dtype=jnp.float32) * (1.0 - frac)[:, None]
            + jax.nn.one_hot(lo + 1, n_in, dtype=jnp.float32) * frac[:, None])


def resize_bilinear_align_corners(x, out_h, out_w, pad_border=False):
    """Bilinear align_corners=True resize; optionally emits a zero 1-pixel border
    (output (B, C, out_h+2, out_w+2)) directly from the interpolation matrices."""
    ah = _interp_matrix(out_h, x.shape[2])
    aw = _interp_matrix(out_w, x.shape[3])
    if pad_border:
        ah = jnp.pad(ah, ((1, 1), (0, 0)))
        aw = jnp.pad(aw, ((1, 1), (0, 0)))
    y = jnp.einsum('oh,bchw->bcow', ah, x, precision=jax.lax.Precision.HIGHEST)
    y = jnp.einsum('pw,bcow->bcop', aw, y, precision=jax.lax.Precision.HIGHEST)
    return y


# ------- kernel 1: 1x1 conv (cmprs) fused with cosal gate + channel concat -------
def _cmprs_gate_merge_kernel(x_ref, g_ref, old_ref, w_ref, b_ref, o_ref):
    # x_ref: (1, C_in, S)  g_ref: (1, 1, S)  old_ref: (1, C_old, S)
    # w_ref: (C_cmp, C_in) b_ref: (C_cmp, 1)  o_ref: (1, C_cmp + C_old, S)
    x = x_ref[0].astype(jnp.float32)                    # (C_in, S)
    w = w_ref[...].astype(jnp.float32)                  # (C_cmp, C_in)
    c_in = x.shape[0]
    c_cmp = w.shape[0]
    if c_in < 8:
        # tiny contraction: VPU broadcast multiply-accumulate, skip the MXU
        acc = jnp.zeros((c_cmp, x.shape[1]), jnp.float32)
        for c in range(c_in):
            acc = acc + w[:, c:c + 1] * x[c:c + 1, :]
    else:
        acc = jnp.dot(w, x, preferred_element_type=jnp.float32)
    gated = (acc + b_ref[...]) * g_ref[0].astype(jnp.float32)
    o_ref[0, :c_cmp, :] = gated.astype(o_ref.dtype)
    o_ref[0, c_cmp:, :] = old_ref[0].astype(o_ref.dtype)


def cmprs_gate_merge(low_p, gate_p, old_p, weight, bias):
    """low_p/gate_p/old_p: NCHW tensors already on the zero-padded (Hp, Wp) grid.
    Returns the merged 96-channel tensor flattened to (B, 96, Hp*Wp) with zero
    borders (ready to be the 'same'-padded input of the first 3x3 conv)."""
    B, C_in, Hp, Wp = low_p.shape
    S = Hp * Wp
    C_cmp = weight.shape[0]
    C_old = old_p.shape[1]
    C_out = C_cmp + C_old
    return pl.pallas_call(
        _cmprs_gate_merge_kernel,
        out_shape=jax.ShapeDtypeStruct((B, C_out, S), low_p.dtype),
        grid_spec=pltpu.PrefetchScalarGridSpec(
            num_scalar_prefetch=0,
            grid=(B,),
            in_specs=[
                pl.BlockSpec((1, C_in, S), lambda b: (b, 0, 0)),
                pl.BlockSpec((1, 1, S), lambda b: (b, 0, 0)),
                pl.BlockSpec((1, C_old, S), lambda b: (b, 0, 0)),
                pl.BlockSpec((C_cmp, C_in), lambda b: (0, 0)),
                pl.BlockSpec((C_cmp, 1), lambda b: (0, 0)),
            ],
            out_specs=pl.BlockSpec((1, C_out, S), lambda b: (b, 0, 0)),
        ),
        compiler_params=pltpu.CompilerParams(dimension_semantics=("parallel",)),
    )(low_p.reshape(B, C_in, S),
      gate_p.reshape(B, 1, S),
      old_p.reshape(B, C_old, S),
      weight.reshape(C_cmp, C_in).astype(low_p.dtype),
      bias.reshape(C_cmp, 1).astype(jnp.float32))           # -> (B, 96, S)


# --------- kernel 2: 3x3 conv (BN-scale folded) + shift + ReLU + border mask ---------
def _conv3x3_relu_mask_kernel(x_ref, w_ref, shift_ref, mask_ref, o_ref, *, offsets):
    # x_ref: (1, C_in, S_ext) zero-padded flattened spatial (+ shift margins)
    # w_ref: (9, C_out, C_in) tap-major BN-scale-folded weights
    # shift_ref: (C_out, 1)   mask_ref: (1, S_out)   o_ref: (1, C_out, S_out)
    s_out = o_ref.shape[2]
    acc = jnp.zeros(o_ref.shape[1:], jnp.float32)
    for t, off in enumerate(offsets):
        xs = x_ref[0, :, off:off + s_out]                         # (C_in, S_out)
        acc = acc + jnp.dot(w_ref[t], xs, preferred_element_type=jnp.float32)
    y = jnp.maximum(acc + shift_ref[...], 0.0) * mask_ref[...]
    o_ref[0] = y.astype(o_ref.dtype)


def conv3x3_bn_relu_padded(x_pad_flat, weight_folded, shift, Hp, Wp, mask):
    """Input/output both live on the zero-padded (Hp, Wp) grid, flattened.
    Output borders are zeroed so the result is directly the next conv's input."""
    B, C_in, S_out = x_pad_flat.shape
    C_out = weight_folded.shape[0]
    M = Wp + 1
    x_ext = jnp.pad(x_pad_flat, ((0, 0), (0, 0), (M, M)))
    S_ext = x_ext.shape[-1]
    offsets = tuple(ky * Wp + kx for ky in range(3) for kx in range(3))
    w9 = jnp.transpose(weight_folded, (2, 3, 0, 1)).reshape(9, C_out, C_in)
    return pl.pallas_call(
        partial(_conv3x3_relu_mask_kernel, offsets=offsets),
        out_shape=jax.ShapeDtypeStruct((B, C_out, S_out), x_pad_flat.dtype),
        grid_spec=pltpu.PrefetchScalarGridSpec(
            num_scalar_prefetch=0,
            grid=(B,),
            in_specs=[
                pl.BlockSpec((1, C_in, S_ext), lambda b: (b, 0, 0)),
                pl.BlockSpec((9, C_out, C_in), lambda b: (0, 0, 0)),
                pl.BlockSpec((C_out, 1), lambda b: (0, 0)),
                pl.BlockSpec((1, S_out), lambda b: (0, 0)),
            ],
            out_specs=pl.BlockSpec((1, C_out, S_out), lambda b: (b, 0, 0)),
        ),
        compiler_params=pltpu.CompilerParams(dimension_semantics=("parallel",)),
    )(x_ext, w9.astype(x_pad_flat.dtype),
      shift.reshape(C_out, 1).astype(jnp.float32),
      mask)


# --- kernel 3: 3x3 conv + shift + ReLU fused with Prediction (1x1 conv + sigmoid) ---
def _conv3x3_relu_pred_kernel(x_ref, w_ref, shift_ref, pw_ref, pb_ref,
                              feat_ref, pred_ref, *, offsets):
    # x_ref: (1, C_in, S_ext)  w_ref: (9, C_out, C_in)  shift_ref: (C_out, 1)
    # pw_ref: (C_out, 1)  pb_ref: (1, 1) SMEM
    # feat_ref: (1, C_out, S_out)  pred_ref: (1, 1, S_out)
    s_out = feat_ref.shape[2]
    acc = jnp.zeros(feat_ref.shape[1:], jnp.float32)
    for t, off in enumerate(offsets):
        xs = x_ref[0, :, off:off + s_out]                         # (C_in, S_out)
        acc = acc + jnp.dot(w_ref[t], xs, preferred_element_type=jnp.float32)
    y = jnp.maximum(acc + shift_ref[...], 0.0)                    # (C_out, S_out)
    feat_ref[0] = y.astype(feat_ref.dtype)
    # Prediction head: channel reduction on VPU/XLU, lane-dense (1, S_out) output.
    z = jnp.sum(y * pw_ref[...].astype(jnp.float32), axis=0, keepdims=True)
    z = z + pb_ref[0, 0]
    pred_ref[0] = jax.nn.sigmoid(z).astype(pred_ref.dtype)


def conv3x3_bn_relu_pred_padded(x_pad_flat, weight_folded, shift,
                                pred_w, pred_b, Hp, Wp):
    B, C_in, S_out = x_pad_flat.shape
    C_out = weight_folded.shape[0]
    M = Wp + 1
    x_ext = jnp.pad(x_pad_flat, ((0, 0), (0, 0), (M, M)))
    S_ext = x_ext.shape[-1]
    offsets = tuple(ky * Wp + kx for ky in range(3) for kx in range(3))
    w9 = jnp.transpose(weight_folded, (2, 3, 0, 1)).reshape(9, C_out, C_in)
    return pl.pallas_call(
        partial(_conv3x3_relu_pred_kernel, offsets=offsets),
        out_shape=(jax.ShapeDtypeStruct((B, C_out, S_out), x_pad_flat.dtype),
                   jax.ShapeDtypeStruct((B, 1, S_out), x_pad_flat.dtype)),
        grid_spec=pltpu.PrefetchScalarGridSpec(
            num_scalar_prefetch=0,
            grid=(B,),
            in_specs=[
                pl.BlockSpec((1, C_in, S_ext), lambda b: (b, 0, 0)),
                pl.BlockSpec((9, C_out, C_in), lambda b: (0, 0, 0)),
                pl.BlockSpec((C_out, 1), lambda b: (0, 0)),
                pl.BlockSpec((C_out, 1), lambda b: (0, 0)),
                pl.BlockSpec(memory_space=pltpu.SMEM),
            ],
            out_specs=[pl.BlockSpec((1, C_out, S_out), lambda b: (b, 0, 0)),
                       pl.BlockSpec((1, 1, S_out), lambda b: (b, 0, 0))],
        ),
        compiler_params=pltpu.CompilerParams(dimension_semantics=("parallel",)),
    )(x_ext, w9.astype(x_pad_flat.dtype),
      shift.reshape(C_out, 1).astype(jnp.float32),
      pred_w.reshape(C_out, 1).astype(jnp.float32),
      pred_b.reshape(1, 1).astype(jnp.float32))


# ---------------- full Decoder_Block forward ----------------
def _fold_bn(gamma, beta, mean, var, conv_bias, eps=1e-5):
    scale = gamma / jnp.sqrt(var + eps)
    shift = beta + (conv_bias - mean) * scale
    return scale, shift


# TODO(synk): BatchNorm uses inference (running-stats) semantics folded into the
# conv weights + per-channel shift; PyTorch training-mode batch statistics are
# not emulated.
def decoder_block_forward(low_level_feats, cosal_map, old_feats, params):
    B, C_in, H, W = low_level_feats.shape
    Hp, Wp = H + 2, W + 2
    S_out = Hp * Wp

    # Resize directly onto the zero-padded (Hp, Wp) grid; pad the low-level feats.
    cosal_p = resize_bilinear_align_corners(cosal_map, H, W, pad_border=True)
    old_p = resize_bilinear_align_corners(old_feats, H, W, pad_border=True)
    low_p = jnp.pad(low_level_feats, ((0, 0), (0, 0), (1, 1), (1, 1)))

    # Fused cmprs 1x1 conv + cosal gate + concat -> (B, 96, S_out), zero borders.
    merged = cmprs_gate_merge(low_p, cosal_p, old_p,
                              params['cmprs_w'], params['cmprs_b'])

    # Border mask on the padded grid (interior = 1, 1-pixel border = 0).
    pos = jnp.arange(S_out)
    row, col = pos // Wp, pos % Wp
    mask = (((row >= 1) & (row <= H) & (col >= 1) & (col <= W))
            .astype(jnp.float32).reshape(1, S_out))

    # merge_conv layer 1: 96 -> 96, BN scale folded into weights.
    s1, t1 = _fold_bn(params['bn1_gamma'], params['bn1_beta'],
                      params['bn1_mean'], params['bn1_var'], params['b1'])
    w1f = params['w1'] * s1[:, None, None, None]
    h1 = conv3x3_bn_relu_padded(merged, w1f, t1, Hp, Wp, mask)   # (B, 96, S_out)

    # merge_conv layer 2: 96 -> 32, fused with the Prediction head.
    s2, t2 = _fold_bn(params['bn2_gamma'], params['bn2_beta'],
                      params['bn2_mean'], params['bn2_var'], params['b2'])
    w2f = params['w2'] * s2[:, None, None, None]
    feats_p, pred_p = conv3x3_bn_relu_pred_padded(
        h1, w2f, t2, params['pred_w'], params['pred_b'], Hp, Wp)

    # Drop the padded border positions.
    new_feats = feats_p.reshape(B, 32, Hp, Wp)[:, :, 1:1 + H, 1:1 + W]
    new_cosal_map = pred_p.reshape(B, 1, Hp, Wp)[:, :, 1:1 + H, 1:1 + W]
    return new_feats, new_cosal_map


# ---------------- parameter init (deterministic) ----------------
def init_decoder_block_params(key, in_channel, dtype=jnp.float32):
    ks = jax.random.split(key, 12)

    def conv_init(kw_key, kb_key, out_c, in_c, ksz):
        fan_in = in_c * ksz * ksz
        bw = math.sqrt(6.0 / ((1.0 + 5.0) * fan_in))     # kaiming_uniform, a=sqrt(5)
        w = jax.random.uniform(kw_key, (out_c, in_c, ksz, ksz), dtype, -bw, bw)
        bb = 1.0 / math.sqrt(fan_in)
        b = jax.random.uniform(kb_key, (out_c,), dtype, -bb, bb)
        return w, b

    cmprs_w, cmprs_b = conv_init(ks[0], ks[1], 64, in_channel, 1)
    w1, b1 = conv_init(ks[2], ks[3], 96, 96, 3)
    w2, b2 = conv_init(ks[4], ks[5], 32, 96, 3)
    pred_w, pred_b = conv_init(ks[6], ks[7], 1, 32, 1)

    def bn_init(kg, kb, c):
        gamma = jax.random.uniform(kg, (c,), dtype, 0.5, 1.5)
        beta = jax.random.uniform(kb, (c,), dtype, -0.2, 0.2)
        mean = jax.random.uniform(jax.random.fold_in(kg, 1), (c,), dtype, -0.2, 0.2)
        var = jax.random.uniform(jax.random.fold_in(kb, 1), (c,), dtype, 0.5, 1.5)
        return gamma, beta, mean, var

    g1, be1, m1, v1 = bn_init(ks[8], ks[9], 96)
    g2, be2, m2, v2 = bn_init(ks[10], ks[11], 32)

    return dict(cmprs_w=cmprs_w, cmprs_b=cmprs_b,
                w1=w1, b1=b1, bn1_gamma=g1, bn1_beta=be1, bn1_mean=m1, bn1_var=v1,
                w2=w2, b2=b2, bn2_gamma=g2, bn2_beta=be2, bn2_mean=m2, bn2_var=v2,
                pred_w=pred_w, pred_b=pred_b)


# ---------------- pure-JAX reference ----------------
def _ref_forward(low, cosal, old, params, eps=1e-5):
    B, C_in, H, W = low.shape
    hp = jax.lax.Precision.HIGHEST
    cosal_r = resize_bilinear_align_corners(cosal, H, W)
    old_r = resize_bilinear_align_corners(old, H, W)
    cm = jnp.einsum('oc,bchw->bohw', params['cmprs_w'][:, :, 0, 0], low,
                    precision=hp) + params['cmprs_b'][None, :, None, None]
    merged = jnp.concatenate([cm * cosal_r, old_r], axis=1)

    def conv_bn_relu(x, w, b, gamma, beta, mean, var):
        y = jax.lax.conv_general_dilated(
            x, w, (1, 1), 'SAME',
            dimension_numbers=('NCHW', 'OIHW', 'NCHW'), precision=hp)
        y = y + b[None, :, None, None]
        y = (y - mean[None, :, None, None]) * (
            gamma[None, :, None, None] / jnp.sqrt(var[None, :, None, None] + eps))
        y = y + beta[None, :, None, None]
        return jnp.maximum(y, 0.0)

    h1 = conv_bn_relu(merged, params['w1'], params['b1'], params['bn1_gamma'],
                      params['bn1_beta'], params['bn1_mean'], params['bn1_var'])
    nf = conv_bn_relu(h1, params['w2'], params['b2'], params['bn2_gamma'],
                      params['bn2_beta'], params['bn2_mean'], params['bn2_var'])
    pr = jax.nn.sigmoid(
        jnp.einsum('c,bchw->bhw', params['pred_w'][0, :, 0, 0], nf, precision=hp)
        + params['pred_b'][0])[:, None, :, :]
    return nf, pr


if __name__ == "__main__":
    key = jax.random.PRNGKey(0)
    k_low, k_cos, k_old, k_par = jax.random.split(key, 4)

    B, in_channel, H, W = 2, 4, 16, 16
    low = jax.random.normal(k_low, (B, in_channel, H, W), jnp.float32)
    cosal = jax.random.uniform(k_cos, (B, 1, 8, 8), jnp.float32)   # pre-resize map
    old = jax.random.normal(k_old, (B, 32, 8, 8), jnp.float32)     # pre-resize feats
    params = init_decoder_block_params(k_par, in_channel)

    fwd = jax.jit(decoder_block_forward)
    new_feats, new_cosal_map = fwd(low, cosal, old, params)
    new_feats = jax.block_until_ready(new_feats)
    new_cosal_map = jax.block_until_ready(new_cosal_map)

    ref_feats, ref_map = _ref_forward(low, cosal, old, params)
    assert new_feats.shape == (B, 32, H, W)
    assert new_cosal_map.shape == (B, 1, H, W)
    assert jnp.allclose(new_feats, ref_feats, atol=2e-3, rtol=2e-3), (
        float(jnp.max(jnp.abs(new_feats - ref_feats))))
    assert jnp.allclose(new_cosal_map, ref_map, atol=2e-3, rtol=2e-3), (
        float(jnp.max(jnp.abs(new_cosal_map - ref_map))))

    print("KERNEL_OK")
</pallas_src>

<mosaic_0001>
module attributes {stable_mosaic.version = 11 : i64} {
  func.func @_cmprs_gate_merge_kernel(%arg0: i32, %arg1: memref<1x4x324xf32, #tpu.memory_space<vmem>>, %arg2: memref<1x1x324xf32, #tpu.memory_space<vmem>>, %arg3: memref<1x32x324xf32, #tpu.memory_space<vmem>>, %arg4: memref<64x4xf32, #tpu.memory_space<vmem>>, %arg5: memref<64x1xf32, #tpu.memory_space<vmem>>, %arg6: memref<1x96x324xf32, #tpu.memory_space<vmem>>) attributes {dimension_semantics = [#tpu.dimension_semantics<parallel>], iteration_bounds = array<i64: 2>, scalar_prefetch = 0 : i64, scratch_operands = 0 : i64, tpu.core_type = #tpu.core_type<tc>, window_params = [{transform_indices = @transform_0, window_bounds = array<i64: 1, 4, 324>}, {transform_indices = @transform_1, window_bounds = array<i64: 1, 1, 324>}, {transform_indices = @transform_2, window_bounds = array<i64: 1, 32, 324>}, {pipeline_mode = #tpu.pipeline_mode<synchronous>, transform_indices = @transform_3, window_bounds = array<i64: 64, 4>}, {pipeline_mode = #tpu.pipeline_mode<synchronous>, transform_indices = @transform_4, window_bounds = array<i64: 64, 1>}, {transform_indices = @transform_5, window_bounds = array<i64: 1, 96, 324>}]} {
    %c0 = arith.constant 0 : index
    %c0_0 = arith.constant 0 : index
    %c0_1 = arith.constant 0 : index
    %0 = vector.load %arg1[%c0, %c0_0, %c0_1] : memref<1x4x324xf32, #tpu.memory_space<vmem>>, vector<1x4x324xf32>
    %1 = vector.shape_cast %0 : vector<1x4x324xf32> to vector<4x324xf32>
    %c0_2 = arith.constant 0 : index
    %c0_3 = arith.constant 0 : index
    %2 = vector.load %arg4[%c0_2, %c0_3] : memref<64x4xf32, #tpu.memory_space<vmem>>, vector<64x4xf32>
    %cst = arith.constant 0.000000e+00 : f32
    %3 = vector.broadcast %cst : f32 to vector<64x324xf32>
    %4 = vector.extract_strided_slice %2 {offsets = [0, 0], sizes = [64, 1], strides = [1, 1]} : vector<64x4xf32> to vector<64x1xf32>
    %5 = vector.extract_strided_slice %1 {offsets = [0, 0], sizes = [1, 324], strides = [1, 1]} : vector<4x324xf32> to vector<1x324xf32>
    %6 = vector.broadcast %4 : vector<64x1xf32> to vector<64x324xf32>
    %7 = vector.broadcast %5 : vector<1x324xf32> to vector<64x324xf32>
    %8 = arith.mulf %6, %7 : vector<64x324xf32>
    %9 = arith.addf %3, %8 : vector<64x324xf32>
    %10 = vector.extract_strided_slice %2 {offsets = [0, 1], sizes = [64, 1], strides = [1, 1]} : vector<64x4xf32> to vector<64x1xf32>
    %11 = vector.extract_strided_slice %1 {offsets = [1, 0], sizes = [1, 324], strides = [1, 1]} : vector<4x324xf32> to vector<1x324xf32>
    %12 = vector.broadcast %10 : vector<64x1xf32> to vector<64x324xf32>
    %13 = vector.broadcast %11 : vector<1x324xf32> to vector<64x324xf32>
    %14 = arith.mulf %12, %13 : vector<64x324xf32>
    %15 = arith.addf %9, %14 : vector<64x324xf32>
    %16 = vector.extract_strided_slice %2 {offsets = [0, 2], sizes = [64, 1], strides = [1, 1]} : vector<64x4xf32> to vector<64x1xf32>
    %17 = vector.extract_strided_slice %1 {offsets = [2, 0], sizes = [1, 324], strides = [1, 1]} : vector<4x324xf32> to vector<1x324xf32>
    %18 = vector.broadcast %16 : vector<64x1xf32> to vector<64x324xf32>
    %19 = vector.broadcast %17 : vector<1x324xf32> to vector<64x324xf32>
    %20 = arith.mulf %18, %19 : vector<64x324xf32>
    %21 = arith.addf %15, %20 : vector<64x324xf32>
    %22 = vector.extract_strided_slice %2 {offsets = [0, 3], sizes = [64, 1], strides = [1, 1]} : vector<64x4xf32> to vector<64x1xf32>
    %23 = vector.extract_strided_slice %1 {offsets = [3, 0], sizes = [1, 324], strides = [1, 1]} : vector<4x324xf32> to vector<1x324xf32>
    %24 = vector.broadcast %22 : vector<64x1xf32> to vector<64x324xf32>
    %25 = vector.broadcast %23 : vector<1x324xf32> to vector<64x324xf32>
    %26 = arith.mulf %24, %25 : vector<64x324xf32>
    %27 = arith.addf %21, %26 : vector<64x324xf32>
    %c0_4 = arith.constant 0 : index
    %c0_5 = arith.constant 0 : index
    %28 = vector.load %arg5[%c0_4, %c0_5] : memref<64x1xf32, #tpu.memory_space<vmem>>, vector<64x1xf32>
    %29 = vector.broadcast %28 : vector<64x1xf32> to vector<64x324xf32>
    %30 = arith.addf %27, %29 : vector<64x324xf32>
    %c0_6 = arith.constant 0 : index
    %c0_7 = arith.constant 0 : index
    %c0_8 = arith.constant 0 : index
    %31 = vector.load %arg2[%c0_6, %c0_7, %c0_8] : memref<1x1x324xf32, #tpu.memory_space<vmem>>, vector<1x1x324xf32>
    %32 = vector.shape_cast %31 : vector<1x1x324xf32> to vector<1x324xf32>
    %33 = vector.broadcast %32 : vector<1x324xf32> to vector<64x324xf32>
    %34 = arith.mulf %30, %33 : vector<64x324xf32>
    %c0_9 = arith.constant 0 : index
    %c0_10 = arith.constant 0 : index
    %c0_11 = arith.constant 0 : index
    %35 = vector.load %arg6[%c0_9, %c0_10, %c0_11] : memref<1x96x324xf32, #tpu.memory_space<vmem>>, vector<1x64x324xf32>
    %36 = vector.shape_cast %35 : vector<1x64x324xf32> to vector<64x324xf32>
    %37 = vector.shape_cast %34 : vector<64x324xf32> to vector<1x64x324xf32>
    tpu.vector_store %arg6[%c0_9, %c0_10, %c0_11], %37 {strides = array<i32>} : memref<1x96x324xf32, #tpu.memory_space<vmem>>, vector<1x64x324xf32>,
    %c0_12 = arith.constant 0 : index
    %c0_13 = arith.constant 0 : index
    %c0_14 = arith.constant 0 : index
    %38 = vector.load %arg3[%c0_12, %c0_13, %c0_14] : memref<1x32x324xf32, #tpu.memory_space<vmem>>, vector<1x32x324xf32>
    %39 = vector.shape_cast %38 : vector<1x32x324xf32> to vector<32x324xf32>
    %c0_15 = arith.constant 0 : index
    %c64 = arith.constant 64 : index
    %c0_16 = arith.constant 0 : index
    %40 = vector.load %arg6[%c0_15, %c64, %c0_16] : memref<1x96x324xf32, #tpu.memory_space<vmem>>, vector<1x32x324xf32>
    %41 = vector.shape_cast %40 : vector<1x32x324xf32> to vector<32x324xf32>
    %42 = vector.shape_cast %39 : vector<32x324xf32> to vector<1x32x324xf32>
    tpu.vector_store %arg6[%c0_15, %c64, %c0_16], %42 {strides = array<i32>} : memref<1x96x324xf32, #tpu.memory_space<vmem>>, vector<1x32x324xf32>,
    return
  }
  func.func @transform_0(%arg0: i32) -> (i32, i32, i32) {
    %c0_i32 = arith.constant 0 : i32
    %c0_i32_0 = arith.constant 0 : i32
    %c0_i32_1 = arith.constant 0 : i32
    return %arg0, %c0_i32, %c0_i32_0 : i32, i32, i32
  }
  func.func @transform_1(%arg0: i32) -> (i32, i32, i32) {
    %c0_i32 = arith.constant 0 : i32
    %c0_i32_0 = arith.constant 0 : i32
    %c0_i32_1 = arith.constant 0 : i32
    return %arg0, %c0_i32, %c0_i32_0 : i32, i32, i32
  }
  func.func @transform_2(%arg0: i32) -> (i32, i32, i32) {
    %c0_i32 = arith.constant 0 : i32
    %c0_i32_0 = arith.constant 0 : i32
    %c0_i32_1 = arith.constant 0 : i32
    return %arg0, %c0_i32, %c0_i32_0 : i32, i32, i32
  }
  func.func @transform_3(%arg0: i32) -> (i32, i32) {
    %c0_i32 = arith.constant 0 : i32
    %c0_i32_0 = arith.constant 0 : i32
    %c0_i32_1 = arith.constant 0 : i32
    return %c0_i32, %c0_i32_0 : i32, i32
  }
  func.func @transform_4(%arg0: i32) -> (i32, i32) {
    %c0_i32 = arith.constant 0 : i32
    %c0_i32_0 = arith.constant 0 : i32
    %c0_i32_1 = arith.constant 0 : i32
    return %c0_i32, %c0_i32_0 : i32, i32
  }
  func.func @transform_5(%arg0: i32) -> (i32, i32, i32) {
    %c0_i32 = arith.constant 0 : i32
    %c0_i32_0 = arith.constant 0 : i32
    %c0_i32_1 = arith.constant 0 : i32
    return %arg0, %c0_i32, %c0_i32_0 : i32, i32, i32
  }
}

module attributes {stable_mosaic.version = 11 : i64} {
  func.func @_conv3x3_relu_mask_kernel(%arg0: i32, %arg1: memref<1x96x362xf32, #tpu.memory_space<vmem>>, %arg2: memref<9x96x96xf32, #tpu.memory_space<vmem>>, %arg3: memref<96x1xf32, #tpu.memory_space<vmem>>, %arg4: memref<1x324xf32, #tpu.memory_space<vmem>>, %arg5: memref<1x96x324xf32, #tpu.memory_space<vmem>>) attributes {dimension_semantics = [#tpu.dimension_semantics<parallel>], iteration_bounds = array<i64: 2>, scalar_prefetch = 0 : i64, scratch_operands = 0 : i64, tpu.core_type = #tpu.core_type<tc>, window_params = [{transform_indices = @transform_0, window_bounds = array<i64: 1, 96, 362>}, {pipeline_mode = #tpu.pipeline_mode<synchronous>, transform_indices = @transform_1, window_bounds = array<i64: 9, 96, 96>}, {pipeline_mode = #tpu.pipeline_mode<synchronous>, transform_indices = @transform_2, window_bounds = array<i64: 96, 1>}, {pipeline_mode = #tpu.pipeline_mode<synchronous>, transform_indices = @transform_3, window_bounds = array<i64: 1, 324>}, {transform_indices = @transform_4, window_bounds = array<i64: 1, 96, 324>}]} {
    %cst = arith.constant 0.000000e+00 : f32
    %0 = vector.broadcast %cst : f32 to vector<96x324xf32>
    %c0 = arith.constant 0 : index
    %c0_0 = arith.constant 0 : index
    %c0_1 = arith.constant 0 : index
    %1 = vector.load %arg1[%c0, %c0_0, %c0_1] : memref<1x96x362xf32, #tpu.memory_space<vmem>>, vector<1x96x324xf32>
    %2 = vector.shape_cast %1 : vector<1x96x324xf32> to vector<96x324xf32>
    %c0_2 = arith.constant 0 : index
    %c0_3 = arith.constant 0 : index
    %c0_4 = arith.constant 0 : index
    %3 = vector.load %arg2[%c0_2, %c0_3, %c0_4] : memref<9x96x96xf32, #tpu.memory_space<vmem>>, vector<1x96x96xf32>
    %4 = vector.shape_cast %3 : vector<1x96x96xf32> to vector<96x96xf32>
    %cst_5 = arith.constant dense<0.000000e+00> : vector<96x324xf32>
    %5 = tpu.matmul %4, %2, %cst_5 {dimension_numbers = #tpu.dot_dimension_numbers<[1], [0], [0], [1], [0, 0, 1, 1], [], []>} : vector<96x96xf32>, vector<96x324xf32>, vector<96x324xf32> -> vector<96x324xf32>
    %6 = arith.addf %0, %5 : vector<96x324xf32>
    %c0_6 = arith.constant 0 : index
    %c0_7 = arith.constant 0 : index
    %c1 = arith.constant 1 : index
    %7 = vector.load %arg1[%c0_6, %c0_7, %c1] : memref<1x96x362xf32, #tpu.memory_space<vmem>>, vector<1x96x324xf32>
    %8 = vector.shape_cast %7 : vector<1x96x324xf32> to vector<96x324xf32>
    %c1_8 = arith.constant 1 : index
    %c0_9 = arith.constant 0 : index
    %c0_10 = arith.constant 0 : index
    %9 = vector.load %arg2[%c1_8, %c0_9, %c0_10] : memref<9x96x96xf32, #tpu.memory_space<vmem>>, vector<1x96x96xf32>
    %10 = vector.shape_cast %9 : vector<1x96x96xf32> to vector<96x96xf32>
    %cst_11 = arith.constant dense<0.000000e+00> : vector<96x324xf32>
    %11 = tpu.matmul %10, %8, %cst_11 {dimension_numbers = #tpu.dot_dimension_numbers<[1], [0], [0], [1], [0, 0, 1, 1], [], []>} : vector<96x96xf32>, vector<96x324xf32>, vector<96x324xf32> -> vector<96x324xf32>
    %12 = arith.addf %6, %11 : vector<96x324xf32>
    %c0_12 = arith.constant 0 : index
    %c0_13 = arith.constant 0 : index
    %c2 = arith.constant 2 : index
    %13 = vector.load %arg1[%c0_12, %c0_13, %c2] : memref<1x96x362xf32, #tpu.memory_space<vmem>>, vector<1x96x324xf32>
    %14 = vector.shape_cast %13 : vector<1x96x324xf32> to vector<96x324xf32>
    %c2_14 = arith.constant 2 : index
    %c0_15 = arith.constant 0 : index
    %c0_16 = arith.constant 0 : index
    %15 = vector.load %arg2[%c2_14, %c0_15, %c0_16] : memref<9x96x96xf32, #tpu.memory_space<vmem>>, vector<1x96x96xf32>
    %16 = vector.shape_cast %15 : vector<1x96x96xf32> to vector<96x96xf32>
    %cst_17 = arith.constant dense<0.000000e+00> : vector<96x324xf32>
    %17 = tpu.matmul %16, %14, %cst_17 {dimension_numbers = #tpu.dot_dimension_numbers<[1], [0], [0], [1], [0, 0, 1, 1], [], []>} : vector<96x96xf32>, vector<96x324xf32>, vector<96x324xf32> -> vector<96x324xf32>
    %18 = arith.addf %12, %17 : vector<96x324xf32>
    %c0_18 = arith.constant 0 : index
    %c0_19 = arith.constant 0 : index
    %c18 = arith.constant 18 : index
    %19 = vector.load %arg1[%c0_18, %c0_19, %c18] : memref<1x96x362xf32, #tpu.memory_space<vmem>>, vector<1x96x324xf32>
    %20 = vector.shape_cast %19 : vector<1x96x324xf32> to vector<96x324xf32>
    %c3 = arith.constant 3 : index
    %c0_20 = arith.constant 0 : index
    %c0_21 = arith.constant 0 : index
    %21 = vector.load %arg2[%c3, %c0_20, %c0_21] : memref<9x96x96xf32, #tpu.memory_space<vmem>>, vector<1x96x96xf32>
    %22 = vector.shape_cast %21 : vector<1x96x96xf32> to vector<96x96xf32>
    %cst_22 = arith.constant dense<0.000000e+00> : vector<96x324xf32>
    %23 = tpu.matmul %22, %20, %cst_22 {dimension_numbers = #tpu.dot_dimension_numbers<[1], [0], [0], [1], [0, 0, 1, 1], [], []>} : vector<96x96xf32>, vector<96x324xf32>, vector<96x324xf32> -> vector<96x324xf32>
    %24 = arith.addf %18, %23 : vector<96x324xf32>
    %c0_23 = arith.constant 0 : index
    %c0_24 = arith.constant 0 : index
    %c19 = arith.constant 19 : index
    %25 = vector.load %arg1[%c0_23, %c0_24, %c19] : memref<1x96x362xf32, #tpu.memory_space<vmem>>, vector<1x96x324xf32>
    %26 = vector.shape_cast %25 : vector<1x96x324xf32> to vector<96x324xf32>
    %c4 = arith.constant 4 : index
    %c0_25 = arith.constant 0 : index
    %c0_26 = arith.constant 0 : index
    %27 = vector.load %arg2[%c4, %c0_25, %c0_26] : memref<9x96x96xf32, #tpu.memory_space<vmem>>, vector<1x96x96xf32>
    %28 = vector.shape_cast %27 : vector<1x96x96xf32> to vector<96x96xf32>
    %cst_27 = arith.constant dense<0.000000e+00> : vector<96x324xf32>
    %29 = tpu.matmul %28, %26, %cst_27 {dimension_numbers = #tpu.dot_dimension_numbers<[1], [0], [0], [1], [0, 0, 1, 1], [], []>} : vector<96x96xf32>, vector<96x324xf32>, vector<96x324xf32> -> vector<96x324xf32>
    %30 = arith.addf %24, %29 : vector<96x324xf32>
    %c0_28 = arith.constant 0 : index
    %c0_29 = arith.constant 0 : index
    %c20 = arith.constant 20 : index
    %31 = vector.load %arg1[%c0_28, %c0_29, %c20] : memref<1x96x362xf32, #tpu.memory_space<vmem>>, vector<1x96x324xf32>
    %32 = vector.shape_cast %31 : vector<1x96x324xf32> to vector<96x324xf32>
    %c5 = arith.constant 5 : index
    %c0_30 = arith.constant 0 : index
    %c0_31 = arith.constant 0 : index
    %33 = vector.load %arg2[%c5, %c0_30, %c0_31] : memref<9x96x96xf32, #tpu.memory_space<vmem>>, vector<1x96x96xf32>
    %34 = vector.shape_cast %33 : vector<1x96x96xf32> to vector<96x96xf32>
    %cst_32 = arith.constant dense<0.000000e+00> : vector<96x324xf32>
    %35 = tpu.matmul %34, %32, %cst_32 {dimension_numbers = #tpu.dot_dimension_numbers<[1], [0], [0], [1], [0, 0, 1, 1], [], []>} : vector<96x96xf32>, vector<96x324xf32>, vector<96x324xf32> -> vector<96x324xf32>
    %36 = arith.addf %30, %35 : vector<96x324xf32>
    %c0_33 = arith.constant 0 : index
    %c0_34 = arith.constant 0 : index
    %c36 = arith.constant 36 : index
    %37 = vector.load %arg1[%c0_33, %c0_34, %c36] : memref<1x96x362xf32, #tpu.memory_space<vmem>>, vector<1x96x324xf32>
    %38 = vector.shape_cast %37 : vector<1x96x324xf32> to vector<96x324xf32>
    %c6 = arith.constant 6 : index
    %c0_35 = arith.constant 0 : index
    %c0_36 = arith.constant 0 : index
    %39 = vector.load %arg2[%c6, %c0_35, %c0_36] : memref<9x96x96xf32, #tpu.memory_space<vmem>>, vector<1x96x96xf32>
    %40 = vector.shape_cast %39 : vector<1x96x96xf32> to vector<96x96xf32>
    %cst_37 = arith.constant dense<0.000000e+00> : vector<96x324xf32>
    %41 = tpu.matmul %40, %38, %cst_37 {dimension_numbers = #tpu.dot_dimension_numbers<[1], [0], [0], [1], [0, 0, 1, 1], [], []>} : vector<96x96xf32>, vector<96x324xf32>, vector<96x324xf32> -> vector<96x324xf32>
    %42 = arith.addf %36, %41 : vector<96x324xf32>
    %c0_38 = arith.constant 0 : index
    %c0_39 = arith.constant 0 : index
    %c37 = arith.constant 37 : index
    %43 = vector.load %arg1[%c0_38, %c0_39, %c37] : memref<1x96x362xf32, #tpu.memory_space<vmem>>, vector<1x96x324xf32>
    %44 = vector.shape_cast %43 : vector<1x96x324xf32> to vector<96x324xf32>
    %c7 = arith.constant 7 : index
    %c0_40 = arith.constant 0 : index
    %c0_41 = arith.constant 0 : index
    %45 = vector.load %arg2[%c7, %c0_40, %c0_41] : memref<9x96x96xf32, #tpu.memory_space<vmem>>, vector<1x96x96xf32>
    %46 = vector.shape_cast %45 : vector<1x96x96xf32> to vector<96x96xf32>
    %cst_42 = arith.constant dense<0.000000e+00> : vector<96x324xf32>
    %47 = tpu.matmul %46, %44, %cst_42 {dimension_numbers = #tpu.dot_dimension_numbers<[1], [0], [0], [1], [0, 0, 1, 1], [], []>} : vector<96x96xf32>, vector<96x324xf32>, vector<96x324xf32> -> vector<96x324xf32>
    %48 = arith.addf %42, %47 : vector<96x324xf32>
    %c0_43 = arith.constant 0 : index
    %c0_44 = arith.constant 0 : index
    %c38 = arith.constant 38 : index
    %49 = vector.load %arg1[%c0_43, %c0_44, %c38] : memref<1x96x362xf32, #tpu.memory_space<vmem>>, vector<1x96x324xf32>
    %50 = vector.shape_cast %49 : vector<1x96x324xf32> to vector<96x324xf32>
    %c8 = arith.constant 8 : index
    %c0_45 = arith.constant 0 : index
    %c0_46 = arith.constant 0 : index
    %51 = vector.load %arg2[%c8, %c0_45, %c0_46] : memref<9x96x96xf32, #tpu.memory_space<vmem>>, vector<1x96x96xf32>
    %52 = vector.shape_cast %51 : vector<1x96x96xf32> to vector<96x96xf32>
    %cst_47 = arith.constant dense<0.000000e+00> : vector<96x324xf32>
    %53 = tpu.matmul %52, %50, %cst_47 {dimension_numbers = #tpu.dot_dimension_numbers<[1], [0], [0], [1], [0, 0, 1, 1], [], []>} : vector<96x96xf32>, vector<96x324xf32>, vector<96x324xf32> -> vector<96x324xf32>
    %54 = arith.addf %48, %53 : vector<96x324xf32>
    %c0_48 = arith.constant 0 : index
    %c0_49 = arith.constant 0 : index
    %55 = vector.load %arg3[%c0_48, %c0_49] : memref<96x1xf32, #tpu.memory_space<vmem>>, vector<96x1xf32>
    %56 = vector.broadcast %55 : vector<96x1xf32> to vector<96x324xf32>
    %57 = arith.addf %54, %56 : vector<96x324xf32>
    %cst_50 = arith.constant 0.000000e+00 : f32
    %58 = vector.broadcast %cst_50 : f32 to vector<96x324xf32>
    %59 = arith.maximumf %57, %58 : vector<96x324xf32>
    %c0_51 = arith.constant 0 : index
    %c0_52 = arith.constant 0 : index
    %60 = vector.load %arg4[%c0_51, %c0_52] : memref<1x324xf32, #tpu.memory_space<vmem>>, vector<1x324xf32>
    %61 = vector.broadcast %60 : vector<1x324xf32> to vector<96x324xf32>
    %62 = arith.mulf %59, %61 : vector<96x324xf32>
    %c0_53 = arith.constant 0 : index
    %c0_54 = arith.constant 0 : index
    %c0_55 = arith.constant 0 : index
    %63 = vector.load %arg5[%c0_53, %c0_54, %c0_55] : memref<1x96x324xf32, #tpu.memory_space<vmem>>, vector<1x96x324xf32>
    %64 = vector.shape_cast %63 : vector<1x96x324xf32> to vector<96x324xf32>
    %65 = vector.shape_cast %62 : vector<96x324xf32> to vector<1x96x324xf32>
    tpu.vector_store %arg5[%c0_53, %c0_54, %c0_55], %65 {strides = array<i32>} : memref<1x96x324xf32, #tpu.memory_space<vmem>>, vector<1x96x324xf32>,
    return
  }
  func.func @transform_0(%arg0: i32) -> (i32, i32, i32) {
    %c0_i32 = arith.constant 0 : i32
    %c0_i32_0 = arith.constant 0 : i32
    %c0_i32_1 = arith.constant 0 : i32
    return %arg0, %c0_i32, %c0_i32_0 : i32, i32, i32
  }
  func.func @transform_1(%arg0: i32) -> (i32, i32, i32) {
    %c0_i32 = arith.constant 0 : i32
    %c0_i32_0 = arith.constant 0 : i32
    %c0_i32_1 = arith.constant 0 : i32
    %c0_i32_2 = arith.constant 0 : i32
    return %c0_i32, %c0_i32_0, %c0_i32_1 : i32, i32, i32
  }
  func.func @transform_2(%arg0: i32) -> (i32, i32) {
    %c0_i32 = arith.constant 0 : i32
    %c0_i32_0 = arith.constant 0 : i32
    %c0_i32_1 = arith.constant 0 : i32
    return %c0_i32, %c0_i32_0 : i32, i32
  }
  func.func @transform_3(%arg0: i32) -> (i32, i32) {
    %c0_i32 = arith.constant 0 : i32
    %c0_i32_0 = arith.constant 0 : i32
    %c0_i32_1 = arith.constant 0 : i32
    return %c0_i32, %c0_i32_0 : i32, i32
  }
  func.func @transform_4(%arg0: i32) -> (i32, i32, i32) {
    %c0_i32 = arith.constant 0 : i32
    %c0_i32_0 = arith.constant 0 : i32
    %c0_i32_1 = arith.constant 0 : i32
    return %arg0, %c0_i32, %c0_i32_0 : i32, i32, i32
  }
}

module attributes {stable_mosaic.version = 11 : i64} {
  func.func @_conv3x3_relu_pred_kernel(%arg0: i32, %arg1: memref<1x96x362xf32, #tpu.memory_space<vmem>>, %arg2: memref<9x32x96xf32, #tpu.memory_space<vmem>>, %arg3: memref<32x1xf32, #tpu.memory_space<vmem>>, %arg4: memref<32x1xf32, #tpu.memory_space<vmem>>, %arg5: memref<1x1xf32, #tpu.memory_space<smem>>, %arg6: memref<1x32x324xf32, #tpu.memory_space<vmem>>, %arg7: memref<1x1x324xf32, #tpu.memory_space<vmem>>) attributes {dimension_semantics = [#tpu.dimension_semantics<parallel>], iteration_bounds = array<i64: 2>, scalar_prefetch = 0 : i64, scratch_operands = 0 : i64, tpu.core_type = #tpu.core_type<tc>, window_params = [{transform_indices = @transform_0, window_bounds = array<i64: 1, 96, 362>}, {pipeline_mode = #tpu.pipeline_mode<synchronous>, transform_indices = @transform_1, window_bounds = array<i64: 9, 32, 96>}, {pipeline_mode = #tpu.pipeline_mode<synchronous>, transform_indices = @transform_2, window_bounds = array<i64: 32, 1>}, {pipeline_mode = #tpu.pipeline_mode<synchronous>, transform_indices = @transform_3, window_bounds = array<i64: 32, 1>}, {transform_indices = @transform_4, window_bounds = array<i64: 1, 1>}, {transform_indices = @transform_5, window_bounds = array<i64: 1, 32, 324>}, {transform_indices = @transform_6, window_bounds = array<i64: 1, 1, 324>}]} {
    %cst = arith.constant 0.000000e+00 : f32
    %0 = vector.broadcast %cst : f32 to vector<32x324xf32>
    %c0 = arith.constant 0 : index
    %c0_0 = arith.constant 0 : index
    %c0_1 = arith.constant 0 : index
    %1 = vector.load %arg1[%c0, %c0_0, %c0_1] : memref<1x96x362xf32, #tpu.memory_space<vmem>>, vector<1x96x324xf32>
    %2 = vector.shape_cast %1 : vector<1x96x324xf32> to vector<96x324xf32>
    %c0_2 = arith.constant 0 : index
    %c0_3 = arith.constant 0 : index
    %c0_4 = arith.constant 0 : index
    %3 = vector.load %arg2[%c0_2, %c0_3, %c0_4] : memref<9x32x96xf32, #tpu.memory_space<vmem>>, vector<1x32x96xf32>
    %4 = vector.shape_cast %3 : vector<1x32x96xf32> to vector<32x96xf32>
    %cst_5 = arith.constant dense<0.000000e+00> : vector<32x324xf32>
    %5 = tpu.matmul %4, %2, %cst_5 {dimension_numbers = #tpu.dot_dimension_numbers<[1], [0], [0], [1], [0, 0, 1, 1], [], []>} : vector<32x96xf32>, vector<96x324xf32>, vector<32x324xf32> -> vector<32x324xf32>
    %6 = arith.addf %0, %5 : vector<32x324xf32>
    %c0_6 = arith.constant 0 : index
    %c0_7 = arith.constant 0 : index
    %c1 = arith.constant 1 : index
    %7 = vector.load %arg1[%c0_6, %c0_7, %c1] : memref<1x96x362xf32, #tpu.memory_space<vmem>>, vector<1x96x324xf32>
    %8 = vector.shape_cast %7 : vector<1x96x324xf32> to vector<96x324xf32>
    %c1_8 = arith.constant 1 : index
    %c0_9 = arith.constant 0 : index
    %c0_10 = arith.constant 0 : index
    %9 = vector.load %arg2[%c1_8, %c0_9, %c0_10] : memref<9x32x96xf32, #tpu.memory_space<vmem>>, vector<1x32x96xf32>
    %10 = vector.shape_cast %9 : vector<1x32x96xf32> to vector<32x96xf32>
    %cst_11 = arith.constant dense<0.000000e+00> : vector<32x324xf32>
    %11 = tpu.matmul %10, %8, %cst_11 {dimension_numbers = #tpu.dot_dimension_numbers<[1], [0], [0], [1], [0, 0, 1, 1], [], []>} : vector<32x96xf32>, vector<96x324xf32>, vector<32x324xf32> -> vector<32x324xf32>
    %12 = arith.addf %6, %11 : vector<32x324xf32>
    %c0_12 = arith.constant 0 : index
    %c0_13 = arith.constant 0 : index
    %c2 = arith.constant 2 : index
    %13 = vector.load %arg1[%c0_12, %c0_13, %c2] : memref<1x96x362xf32, #tpu.memory_space<vmem>>, vector<1x96x324xf32>
    %14 = vector.shape_cast %13 : vector<1x96x324xf32> to vector<96x324xf32>
    %c2_14 = arith.constant 2 : index
    %c0_15 = arith.constant 0 : index
    %c0_16 = arith.constant 0 : index
    %15 = vector.load %arg2[%c2_14, %c0_15, %c0_16] : memref<9x32x96xf32, #tpu.memory_space<vmem>>, vector<1x32x96xf32>
    %16 = vector.shape_cast %15 : vector<1x32x96xf32> to vector<32x96xf32>
    %cst_17 = arith.constant dense<0.000000e+00> : vector<32x324xf32>
    %17 = tpu.matmul %16, %14, %cst_17 {dimension_numbers = #tpu.dot_dimension_numbers<[1], [0], [0], [1], [0, 0, 1, 1], [], []>} : vector<32x96xf32>, vector<96x324xf32>, vector<32x324xf32> -> vector<32x324xf32>
    %18 = arith.addf %12, %17 : vector<32x324xf32>
    %c0_18 = arith.constant 0 : index
    %c0_19 = arith.constant 0 : index
    %c18 = arith.constant 18 : index
    %19 = vector.load %arg1[%c0_18, %c0_19, %c18] : memref<1x96x362xf32, #tpu.memory_space<vmem>>, vector<1x96x324xf32>
    %20 = vector.shape_cast %19 : vector<1x96x324xf32> to vector<96x324xf32>
    %c3 = arith.constant 3 : index
    %c0_20 = arith.constant 0 : index
    %c0_21 = arith.constant 0 : index
    %21 = vector.load %arg2[%c3, %c0_20, %c0_21] : memref<9x32x96xf32, #tpu.memory_space<vmem>>, vector<1x32x96xf32>
    %22 = vector.shape_cast %21 : vector<1x32x96xf32> to vector<32x96xf32>
    %cst_22 = arith.constant dense<0.000000e+00> : vector<32x324xf32>
    %23 = tpu.matmul %22, %20, %cst_22 {dimension_numbers = #tpu.dot_dimension_numbers<[1], [0], [0], [1], [0, 0, 1, 1], [], []>} : vector<32x96xf32>, vector<96x324xf32>, vector<32x324xf32> -> vector<32x324xf32>
    %24 = arith.addf %18, %23 : vector<32x324xf32>
    %c0_23 = arith.constant 0 : index
    %c0_24 = arith.constant 0 : index
    %c19 = arith.constant 19 : index
    %25 = vector.load %arg1[%c0_23, %c0_24, %c19] : memref<1x96x362xf32, #tpu.memory_space<vmem>>, vector<1x96x324xf32>
    %26 = vector.shape_cast %25 : vector<1x96x324xf32> to vector<96x324xf32>
    %c4 = arith.constant 4 : index
    %c0_25 = arith.constant 0 : index
    %c0_26 = arith.constant 0 : index
    %27 = vector.load %arg2[%c4, %c0_25, %c0_26] : memref<9x32x96xf32, #tpu.memory_space<vmem>>, vector<1x32x96xf32>
    %28 = vector.shape_cast %27 : vector<1x32x96xf32> to vector<32x96xf32>
    %cst_27 = arith.constant dense<0.000000e+00> : vector<32x324xf32>
    %29 = tpu.matmul %28, %26, %cst_27 {dimension_numbers = #tpu.dot_dimension_numbers<[1], [0], [0], [1], [0, 0, 1, 1], [], []>} : vector<32x96xf32>, vector<96x324xf32>, vector<32x324xf32> -> vector<32x324xf32>
    %30 = arith.addf %24, %29 : vector<32x324xf32>
    %c0_28 = arith.constant 0 : index
    %c0_29 = arith.constant 0 : index
    %c20 = arith.constant 20 : index
    %31 = vector.load %arg1[%c0_28, %c0_29, %c20] : memref<1x96x362xf32, #tpu.memory_space<vmem>>, vector<1x96x324xf32>
    %32 = vector.shape_cast %31 : vector<1x96x324xf32> to vector<96x324xf32>
    %c5 = arith.constant 5 : index
    %c0_30 = arith.constant 0 : index
    %c0_31 = arith.constant 0 : index
    %33 = vector.load %arg2[%c5, %c0_30, %c0_31] : memref<9x32x96xf32, #tpu.memory_space<vmem>>, vector<1x32x96xf32>
    %34 = vector.shape_cast %33 : vector<1x32x96xf32> to vector<32x96xf32>
    %cst_32 = arith.constant dense<0.000000e+00> : vector<32x324xf32>
    %35 = tpu.matmul %34, %32, %cst_32 {dimension_numbers = #tpu.dot_dimension_numbers<[1], [0], [0], [1], [0, 0, 1, 1], [], []>} : vector<32x96xf32>, vector<96x324xf32>, vector<32x324xf32> -> vector<32x324xf32>
    %36 = arith.addf %30, %35 : vector<32x324xf32>
    %c0_33 = arith.constant 0 : index
    %c0_34 = arith.constant 0 : index
    %c36 = arith.constant 36 : index
    %37 = vector.load %arg1[%c0_33, %c0_34, %c36] : memref<1x96x362xf32, #tpu.memory_space<vmem>>, vector<1x96x324xf32>
    %38 = vector.shape_cast %37 : vector<1x96x324xf32> to vector<96x324xf32>
    %c6 = arith.constant 6 : index
    %c0_35 = arith.constant 0 : index
    %c0_36 = arith.constant 0 : index
    %39 = vector.load %arg2[%c6, %c0_35, %c0_36] : memref<9x32x96xf32, #tpu.memory_space<vmem>>, vector<1x32x96xf32>
    %40 = vector.shape_cast %39 : vector<1x32x96xf32> to vector<32x96xf32>
    %cst_37 = arith.constant dense<0.000000e+00> : vector<32x324xf32>
    %41 = tpu.matmul %40, %38, %cst_37 {dimension_numbers = #tpu.dot_dimension_numbers<[1], [0], [0], [1], [0, 0, 1, 1], [], []>} : vector<32x96xf32>, vector<96x324xf32>, vector<32x324xf32> -> vector<32x324xf32>
    %42 = arith.addf %36, %41 : vector<32x324xf32>
    %c0_38 = arith.constant 0 : index
    %c0_39 = arith.constant 0 : index
    %c37 = arith.constant 37 : index
    %43 = vector.load %arg1[%c0_38, %c0_39, %c37] : memref<1x96x362xf32, #tpu.memory_space<vmem>>, vector<1x96x324xf32>
    %44 = vector.shape_cast %43 : vector<1x96x324xf32> to vector<96x324xf32>
    %c7 = arith.constant 7 : index
    %c0_40 = arith.constant 0 : index
    %c0_41 = arith.constant 0 : index
    %45 = vector.load %arg2[%c7, %c0_40, %c0_41] : memref<9x32x96xf32, #tpu.memory_space<vmem>>, vector<1x32x96xf32>
    %46 = vector.shape_cast %45 : vector<1x32x96xf32> to vector<32x96xf32>
    %cst_42 = arith.constant dense<0.000000e+00> : vector<32x324xf32>
    %47 = tpu.matmul %46, %44, %cst_42 {dimension_numbers = #tpu.dot_dimension_numbers<[1], [0], [0], [1], [0, 0, 1, 1], [], []>} : vector<32x96xf32>, vector<96x324xf32>, vector<32x324xf32> -> vector<32x324xf32>
    %48 = arith.addf %42, %47 : vector<32x324xf32>
    %c0_43 = arith.constant 0 : index
    %c0_44 = arith.constant 0 : index
    %c38 = arith.constant 38 : index
    %49 = vector.load %arg1[%c0_43, %c0_44, %c38] : memref<1x96x362xf32, #tpu.memory_space<vmem>>, vector<1x96x324xf32>
    %50 = vector.shape_cast %49 : vector<1x96x324xf32> to vector<96x324xf32>
    %c8 = arith.constant 8 : index
    %c0_45 = arith.constant 0 : index
    %c0_46 = arith.constant 0 : index
    %51 = vector.load %arg2[%c8, %c0_45, %c0_46] : memref<9x32x96xf32, #tpu.memory_space<vmem>>, vector<1x32x96xf32>
    %52 = vector.shape_cast %51 : vector<1x32x96xf32> to vector<32x96xf32>
    %cst_47 = arith.constant dense<0.000000e+00> : vector<32x324xf32>
    %53 = tpu.matmul %52, %50, %cst_47 {dimension_numbers = #tpu.dot_dimension_numbers<[1], [0], [0], [1], [0, 0, 1, 1], [], []>} : vector<32x96xf32>, vector<96x324xf32>, vector<32x324xf32> -> vector<32x324xf32>
    %54 = arith.addf %48, %53 : vector<32x324xf32>
    %c0_48 = arith.constant 0 : index
    %c0_49 = arith.constant 0 : index
    %55 = vector.load %arg3[%c0_48, %c0_49] : memref<32x1xf32, #tpu.memory_space<vmem>>, vector<32x1xf32>
    %56 = vector.broadcast %55 : vector<32x1xf32> to vector<32x324xf32>
    %57 = arith.addf %54, %56 : vector<32x324xf32>
    %cst_50 = arith.constant 0.000000e+00 : f32
    %58 = vector.broadcast %cst_50 : f32 to vector<32x324xf32>
    %59 = arith.maximumf %57, %58 : vector<32x324xf32>
    %c0_51 = arith.constant 0 : index
    %c0_52 = arith.constant 0 : index
    %c0_53 = arith.constant 0 : index
    %60 = vector.load %arg6[%c0_51, %c0_52, %c0_53] : memref<1x32x324xf32, #tpu.memory_space<vmem>>, vector<1x32x324xf32>
    %61 = vector.shape_cast %60 : vector<1x32x324xf32> to vector<32x324xf32>
    %62 = vector.shape_cast %59 : vector<32x324xf32> to vector<1x32x324xf32>
    tpu.vector_store %arg6[%c0_51, %c0_52, %c0_53], %62 {strides = array<i32>} : memref<1x32x324xf32, #tpu.memory_space<vmem>>, vector<1x32x324xf32>,
    %c0_54 = arith.constant 0 : index
    %c0_55 = arith.constant 0 : index
    %63 = vector.load %arg4[%c0_54, %c0_55] : memref<32x1xf32, #tpu.memory_space<vmem>>, vector<32x1xf32>
    %64 = vector.broadcast %63 : vector<32x1xf32> to vector<32x324xf32>
    %65 = arith.mulf %59, %64 : vector<32x324xf32>
    %cst_56 = arith.constant dense<0.000000e+00> : vector<324xf32>
    %66 = vector.multi_reduction <add>, %65, %cst_56 [0] : vector<32x324xf32> to vector<324xf32>
    %67 = vector.shape_cast %66 : vector<324xf32> to vector<1x324xf32>
    %c0_57 = arith.constant 0 : index
    %c0_58 = arith.constant 0 : index
    %68 = memref.load %arg5[%c0_57, %c0_58] : memref<1x1xf32, #tpu.memory_space<smem>>
    %69 = vector.broadcast %68 : f32 to vector<1x324xf32>
    %70 = arith.addf %67, %69 : vector<1x324xf32>
    %71 = arith.negf %70 : vector<1x324xf32>
    %72 = math.exp %71 : vector<1x324xf32>
    %cst_59 = arith.constant 1.000000e+00 : f32
    %73 = vector.broadcast %cst_59 : f32 to vector<1x324xf32>
    %74 = arith.addf %73, %72 : vector<1x324xf32>
    %75 = arith.divf %73, %74 : vector<1x324xf32>
    %c0_60 = arith.constant 0 : index
    %c0_61 = arith.constant 0 : index
    %c0_62 = arith.constant 0 : index
    %76 = vector.load %arg7[%c0_60, %c0_61, %c0_62] : memref<1x1x324xf32, #tpu.memory_space<vmem>>, vector<1x1x324xf32>
    %77 = vector.shape_cast %76 : vector<1x1x324xf32> to vector<1x324xf32>
    %78 = vector.shape_cast %75 : vector<1x324xf32> to vector<1x1x324xf32>
    tpu.vector_store %arg7[%c0_60, %c0_61, %c0_62], %78 {strides = array<i32>} : memref<1x1x324xf32, #tpu.memory_space<vmem>>, vector<1x1x324xf32>,
    return
  }
  func.func @transform_0(%arg0: i32) -> (i32, i32, i32) {
    %c0_i32 = arith.constant 0 : i32
    %c0_i32_0 = arith.constant 0 : i32
    %c0_i32_1 = arith.constant 0 : i32
    return %arg0, %c0_i32, %c0_i32_0 : i32, i32, i32
  }
  func.func @transform_1(%arg0: i32) -> (i32, i32, i32) {
    %c0_i32 = arith.constant 0 : i32
    %c0_i32_0 = arith.constant 0 : i32
    %c0_i32_1 = arith.constant 0 : i32
    %c0_i32_2 = arith.constant 0 : i32
    return %c0_i32, %c0_i32_0, %c0_i32_1 : i32, i32, i32
  }
  func.func @transform_2(%arg0: i32) -> (i32, i32) {
    %c0_i32 = arith.constant 0 : i32
    %c0_i32_0 = arith.constant 0 : i32
    %c0_i32_1 = arith.constant 0 : i32
    return %c0_i32, %c0_i32_0 : i32, i32
  }
  func.func @transform_3(%arg0: i32) -> (i32, i32) {
    %c0_i32 = arith.constant 0 : i32
    %c0_i32_0 = arith.constant 0 : i32
    %c0_i32_1 = arith.constant 0 : i32
    return %c0_i32, %c0_i32_0 : i32, i32
  }
  func.func @transform_4(%arg0: i32) -> (i32, i32) {
    %c0_i32 = arith.constant 0 : i32
    %c0_i32_0 = arith.constant 0 : i32
    %c0_i32_1 = arith.constant 0 : i32
    return %c0_i32, %c0_i32_0 : i32, i32
  }
  func.func @transform_5(%arg0: i32) -> (i32, i32, i32) {
    %c0_i32 = arith.constant 0 : i32
    %c0_i32_0 = arith.constant 0 : i32
    %c0_i32_1 = arith.constant 0 : i32
    return %arg0, %c0_i32, %c0_i32_0 : i32, i32, i32
  }
  func.func @transform_6(%arg0: i32) -> (i32, i32, i32) {
    %c0_i32 = arith.constant 0 : i32
    %c0_i32_0 = arith.constant 0 : i32
    %c0_i32_1 = arith.constant 0 : i32
    return %arg0, %c0_i32, %c0_i32_0 : i32, i32, i32
  }
}

</mosaic_0001>

<llo_original>
// kernel: decoder_block_forward.3
$region0: #{decoder_block_forward.3}
  #allocation0 [shape = 'u32[]', space=smem, size = 0x4, offset = 0x4, fixed_abs, tag = 'smem constant byte address 0x4 - core index']
  #allocation1 [shape = 'u32[144,128]{1,0:T(1,128)}', space=vmem, size = 0x12000, scoped, tag = 'internal scratch']
  %s0 = inlined_call_operand.vmem [shape: f32[2,4,324], index: 0, kind: input, shape index: {}]
  %s1 = inlined_call_operand.vmem [shape: f32[2,1,324], index: 1, kind: input, shape index: {}]
  %s2 = inlined_call_operand.vmem [shape: f32[2,32,324], index: 2, kind: input, shape index: {}]
  %s3 = inlined_call_operand.vmem [shape: f32[64,4], index: 3, kind: input, shape index: {}]
  %s4 = inlined_call_operand.vmem [shape: f32[64,1], index: 4, kind: input, shape index: {}]
  %s5 = inlined_call_operand.vmem [shape: f32[2,96,324], index: 5, kind: output, shape index: {}]
  %s6 = sld [smem:[#allocation0]]
  $region53: #{decoder_block_forward.3} parent=0
    _
  %s8 = ssub.s32 1, %s6
  %s9 = scalar_select 0, %s8, %s6
  loop: start=0, step=1, limit=4
  $region2: #{decoder_block_forward.3} parent=0 // loop_pre_header
    _
  $region3: #{decoder_block_forward.3} parent=0 // loop_header
    %s11 = sphi 0, %s15
    %p12 = scmp.ge.s32.totalorder %s11, 4
    %s21 = sphi 0, %s23
    %s24 = sphi 0, %s21
    %s25 = sphi 0, %s24
    %s41 = sphi 0, %s25
    %s47 = sphi 0, %s49
    %s50 = sphi 0, %s47
    %s51 = sphi 0, %s50
    %s67 = sphi 0, %s51
    %s73 = sphi 0, %s75
    %s76 = sphi 0, %s73
    %s77 = sphi 0, %s76
    %s93 = sphi 0, %s77
    %s97 = sphi 0, %s97
    %s99 = sphi 0, %s97
    %s100 = sphi 0, %s99
    %s114 = sphi 0, %s100
    %s118 = sphi 0, %s118
    %s120 = sphi 0, %s118
    %s121 = sphi 0, %s120
    %s135 = sphi 0, %s121
    %s141 = sphi 0, %s143
    %s144 = sphi 0, %s141
    %s145 = sphi 0, %s144
    %s161 = sphi 0, %s145
  $region4: #{decoder_block_forward.3} parent=0 // loop_header_branch
    %14 = sbr.rel (%p12) target = $region8
  $region5: #{decoder_block_forward.3} parent=0 // loop_body
    %s16 = ssub.s32 %s11, 1
    %s17 = ssub.s32 %s11, 2
    %s18 = sadd.s32 %s11, 1
    %s19 = ssub.s32 %s11, %s18
    %p20 = scmp.eq.s32.totalorder %s19, 0
    %s22 = sadd.s32 %s21, 1
    %s23 = scalar_select %p20, %s21, %s22
    %p26 = pneg %p20
    %p27 = scmp.eq.s32.totalorder %s11, 1
    %p28 = por %p26, %p27
    %p29 = scmp.ne.s32.totalorder %s21, %s24
    %p30 = scmp.eq.s32.totalorder %s11, 0
    %p31 = por %p29, %p30
    %p32 = scmp.ne.s32.totalorder %s21, %s24
    %p33 = scmp.eq.s32.totalorder %s16, 1
    %p34 = por %p32, %p33
    %p35 = scmp.ne.s32.totalorder %s24, %s25
    %p36 = scmp.eq.s32.totalorder %s16, 0
    %p37 = por %p35, %p36
    %p38 = scmp.ne.s32.totalorder %s24, %s25
    %p39 = scmp.eq.s32.totalorder %s17, 1
    %p40 = por %p38, %p39
    %p42 = scmp.ne.s32.totalorder %s25, %s41
    %p43 = scmp.eq.s32.totalorder %s17, 0
    %p44 = por %p42, %p43
    %s45 = ssub.s32 %s11, %s18
    %p46 = scmp.eq.s32.totalorder %s45, 0
    %s48 = sadd.s32 %s47, 1
    %s49 = scalar_select %p46, %s47, %s48
    %p52 = pneg %p46
    %p53 = scmp.eq.s32.totalorder %s11, 1
    %p54 = por %p52, %p53
    %p55 = scmp.ne.s32.totalorder %s47, %s50
    %p56 = scmp.eq.s32.totalorder %s11, 0
    %p57 = por %p55, %p56
    %p58 = scmp.ne.s32.totalorder %s47, %s50
    %p59 = scmp.eq.s32.totalorder %s16, 1
    %p60 = por %p58, %p59
    %p61 = scmp.ne.s32.totalorder %s50, %s51
    %p62 = scmp.eq.s32.totalorder %s16, 0
    %p63 = por %p61, %p62
    %p64 = scmp.ne.s32.totalorder %s50, %s51
    %p65 = scmp.eq.s32.totalorder %s17, 1
    %p66 = por %p64, %p65
    %p68 = scmp.ne.s32.totalorder %s51, %s67
    %p69 = scmp.eq.s32.totalorder %s17, 0
    %p70 = por %p68, %p69
    %s71 = ssub.s32 %s11, %s18
    %p72 = scmp.eq.s32.totalorder %s71, 0
    %s74 = sadd.s32 %s73, 1
    %s75 = scalar_select %p72, %s73, %s74
    %p78 = pneg %p72
    %p79 = scmp.eq.s32.totalorder %s11, 1
    %p80 = por %p78, %p79
    %p81 = scmp.ne.s32.totalorder %s73, %s76
    %p82 = scmp.eq.s32.totalorder %s11, 0
    %p83 = por %p81, %p82
    %p84 = scmp.ne.s32.totalorder %s73, %s76
    %p85 = scmp.eq.s32.totalorder %s16, 1
    %p86 = por %p84, %p85
    %p87 = scmp.ne.s32.totalorder %s76, %s77
    %p88 = scmp.eq.s32.totalorder %s16, 0
    %p89 = por %p87, %p88
    %p90 = scmp.ne.s32.totalorder %s76, %s77
    %p91 = scmp.eq.s32.totalorder %s17, 1
    %p92 = por %p90, %p91
    %p94 = scmp.ne.s32.totalorder %s77, %s93
    %p95 = scmp.eq.s32.totalorder %s17, 0
    %p96 = por %p94, %p95
    %s98 = sadd.s32 %s97, 1
    %p101 = scmp.eq.s32.totalorder %s11, 1
    %p102 = scmp.ne.s32.totalorder %s97, %s99
    %p103 = scmp.eq.s32.totalorder %s11, 0
    %p104 = por %p102, %p103
    %p105 = scmp.ne.s32.totalorder %s97, %s99
    %p106 = scmp.eq.s32.totalorder %s16, 1
    %p107 = por %p105, %p106
    %p108 = scmp.ne.s32.totalorder %s99, %s100
    %p109 = scmp.eq.s32.totalorder %s16, 0
    %p110 = por %p108, %p109
    %p111 = scmp.ne.s32.totalorder %s99, %s100
    %p112 = scmp.eq.s32.totalorder %s17, 1
    %p113 = por %p111, %p112
    %p115 = scmp.ne.s32.totalorder %s100, %s114
    %p116 = scmp.eq.s32.totalorder %s17, 0
    %p117 = por %p115, %p116
    %s119 = sadd.s32 %s118, 1
    %p122 = scmp.eq.s32.totalorder %s11, 1
    %p123 = scmp.ne.s32.totalorder %s118, %s120
    %p124 = scmp.eq.s32.totalorder %s11, 0
    %p125 = por %p123, %p124
    %p126 = scmp.ne.s32.totalorder %s118, %s120
    %p127 = scmp.eq.s32.totalorder %s16, 1
    %p128 = por %p126, %p127
    %p129 = scmp.ne.s32.totalorder %s120, %s121
    %p130 = scmp.eq.s32.totalorder %s16, 0
    %p131 = por %p129, %p130
    %p132 = scmp.ne.s32.totalorder %s120, %s121
    %p133 = scmp.eq.s32.totalorder %s17, 1
    %p134 = por %p132, %p133
    %p136 = scmp.ne.s32.totalorder %s121, %s135
    %p137 = scmp.eq.s32.totalorder %s17, 0
    %p138 = por %p136, %p137
    %s139 = ssub.s32 %s11, %s18
    %p140 = scmp.eq.s32.totalorder %s139, 0
    %s142 = sadd.s32 %s141, 1
    %s143 = scalar_select %p140, %s141, %s142
    %p146 = pneg %p140
    %p147 = scmp.eq.s32.totalorder %s11, 1
    %p148 = por %p146, %p147
    %p149 = scmp.ne.s32.totalorder %s141, %s144
    %p150 = scmp.eq.s32.totalorder %s11, 0
    %p151 = por %p149, %p150
    %p152 = scmp.ne.s32.totalorder %s141, %s144
    %p153 = scmp.eq.s32.totalorder %s16, 1
    %p154 = por %p152, %p153
    %p155 = scmp.ne.s32.totalorder %s144, %s145
    %p156 = scmp.eq.s32.totalorder %s16, 0
    %p157 = por %p155, %p156
    %p158 = scmp.ne.s32.totalorder %s144, %s145
    %p159 = scmp.eq.s32.totalorder %s17, 1
    %p160 = por %p158, %p159
    %p162 = scmp.ne.s32.totalorder %s145, %s161
    %p163 = scmp.eq.s32.totalorder %s17, 0
    %p164 = por %p162, %p163
    %p165 = scmp.le.s32.totalorder 1, %s11
    %p166 = scmp.lt.s32.totalorder %s11, 3
    %p167 = pnand %p165, %p166
    %p168 = pneg %p167
    // Predicated region
    $region9: #{decoder_block_forward.3} parent=5 // pred_check
      _
    $region10: #{decoder_block_forward.3} parent=5 // pred_check_branch
      %170 = sbr.rel (%p167) target = $region12
    $region11: #{decoder_block_forward.3} parent=5 // pred_region
      %s171 = ssub.s32 %s11, 1
      // Predicated region
      $region13: #{decoder_block_forward.3} parent=11 // pred_check
        %p172 = pneg %p110
      $region14: #{decoder_block_forward.3} parent=11 // pred_check_branch
        %174 = sbr.rel (%p172) target = $region16
      $region15: #{decoder_block_forward.3} parent=11 // pred_region
        _
      $region16: #{decoder_block_forward.3} parent=11 // pred_fallthru
        _
      // Predicated region
      $region17: #{decoder_block_forward.3} parent=11 // pred_check
        %p175 = pneg %p131
      $region18: #{decoder_block_forward.3} parent=11 // pred_check_branch
        %177 = sbr.rel (%p175) target = $region20
      $region19: #{decoder_block_forward.3} parent=11 // pred_region
        _
      $region20: #{decoder_block_forward.3} parent=11 // pred_fallthru
        _
    $region12: #{decoder_block_forward.3} parent=5 // pred_fallthru
      _
    %p178 = scmp.lt.s32.totalorder %s11, 2
    // Predicated region
    $region21: #{decoder_block_forward.3} parent=5 // pred_check
      %p179 = pneg %p178
    $region22: #{decoder_block_forward.3} parent=5 // pred_check_branch
      %181 = sbr.rel (%p179) target = $region24
    $region23: #{decoder_block_forward.3} parent=5 // pred_region
      // Predicated region
      $region25: #{decoder_block_forward.3} parent=23 // pred_check
        %p182 = pneg %p31
      $region26: #{decoder_block_forward.3} parent=23 // pred_check_branch
        %184 = sbr.rel (%p182) target = $region28
      $region27: #{decoder_block_forward.3} parent=23 // pred_region
        %p185 = scmp.lt.s32.totalorder %s11, 1
        %s186 = scalar_select %p185, %s11, 1
        %s187 = smul.addr %s186, 3
        %s188 = smul.addr %s187, 4
        %s189 = scalar_lea.vmem %s0, %s188
      $region28: #{decoder_block_forward.3} parent=23 // pred_fallthru
        _
      // Predicated region
      $region29: #{decoder_block_forward.3} parent=23 // pred_check
        %p190 = pneg %p57
      $region30: #{decoder_block_forward.3} parent=23 // pred_check_branch
        %192 = sbr.rel (%p190) target = $region32
      $region31: #{decoder_block_forward.3} parent=23 // pred_region
        %p193 = scmp.lt.s32.totalorder %s11, 1
        %s194 = scalar_select %p193, %s11, 1
        %s195 = smul.addr %s194, 3
        %s196 = scalar_lea.vmem %s1, %s195
      $region32: #{decoder_block_forward.3} parent=23 // pred_fallthru
        _
      // Predicated region
      $region33: #{decoder_block_forward.3} parent=23 // pred_check
        %p197 = pneg %p83
      $region34: #{decoder_block_forward.3} parent=23 // pred_check_branch
        %199 = sbr.rel (%p197) target = $region36
      $region35: #{decoder_block_forward.3} parent=23 // pred_region
        %p200 = scmp.lt.s32.totalorder %s11, 1
        %s201 = scalar_select %p200, %s11, 1
        %s202 = smul.addr %s201, 12
        %s203 = smul.addr %s202, 8
        %s204 = scalar_lea.vmem %s2, %s203
      $region36: #{decoder_block_forward.3} parent=23 // pred_fallthru
        _
    $region24: #{decoder_block_forward.3} parent=5 // pred_fallthru
      _
    %p205 = scmp.le.s32.totalorder 1, %s11
    %p206 = scmp.lt.s32.totalorder %s11, 3
    %p207 = pnand %p205, %p206
    %p208 = pneg %p207
    // Predicated region
    $region37: #{decoder_block_forward.3} parent=5 // pred_check
      _
    $region38: #{decoder_block_forward.3} parent=5 // pred_check_branch
      %210 = sbr.rel (%p207) target = $region40
    $region39: #{decoder_block_forward.3} parent=5 // pred_region
      %s211 = ssub.s32 %s11, 1
      %p212 = scmp.lt.s32.totalorder %s16, 1
      %s213 = scalar_select %p212, %s16, 1
      %s214 = smul.addr %s213, 3
      %s215 = smul.addr %s214, 4
      %s216 = scalar_lea.vmem %s0, %s215
      %p217 = pneg %p37
      %p218 = pneg %p34
      %p219 = scmp.lt.s32.totalorder %s16, 1
      %s220 = scalar_select %p219, %s16, 1
      %s221 = smul.addr %s220, 3
      %s222 = scalar_lea.vmem %s1, %s221
      %p223 = pneg %p63
      %p224 = pneg %p60
      %p225 = scmp.lt.s32.totalorder %s16, 1
      %s226 = scalar_select %p225, %s16, 1
      %s227 = smul.addr %s226, 12
      %s228 = smul.addr %s227, 8
      %s229 = scalar_lea.vmem %s2, %s228
      %p230 = pneg %p89
      %p231 = pneg %p86
      %p232 = pneg %p110
      %p233 = pneg %p107
      %p234 = pneg %p131
      %p235 = pneg %p128
      %p236 = pneg %p157
      %p237 = pneg %p154
      %p238 = scmp.lt.s32.totalorder %s16, 1
      %s239 = scalar_select %p238, %s16, 1
      %s240 = smul.addr %s239, 36
      %s241 = smul.addr %s240, 8
      %s242 = scalar_lea.vmem %s5, %s241
      %p243 = scmp.lt.s32.totalorder %s16, 1
      %s244 = scalar_select %p243, %s16, 1
      %s245 = smul.addr %s244, 3
      %s246 = smul.addr %s245, 4
      %s247 = scalar_lea.vmem %s0, %s246
      %p248 = scmp.lt.s32.totalorder %s16, 1
      %s249 = scalar_select %p248, %s16, 1
      %s250 = smul.addr %s249, 3
      %s251 = scalar_lea.vmem %s1, %s250
      %p252 = scmp.lt.s32.totalorder %s16, 1
      %s253 = scalar_select %p252, %s16, 1
      %s254 = smul.addr %s253, 12
      %s255 = smul.addr %s254, 8
      %s256 = scalar_lea.vmem %s2, %s255
      %p257 = scmp.lt.s32.totalorder %s16, 1
      %s258 = scalar_select %p257, %s16, 1
      %s259 = smul.addr %s258, 36
      %s260 = smul.addr %s259, 8
      %s261 = scalar_lea.vmem %s5, %s260
      %v262 = vld [vmem:[%s247] sm:$0xff]
      %v263 = vld [vmem:[%s247 + $0x8] sm:$0xf]
      %v264 = vld [vmem:[%s3] sm:$0xff]
      %v265 = vld [vmem:[%s3 + $0x8] sm:$0xff]
      %v266 = vld [vmem:[%s3 + $0x10] sm:$0xff]
      %v267 = vld [vmem:[%s3 + $0x18] sm:$0xff]
      %v268 = vld [vmem:[%s3 + $0x20] sm:$0xff]
      %v269 = vld [vmem:[%s3 + $0x28] sm:$0xff]
      %v270 = vld [vmem:[%s3 + $0x30] sm:$0xff]
      %v271 = vld [vmem:[%s3 + $0x38] sm:$0xff]
      %273 = vset.pattern.permute.xlu0 0
      %274 = vperm.xlu0 %273, %v264
      %v275 = vpop.permute.xlu0 %274
      %278 = vset.pattern.permute.xlu0 0
      %279 = vperm.xlu0 %278, %v265
      %v280 = vpop.permute.xlu0 %279
      %283 = vset.pattern.permute.xlu0 0
      %284 = vperm.xlu0 %283, %v266
      %v285 = vpop.permute.xlu0 %284
      %288 = vset.pattern.permute.xlu0 0
      %289 = vperm.xlu0 %288, %v267
      %v290 = vpop.permute.xlu0 %289
      %293 = vset.pattern.permute.xlu0 0
      %294 = vperm.xlu0 %293, %v268
      %v295 = vpop.permute.xlu0 %294
      %298 = vset.pattern.permute.xlu0 0
      %299 = vperm.xlu0 %298, %v269
      %v300 = vpop.permute.xlu0 %299
      %303 = vset.pattern.permute.xlu0 0
      %304 = vperm.xlu0 %303, %v270
      %v305 = vpop.permute.xlu0 %304
      %308 = vset.pattern.permute.xlu0 0
      %309 = vperm.xlu0 %308, %v271
      %v310 = vpop.permute.xlu0 %309
      %v314 = vlaneseq
      %v315 = vshrl.u32 %v314, 7
      %v316 = vsub.s32 0, %v315
      %v317 = vrot.slane %v262, %v316
      %v318 = vlaneseq
      %v319 = vshrl.u32 %v318, 7
      %v320 = vsub.s32 4, %v319
      %v321 = vrot.slane %v262, %v320
      %v322 = vlaneseq
      %v323 = vshrl.u32 %v322, 7
      %v324 = vsub.s32 0, %v323
      %v325 = vrot.slane %v263, %v324
      %v329 = vlaneseq
      %v330 = vshrl.u32 %v329, 7
      %v331 = vsub.s32 0, %v330
      %v332 = vrot.slane %v317, %v331
      %v333 = vlaneseq
      %v334 = vshrl.u32 %v333, 7
      %v335 = vsub.s32 0, %v334
      %v336 = vrot.slane %v321, %v335
      %v337 = vlaneseq
      %v338 = vshrl.u32 %v337, 7
      %v339 = vsub.s32 0, %v338
      %v340 = vrot.slane %v325, %v339
      %v341 = vmul.f32 %v275, %v332
      %v342 = vmul.f32 %v275, %v336
      %v343 = vmul.f32 %v275, %v340
      %v344 = vmul.f32 %v280, %v332
      %v345 = vmul.f32 %v280, %v336
      %v346 = vmul.f32 %v280, %v340
      %v347 = vmul.f32 %v285, %v332
      %v348 = vmul.f32 %v285, %v336
      %v349 = vmul.f32 %v285, %v340
      %v350 = vmul.f32 %v290, %v332
      %v351 = vmul.f32 %v290, %v336
      %v352 = vmul.f32 %v290, %v340
      %v353 = vmul.f32 %v295, %v332
      %v354 = vmul.f32 %v295, %v336
      %v355 = vmul.f32 %v295, %v340
      %v356 = vmul.f32 %v300, %v332
      %v357 = vmul.f32 %v300, %v336
      %v358 = vmul.f32 %v300, %v340
      %v359 = vmul.f32 %v305, %v332
      %v360 = vmul.f32 %v305, %v336
      %v361 = vmul.f32 %v305, %v340
      %v362 = vmul.f32 %v310, %v332
      %v363 = vmul.f32 %v310, %v336
      %v364 = vmul.f32 %v310, %v340
      %v365 = vadd.f32 %v341, 0.0
      %v366 = vadd.f32 %v342, 0.0
      %v367 = vadd.f32 %v343, 0.0
      %v368 = vadd.f32 %v344, 0.0
      %v369 = vadd.f32 %v345, 0.0
      %v370 = vadd.f32 %v346, 0.0
      %v371 = vadd.f32 %v347, 0.0
      %v372 = vadd.f32 %v348, 0.0
      %v373 = vadd.f32 %v349, 0.0
      %v374 = vadd.f32 %v350, 0.0
      %v375 = vadd.f32 %v351, 0.0
      %v376 = vadd.f32 %v352, 0.0
      %v377 = vadd.f32 %v353, 0.0
      %v378 = vadd.f32 %v354, 0.0
      %v379 = vadd.f32 %v355, 0.0
      %v380 = vadd.f32 %v356, 0.0
      %v381 = vadd.f32 %v357, 0.0
      %v382 = vadd.f32 %v358, 0.0
      %v383 = vadd.f32 %v359, 0.0
      %v384 = vadd.f32 %v360, 0.0
      %v385 = vadd.f32 %v361, 0.0
      %v386 = vadd.f32 %v362, 0.0
      %v387 = vadd.f32 %v363, 0.0
      %v388 = vadd.f32 %v364, 0.0
      %389 = vset.pattern.permute.xlu0 1
      %390 = vperm.xlu0 %389, %v264
      %v391 = vpop.permute.xlu0 %390
      %393 = vset.pattern.permute.xlu0 1
      %394 = vperm.xlu0 %393, %v265
      %v395 = vpop.permute.xlu0 %394
      %397 = vset.pattern.permute.xlu0 1
      %398 = vperm.xlu0 %397, %v266
      %v399 = vpop.permute.xlu0 %398
      %401 = vset.pattern.permute.xlu0 1
      %402 = vperm.xlu0 %401, %v267
      %v403 = vpop.permute.xlu0 %402
      %405 = vset.pattern.permute.xlu0 1
      %406 = vperm.xlu0 %405, %v268
      %v407 = vpop.permute.xlu0 %406
      %409 = vset.pattern.permute.xlu0 1
      %410 = vperm.xlu0 %409, %v269
      %v411 = vpop.permute.xlu0 %410
      %413 = vset.pattern.permute.xlu0 1
      %414 = vperm.xlu0 %413, %v270
      %v415 = vpop.permute.xlu0 %414
      %417 = vset.pattern.permute.xlu0 1
      %418 = vperm.xlu0 %417, %v271
      %v419 = vpop.permute.xlu0 %418
      %v421 = vlaneseq
      %v422 = vshrl.u32 %v421, 7
      %v423 = vsub.s32 1, %v422
      %v424 = vrot.slane %v262, %v423
      %v425 = vlaneseq
      %v426 = vshrl.u32 %v425, 7
      %v427 = vsub.s32 5, %v426
      %v428 = vrot.slane %v262, %v427
      %v429 = vlaneseq
      %v430 = vshrl.u32 %v429, 7
      %v431 = vsub.s32 1, %v430
      %v432 = vrot.slane %v263, %v431
      %v436 = vlaneseq
      %v437 = vshrl.u32 %v436, 7
      %v438 = vsub.s32 1, %v437
      %v439 = vrot.slane %v424, %v438
      %v440 = vlaneseq
      %v441 = vshrl.u32 %v440, 7
      %v442 = vsub.s32 1, %v441
      %v443 = vrot.slane %v428, %v442
      %v444 = vlaneseq
      %v445 = vshrl.u32 %v444, 7
      %v446 = vsub.s32 1, %v445
      %v447 = vrot.slane %v432, %v446
      %v448 = vmul.f32 %v391, %v439
      %v449 = vmul.f32 %v391, %v443
      %v450 = vmul.f32 %v391, %v447
      %v451 = vmul.f32 %v395, %v439
      %v452 = vmul.f32 %v395, %v443
      %v453 = vmul.f32 %v395, %v447
      %v454 = vmul.f32 %v399, %v439
      %v455 = vmul.f32 %v399, %v443
      %v456 = vmul.f32 %v399, %v447
      %v457 = vmul.f32 %v403, %v439
      %v458 = vmul.f32 %v403, %v443
      %v459 = vmul.f32 %v403, %v447
      %v460 = vmul.f32 %v407, %v439
      %v461 = vmul.f32 %v407, %v443
      %v462 = vmul.f32 %v407, %v447
      %v463 = vmul.f32 %v411, %v439
      %v464 = vmul.f32 %v411, %v443
      %v465 = vmul.f32 %v411, %v447
      %v466 = vmul.f32 %v415, %v439
      %v467 = vmul.f32 %v415, %v443
      %v468 = vmul.f32 %v415, %v447
      %v469 = vmul.f32 %v419, %v439
      %v470 = vmul.f32 %v419, %v443
      %v471 = vmul.f32 %v419, %v447
      %v472 = vadd.f32 %v365, %v448
      %v473 = vadd.f32 %v366, %v449
      %v474 = vadd.f32 %v367, %v450
      %v475 = vadd.f32 %v368, %v451
      %v476 = vadd.f32 %v369, %v452
      %v477 = vadd.f32 %v370, %v453
      %v478 = vadd.f32 %v371, %v454
      %v479 = vadd.f32 %v372, %v455
      %v480 = vadd.f32 %v373, %v456
      %v481 = vadd.f32 %v374, %v457
      %v482 = vadd.f32 %v375, %v458
      %v483 = vadd.f32 %v376, %v459
      %v484 = vadd.f32 %v377, %v460
      %v485 = vadd.f32 %v378, %v461
      %v486 = vadd.f32 %v379, %v462
      %v487 = vadd.f32 %v380, %v463
      %v488 = vadd.f32 %v381, %v464
      %v489 = vadd.f32 %v382, %v465
      %v490 = vadd.f32 %v383, %v466
      %v491 = vadd.f32 %v384, %v467
      %v492 = vadd.f32 %v385, %v468
      %v493 = vadd.f32 %v386, %v469
      %v494 = vadd.f32 %v387, %v470
      %v495 = vadd.f32 %v388, %v471
      %496 = vset.pattern.permute.xlu0 2
      %497 = vperm.xlu0 %496, %v264
      %v498 = vpop.permute.xlu0 %497
      %500 = vset.pattern.permute.xlu0 2
      %501 = vperm.xlu0 %500, %v265
      %v502 = vpop.permute.xlu0 %501
      %504 = vset.pattern.permute.xlu0 2
      %505 = vperm.xlu0 %504, %v266
      %v506 = vpop.permute.xlu0 %505
      %508 = vset.pattern.permute.xlu0 2
      %509 = vperm.xlu0 %508, %v267
      %v510 = vpop.permute.xlu0 %509
      %512 = vset.pattern.permute.xlu0 2
      %513 = vperm.xlu0 %512, %v268
      %v514 = vpop.permute.xlu0 %513
      %516 = vset.pattern.permute.xlu0 2
      %517 = vperm.xlu0 %516, %v269
      %v518 = vpop.permute.xlu0 %517
      %520 = vset.pattern.permute.xlu0 2
      %521 = vperm.xlu0 %520, %v270
      %v522 = vpop.permute.xlu0 %521
      %524 = vset.pattern.permute.xlu0 2
      %525 = vperm.xlu0 %524, %v271
      %v526 = vpop.permute.xlu0 %525
      %v528 = vlaneseq
      %v529 = vshrl.u32 %v528, 7
      %v530 = vsub.s32 2, %v529
      %v531 = vrot.slane %v262, %v530
      %v532 = vlaneseq
      %v533 = vshrl.u32 %v532, 7
      %v534 = vsub.s32 6, %v533
      %v535 = vrot.slane %v262, %v534
      %v536 = vlaneseq
      %v537 = vshrl.u32 %v536, 7
      %v538 = vsub.s32 2, %v537
      %v539 = vrot.slane %v263, %v538
      %v543 = vlaneseq
      %v544 = vshrl.u32 %v543, 7
      %v545 = vsub.s32 2, %v544
      %v546 = vrot.slane %v531, %v545
      %v547 = vlaneseq
      %v548 = vshrl.u32 %v547, 7
      %v549 = vsub.s32 2, %v548
      %v550 = vrot.slane %v535, %v549
      %v551 = vlaneseq
      %v552 = vshrl.u32 %v551, 7
      %v553 = vsub.s32 2, %v552
      %v554 = vrot.slane %v539, %v553
      %v555 = vmul.f32 %v498, %v546
      %v556 = vmul.f32 %v498, %v550
      %v557 = vmul.f32 %v498, %v554
      %v558 = vmul.f32 %v502, %v546
      %v559 = vmul.f32 %v502, %v550
      %v560 = vmul.f32 %v502, %v554
      %v561 = vmul.f32 %v506, %v546
      %v562 = vmul.f32 %v506, %v550
      %v563 = vmul.f32 %v506, %v554
      %v564 = vmul.f32 %v510, %v546
      %v565 = vmul.f32 %v510, %v550
      %v566 = vmul.f32 %v510, %v554
      %v567 = vmul.f32 %v514, %v546
      %v568 = vmul.f32 %v514, %v550
      %v569 = vmul.f32 %v514, %v554
      %v570 = vmul.f32 %v518, %v546
      %v571 = vmul.f32 %v518, %v550
      %v572 = vmul.f32 %v518, %v554
      %v573 = vmul.f32 %v522, %v546
      %v574 = vmul.f32 %v522, %v550
      %v575 = vmul.f32 %v522, %v554
      %v576 = vmul.f32 %v526, %v546
      %v577 = vmul.f32 %v526, %v550
      %v578 = vmul.f32 %v526, %v554
      %v579 = vadd.f32 %v472, %v555
      %v580 = vadd.f32 %v473, %v556
      %v581 = vadd.f32 %v474, %v557
      %v582 = vadd.f32 %v475, %v558
      %v583 = vadd.f32 %v476, %v559
      %v584 = vadd.f32 %v477, %v560
      %v585 = vadd.f32 %v478, %v561
      %v586 = vadd.f32 %v479, %v562
      %v587 = vadd.f32 %v480, %v563
      %v588 = vadd.f32 %v481, %v564
      %v589 = vadd.f32 %v482, %v565
      %v590 = vadd.f32 %v483, %v566
      %v591 = vadd.f32 %v484, %v567
      %v592 = vadd.f32 %v485, %v568
      %v593 = vadd.f32 %v486, %v569
      %v594 = vadd.f32 %v487, %v570
      %v595 = vadd.f32 %v488, %v571
      %v596 = vadd.f32 %v489, %v572
      %v597 = vadd.f32 %v490, %v573
      %v598 = vadd.f32 %v491, %v574
      %v599 = vadd.f32 %v492, %v575
      %v600 = vadd.f32 %v493, %v576
      %v601 = vadd.f32 %v494, %v577
      %v602 = vadd.f32 %v495, %v578
      %603 = vset.pattern.permute.xlu0 3
      %604 = vperm.xlu0 %603, %v264
      %v605 = vpop.permute.xlu0 %604
      %607 = vset.pattern.permute.xlu0 3
      %608 = vperm.xlu0 %607, %v265
      %v609 = vpop.permute.xlu0 %608
      %611 = vset.pattern.permute.xlu0 3
      %612 = vperm.xlu0 %611, %v266
      %v613 = vpop.permute.xlu0 %612
      %615 = vset.pattern.permute.xlu0 3
      %616 = vperm.xlu0 %615, %v267
      %v617 = vpop.permute.xlu0 %616
      %619 = vset.pattern.permute.xlu0 3
      %620 = vperm.xlu0 %619, %v268
      %v621 = vpop.permute.xlu0 %620
      %623 = vset.pattern.permute.xlu0 3
      %624 = vperm.xlu0 %623, %v269
      %v625 = vpop.permute.xlu0 %624
      %627 = vset.pattern.permute.xlu0 3
      %628 = vperm.xlu0 %627, %v270
      %v629 = vpop.permute.xlu0 %628
      %631 = vset.pattern.permute.xlu0 3
      %632 = vperm.xlu0 %631, %v271
      %v633 = vpop.permute.xlu0 %632
      %v635 = vlaneseq
      %v636 = vshrl.u32 %v635, 7
      %v637 = vsub.s32 3, %v636
      %v638 = vrot.slane %v262, %v637
      %v639 = vlaneseq
      %v640 = vshrl.u32 %v639, 7
      %v641 = vsub.s32 7, %v640
      %v642 = vrot.slane %v262, %v641
      %v643 = vlaneseq
      %v644 = vshrl.u32 %v643, 7
      %v645 = vsub.s32 3, %v644
      %v646 = vrot.slane %v263, %v645
      %v650 = vlaneseq
      %v651 = vshrl.u32 %v650, 7
      %v652 = vsub.s32 3, %v651
      %v653 = vrot.slane %v638, %v652
      %v654 = vlaneseq
      %v655 = vshrl.u32 %v654, 7
      %v656 = vsub.s32 3, %v655
      %v657 = vrot.slane %v642, %v656
      %v658 = vlaneseq
      %v659 = vshrl.u32 %v658, 7
      %v660 = vsub.s32 3, %v659
      %v661 = vrot.slane %v646, %v660
      %v662 = vmul.f32 %v605, %v653
      %v663 = vmul.f32 %v605, %v657
      %v664 = vmul.f32 %v605, %v661
      %v665 = vmul.f32 %v609, %v653
      %v666 = vmul.f32 %v609, %v657
      %v667 = vmul.f32 %v609, %v661
      %v668 = vmul.f32 %v613, %v653
      %v669 = vmul.f32 %v613, %v657
      %v670 = vmul.f32 %v613, %v661
      %v671 = vmul.f32 %v617, %v653
      %v672 = vmul.f32 %v617, %v657
      %v673 = vmul.f32 %v617, %v661
      %v674 = vmul.f32 %v621, %v653
      %v675 = vmul.f32 %v621, %v657
      %v676 = vmul.f32 %v621, %v661
      %v677 = vmul.f32 %v625, %v653
      %v678 = vmul.f32 %v625, %v657
      %v679 = vmul.f32 %v625, %v661
      %v680 = vmul.f32 %v629, %v653
      %v681 = vmul.f32 %v629, %v657
      %v682 = vmul.f32 %v629, %v661
      %v683 = vmul.f32 %v633, %v653
      %v684 = vmul.f32 %v633, %v657
      %v685 = vmul.f32 %v633, %v661
      %v686 = vadd.f32 %v579, %v662
      %v687 = vadd.f32 %v580, %v663
      %v688 = vadd.f32 %v581, %v664
      %v689 = vadd.f32 %v582, %v665
      %v690 = vadd.f32 %v583, %v666
      %v691 = vadd.f32 %v584, %v667
      %v692 = vadd.f32 %v585, %v668
      %v693 = vadd.f32 %v586, %v669
      %v694 = vadd.f32 %v587, %v670
      %v695 = vadd.f32 %v588, %v671
      %v696 = vadd.f32 %v589, %v672
      %v697 = vadd.f32 %v590, %v673
      %v698 = vadd.f32 %v591, %v674
      %v699 = vadd.f32 %v592, %v675
      %v700 = vadd.f32 %v593, %v676
      %v701 = vadd.f32 %v594, %v677
      %v702 = vadd.f32 %v595, %v678
      %v703 = vadd.f32 %v596, %v679
      %v704 = vadd.f32 %v597, %v680
      %v705 = vadd.f32 %v598, %v681
      %v706 = vadd.f32 %v599, %v682
      %v707 = vadd.f32 %v600, %v683
      %v708 = vadd.f32 %v601, %v684
      %v709 = vadd.f32 %v602, %v685
      %v710 = vld [vmem:[%s4] sm:$0xff]
      %v711 = vld [vmem:[%s4 + $0x8] sm:$0xff]
      %v712 = vld [vmem:[%s4 + $0x10] sm:$0xff]
      %v713 = vld [vmem:[%s4 + $0x18] sm:$0xff]
      %v714 = vld [vmem:[%s4 + $0x20] sm:$0xff]
      %v715 = vld [vmem:[%s4 + $0x28] sm:$0xff]
      %v716 = vld [vmem:[%s4 + $0x30] sm:$0xff]
      %v717 = vld [vmem:[%s4 + $0x38] sm:$0xff]
      %719 = vset.pattern.permute.xlu0 0
      %720 = vperm.xlu0 %719, %v710
      %v721 = vpop.permute.xlu0 %720
      %724 = vset.pattern.permute.xlu0 0
      %725 = vperm.xlu0 %724, %v711
      %v726 = vpop.permute.xlu0 %725
      %729 = vset.pattern.permute.xlu0 0
      %730 = vperm.xlu0 %729, %v712
      %v731 = vpop.permute.xlu0 %730
      %734 = vset.pattern.permute.xlu0 0
      %735 = vperm.xlu0 %734, %v713
      %v736 = vpop.permute.xlu0 %735
      %739 = vset.pattern.permute.xlu0 0
      %740 = vperm.xlu0 %739, %v714
      %v741 = vpop.permute.xlu0 %740
      %744 = vset.pattern.permute.xlu0 0
      %745 = vperm.xlu0 %744, %v715
      %v746 = vpop.permute.xlu0 %745
      %749 = vset.pattern.permute.xlu0 0
      %750 = vperm.xlu0 %749, %v716
      %v751 = vpop.permute.xlu0 %750
      %754 = vset.pattern.permute.xlu0 0
      %755 = vperm.xlu0 %754, %v717
      %v756 = vpop.permute.xlu0 %755
      %v758 = vadd.f32 %v686, %v721
      %v759 = vadd.f32 %v687, %v721
      %v760 = vadd.f32 %v688, %v721
      %v761 = vadd.f32 %v689, %v726
      %v762 = vadd.f32 %v690, %v726
      %v763 = vadd.f32 %v691, %v726
      %v764 = vadd.f32 %v692, %v731
      %v765 = vadd.f32 %v693, %v731
      %v766 = vadd.f32 %v694, %v731
      %v767 = vadd.f32 %v695, %v736
      %v768 = vadd.f32 %v696, %v736
      %v769 = vadd.f32 %v697, %v736
      %v770 = vadd.f32 %v698, %v741
      %v771 = vadd.f32 %v699, %v741
      %v772 = vadd.f32 %v700, %v741
      %v773 = vadd.f32 %v701, %v746
      %v774 = vadd.f32 %v702, %v746
      %v775 = vadd.f32 %v703, %v746
      %v776 = vadd.f32 %v704, %v751
      %v777 = vadd.f32 %v705, %v751
      %v778 = vadd.f32 %v706, %v751
      %v779 = vadd.f32 %v707, %v756
      %v780 = vadd.f32 %v708, %v756
      %v781 = vadd.f32 %v709, %v756
      %v782 = vld [vmem:[%s251] sm:$0x7]
      %v784 = vlaneseq
      %v785 = vshrl.u32 %v784, 7
      %v786 = vsub.s32 0, %v785
      %v787 = vrot.slane %v782, %v786
      %v788 = vlaneseq
      %v789 = vshrl.u32 %v788, 7
      %v790 = vsub.s32 1, %v789
      %v791 = vrot.slane %v782, %v790
      %v792 = vlaneseq
      %v793 = vshrl.u32 %v792, 7
      %v794 = vsub.s32 2, %v793
      %v795 = vrot.slane %v782, %v794
      %v799 = vmul.f32 %v758, %v787
      %v800 = vmul.f32 %v759, %v791
      %v801 = vmul.f32 %v760, %v795
      %v802 = vmul.f32 %v761, %v787
      %v803 = vmul.f32 %v762, %v791
      %v804 = vmul.f32 %v763, %v795
      %v805 = vmul.f32 %v764, %v787
      %v806 = vmul.f32 %v765, %v791
      %v807 = vmul.f32 %v766, %v795
      %v808 = vmul.f32 %v767, %v787
      %v809 = vmul.f32 %v768, %v791
      %v810 = vmul.f32 %v769, %v795
      %v811 = vmul.f32 %v770, %v787
      %v812 = vmul.f32 %v771, %v791
      %v813 = vmul.f32 %v772, %v795
      %v814 = vmul.f32 %v773, %v787
      %v815 = vmul.f32 %v774, %v791
      %v816 = vmul.f32 %v775, %v795
      %v817 = vmul.f32 %v776, %v787
      %v818 = vmul.f32 %v777, %v791
      %v819 = vmul.f32 %v778, %v795
      %v820 = vmul.f32 %v779, %v787
      %v821 = vmul.f32 %v780, %v791
      %v822 = vmul.f32 %v781, %v795
      %823 = vst [vmem:[%s261] sm:$0xff] %v799
      %824 = vst [vmem:[%s261 + $0x8] sm:$0xff] %v800
      %vm825 = vcmask 556032
      %826 = vst.msk [vmem:[%s261 + $0x10] sm:$0xff] %vm825, %v801
      %827 = vst [vmem:[%s261 + $0x18] sm:$0xff] %v802
      %828 = vst [vmem:[%s261 + $0x20] sm:$0xff] %v803
      %829 = vst.msk [vmem:[%s261 + $0x28] sm:$0xff] %vm825, %v804
      %830 = vst [vmem:[%s261 + $0x30] sm:$0xff] %v805
      %831 = vst [vmem:[%s261 + $0x38] sm:$0xff] %v806
      %832 = vst.msk [vmem:[%s261 + $0x40] sm:$0xff] %vm825, %v807
      %833 = vst [vmem:[%s261 + $0x48] sm:$0xff] %v808
      %834 = vst [vmem:[%s261 + $0x50] sm:$0xff] %v809
      %835 = vst.msk [vmem:[%s261 + $0x58] sm:$0xff] %vm825, %v810
      %836 = vst [vmem:[%s261 + $0x60] sm:$0xff] %v811
      %837 = vst [vmem:[%s261 + $0x68] sm:$0xff] %v812
      %838 = vst.msk [vmem:[%s261 + $0x70] sm:$0xff] %vm825, %v813
      %839 = vst [vmem:[%s261 + $0x78] sm:$0xff] %v814
      %840 = vst [vmem:[%s261 + $0x80] sm:$0xff] %v815
      %841 = vst.msk [vmem:[%s261 + $0x88] sm:$0xff] %vm825, %v816
      %842 = vst [vmem:[%s261 + $0x90] sm:$0xff] %v817
      %843 = vst [vmem:[%s261 + $0x98] sm:$0xff] %v818
      %844 = vst.msk [vmem:[%s261 + $0xa0] sm:$0xff] %vm825, %v819
      %845 = vst [vmem:[%s261 + $0xa8] sm:$0xff] %v820
      %846 = vst [vmem:[%s261 + $0xb0] sm:$0xff] %v821
      %847 = vst.msk [vmem:[%s261 + $0xb8] sm:$0xff] %vm825, %v822
      %v848 = vld [vmem:[%s256] sm:$0xff]
      %v849 = vld [vmem:[%s256 + $0x8] sm:$0xff]
      %v850 = vld [vmem:[%s256 + $0x10] sm:$0xff]
      %v851 = vld [vmem:[%s256 + $0x18] sm:$0xff]
      %v852 = vld [vmem:[%s256 + $0x20] sm:$0xff]
      %v853 = vld [vmem:[%s256 + $0x28] sm:$0xff]
      %v854 = vld [vmem:[%s256 + $0x30] sm:$0xff]
      %v855 = vld [vmem:[%s256 + $0x38] sm:$0xff]
      %v856 = vld [vmem:[%s256 + $0x40] sm:$0xff]
      %v857 = vld [vmem:[%s256 + $0x48] sm:$0xff]
      %v858 = vld [vmem:[%s256 + $0x50] sm:$0xff]
      %v859 = vld [vmem:[%s256 + $0x58] sm:$0xff]
      %860 = vst [vmem:[%s261 + $0xc0] sm:$0xff] %v848
      %861 = vst [vmem:[%s261 + $0xc8] sm:$0xff] %v849
      %862 = vst.msk [vmem:[%s261 + $0xd0] sm:$0xff] %vm825, %v850
      %863 = vst [vmem:[%s261 + $0xd8] sm:$0xff] %v851
      %864 = vst [vmem:[%s261 + $0xe0] sm:$0xff] %v852
      %865 = vst.msk [vmem:[%s261 + $0xe8] sm:$0xff] %vm825, %v853
      %866 = vst [vmem:[%s261 + $0xf0] sm:$0xff] %v854
      %867 = vst [vmem:[%s261 + $0xf8] sm:$0xff] %v855
      %868 = vst.msk [vmem:[%s261 + $0x100] sm:$0xff] %vm825, %v856
      %869 = vst [vmem:[%s261 + $0x108] sm:$0xff] %v857
      %870 = vst [vmem:[%s261 + $0x110] sm:$0xff] %v858
      %871 = vst.msk [vmem:[%s261 + $0x118] sm:$0xff] %vm825, %v859
      %p872 = scmp.lt.s32.totalorder %s16, 1
      %s873 = scalar_select %p872, %s16, 1
      %s874 = smul.addr %s873, 36
      %s875 = smul.addr %s874, 8
      %s876 = scalar_lea.vmem %s5, %s875
      // Predicated region
      $region41: #{decoder_block_forward.3} parent=39 // pred_check
        %p877 = pneg %p154
      $region42: #{decoder_block_forward.3} parent=39 // pred_check_branch
        %879 = sbr.rel (%p877) target = $region44
      $region43: #{decoder_block_forward.3} parent=39 // pred_region
        _
      $region44: #{decoder_block_forward.3} parent=39 // pred_fallthru
        _
    $region40: #{decoder_block_forward.3} parent=5 // pred_fallthru
      _
    %p880 = scmp.le.s32.totalorder 2, %s11
    // Predicated region
    $region45: #{decoder_block_forward.3} parent=5 // pred_check
      %p881 = pneg %p880
    $region46: #{decoder_block_forward.3} parent=5 // pred_check_branch
      %883 = sbr.rel (%p881) target = $region48
    $region47: #{decoder_block_forward.3} parent=5 // pred_region
      %s884 = ssub.s32 %s11, 2
      // Predicated region
      $region49: #{decoder_block_forward.3} parent=47 // pred_check
        %p885 = pneg %p160
      $region50: #{decoder_block_forward.3} parent=47 // pred_check_branch
        %887 = sbr.rel (%p885) target = $region52
      $region51: #{decoder_block_forward.3} parent=47 // pred_region
        %p888 = scmp.lt.s32.totalorder %s17, 1
        %s889 = scalar_select %p888, %s17, 1
        %s890 = smul.addr %s889, 36
        %s891 = smul.addr %s890, 8
        %s892 = scalar_lea.vmem %s5, %s891
      $region52: #{decoder_block_forward.3} parent=47 // pred_fallthru
        _
    $region48: #{decoder_block_forward.3} parent=5 // pred_fallthru
      _
  $region6: #{decoder_block_forward.3} parent=0 // loop_footer
    %s15 = sadd.s32 1, %s11
  $region7: #{decoder_block_forward.3} parent=0 // loop_footer_branch
    %10 = sbr.rel target = $region3
  $region8: #{decoder_block_forward.3} parent=0 // loop_exit
    _

// kernel: decoder_block_forward.5
$region0: #{decoder_block_forward.5}
  #allocation0 [shape = 'u32[]', space=smem, size = 0x4, offset = 0x4, fixed_abs, tag = 'smem constant byte address 0x4 - core index']
  #allocation1 [shape = 'u32[144,128]{1,0:T(1,128)}', space=vmem, size = 0x12000, scoped, tag = 'internal scratch']
  #allocation2 [shape = 'f32[1,1]{1,0:T(1,128)S(6)}', space=smem, size = 0x200, scoped, tag = 'scoped memory for decoder_block_forward.5']
  %s0 = inlined_call_operand.vmem [shape: f32[2,96,362], index: 0, kind: input, shape index: {}]
  %s1 = inlined_call_operand.vmem [shape: f32[9,32,96], index: 1, kind: input, shape index: {}]
  %s2 = inlined_call_operand.vmem [shape: f32[32,1], index: 2, kind: input, shape index: {}]
  %s3 = inlined_call_operand.vmem [shape: f32[32,1], index: 3, kind: input, shape index: {}]
  %s4 = inlined_call_operand.<no memory space> [shape: f32[1,1], index: 4, kind: input, shape index: {}]
  %s5 = inlined_call_operand.vmem [shape: f32[2,32,324], index: 5, kind: output, shape index: {0}]
  %s6 = inlined_call_operand.vmem [shape: f32[2,1,324], index: 6, kind: output, shape index: {1}]
  %7 = xla_tuple %s5, %s6
  %s8 = sld [smem:[#allocation0]]
  $region61: #{decoder_block_forward.5} parent=0
    _
  %s10 = ssub.s32 1, %s8
  %s11 = scalar_select 0, %s10, %s8
  %12 = sst [smem:[#allocation2]] %s4
  loop: start=0, step=1, limit=4
  $region2: #{decoder_block_forward.5} parent=0 // loop_pre_header
    _
  $region3: #{decoder_block_forward.5} parent=0 // loop_header
    %s14 = sphi 0, %s18
    %p15 = scmp.ge.s32.totalorder %s14, 4
    %s24 = sphi 0, %s26
    %s27 = sphi 0, %s24
    %s28 = sphi 0, %s27
    %s44 = sphi 0, %s28
    %s48 = sphi 0, %s48
    %s50 = sphi 0, %s48
    %s51 = sphi 0, %s50
    %s65 = sphi 0, %s51
    %s69 = sphi 0, %s69
    %s71 = sphi 0, %s69
    %s72 = sphi 0, %s71
    %s86 = sphi 0, %s72
    %s90 = sphi 0, %s90
    %s92 = sphi 0, %s90
    %s93 = sphi 0, %s92
    %s107 = sphi 0, %s93
    %s111 = sphi 0, %s111
    %s113 = sphi 0, %s111
    %s114 = sphi 0, %s113
    %s128 = sphi 0, %s114
    %s134 = sphi 0, %s136
    %s137 = sphi 0, %s134
    %s138 = sphi 0, %s137
    %s154 = sphi 0, %s138
    %s160 = sphi 0, %s162
    %s163 = sphi 0, %s160
    %s164 = sphi 0, %s163
    %s180 = sphi 0, %s164
  $region4: #{decoder_block_forward.5} parent=0 // loop_header_branch
    %17 = sbr.rel (%p15) target = $region8
  $region5: #{decoder_block_forward.5} parent=0 // loop_body
    %s19 = ssub.s32 %s14, 1
    %s20 = ssub.s32 %s14, 2
    %s21 = sadd.s32 %s14, 1
    %s22 = ssub.s32 %s14, %s21
    %p23 = scmp.eq.s32.totalorder %s22, 0
    %s25 = sadd.s32 %s24, 1
    %s26 = scalar_select %p23, %s24, %s25
    %p29 = pneg %p23
    %p30 = scmp.eq.s32.totalorder %s14, 1
    %p31 = por %p29, %p30
    %p32 = scmp.ne.s32.totalorder %s24, %s27
    %p33 = scmp.eq.s32.totalorder %s14, 0
    %p34 = por %p32, %p33
    %p35 = scmp.ne.s32.totalorder %s24, %s27
    %p36 = scmp.eq.s32.totalorder %s19, 1
    %p37 = por %p35, %p36
    %p38 = scmp.ne.s32.totalorder %s27, %s28
    %p39 = scmp.eq.s32.totalorder %s19, 0
    %p40 = por %p38, %p39
    %p41 = scmp.ne.s32.totalorder %s27, %s28
    %p42 = scmp.eq.s32.totalorder %s20, 1
    %p43 = por %p41, %p42
    %p45 = scmp.ne.s32.totalorder %s28, %s44
    %p46 = scmp.eq.s32.totalorder %s20, 0
    %p47 = por %p45, %p46
    %s49 = sadd.s32 %s48, 1
    %p52 = scmp.eq.s32.totalorder %s14, 1
    %p53 = scmp.ne.s32.totalorder %s48, %s50
    %p54 = scmp.eq.s32.totalorder %s14, 0
    %p55 = por %p53, %p54
    %p56 = scmp.ne.s32.totalorder %s48, %s50
    %p57 = scmp.eq.s32.totalorder %s19, 1
    %p58 = por %p56, %p57
    %p59 = scmp.ne.s32.totalorder %s50, %s51
    %p60 = scmp.eq.s32.totalorder %s19, 0
    %p61 = por %p59, %p60
    %p62 = scmp.ne.s32.totalorder %s50, %s51
    %p63 = scmp.eq.s32.totalorder %s20, 1
    %p64 = por %p62, %p63
    %p66 = scmp.ne.s32.totalorder %s51, %s65
    %p67 = scmp.eq.s32.totalorder %s20, 0
    %p68 = por %p66, %p67
    %s70 = sadd.s32 %s69, 1
    %p73 = scmp.eq.s32.totalorder %s14, 1
    %p74 = scmp.ne.s32.totalorder %s69, %s71
    %p75 = scmp.eq.s32.totalorder %s14, 0
    %p76 = por %p74, %p75
    %p77 = scmp.ne.s32.totalorder %s69, %s71
    %p78 = scmp.eq.s32.totalorder %s19, 1
    %p79 = por %p77, %p78
    %p80 = scmp.ne.s32.totalorder %s71, %s72
    %p81 = scmp.eq.s32.totalorder %s19, 0
    %p82 = por %p80, %p81
    %p83 = scmp.ne.s32.totalorder %s71, %s72
    %p84 = scmp.eq.s32.totalorder %s20, 1
    %p85 = por %p83, %p84
    %p87 = scmp.ne.s32.totalorder %s72, %s86
    %p88 = scmp.eq.s32.totalorder %s20, 0
    %p89 = por %p87, %p88
    %s91 = sadd.s32 %s90, 1
    %p94 = scmp.eq.s32.totalorder %s14, 1
    %p95 = scmp.ne.s32.totalorder %s90, %s92
    %p96 = scmp.eq.s32.totalorder %s14, 0
    %p97 = por %p95, %p96
    %p98 = scmp.ne.s32.totalorder %s90, %s92
    %p99 = scmp.eq.s32.totalorder %s19, 1
    %p100 = por %p98, %p99
    %p101 = scmp.ne.s32.totalorder %s92, %s93
    %p102 = scmp.eq.s32.totalorder %s19, 0
    %p103 = por %p101, %p102
    %p104 = scmp.ne.s32.totalorder %s92, %s93
    %p105 = scmp.eq.s32.totalorder %s20, 1
    %p106 = por %p104, %p105
    %p108 = scmp.ne.s32.totalorder %s93, %s107
    %p109 = scmp.eq.s32.totalorder %s20, 0
    %p110 = por %p108, %p109
    %s112 = sadd.s32 %s111, 1
    %p115 = scmp.eq.s32.totalorder %s14, 1
    %p116 = scmp.ne.s32.totalorder %s111, %s113
    %p117 = scmp.eq.s32.totalorder %s14, 0
    %p118 = por %p116, %p117
    %p119 = scmp.ne.s32.totalorder %s111, %s113
    %p120 = scmp.eq.s32.totalorder %s19, 1
    %p121 = por %p119, %p120
    %p122 = scmp.ne.s32.totalorder %s113, %s114
    %p123 = scmp.eq.s32.totalorder %s19, 0
    %p124 = por %p122, %p123
    %p125 = scmp.ne.s32.totalorder %s113, %s114
    %p126 = scmp.eq.s32.totalorder %s20, 1
    %p127 = por %p125, %p126
    %p129 = scmp.ne.s32.totalorder %s114, %s128
    %p130 = scmp.eq.s32.totalorder %s20, 0
    %p131 = por %p129, %p130
    %s132 = ssub.s32 %s14, %s21
    %p133 = scmp.eq.s32.totalorder %s132, 0
    %s135 = sadd.s32 %s134, 1
    %s136 = scalar_select %p133, %s134, %s135
    %p139 = pneg %p133
    %p140 = scmp.eq.s32.totalorder %s14, 1
    %p141 = por %p139, %p140
    %p142 = scmp.ne.s32.totalorder %s134, %s137
    %p143 = scmp.eq.s32.totalorder %s14, 0
    %p144 = por %p142, %p143
    %p145 = scmp.ne.s32.totalorder %s134, %s137
    %p146 = scmp.eq.s32.totalorder %s19, 1
    %p147 = por %p145, %p146
    %p148 = scmp.ne.s32.totalorder %s137, %s138
    %p149 = scmp.eq.s32.totalorder %s19, 0
    %p150 = por %p148, %p149
    %p151 = scmp.ne.s32.totalorder %s137, %s138
    %p152 = scmp.eq.s32.totalorder %s20, 1
    %p153 = por %p151, %p152
    %p155 = scmp.ne.s32.totalorder %s138, %s154
    %p156 = scmp.eq.s32.totalorder %s20, 0
    %p157 = por %p155, %p156
    %s158 = ssub.s32 %s14, %s21
    %p159 = scmp.eq.s32.totalorder %s158, 0
    %s161 = sadd.s32 %s160, 1
    %s162 = scalar_select %p159, %s160, %s161
    %p165 = pneg %p159
    %p166 = scmp.eq.s32.totalorder %s14, 1
    %p167 = por %p165, %p166
    %p168 = scmp.ne.s32.totalorder %s160, %s163
    %p169 = scmp.eq.s32.totalorder %s14, 0
    %p170 = por %p168, %p169
    %p171 = scmp.ne.s32.totalorder %s160, %s163
    %p172 = scmp.eq.s32.totalorder %s19, 1
    %p173 = por %p171, %p172
    %p174 = scmp.ne.s32.totalorder %s163, %s164
    %p175 = scmp.eq.s32.totalorder %s19, 0
    %p176 = por %p174, %p175
    %p177 = scmp.ne.s32.totalorder %s163, %s164
    %p178 = scmp.eq.s32.totalorder %s20, 1
    %p179 = por %p177, %p178
    %p181 = scmp.ne.s32.totalorder %s164, %s180
    %p182 = scmp.eq.s32.totalorder %s20, 0
    %p183 = por %p181, %p182
    %p184 = scmp.le.s32.totalorder 1, %s14
    %p185 = scmp.lt.s32.totalorder %s14, 3
    %p186 = pnand %p184, %p185
    %p187 = pneg %p186
    // Predicated region
    $region9: #{decoder_block_forward.5} parent=5 // pred_check
      _
    $region10: #{decoder_block_forward.5} parent=5 // pred_check_branch
      %189 = sbr.rel (%p186) target = $region12
    $region11: #{decoder_block_forward.5} parent=5 // pred_region
      %s190 = ssub.s32 %s14, 1
      // Predicated region
      $region13: #{decoder_block_forward.5} parent=11 // pred_check
        %p191 = pneg %p61
      $region14: #{decoder_block_forward.5} parent=11 // pred_check_branch
        %193 = sbr.rel (%p191) target = $region16
      $region15: #{decoder_block_forward.5} parent=11 // pred_region
        _
      $region16: #{decoder_block_forward.5} parent=11 // pred_fallthru
        _
      // Predicated region
      $region17: #{decoder_block_forward.5} parent=11 // pred_check
        %p194 = pneg %p82
      $region18: #{decoder_block_forward.5} parent=11 // pred_check_branch
        %196 = sbr.rel (%p194) target = $region20
      $region19: #{decoder_block_forward.5} parent=11 // pred_region
        _
      $region20: #{decoder_block_forward.5} parent=11 // pred_fallthru
        _
      // Predicated region
      $region21: #{decoder_block_forward.5} parent=11 // pred_check
        %p197 = pneg %p103
      $region22: #{decoder_block_forward.5} parent=11 // pred_check_branch
        %199 = sbr.rel (%p197) target = $region24
      $region23: #{decoder_block_forward.5} parent=11 // pred_region
        _
      $region24: #{decoder_block_forward.5} parent=11 // pred_fallthru
        _
      // Predicated region
      $region25: #{decoder_block_forward.5} parent=11 // pred_check
        %p200 = pneg %p124
      $region26: #{decoder_block_forward.5} parent=11 // pred_check_branch
        %202 = sbr.rel (%p200) target = $region28
      $region27: #{decoder_block_forward.5} parent=11 // pred_region
        _
      $region28: #{decoder_block_forward.5} parent=11 // pred_fallthru
        _
    $region12: #{decoder_block_forward.5} parent=5 // pred_fallthru
      _
    %p203 = scmp.lt.s32.totalorder %s14, 2
    // Predicated region
    $region29: #{decoder_block_forward.5} parent=5 // pred_check
      %p204 = pneg %p203
    $region30: #{decoder_block_forward.5} parent=5 // pred_check_branch
      %206 = sbr.rel (%p204) target = $region32
    $region31: #{decoder_block_forward.5} parent=5 // pred_region
      // Predicated region
      $region33: #{decoder_block_forward.5} parent=31 // pred_check
        %p207 = pneg %p34
      $region34: #{decoder_block_forward.5} parent=31 // pred_check_branch
        %209 = sbr.rel (%p207) target = $region36
      $region35: #{decoder_block_forward.5} parent=31 // pred_region
        %p210 = scmp.lt.s32.totalorder %s14, 1
        %s211 = scalar_select %p210, %s14, 1
        %s212 = smul.addr %s211, 36
        %s213 = smul.addr %s212, 8
        %s214 = scalar_lea.vmem %s0, %s213
      $region36: #{decoder_block_forward.5} parent=31 // pred_fallthru
        _
    $region32: #{decoder_block_forward.5} parent=5 // pred_fallthru
      _
    %p215 = scmp.le.s32.totalorder 1, %s14
    %p216 = scmp.lt.s32.totalorder %s14, 3
    %p217 = pnand %p215, %p216
    %p218 = pneg %p217
    // Predicated region
    $region37: #{decoder_block_forward.5} parent=5 // pred_check
      _
    $region38: #{decoder_block_forward.5} parent=5 // pred_check_branch
      %220 = sbr.rel (%p217) target = $region40
    $region39: #{decoder_block_forward.5} parent=5 // pred_region
      %s221 = ssub.s32 %s14, 1
      %p222 = scmp.lt.s32.totalorder %s19, 1
      %s223 = scalar_select %p222, %s19, 1
      %s224 = smul.addr %s223, 36
      %s225 = smul.addr %s224, 8
      %s226 = scalar_lea.vmem %s0, %s225
      %p227 = pneg %p40
      %p228 = pneg %p37
      %p229 = pneg %p61
      %p230 = pneg %p58
      %p231 = pneg %p82
      %p232 = pneg %p79
      %p233 = pneg %p103
      %p234 = pneg %p100
      %p235 = pneg %p124
      %p236 = pneg %p121
      %p237 = pneg %p150
      %p238 = pneg %p147
      %p239 = scmp.lt.s32.totalorder %s19, 1
      %s240 = scalar_select %p239, %s19, 1
      %s241 = smul.addr %s240, 12
      %s242 = smul.addr %s241, 8
      %s243 = scalar_lea.vmem %s5, %s242
      %p244 = pneg %p176
      %p245 = pneg %p173
      %p246 = scmp.lt.s32.totalorder %s19, 1
      %s247 = scalar_select %p246, %s19, 1
      %s248 = smul.addr %s247, 3
      %s249 = scalar_lea.vmem %s6, %s248
      %p250 = scmp.lt.s32.totalorder %s19, 1
      %s251 = scalar_select %p250, %s19, 1
      %s252 = smul.addr %s251, 36
      %s253 = smul.addr %s252, 8
      %s254 = scalar_lea.vmem %s0, %s253
      %p255 = scmp.lt.s32.totalorder %s19, 1
      %s256 = scalar_select %p255, %s19, 1
      %s257 = smul.addr %s256, 12
      %s258 = smul.addr %s257, 8
      %s259 = scalar_lea.vmem %s5, %s258
      %p260 = scmp.lt.s32.totalorder %s19, 1
      %s261 = scalar_select %p260, %s19, 1
      %s262 = smul.addr %s261, 3
      %s263 = scalar_lea.vmem %s6, %s262
      %v264 = vld [vmem:[%s254] sm:$0xff]
      %v265 = vld [vmem:[%s254 + $0x8] sm:$0xff]
      %v266 = vld [vmem:[%s254 + $0x10] sm:$0xff]
      %v267 = vld [vmem:[%s254 + $0x18] sm:$0xff]
      %v268 = vld [vmem:[%s254 + $0x20] sm:$0xff]
      %v269 = vld [vmem:[%s254 + $0x28] sm:$0xff]
      %v270 = vld [vmem:[%s254 + $0x30] sm:$0xff]
      %v271 = vld [vmem:[%s254 + $0x38] sm:$0xff]
      %v272 = vld [vmem:[%s254 + $0x40] sm:$0xff]
      %v273 = vld [vmem:[%s254 + $0x48] sm:$0xff]
      %v274 = vld [vmem:[%s254 + $0x50] sm:$0xff]
      %v275 = vld [vmem:[%s254 + $0x58] sm:$0xff]
      %v276 = vld [vmem:[%s254 + $0x60] sm:$0xff]
      %v277 = vld [vmem:[%s254 + $0x68] sm:$0xff]
      %v278 = vld [vmem:[%s254 + $0x70] sm:$0xff]
      %v279 = vld [vmem:[%s254 + $0x78] sm:$0xff]
      %v280 = vld [vmem:[%s254 + $0x80] sm:$0xff]
      %v281 = vld [vmem:[%s254 + $0x88] sm:$0xff]
      %v282 = vld [vmem:[%s254 + $0x90] sm:$0xff]
      %v283 = vld [vmem:[%s254 + $0x98] sm:$0xff]
      %v284 = vld [vmem:[%s254 + $0xa0] sm:$0xff]
      %v285 = vld [vmem:[%s254 + $0xa8] sm:$0xff]
      %v286 = vld [vmem:[%s254 + $0xb0] sm:$0xff]
      %v287 = vld [vmem:[%s254 + $0xb8] sm:$0xff]
      %v288 = vld [vmem:[%s254 + $0xc0] sm:$0xff]
      %v289 = vld [vmem:[%s254 + $0xc8] sm:$0xff]
      %v290 = vld [vmem:[%s254 + $0xd0] sm:$0xff]
      %v291 = vld [vmem:[%s254 + $0xd8] sm:$0xff]
      %v292 = vld [vmem:[%s254 + $0xe0] sm:$0xff]
      %v293 = vld [vmem:[%s254 + $0xe8] sm:$0xff]
      %v294 = vld [vmem:[%s254 + $0xf0] sm:$0xff]
      %v295 = vld [vmem:[%s254 + $0xf8] sm:$0xff]
      %v296 = vld [vmem:[%s254 + $0x100] sm:$0xff]
      %v297 = vld [vmem:[%s254 + $0x108] sm:$0xff]
      %v298 = vld [vmem:[%s254 + $0x110] sm:$0xff]
      %v299 = vld [vmem:[%s254 + $0x118] sm:$0xff]
      %v300 = vld [vmem:[%s1] sm:$0xff]
      %v301 = vld [vmem:[%s1 + $0x8] sm:$0xff]
      %v302 = vld [vmem:[%s1 + $0x10] sm:$0xff]
      %v303 = vld [vmem:[%s1 + $0x18] sm:$0xff]
      %s304 = scalar_lea.vmem %s1, 32
      %v305 = vld [vmem:[%s304] sm:$0xff]
      %v306 = vld [vmem:[%s304 + $0x8] sm:$0xff]
      %v307 = vld [vmem:[%s304 + $0x10] sm:$0xff]
      %v308 = vld [vmem:[%s304 + $0x18] sm:$0xff]
      %345 = vrot.lane.b32.xlu0 %v264, 127
      %v346 = vpop.permute.xlu0 %345
      %347 = vrot.lane.b32.xlu0 %v265, 127
      %v348 = vpop.permute.xlu0 %347
      %349 = vrot.lane.b32.xlu0 %v266, 127
      %v350 = vpop.permute.xlu0 %349
      %351 = vrot.lane.b32.xlu0 %v267, 127
      %v352 = vpop.permute.xlu0 %351
      %353 = vrot.lane.b32.xlu0 %v268, 127
      %v354 = vpop.permute.xlu0 %353
      %355 = vrot.lane.b32.xlu0 %v269, 127
      %v356 = vpop.permute.xlu0 %355
      %357 = vrot.lane.b32.xlu0 %v270, 127
      %v358 = vpop.permute.xlu0 %357
      %359 = vrot.lane.b32.xlu0 %v271, 127
      %v360 = vpop.permute.xlu0 %359
      %361 = vrot.lane.b32.xlu0 %v272, 127
      %v362 = vpop.permute.xlu0 %361
      %363 = vrot.lane.b32.xlu0 %v273, 127
      %v364 = vpop.permute.xlu0 %363
      %365 = vrot.lane.b32.xlu0 %v274, 127
      %v366 = vpop.permute.xlu0 %365
      %367 = vrot.lane.b32.xlu0 %v275, 127
      %v368 = vpop.permute.xlu0 %367
      %369 = vrot.lane.b32.xlu0 %v276, 127
      %v370 = vpop.permute.xlu0 %369
      %371 = vrot.lane.b32.xlu0 %v277, 127
      %v372 = vpop.permute.xlu0 %371
      %373 = vrot.lane.b32.xlu0 %v278, 127
      %v374 = vpop.permute.xlu0 %373
      %375 = vrot.lane.b32.xlu0 %v279, 127
      %v376 = vpop.permute.xlu0 %375
      %377 = vrot.lane.b32.xlu0 %v280, 127
      %v378 = vpop.permute.xlu0 %377
      %379 = vrot.lane.b32.xlu0 %v281, 127
      %v380 = vpop.permute.xlu0 %379
      %381 = vrot.lane.b32.xlu0 %v282, 127
      %v382 = vpop.permute.xlu0 %381
      %383 = vrot.lane.b32.xlu0 %v283, 127
      %v384 = vpop.permute.xlu0 %383
      %385 = vrot.lane.b32.xlu0 %v284, 127
      %v386 = vpop.permute.xlu0 %385
      %387 = vrot.lane.b32.xlu0 %v285, 127
      %v388 = vpop.permute.xlu0 %387
      %389 = vrot.lane.b32.xlu0 %v286, 127
      %v390 = vpop.permute.xlu0 %389
      %391 = vrot.lane.b32.xlu0 %v287, 127
      %v392 = vpop.permute.xlu0 %391
      %393 = vrot.lane.b32.xlu0 %v288, 127
      %v394 = vpop.permute.xlu0 %393
      %395 = vrot.lane.b32.xlu0 %v289, 127
      %v396 = vpop.permute.xlu0 %395
      %397 = vrot.lane.b32.xlu0 %v290, 127
      %v398 = vpop.permute.xlu0 %397
      %399 = vrot.lane.b32.xlu0 %v291, 127
      %v400 = vpop.permute.xlu0 %399
      %401 = vrot.lane.b32.xlu0 %v292, 127
      %v402 = vpop.permute.xlu0 %401
      %403 = vrot.lane.b32.xlu0 %v293, 127
      %v404 = vpop.permute.xlu0 %403
      %405 = vrot.lane.b32.xlu0 %v294, 127
      %v406 = vpop.permute.xlu0 %405
      %407 = vrot.lane.b32.xlu0 %v295, 127
      %v408 = vpop.permute.xlu0 %407
      %409 = vrot.lane.b32.xlu0 %v296, 127
      %v410 = vpop.permute.xlu0 %409
      %411 = vrot.lane.b32.xlu0 %v297, 127
      %v412 = vpop.permute.xlu0 %411
      %413 = vrot.lane.b32.xlu0 %v298, 127
      %v414 = vpop.permute.xlu0 %413
      %415 = vrot.lane.b32.xlu0 %v299, 127
      %v416 = vpop.permute.xlu0 %415
      %vm417 = vcmask 1039360
      %v418 = vsel %vm417, %v346, %v348
      %v419 = vsel %vm417, %v348, %v350
      %v420 = vsel %vm417, %v352, %v354
      %v421 = vsel %vm417, %v354, %v356
      %v422 = vsel %vm417, %v358, %v360
      %v423 = vsel %vm417, %v360, %v362
      %v424 = vsel %vm417, %v364, %v366
      %v425 = vsel %vm417, %v366, %v368
      %v426 = vsel %vm417, %v370, %v372
      %v427 = vsel %vm417, %v372, %v374
      %v428 = vsel %vm417, %v376, %v378
      %v429 = vsel %vm417, %v378, %v380
      %v430 = vsel %vm417, %v382, %v384
      %v431 = vsel %vm417, %v384, %v386
      %v432 = vsel %vm417, %v388, %v390
      %v433 = vsel %vm417, %v390, %v392
      %v434 = vsel %vm417, %v394, %v396
      %v435 = vsel %vm417, %v396, %v398
      %v436 = vsel %vm417, %v400, %v402
      %v437 = vsel %vm417, %v402, %v404
      %v438 = vsel %vm417, %v406, %v408
      %v439 = vsel %vm417, %v408, %v410
      %v440 = vsel %vm417, %v412, %v414
      %v441 = vsel %vm417, %v414, %v416
      %vm478 = vcmask 785408
      %v480 = vsel %vm478, %v305, 0
      %v483 = vsel %vm478, %v306, 0
      %v486 = vsel %vm478, %v307, 0
      %v489 = vsel %vm478, %v308, 0
      %491 = vmatprep.subr.mxu0 %v419
      %492 = vmatpush1.msra.mxu0 %v418
      %493 = vmatprep.subr.mxu0 %v421
      %494 = vmatpush1.msra.mxu0 %v420
      %495 = vmatprep.subr.mxu0 %v423
      %496 = vmatpush1.msra.mxu0 %v422
      %497 = vmatprep.subr.mxu0 %v425
      %498 = vmatpush1.msra.mxu0 %v424
      %499 = vmatprep.subr.mxu0 %v427
      %500 = vmatpush1.msra.mxu0 %v426
      %501 = vmatprep.subr.mxu0 %v429
      %502 = vmatpush1.msra.mxu0 %v428
      %503 = vmatprep.subr.mxu0 %v431
      %504 = vmatpush1.msra.mxu0 %v430
      %505 = vmatprep.subr.mxu0 %v433
      %506 = vmatpush1.msra.mxu0 %v432
      %507 = vmatprep.subr.mxu0 %v435
      %508 = vmatpush1.msra.mxu0 %v434
      %509 = vmatprep.subr.mxu0 %v437
      %510 = vmatpush1.msra.mxu0 %v436
      %511 = vmatprep.subr.mxu0 %v439
      %512 = vmatpush1.msra.mxu0 %v438
      %513 = vmatprep.subr.mxu0 %v441
      %514 = vmatpush1.msra.mxu0 %v440
      %515 = vmatprep.subr.mxu0 0.0
      %516 = vmatpush1.msra.mxu0 0.0
      %517 = vmatprep.subr.mxu0 0.0
      %518 = vmatpush1.msra.mxu0 0.0
      %519 = vmatprep.subr.mxu0 0.0
      %520 = vmatpush1.msra.mxu0 0.0
      %521 = vmatprep.subr.mxu0 0.0
      %522 = vmatpush1.msra.mxu0 0.0
      %523 = vmatprep.subr.mxu0 0.0
      %524 = vmatpush1.msra.mxu0 0.0
      %525 = vmatprep.subr.mxu0 0.0
      %526 = vmatpush1.msra.mxu0 0.0
      %527 = vmatprep.subr.mxu0 0.0
      %528 = vmatpush1.msra.mxu0 0.0
      %529 = vmatprep.subr.mxu0 0.0
      %530 = vmatpush1.msra.mxu0 0.0
      %531 = vmatprep.subr.mxu0 0.0
      %532 = vmatpush1.msra.mxu0 0.0
      %533 = vmatprep.subr.mxu0 0.0
      %534 = vmatpush1.msra.mxu0 0.0
      %535 = vmatprep.subr.mxu0 0.0
      %536 = vmatpush1.msra.mxu0 0.0
      %537 = vmatprep.subr.mxu0 0.0
      %538 = vmatpush1.msra.mxu0 0.0
      %539 = vmatprep.subr.mxu0 0.0
      %540 = vmatpush1.msra.mxu0 0.0
      %541 = vmatprep.subr.mxu0 0.0
      %542 = vmatpush1.msra.mxu0 0.0
      %543 = vmatprep.subr.mxu0 0.0
      %544 = vmatpush1.msra.mxu0 0.0
      %545 = vmatprep.subr.mxu0 0.0
      %546 = vmatpush1.msra.mxu0 0.0
      %547 = vmatprep.subr.mxu0 0.0
      %548 = vmatpush1.msra.mxu0 0.0
      %549 = vmatprep.subr.mxu0 0.0
      %550 = vmatpush1.msra.mxu0 0.0
      %551 = vmatprep.subr.mxu0 0.0
      %552 = vmatpush1.msra.mxu0 0.0
      %553 = vmatprep.subr.mxu0 0.0
      %554 = vmatpush1.msra.mxu0 0.0
      %555 = vmatprep.mubr.f32.mxu0 0.0
      %556 = vmatmul.mubr.f32.gmra.mrb[0].mxu0 %v480
      %v557 = vpop.f32.mrb[0].mxu0
      %v558 = vadd.f32 0.0, %v557
      %v559 = vpop.f32.mrb[0].mxu0
      %v560 = vadd.f32 0.0, %v559
      %561 = vmatprep.mubr.f32.mxu0 0.0
      %562 = vmatmul.mubr.f32.gmra.mrb[0].mxu0 %v483
      %v563 = vpop.f32.mrb[0].mxu0
      %v564 = vadd.f32 0.0, %v563
      %v565 = vpop.f32.mrb[0].mxu0
      %v566 = vadd.f32 0.0, %v565
      %567 = vmatprep.mubr.f32.mxu0 0.0
      %568 = vmatmul.mubr.f32.gmra.mrb[0].mxu0 %v486
      %v569 = vpop.f32.mrb[0].mxu0
      %v570 = vadd.f32 0.0, %v569
      %v571 = vpop.f32.mrb[0].mxu0
      %v572 = vadd.f32 0.0, %v571
      %573 = vmatprep.mubr.f32.mxu0 0.0
      %574 = vmatmul.mubr.f32.gmra.mrb[0].mxu0 %v489
      %v575 = vpop.f32.mrb[0].mxu0
      %v576 = vadd.f32 0.0, %v575
      %v577 = vpop.f32.mrb[0].mxu0
      %v578 = vadd.f32 0.0, %v577
      %579 = vdwg.mxu0
      %580 = vmatprep.subr.mxu0 0.0
      %581 = vmatpush1.msra.mxu0 %v350
      %582 = vmatprep.subr.mxu0 0.0
      %583 = vmatpush1.msra.mxu0 %v356
      %584 = vmatprep.subr.mxu0 0.0
      %585 = vmatpush1.msra.mxu0 %v362
      %586 = vmatprep.subr.mxu0 0.0
      %587 = vmatpush1.msra.mxu0 %v368
      %588 = vmatprep.subr.mxu0 0.0
      %589 = vmatpush1.msra.mxu0 %v374
      %590 = vmatprep.subr.mxu0 0.0
      %591 = vmatpush1.msra.mxu0 %v380
      %592 = vmatprep.subr.mxu0 0.0
      %593 = vmatpush1.msra.mxu0 %v386
      %594 = vmatprep.subr.mxu0 0.0
      %595 = vmatpush1.msra.mxu0 %v392
      %596 = vmatprep.subr.mxu0 0.0
      %597 = vmatpush1.msra.mxu0 %v398
      %598 = vmatprep.subr.mxu0 0.0
      %599 = vmatpush1.msra.mxu0 %v404
      %600 = vmatprep.subr.mxu0 0.0
      %601 = vmatpush1.msra.mxu0 %v410
      %602 = vmatprep.subr.mxu0 0.0
      %603 = vmatpush1.msra.mxu0 %v416
      %604 = vmatprep.subr.mxu0 0.0
      %605 = vmatpush1.msra.mxu0 0.0
      %606 = vmatprep.subr.mxu0 0.0
      %607 = vmatpush1.msra.mxu0 0.0
      %608 = vmatprep.subr.mxu0 0.0
      %609 = vmatpush1.msra.mxu0 0.0
      %610 = vmatprep.subr.mxu0 0.0
      %611 = vmatpush1.msra.mxu0 0.0
      %612 = vmatprep.subr.mxu0 0.0
      %613 = vmatpush1.msra.mxu0 0.0
      %614 = vmatprep.subr.mxu0 0.0
      %615 = vmatpush1.msra.mxu0 0.0
      %616 = vmatprep.subr.mxu0 0.0
      %617 = vmatpush1.msra.mxu0 0.0
      %618 = vmatprep.subr.mxu0 0.0
      %619 = vmatpush1.msra.mxu0 0.0
      %620 = vmatprep.subr.mxu0 0.0
      %621 = vmatpush1.msra.mxu0 0.0
      %622 = vmatprep.subr.mxu0 0.0
      %623 = vmatpush1.msra.mxu0 0.0
      %624 = vmatprep.subr.mxu0 0.0
      %625 = vmatpush1.msra.mxu0 0.0
      %626 = vmatprep.subr.mxu0 0.0
      %627 = vmatpush1.msra.mxu0 0.0
      %628 = vmatprep.subr.mxu0 0.0
      %629 = vmatpush1.msra.mxu0 0.0
      %630 = vmatprep.subr.mxu0 0.0
      %631 = vmatpush1.msra.mxu0 0.0
      %632 = vmatprep.subr.mxu0 0.0
      %633 = vmatpush1.msra.mxu0 0.0
      %634 = vmatprep.subr.mxu0 0.0
      %635 = vmatpush1.msra.mxu0 0.0
      %636 = vmatprep.subr.mxu0 0.0
      %637 = vmatpush1.msra.mxu0 0.0
      %638 = vmatprep.subr.mxu0 0.0
      %639 = vmatpush1.msra.mxu0 0.0
      %640 = vmatprep.subr.mxu0 0.0
      %641 = vmatpush1.msra.mxu0 0.0
      %642 = vmatprep.subr.mxu0 0.0
      %643 = vmatpush1.msra.mxu0 0.0
      %644 = vmatprep.mubr.f32.mxu0 0.0
      %645 = vmatmul.mubr.f32.gmra.mrb[0].mxu0 %v480
      %v646 = vpop.f32.mrb[0].mxu0
      %v647 = vadd.f32 0.0, %v646
      %v648 = vpop.f32.mrb[0].mxu0
      %649 = vmatprep.mubr.f32.mxu0 0.0
      %650 = vmatmul.mubr.f32.gmra.mrb[0].mxu0 %v483
      %v651 = vpop.f32.mrb[0].mxu0
      %v652 = vadd.f32 0.0, %v651
      %v653 = vpop.f32.mrb[0].mxu0
      %654 = vmatprep.mubr.f32.mxu0 0.0
      %655 = vmatmul.mubr.f32.gmra.mrb[0].mxu0 %v486
      %v656 = vpop.f32.mrb[0].mxu0
      %v657 = vadd.f32 0.0, %v656
      %v658 = vpop.f32.mrb[0].mxu0
      %659 = vmatprep.mubr.f32.mxu0 0.0
      %660 = vmatmul.mubr.f32.gmra.mrb[0].mxu0 %v489
      %v661 = vpop.f32.mrb[0].mxu0
      %v662 = vadd.f32 0.0, %v661
      %v663 = vpop.f32.mrb[0].mxu0
      %664 = vdwg.mxu0
      %v666 = vsel %vm478, %v300, 0
      %v669 = vsel %vm478, %v301, 0
      %v672 = vsel %vm478, %v302, 0
      %v675 = vsel %vm478, %v303, 0
      %677 = vmatprep.subr.mxu0 %v265
      %678 = vmatpush1.msra.mxu0 %v264
      %679 = vmatprep.subr.mxu0 %v268
      %680 = vmatpush1.msra.mxu0 %v267
      %681 = vmatprep.subr.mxu0 %v271
      %682 = vmatpush1.msra.mxu0 %v270
      %683 = vmatprep.subr.mxu0 %v274
      %684 = vmatpush1.msra.mxu0 %v273
      %685 = vmatprep.subr.mxu0 %v277
      %686 = vmatpush1.msra.mxu0 %v276
      %687 = vmatprep.subr.mxu0 %v280
      %688 = vmatpush1.msra.mxu0 %v279
      %689 = vmatprep.subr.mxu0 %v283
      %690 = vmatpush1.msra.mxu0 %v282
      %691 = vmatprep.subr.mxu0 %v286
      %692 = vmatpush1.msra.mxu0 %v285
      %693 = vmatprep.subr.mxu0 %v289
      %694 = vmatpush1.msra.mxu0 %v288
      %695 = vmatprep.subr.mxu0 %v292
      %696 = vmatpush1.msra.mxu0 %v291
      %697 = vmatprep.subr.mxu0 %v295
      %698 = vmatpush1.msra.mxu0 %v294
      %699 = vmatprep.subr.mxu0 %v298
      %700 = vmatpush1.msra.mxu0 %v297
      %701 = vmatprep.subr.mxu0 0.0
      %702 = vmatpush1.msra.mxu0 0.0
      %703 = vmatprep.subr.mxu0 0.0
      %704 = vmatpush1.msra.mxu0 0.0
      %705 = vmatprep.subr.mxu0 0.0
      %706 = vmatpush1.msra.mxu0 0.0
      %707 = vmatprep.subr.mxu0 0.0
      %708 = vmatpush1.msra.mxu0 0.0
      %709 = vmatprep.subr.mxu0 0.0
      %710 = vmatpush1.msra.mxu0 0.0
      %711 = vmatprep.subr.mxu0 0.0
      %712 = vmatpush1.msra.mxu0 0.0
      %713 = vmatprep.subr.mxu0 0.0
      %714 = vmatpush1.msra.mxu0 0.0
      %715 = vmatprep.subr.mxu0 0.0
      %716 = vmatpush1.msra.mxu0 0.0
      %717 = vmatprep.subr.mxu0 0.0
      %718 = vmatpush1.msra.mxu0 0.0
      %719 = vmatprep.subr.mxu0 0.0
      %720 = vmatpush1.msra.mxu0 0.0
      %721 = vmatprep.subr.mxu0 0.0
      %722 = vmatpush1.msra.mxu0 0.0
      %723 = vmatprep.subr.mxu0 0.0
      %724 = vmatpush1.msra.mxu0 0.0
      %725 = vmatprep.subr.mxu0 0.0
      %726 = vmatpush1.msra.mxu0 0.0
      %727 = vmatprep.subr.mxu0 0.0
      %728 = vmatpush1.msra.mxu0 0.0
      %729 = vmatprep.subr.mxu0 0.0
      %730 = vmatpush1.msra.mxu0 0.0
      %731 = vmatprep.subr.mxu0 0.0
      %732 = vmatpush1.msra.mxu0 0.0
      %733 = vmatprep.subr.mxu0 0.0
      %734 = vmatpush1.msra.mxu0 0.0
      %735 = vmatprep.subr.mxu0 0.0
      %736 = vmatpush1.msra.mxu0 0.0
      %737 = vmatprep.subr.mxu0 0.0
      %738 = vmatpush1.msra.mxu0 0.0
      %739 = vmatprep.subr.mxu0 0.0
      %740 = vmatpush1.msra.mxu0 0.0
      %741 = vmatprep.mubr.f32.mxu0 0.0
      %742 = vmatmul.mubr.f32.gmra.mrb[0].mxu0 %v666
      %v743 = vpop.f32.mrb[0].mxu0
      %v744 = vadd.f32 %v558, %v743
      %v745 = vpop.f32.mrb[0].mxu0
      %v746 = vadd.f32 %v560, %v745
      %747 = vmatprep.mubr.f32.mxu0 0.0
      %748 = vmatmul.mubr.f32.gmra.mrb[0].mxu0 %v669
      %v749 = vpop.f32.mrb[0].mxu0
      %v750 = vadd.f32 %v564, %v749
      %v751 = vpop.f32.mrb[0].mxu0
      %v752 = vadd.f32 %v566, %v751
      %753 = vmatprep.mubr.f32.mxu0 0.0
      %754 = vmatmul.mubr.f32.gmra.mrb[0].mxu0 %v672
      %v755 = vpop.f32.mrb[0].mxu0
      %v756 = vadd.f32 %v570, %v755
      %v757 = vpop.f32.mrb[0].mxu0
      %v758 = vadd.f32 %v572, %v757
      %759 = vmatprep.mubr.f32.mxu0 0.0
      %760 = vmatmul.mubr.f32.gmra.mrb[0].mxu0 %v675
      %v761 = vpop.f32.mrb[0].mxu0
      %v762 = vadd.f32 %v576, %v761
      %v763 = vpop.f32.mrb[0].mxu0
      %v764 = vadd.f32 %v578, %v763
      %765 = vdwg.mxu0
      %766 = vmatprep.subr.mxu0 0.0
      %767 = vmatpush1.msra.mxu0 %v266
      %768 = vmatprep.subr.mxu0 0.0
      %769 = vmatpush1.msra.mxu0 %v269
      %770 = vmatprep.subr.mxu0 0.0
      %771 = vmatpush1.msra.mxu0 %v272
      %772 = vmatprep.subr.mxu0 0.0
      %773 = vmatpush1.msra.mxu0 %v275
      %774 = vmatprep.subr.mxu0 0.0
      %775 = vmatpush1.msra.mxu0 %v278
      %776 = vmatprep.subr.mxu0 0.0
      %777 = vmatpush1.msra.mxu0 %v281
      %778 = vmatprep.subr.mxu0 0.0
      %779 = vmatpush1.msra.mxu0 %v284
      %780 = vmatprep.subr.mxu0 0.0
      %781 = vmatpush1.msra.mxu0 %v287
      %782 = vmatprep.subr.mxu0 0.0
      %783 = vmatpush1.msra.mxu0 %v290
      %784 = vmatprep.subr.mxu0 0.0
      %785 = vmatpush1.msra.mxu0 %v293
      %786 = vmatprep.subr.mxu0 0.0
      %787 = vmatpush1.msra.mxu0 %v296
      %788 = vmatprep.subr.mxu0 0.0
      %789 = vmatpush1.msra.mxu0 %v299
      %790 = vmatprep.subr.mxu0 0.0
      %791 = vmatpush1.msra.mxu0 0.0
      %792 = vmatprep.subr.mxu0 0.0
      %793 = vmatpush1.msra.mxu0 0.0
      %794 = vmatprep.subr.mxu0 0.0
      %795 = vmatpush1.msra.mxu0 0.0
      %796 = vmatprep.subr.mxu0 0.0
      %797 = vmatpush1.msra.mxu0 0.0
      %798 = vmatprep.subr.mxu0 0.0
      %799 = vmatpush1.msra.mxu0 0.0
      %800 = vmatprep.subr.mxu0 0.0
      %801 = vmatpush1.msra.mxu0 0.0
      %802 = vmatprep.subr.mxu0 0.0
      %803 = vmatpush1.msra.mxu0 0.0
      %804 = vmatprep.subr.mxu0 0.0
      %805 = vmatpush1.msra.mxu0 0.0
      %806 = vmatprep.subr.mxu0 0.0
      %807 = vmatpush1.msra.mxu0 0.0
      %808 = vmatprep.subr.mxu0 0.0
      %809 = vmatpush1.msra.mxu0 0.0
      %810 = vmatprep.subr.mxu0 0.0
      %811 = vmatpush1.msra.mxu0 0.0
      %812 = vmatprep.subr.mxu0 0.0
      %813 = vmatpush1.msra.mxu0 0.0
      %814 = vmatprep.subr.mxu0 0.0
      %815 = vmatpush1.msra.mxu0 0.0
      %816 = vmatprep.subr.mxu0 0.0
      %817 = vmatpush1.msra.mxu0 0.0
      %818 = vmatprep.subr.mxu0 0.0
      %819 = vmatpush1.msra.mxu0 0.0
      %820 = vmatprep.subr.mxu0 0.0
      %821 = vmatpush1.msra.mxu0 0.0
      %822 = vmatprep.subr.mxu0 0.0
      %823 = vmatpush1.msra.mxu0 0.0
      %824 = vmatprep.subr.mxu0 0.0
      %825 = vmatpush1.msra.mxu0 0.0
      %826 = vmatprep.subr.mxu0 0.0
      %827 = vmatpush1.msra.mxu0 0.0
      %828 = vmatprep.subr.mxu0 0.0
      %829 = vmatpush1.msra.mxu0 0.0
      %830 = vmatprep.mubr.f32.mxu0 0.0
      %831 = vmatmul.mubr.f32.gmra.mrb[0].mxu0 %v666
      %v832 = vpop.f32.mrb[0].mxu0
      %v833 = vadd.f32 %v647, %v832
      %v834 = vpop.f32.mrb[0].mxu0
      %835 = vmatprep.mubr.f32.mxu0 0.0
      %836 = vmatmul.mubr.f32.gmra.mrb[0].mxu0 %v669
      %v837 = vpop.f32.mrb[0].mxu0
      %v838 = vadd.f32 %v652, %v837
      %v839 = vpop.f32.mrb[0].mxu0
      %840 = vmatprep.mubr.f32.mxu0 0.0
      %841 = vmatmul.mubr.f32.gmra.mrb[0].mxu0 %v672
      %v842 = vpop.f32.mrb[0].mxu0
      %v843 = vadd.f32 %v657, %v842
      %v844 = vpop.f32.mrb[0].mxu0
      %845 = vmatprep.mubr.f32.mxu0 0.0
      %846 = vmatmul.mubr.f32.gmra.mrb[0].mxu0 %v675
      %v847 = vpop.f32.mrb[0].mxu0
      %v848 = vadd.f32 %v662, %v847
      %v849 = vpop.f32.mrb[0].mxu0
      %850 = vdwg.mxu0
      %s851 = scalar_lea.vmem %s1, 64
      %v852 = vld [vmem:[%s851] sm:$0xff]
      %v853 = vld [vmem:[%s851 + $0x8] sm:$0xff]
      %v854 = vld [vmem:[%s851 + $0x10] sm:$0xff]
      %v855 = vld [vmem:[%s851 + $0x18] sm:$0xff]
      %856 = vrot.lane.b32.xlu0 %v264, 126
      %v857 = vpop.permute.xlu0 %856
      %858 = vrot.lane.b32.xlu0 %v265, 126
      %v859 = vpop.permute.xlu0 %858
      %860 = vrot.lane.b32.xlu0 %v266, 126
      %v861 = vpop.permute.xlu0 %860
      %862 = vrot.lane.b32.xlu0 %v267, 126
      %v863 = vpop.permute.xlu0 %862
      %864 = vrot.lane.b32.xlu0 %v268, 126
      %v865 = vpop.permute.xlu0 %864
      %866 = vrot.lane.b32.xlu0 %v269, 126
      %v867 = vpop.permute.xlu0 %866
      %868 = vrot.lane.b32.xlu0 %v270, 126
      %v869 = vpop.permute.xlu0 %868
      %870 = vrot.lane.b32.xlu0 %v271, 126
      %v871 = vpop.permute.xlu0 %870
      %872 = vrot.lane.b32.xlu0 %v272, 126
      %v873 = vpop.permute.xlu0 %872
      %874 = vrot.lane.b32.xlu0 %v273, 126
      %v875 = vpop.permute.xlu0 %874
      %876 = vrot.lane.b32.xlu0 %v274, 126
      %v877 = vpop.permute.xlu0 %876
      %878 = vrot.lane.b32.xlu0 %v275, 126
      %v879 = vpop.permute.xlu0 %878
      %880 = vrot.lane.b32.xlu0 %v276, 126
      %v881 = vpop.permute.xlu0 %880
      %882 = vrot.lane.b32.xlu0 %v277, 126
      %v883 = vpop.permute.xlu0 %882
      %884 = vrot.lane.b32.xlu0 %v278, 126
      %v885 = vpop.permute.xlu0 %884
      %886 = vrot.lane.b32.xlu0 %v279, 126
      %v887 = vpop.permute.xlu0 %886
      %888 = vrot.lane.b32.xlu0 %v280, 126
      %v889 = vpop.permute.xlu0 %888
      %890 = vrot.lane.b32.xlu0 %v281, 126
      %v891 = vpop.permute.xlu0 %890
      %892 = vrot.lane.b32.xlu0 %v282, 126
      %v893 = vpop.permute.xlu0 %892
      %894 = vrot.lane.b32.xlu0 %v283, 126
      %v895 = vpop.permute.xlu0 %894
      %896 = vrot.lane.b32.xlu0 %v284, 126
      %v897 = vpop.permute.xlu0 %896
      %898 = vrot.lane.b32.xlu0 %v285, 126
      %v899 = vpop.permute.xlu0 %898
      %900 = vrot.lane.b32.xlu0 %v286, 126
      %v901 = vpop.permute.xlu0 %900
      %902 = vrot.lane.b32.xlu0 %v287, 126
      %v903 = vpop.permute.xlu0 %902
      %904 = vrot.lane.b32.xlu0 %v288, 126
      %v905 = vpop.permute.xlu0 %904
      %906 = vrot.lane.b32.xlu0 %v289, 126
      %v907 = vpop.permute.xlu0 %906
      %908 = vrot.lane.b32.xlu0 %v290, 126
      %v909 = vpop.permute.xlu0 %908
      %910 = vrot.lane.b32.xlu0 %v291, 126
      %v911 = vpop.permute.xlu0 %910
      %912 = vrot.lane.b32.xlu0 %v292, 126
      %v913 = vpop.permute.xlu0 %912
      %914 = vrot.lane.b32.xlu0 %v293, 126
      %v915 = vpop.permute.xlu0 %914
      %916 = vrot.lane.b32.xlu0 %v294, 126
      %v917 = vpop.permute.xlu0 %916
      %918 = vrot.lane.b32.xlu0 %v295, 126
      %v919 = vpop.permute.xlu0 %918
      %920 = vrot.lane.b32.xlu0 %v296, 126
      %v921 = vpop.permute.xlu0 %920
      %922 = vrot.lane.b32.xlu0 %v297, 126
      %v923 = vpop.permute.xlu0 %922
      %924 = vrot.lane.b32.xlu0 %v298, 126
      %v925 = vpop.permute.xlu0 %924
      %926 = vrot.lane.b32.xlu0 %v299, 126
      %v927 = vpop.permute.xlu0 %926
      %vm928 = vcmask 1031168
      %v929 = vsel %vm928, %v857, %v859
      %v930 = vsel %vm928, %v859, %v861
      %v931 = vsel %vm928, %v863, %v865
      %v932 = vsel %vm928, %v865, %v867
      %v933 = vsel %vm928, %v869, %v871
      %v934 = vsel %vm928, %v871, %v873
      %v935 = vsel %vm928, %v875, %v877
      %v936 = vsel %vm928, %v877, %v879
      %v937 = vsel %vm928, %v881, %v883
      %v938 = vsel %vm928, %v883, %v885
      %v939 = vsel %vm928, %v887, %v889
      %v940 = vsel %vm928, %v889, %v891
      %v941 = vsel %vm928, %v893, %v895
      %v942 = vsel %vm928, %v895, %v897
      %v943 = vsel %vm928, %v899, %v901
      %v944 = vsel %vm928, %v901, %v903
      %v945 = vsel %vm928, %v905, %v907
      %v946 = vsel %vm928, %v907, %v909
      %v947 = vsel %vm928, %v911, %v913
      %v948 = vsel %vm928, %v913, %v915
      %v949 = vsel %vm928, %v917, %v919
      %v950 = vsel %vm928, %v919, %v921
      %v951 = vsel %vm928, %v923, %v925
      %v952 = vsel %vm928, %v925, %v927
      %v990 = vsel %vm478, %v852, 0
      %v993 = vsel %vm478, %v853, 0
      %v996 = vsel %vm478, %v854, 0
      %v999 = vsel %vm478, %v855, 0
      %1001 = vmatprep.subr.mxu0 %v930
      %1002 = vmatpush1.msra.mxu0 %v929
      %1003 = vmatprep.subr.mxu0 %v932
      %1004 = vmatpush1.msra.mxu0 %v931
      %1005 = vmatprep.subr.mxu0 %v934
      %1006 = vmatpush1.msra.mxu0 %v933
      %1007 = vmatprep.subr.mxu0 %v936
      %1008 = vmatpush1.msra.mxu0 %v935
      %1009 = vmatprep.subr.mxu0 %v938
      %1010 = vmatpush1.msra.mxu0 %v937
      %1011 = vmatprep.subr.mxu0 %v940
      %1012 = vmatpush1.msra.mxu0 %v939
      %1013 = vmatprep.subr.mxu0 %v942
      %1014 = vmatpush1.msra.mxu0 %v941
      %1015 = vmatprep.subr.mxu0 %v944
      %1016 = vmatpush1.msra.mxu0 %v943
      %1017 = vmatprep.subr.mxu0 %v946
      %1018 = vmatpush1.msra.mxu0 %v945
      %1019 = vmatprep.subr.mxu0 %v948
      %1020 = vmatpush1.msra.mxu0 %v947
      %1021 = vmatprep.subr.mxu0 %v950
      %1022 = vmatpush1.msra.mxu0 %v949
      %1023 = vmatprep.subr.mxu0 %v952
      %1024 = vmatpush1.msra.mxu0 %v951
      %1025 = vmatprep.subr.mxu0 0.0
      %1026 = vmatpush1.msra.mxu0 0.0
      %1027 = vmatprep.subr.mxu0 0.0
      %1028 = vmatpush1.msra.mxu0 0.0
      %1029 = vmatprep.subr.mxu0 0.0
      %1030 = vmatpush1.msra.mxu0 0.0
      %1031 = vmatprep.subr.mxu0 0.0
      %1032 = vmatpush1.msra.mxu0 0.0
      %1033 = vmatprep.subr.mxu0 0.0
      %1034 = vmatpush1.msra.mxu0 0.0
      %1035 = vmatprep.subr.mxu0 0.0
      %1036 = vmatpush1.msra.mxu0 0.0
      %1037 = vmatprep.subr.mxu0 0.0
      %1038 = vmatpush1.msra.mxu0 0.0
      %1039 = vmatprep.subr.mxu0 0.0
      %1040 = vmatpush1.msra.mxu0 0.0
      %1041 = vmatprep.subr.mxu0 0.0
      %1042 = vmatpush1.msra.mxu0 0.0
      %1043 = vmatprep.subr.mxu0 0.0
      %1044 = vmatpush1.msra.mxu0 0.0
      %1045 = vmatprep.subr.mxu0 0.0
      %1046 = vmatpush1.msra.mxu0 0.0
      %1047 = vmatprep.subr.mxu0 0.0
      %1048 = vmatpush1.msra.mxu0 0.0
      %1049 = vmatprep.subr.mxu0 0.0
      %1050 = vmatpush1.msra.mxu0 0.0
      %1051 = vmatprep.subr.mxu0 0.0
      %1052 = vmatpush1.msra.mxu0 0.0
      %1053 = vmatprep.subr.mxu0 0.0
      %1054 = vmatpush1.msra.mxu0 0.0
      %1055 = vmatprep.subr.mxu0 0.0
      %1056 = vmatpush1.msra.mxu0 0.0
      %1057 = vmatprep.subr.mxu0 0.0
      %1058 = vmatpush1.msra.mxu0 0.0
      %1059 = vmatprep.subr.mxu0 0.0
      %1060 = vmatpush1.msra.mxu0 0.0
      %1061 = vmatprep.subr.mxu0 0.0
      %1062 = vmatpush1.msra.mxu0 0.0
      %1063 = vmatprep.subr.mxu0 0.0
      %1064 = vmatpush1.msra.mxu0 0.0
      %1065 = vmatprep.mubr.f32.mxu0 0.0
      %1066 = vmatmul.mubr.f32.gmra.mrb[0].mxu0 %v990
      %v1067 = vpop.f32.mrb[0].mxu0
      %v1068 = vadd.f32 0.0, %v1067
      %v1069 = vpop.f32.mrb[0].mxu0
      %v1070 = vadd.f32 0.0, %v1069
      %1071 = vmatprep.mubr.f32.mxu0 0.0
      %1072 = vmatmul.mubr.f32.gmra.mrb[0].mxu0 %v993
      %v1073 = vpop.f32.mrb[0].mxu0
      %v1074 = vadd.f32 0.0, %v1073
      %v1075 = vpop.f32.mrb[0].mxu0
      %v1076 = vadd.f32 0.0, %v1075
      %1077 = vmatprep.mubr.f32.mxu0 0.0
      %1078 = vmatmul.mubr.f32.gmra.mrb[0].mxu0 %v996
      %v1079 = vpop.f32.mrb[0].mxu0
      %v1080 = vadd.f32 0.0, %v1079
      %v1081 = vpop.f32.mrb[0].mxu0
      %v1082 = vadd.f32 0.0, %v1081
      %1083 = vmatprep.mubr.f32.mxu0 0.0
      %1084 = vmatmul.mubr.f32.gmra.mrb[0].mxu0 %v999
      %v1085 = vpop.f32.mrb[0].mxu0
      %v1086 = vadd.f32 0.0, %v1085
      %v1087 = vpop.f32.mrb[0].mxu0
      %v1088 = vadd.f32 0.0, %v1087
      %1089 = vdwg.mxu0
      %1090 = vmatprep.subr.mxu0 0.0
      %1091 = vmatpush1.msra.mxu0 %v861
      %1092 = vmatprep.subr.mxu0 0.0
      %1093 = vmatpush1.msra.mxu0 %v867
      %1094 = vmatprep.subr.mxu0 0.0
      %1095 = vmatpush1.msra.mxu0 %v873
      %1096 = vmatprep.subr.mxu0 0.0
      %1097 = vmatpush1.msra.mxu0 %v879
      %1098 = vmatprep.subr.mxu0 0.0
      %1099 = vmatpush1.msra.mxu0 %v885
      %1100 = vmatprep.subr.mxu0 0.0
      %1101 = vmatpush1.msra.mxu0 %v891
      %1102 = vmatprep.subr.mxu0 0.0
      %1103 = vmatpush1.msra.mxu0 %v897
      %1104 = vmatprep.subr.mxu0 0.0
      %1105 = vmatpush1.msra.mxu0 %v903
      %1106 = vmatprep.subr.mxu0 0.0
      %1107 = vmatpush1.msra.mxu0 %v909
      %1108 = vmatprep.subr.mxu0 0.0
      %1109 = vmatpush1.msra.mxu0 %v915
      %1110 = vmatprep.subr.mxu0 0.0
      %1111 = vmatpush1.msra.mxu0 %v921
      %1112 = vmatprep.subr.mxu0 0.0
      %1113 = vmatpush1.msra.mxu0 %v927
      %1114 = vmatprep.subr.mxu0 0.0
      %1115 = vmatpush1.msra.mxu0 0.0
      %1116 = vmatprep.subr.mxu0 0.0
      %1117 = vmatpush1.msra.mxu0 0.0
      %1118 = vmatprep.subr.mxu0 0.0
      %1119 = vmatpush1.msra.mxu0 0.0
      %1120 = vmatprep.subr.mxu0 0.0
      %1121 = vmatpush1.msra.mxu0 0.0
      %1122 = vmatprep.subr.mxu0 0.0
      %1123 = vmatpush1.msra.mxu0 0.0
      %1124 = vmatprep.subr.mxu0 0.0
      %1125 = vmatpush1.msra.mxu0 0.0
      %1126 = vmatprep.subr.mxu0 0.0
      %1127 = vmatpush1.msra.mxu0 0.0
      %1128 = vmatprep.subr.mxu0 0.0
      %1129 = vmatpush1.msra.mxu0 0.0
      %1130 = vmatprep.subr.mxu0 0.0
      %1131 = vmatpush1.msra.mxu0 0.0
      %1132 = vmatprep.subr.mxu0 0.0
      %1133 = vmatpush1.msra.mxu0 0.0
      %1134 = vmatprep.subr.mxu0 0.0
      %1135 = vmatpush1.msra.mxu0 0.0
      %1136 = vmatprep.subr.mxu0 0.0
      %1137 = vmatpush1.msra.mxu0 0.0
      %1138 = vmatprep.subr.mxu0 0.0
      %1139 = vmatpush1.msra.mxu0 0.0
      %1140 = vmatprep.subr.mxu0 0.0
      %1141 = vmatpush1.msra.mxu0 0.0
      %1142 = vmatprep.subr.mxu0 0.0
      %1143 = vmatpush1.msra.mxu0 0.0
      %1144 = vmatprep.subr.mxu0 0.0
      %1145 = vmatpush1.msra.mxu0 0.0
      %1146 = vmatprep.subr.mxu0 0.0
      %1147 = vmatpush1.msra.mxu0 0.0
      %1148 = vmatprep.subr.mxu0 0.0
      %1149 = vmatpush1.msra.mxu0 0.0
      %1150 = vmatprep.subr.mxu0 0.0
      %1151 = vmatpush1.msra.mxu0 0.0
      %1152 = vmatprep.subr.mxu0 0.0
      %1153 = vmatpush1.msra.mxu0 0.0
      %1154 = vmatprep.mubr.f32.mxu0 0.0
      %1155 = vmatmul.mubr.f32.gmra.mrb[0].mxu0 %v990
      %v1156 = vpop.f32.mrb[0].mxu0
      %v1157 = vadd.f32 0.0, %v1156
      %v1158 = vpop.f32.mrb[0].mxu0
      %1159 = vmatprep.mubr.f32.mxu0 0.0
      %1160 = vmatmul.mubr.f32.gmra.mrb[0].mxu0 %v993
      %v1161 = vpop.f32.mrb[0].mxu0
      %v1162 = vadd.f32 0.0, %v1161
      %v1163 = vpop.f32.mrb[0].mxu0
      %1164 = vmatprep.mubr.f32.mxu0 0.0
      %1165 = vmatmul.mubr.f32.gmra.mrb[0].mxu0 %v996
      %v1166 = vpop.f32.mrb[0].mxu0
      %v1167 = vadd.f32 0.0, %v1166
      %v1168 = vpop.f32.mrb[0].mxu0
      %1169 = vmatprep.mubr.f32.mxu0 0.0
      %1170 = vmatmul.mubr.f32.gmra.mrb[0].mxu0 %v999
      %v1171 = vpop.f32.mrb[0].mxu0
      %v1172 = vadd.f32 0.0, %v1171
      %v1173 = vpop.f32.mrb[0].mxu0
      %1174 = vdwg.mxu0
      %v1175 = vadd.f32 %v744, %v1068
      %v1176 = vadd.f32 %v746, %v1070
      %v1177 = vadd.f32 %v833, %v1157
      %v1178 = vadd.f32 %v750, %v1074
      %v1179 = vadd.f32 %v752, %v1076
      %v1180 = vadd.f32 %v838, %v1162
      %v1181 = vadd.f32 %v756, %v1080
      %v1182 = vadd.f32 %v758, %v1082
      %v1183 = vadd.f32 %v843, %v1167
      %v1184 = vadd.f32 %v762, %v1086
      %v1185 = vadd.f32 %v764, %v1088
      %v1186 = vadd.f32 %v848, %v1172
      %s1187 = scalar_lea.vmem %s1, 96
      %v1188 = vld [vmem:[%s1187] sm:$0xff]
      %v1189 = vld [vmem:[%s1187 + $0x8] sm:$0xff]
      %v1190 = vld [vmem:[%s1187 + $0x10] sm:$0xff]
      %v1191 = vld [vmem:[%s1187 + $0x18] sm:$0xff]
      %1192 = vrot.lane.b32.xlu0 %v264, 110
      %v1193 = vpop.permute.xlu0 %1192
      %1194 = vrot.lane.b32.xlu0 %v265, 110
      %v1195 = vpop.permute.xlu0 %1194
      %1196 = vrot.lane.b32.xlu0 %v266, 110
      %v1197 = vpop.permute.xlu0 %1196
      %1198 = vrot.lane.b32.xlu0 %v267, 110
      %v1199 = vpop.permute.xlu0 %1198
      %1200 = vrot.lane.b32.xlu0 %v268, 110
      %v1201 = vpop.permute.xlu0 %1200
      %1202 = vrot.lane.b32.xlu0 %v269, 110
      %v1203 = vpop.permute.xlu0 %1202
      %1204 = vrot.lane.b32.xlu0 %v270, 110
      %v1205 = vpop.permute.xlu0 %1204
      %1206 = vrot.lane.b32.xlu0 %v271, 110
      %v1207 = vpop.permute.xlu0 %1206
      %1208 = vrot.lane.b32.xlu0 %v272, 110
      %v1209 = vpop.permute.xlu0 %1208
      %1210 = vrot.lane.b32.xlu0 %v273, 110
      %v1211 = vpop.permute.xlu0 %1210
      %1212 = vrot.lane.b32.xlu0 %v274, 110
      %v1213 = vpop.permute.xlu0 %1212
      %1214 = vrot.lane.b32.xlu0 %v275, 110
      %v1215 = vpop.permute.xlu0 %1214
      %1216 = vrot.lane.b32.xlu0 %v276, 110
      %v1217 = vpop.permute.xlu0 %1216
      %1218 = vrot.lane.b32.xlu0 %v277, 110
      %v1219 = vpop.permute.xlu0 %1218
      %1220 = vrot.lane.b32.xlu0 %v278, 110
      %v1221 = vpop.permute.xlu0 %1220
      %1222 = vrot.lane.b32.xlu0 %v279, 110
      %v1223 = vpop.permute.xlu0 %1222
      %1224 = vrot.lane.b32.xlu0 %v280, 110
      %v1225 = vpop.permute.xlu0 %1224
      %1226 = vrot.lane.b32.xlu0 %v281, 110
      %v1227 = vpop.permute.xlu0 %1226
      %1228 = vrot.lane.b32.xlu0 %v282, 110
      %v1229 = vpop.permute.xlu0 %1228
      %1230 = vrot.lane.b32.xlu0 %v283, 110
      %v1231 = vpop.permute.xlu0 %1230
      %1232 = vrot.lane.b32.xlu0 %v284, 110
      %v1233 = vpop.permute.xlu0 %1232
      %1234 = vrot.lane.b32.xlu0 %v285, 110
      %v1235 = vpop.permute.xlu0 %1234
      %1236 = vrot.lane.b32.xlu0 %v286, 110
      %v1237 = vpop.permute.xlu0 %1236
      %1238 = vrot.lane.b32.xlu0 %v287, 110
      %v1239 = vpop.permute.xlu0 %1238
      %1240 = vrot.lane.b32.xlu0 %v288, 110
      %v1241 = vpop.permute.xlu0 %1240
      %1242 = vrot.lane.b32.xlu0 %v289, 110
      %v1243 = vpop.permute.xlu0 %1242
      %1244 = vrot.lane.b32.xlu0 %v290, 110
      %v1245 = vpop.permute.xlu0 %1244
      %1246 = vrot.lane.b32.xlu0 %v291, 110
      %v1247 = vpop.permute.xlu0 %1246
      %1248 = vrot.lane.b32.xlu0 %v292, 110
      %v1249 = vpop.permute.xlu0 %1248
      %1250 = vrot.lane.b32.xlu0 %v293, 110
      %v1251 = vpop.permute.xlu0 %1250
      %1252 = vrot.lane.b32.xlu0 %v294, 110
      %v1253 = vpop.permute.xlu0 %1252
      %1254 = vrot.lane.b32.xlu0 %v295, 110
      %v1255 = vpop.permute.xlu0 %1254
      %1256 = vrot.lane.b32.xlu0 %v296, 110
      %v1257 = vpop.permute.xlu0 %1256
      %1258 = vrot.lane.b32.xlu0 %v297, 110
      %v1259 = vpop.permute.xlu0 %1258
      %1260 = vrot.lane.b32.xlu0 %v298, 110
      %v1261 = vpop.permute.xlu0 %1260
      %1262 = vrot.lane.b32.xlu0 %v299, 110
      %v1263 = vpop.permute.xlu0 %1262
      %vm1264 = vcmask 900096
      %v1265 = vsel %vm1264, %v1193, %v1195
      %v1266 = vsel %vm1264, %v1195, %v1197
      %v1267 = vsel %vm1264, %v1199, %v1201
      %v1268 = vsel %vm1264, %v1201, %v1203
      %v1269 = vsel %vm1264, %v1205, %v1207
      %v1270 = vsel %vm1264, %v1207, %v1209
      %v1271 = vsel %vm1264, %v1211, %v1213
      %v1272 = vsel %vm1264, %v1213, %v1215
      %v1273 = vsel %vm1264, %v1217, %v1219
      %v1274 = vsel %vm1264, %v1219, %v1221
      %v1275 = vsel %vm1264, %v1223, %v1225
      %v1276 = vsel %vm1264, %v1225, %v1227
      %v1277 = vsel %vm1264, %v1229, %v1231
      %v1278 = vsel %vm1264, %v1231, %v1233
      %v1279 = vsel %vm1264, %v1235, %v1237
      %v1280 = vsel %vm1264, %v1237, %v1239
      %v1281 = vsel %vm1264, %v1241, %v1243
      %v1282 = vsel %vm1264, %v1243, %v1245
      %v1283 = vsel %vm1264, %v1247, %v1249
      %v1284 = vsel %vm1264, %v1249, %v1251
      %v1285 = vsel %vm1264, %v1253, %v1255
      %v1286 = vsel %vm1264, %v1255, %v1257
      %v1287 = vsel %vm1264, %v1259, %v1261
      %v1288 = vsel %vm1264, %v1261, %v1263
      %v1326 = vsel %vm478, %v1188, 0
      %v1329 = vsel %vm478, %v1189, 0
      %v1332 = vsel %vm478, %v1190, 0
      %v1335 = vsel %vm478, %v1191, 0
      %1337 = vmatprep.subr.mxu0 %v1266
      %1338 = vmatpush1.msra.mxu0 %v1265
      %1339 = vmatprep.subr.mxu0 %v1268
      %1340 = vmatpush1.msra.mxu0 %v1267
      %1341 = vmatprep.subr.mxu0 %v1270
      %1342 = vmatpush1.msra.mxu0 %v1269
      %1343 = vmatprep.subr.mxu0 %v1272
      %1344 = vmatpush1.msra.mxu0 %v1271
      %1345 = vmatprep.subr.mxu0 %v1274
      %1346 = vmatpush1.msra.mxu0 %v1273
      %1347 = vmatprep.subr.mxu0 %v1276
      %1348 = vmatpush1.msra.mxu0 %v1275
      %1349 = vmatprep.subr.mxu0 %v1278
      %1350 = vmatpush1.msra.mxu0 %v1277
      %1351 = vmatprep.subr.mxu0 %v1280
      %1352 = vmatpush1.msra.mxu0 %v1279
      %1353 = vmatprep.subr.mxu0 %v1282
      %1354 = vmatpush1.msra.mxu0 %v1281
      %1355 = vmatprep.subr.mxu0 %v1284
      %1356 = vmatpush1.msra.mxu0 %v1283
      %1357 = vmatprep.subr.mxu0 %v1286
      %1358 = vmatpush1.msra.mxu0 %v1285
      %1359 = vmatprep.subr.mxu0 %v1288
      %1360 = vmatpush1.msra.mxu0 %v1287
      %1361 = vmatprep.subr.mxu0 0.0
      %1362 = vmatpush1.msra.mxu0 0.0
      %1363 = vmatprep.subr.mxu0 0.0
      %1364 = vmatpush1.msra.mxu0 0.0
      %1365 = vmatprep.subr.mxu0 0.0
      %1366 = vmatpush1.msra.mxu0 0.0
      %1367 = vmatprep.subr.mxu0 0.0
      %1368 = vmatpush1.msra.mxu0 0.0
      %1369 = vmatprep.subr.mxu0 0.0
      %1370 = vmatpush1.msra.mxu0 0.0
      %1371 = vmatprep.subr.mxu0 0.0
      %1372 = vmatpush1.msra.mxu0 0.0
      %1373 = vmatprep.subr.mxu0 0.0
      %1374 = vmatpush1.msra.mxu0 0.0
      %1375 = vmatprep.subr.mxu0 0.0
      %1376 = vmatpush1.msra.mxu0 0.0
      %1377 = vmatprep.subr.mxu0 0.0
      %1378 = vmatpush1.msra.mxu0 0.0
      %1379 = vmatprep.subr.mxu0 0.0
      %1380 = vmatpush1.msra.mxu0 0.0
      %1381 = vmatprep.subr.mxu0 0.0
      %1382 = vmatpush1.msra.mxu0 0.0
      %1383 = vmatprep.subr.mxu0 0.0
      %1384 = vmatpush1.msra.mxu0 0.0
      %1385 = vmatprep.subr.mxu0 0.0
      %1386 = vmatpush1.msra.mxu0 0.0
      %1387 = vmatprep.subr.mxu0 0.0
      %1388 = vmatpush1.msra.mxu0 0.0
      %1389 = vmatprep.subr.mxu0 0.0
      %1390 = vmatpush1.msra.mxu0 0.0
      %1391 = vmatprep.subr.mxu0 0.0
      %1392 = vmatpush1.msra.mxu0 0.0
      %1393 = vmatprep.subr.mxu0 0.0
      %1394 = vmatpush1.msra.mxu0 0.0
      %1395 = vmatprep.subr.mxu0 0.0
      %1396 = vmatpush1.msra.mxu0 0.0
      %1397 = vmatprep.subr.mxu0 0.0
      %1398 = vmatpush1.msra.mxu0 0.0
      %1399 = vmatprep.subr.mxu0 0.0
      %1400 = vmatpush1.msra.mxu0 0.0
      %1401 = vmatprep.mubr.f32.mxu0 0.0
      %1402 = vmatmul.mubr.f32.gmra.mrb[0].mxu0 %v1326
      %v1403 = vpop.f32.mrb[0].mxu0
      %v1404 = vadd.f32 0.0, %v1403
      %v1405 = vpop.f32.mrb[0].mxu0
      %v1406 = vadd.f32 0.0, %v1405
      %1407 = vmatprep.mubr.f32.mxu0 0.0
      %1408 = vmatmul.mubr.f32.gmra.mrb[0].mxu0 %v1329
      %v1409 = vpop.f32.mrb[0].mxu0
      %v1410 = vadd.f32 0.0, %v1409
      %v1411 = vpop.f32.mrb[0].mxu0
      %v1412 = vadd.f32 0.0, %v1411
      %1413 = vmatprep.mubr.f32.mxu0 0.0
      %1414 = vmatmul.mubr.f32.gmra.mrb[0].mxu0 %v1332
      %v1415 = vpop.f32.mrb[0].mxu0
      %v1416 = vadd.f32 0.0, %v1415
      %v1417 = vpop.f32.mrb[0].mxu0
      %v1418 = vadd.f32 0.0, %v1417
      %1419 = vmatprep.mubr.f32.mxu0 0.0
      %1420 = vmatmul.mubr.f32.gmra.mrb[0].mxu0 %v1335
      %v1421 = vpop.f32.mrb[0].mxu0
      %v1422 = vadd.f32 0.0, %v1421
      %v1423 = vpop.f32.mrb[0].mxu0
      %v1424 = vadd.f32 0.0, %v1423
      %1425 = vdwg.mxu0
      %1426 = vmatprep.subr.mxu0 0.0
      %1427 = vmatpush1.msra.mxu0 %v1197
      %1428 = vmatprep.subr.mxu0 0.0
      %1429 = vmatpush1.msra.mxu0 %v1203
      %1430 = vmatprep.subr.mxu0 0.0
      %1431 = vmatpush1.msra.mxu0 %v1209
      %1432 = vmatprep.subr.mxu0 0.0
      %1433 = vmatpush1.msra.mxu0 %v1215
      %1434 = vmatprep.subr.mxu0 0.0
      %1435 = vmatpush1.msra.mxu0 %v1221
      %1436 = vmatprep.subr.mxu0 0.0
      %1437 = vmatpush1.msra.mxu0 %v1227
      %1438 = vmatprep.subr.mxu0 0.0
      %1439 = vmatpush1.msra.mxu0 %v1233
      %1440 = vmatprep.subr.mxu0 0.0
      %1441 = vmatpush1.msra.mxu0 %v1239
      %1442 = vmatprep.subr.mxu0 0.0
      %1443 = vmatpush1.msra.mxu0 %v1245
      %1444 = vmatprep.subr.mxu0 0.0
      %1445 = vmatpush1.msra.mxu0 %v1251
      %1446 = vmatprep.subr.mxu0 0.0
      %1447 = vmatpush1.msra.mxu0 %v1257
      %1448 = vmatprep.subr.mxu0 0.0
      %1449 = vmatpush1.msra.mxu0 %v1263
      %1450 = vmatprep.subr.mxu0 0.0
      %1451 = vmatpush1.msra.mxu0 0.0
      %1452 = vmatprep.subr.mxu0 0.0
      %1453 = vmatpush1.msra.mxu0 0.0
      %1454 = vmatprep.subr.mxu0 0.0
      %1455 = vmatpush1.msra.mxu0 0.0
      %1456 = vmatprep.subr.mxu0 0.0
      %1457 = vmatpush1.msra.mxu0 0.0
      %1458 = vmatprep.subr.mxu0 0.0
      %1459 = vmatpush1.msra.mxu0 0.0
      %1460 = vmatprep.subr.mxu0 0.0
      %1461 = vmatpush1.msra.mxu0 0.0
      %1462 = vmatprep.subr.mxu0 0.0
      %1463 = vmatpush1.msra.mxu0 0.0
      %1464 = vmatprep.subr.mxu0 0.0
      %1465 = vmatpush1.msra.mxu0 0.0
      %1466 = vmatprep.subr.mxu0 0.0
      %1467 = vmatpush1.msra.mxu0 0.0
      %1468 = vmatprep.subr.mxu0 0.0
      %1469 = vmatpush1.msra.mxu0 0.0
      %1470 = vmatprep.subr.mxu0 0.0
      %1471 = vmatpush1.msra.mxu0 0.0
      %1472 = vmatprep.subr.mxu0 0.0
      %1473 = vmatpush1.msra.mxu0 0.0
      %1474 = vmatprep.subr.mxu0 0.0
      %1475 = vmatpush1.msra.mxu0 0.0
      %1476 = vmatprep.subr.mxu0 0.0
      %1477 = vmatpush1.msra.mxu0 0.0
      %1478 = vmatprep.subr.mxu0 0.0
      %1479 = vmatpush1.msra.mxu0 0.0
      %1480 = vmatprep.subr.mxu0 0.0
      %1481 = vmatpush1.msra.mxu0 0.0
      %1482 = vmatprep.subr.mxu0 0.0
      %1483 = vmatpush1.msra.mxu0 0.0
      %1484 = vmatprep.subr.mxu0 0.0
      %1485 = vmatpush1.msra.mxu0 0.0
      %1486 = vmatprep.subr.mxu0 0.0
      %1487 = vmatpush1.msra.mxu0 0.0
      %1488 = vmatprep.subr.mxu0 0.0
      %1489 = vmatpush1.msra.mxu0 0.0
      %1490 = vmatprep.mubr.f32.mxu0 0.0
      %1491 = vmatmul.mubr.f32.gmra.mrb[0].mxu0 %v1326
      %v1492 = vpop.f32.mrb[0].mxu0
      %v1493 = vadd.f32 0.0, %v1492
      %v1494 = vpop.f32.mrb[0].mxu0
      %1495 = vmatprep.mubr.f32.mxu0 0.0
      %1496 = vmatmul.mubr.f32.gmra.mrb[0].mxu0 %v1329
      %v1497 = vpop.f32.mrb[0].mxu0
      %v1498 = vadd.f32 0.0, %v1497
      %v1499 = vpop.f32.mrb[0].mxu0
      %1500 = vmatprep.mubr.f32.mxu0 0.0
      %1501 = vmatmul.mubr.f32.gmra.mrb[0].mxu0 %v1332
      %v1502 = vpop.f32.mrb[0].mxu0
      %v1503 = vadd.f32 0.0, %v1502
      %v1504 = vpop.f32.mrb[0].mxu0
      %1505 = vmatprep.mubr.f32.mxu0 0.0
      %1506 = vmatmul.mubr.f32.gmra.mrb[0].mxu0 %v1335
      %v1507 = vpop.f32.mrb[0].mxu0
      %v1508 = vadd.f32 0.0, %v1507
      %v1509 = vpop.f32.mrb[0].mxu0
      %1510 = vdwg.mxu0
      %v1511 = vadd.f32 %v1175, %v1404
      %v1512 = vadd.f32 %v1176, %v1406
      %v1513 = vadd.f32 %v1177, %v1493
      %v1514 = vadd.f32 %v1178, %v1410
      %v1515 = vadd.f32 %v1179, %v1412
      %v1516 = vadd.f32 %v1180, %v1498
      %v1517 = vadd.f32 %v1181, %v1416
      %v1518 = vadd.f32 %v1182, %v1418
      %v1519 = vadd.f32 %v1183, %v1503
      %v1520 = vadd.f32 %v1184, %v1422
      %v1521 = vadd.f32 %v1185, %v1424
      %v1522 = vadd.f32 %v1186, %v1508
      %s1523 = scalar_lea.vmem %s1, 128
      %v1524 = vld [vmem:[%s1523] sm:$0xff]
      %v1525 = vld [vmem:[%s1523 + $0x8] sm:$0xff]
      %v1526 = vld [vmem:[%s1523 + $0x10] sm:$0xff]
      %v1527 = vld [vmem:[%s1523 + $0x18] sm:$0xff]
      %1528 = vrot.lane.b32.xlu0 %v264, 109
      %v1529 = vpop.permute.xlu0 %1528
      %1530 = vrot.lane.b32.xlu0 %v265, 109
      %v1531 = vpop.permute.xlu0 %1530
      %1532 = vrot.lane.b32.xlu0 %v266, 109
      %v1533 = vpop.permute.xlu0 %1532
      %1534 = vrot.lane.b32.xlu0 %v267, 109
      %v1535 = vpop.permute.xlu0 %1534
      %1536 = vrot.lane.b32.xlu0 %v268, 109
      %v1537 = vpop.permute.xlu0 %1536
      %1538 = vrot.lane.b32.xlu0 %v269, 109
      %v1539 = vpop.permute.xlu0 %1538
      %1540 = vrot.lane.b32.xlu0 %v270, 109
      %v1541 = vpop.permute.xlu0 %1540
      %1542 = vrot.lane.b32.xlu0 %v271, 109
      %v1543 = vpop.permute.xlu0 %1542
      %1544 = vrot.lane.b32.xlu0 %v272, 109
      %v1545 = vpop.permute.xlu0 %1544
      %1546 = vrot.lane.b32.xlu0 %v273, 109
      %v1547 = vpop.permute.xlu0 %1546
      %1548 = vrot.lane.b32.xlu0 %v274, 109
      %v1549 = vpop.permute.xlu0 %1548
      %1550 = vrot.lane.b32.xlu0 %v275, 109
      %v1551 = vpop.permute.xlu0 %1550
      %1552 = vrot.lane.b32.xlu0 %v276, 109
      %v1553 = vpop.permute.xlu0 %1552
      %1554 = vrot.lane.b32.xlu0 %v277, 109
      %v1555 = vpop.permute.xlu0 %1554
      %1556 = vrot.lane.b32.xlu0 %v278, 109
      %v1557 = vpop.permute.xlu0 %1556
      %1558 = vrot.lane.b32.xlu0 %v279, 109
      %v1559 = vpop.permute.xlu0 %1558
      %1560 = vrot.lane.b32.xlu0 %v280, 109
      %v1561 = vpop.permute.xlu0 %1560
      %1562 = vrot.lane.b32.xlu0 %v281, 109
      %v1563 = vpop.permute.xlu0 %1562
      %1564 = vrot.lane.b32.xlu0 %v282, 109
      %v1565 = vpop.permute.xlu0 %1564
      %1566 = vrot.lane.b32.xlu0 %v283, 109
      %v1567 = vpop.permute.xlu0 %1566
      %1568 = vrot.lane.b32.xlu0 %v284, 109
      %v1569 = vpop.permute.xlu0 %1568
      %1570 = vrot.lane.b32.xlu0 %v285, 109
      %v1571 = vpop.permute.xlu0 %1570
      %1572 = vrot.lane.b32.xlu0 %v286, 109
      %v1573 = vpop.permute.xlu0 %1572
      %1574 = vrot.lane.b32.xlu0 %v287, 109
      %v1575 = vpop.permute.xlu0 %1574
      %1576 = vrot.lane.b32.xlu0 %v288, 109
      %v1577 = vpop.permute.xlu0 %1576
      %1578 = vrot.lane.b32.xlu0 %v289, 109
      %v1579 = vpop.permute.xlu0 %1578
      %1580 = vrot.lane.b32.xlu0 %v290, 109
      %v1581 = vpop.permute.xlu0 %1580
      %1582 = vrot.lane.b32.xlu0 %v291, 109
      %v1583 = vpop.permute.xlu0 %1582
      %1584 = vrot.lane.b32.xlu0 %v292, 109
      %v1585 = vpop.permute.xlu0 %1584
      %1586 = vrot.lane.b32.xlu0 %v293, 109
      %v1587 = vpop.permute.xlu0 %1586
      %1588 = vrot.lane.b32.xlu0 %v294, 109
      %v1589 = vpop.permute.xlu0 %1588
      %1590 = vrot.lane.b32.xlu0 %v295, 109
      %v1591 = vpop.permute.xlu0 %1590
      %1592 = vrot.lane.b32.xlu0 %v296, 109
      %v1593 = vpop.permute.xlu0 %1592
      %1594 = vrot.lane.b32.xlu0 %v297, 109
      %v1595 = vpop.permute.xlu0 %1594
      %1596 = vrot.lane.b32.xlu0 %v298, 109
      %v1597 = vpop.permute.xlu0 %1596
      %1598 = vrot.lane.b32.xlu0 %v299, 109
      %v1599 = vpop.permute.xlu0 %1598
      %vm1600 = vcmask 891904
      %v1601 = vsel %vm1600, %v1529, %v1531
      %v1602 = vsel %vm1600, %v1531, %v1533
      %v1603 = vsel %vm1600, %v1535, %v1537
      %v1604 = vsel %vm1600, %v1537, %v1539
      %v1605 = vsel %vm1600, %v1541, %v1543
      %v1606 = vsel %vm1600, %v1543, %v1545
      %v1607 = vsel %vm1600, %v1547, %v1549
      %v1608 = vsel %vm1600, %v1549, %v1551
      %v1609 = vsel %vm1600, %v1553, %v1555
      %v1610 = vsel %vm1600, %v1555, %v1557
      %v1611 = vsel %vm1600, %v1559, %v1561
      %v1612 = vsel %vm1600, %v1561, %v1563
      %v1613 = vsel %vm1600, %v1565, %v1567
      %v1614 = vsel %vm1600, %v1567, %v1569
      %v1615 = vsel %vm1600, %v1571, %v1573
      %v1616 = vsel %vm1600, %v1573, %v1575
      %v1617 = vsel %vm1600, %v1577, %v1579
      %v1618 = vsel %vm1600, %v1579, %v1581
      %v1619 = vsel %vm1600, %v1583, %v1585
      %v1620 = vsel %vm1600, %v1585, %v1587
      %v1621 = vsel %vm1600, %v1589, %v1591
      %v1622 = vsel %vm1600, %v1591, %v1593
      %v1623 = vsel %vm1600, %v1595, %v1597
      %v1624 = vsel %vm1600, %v1597, %v1599
      %v1662 = vsel %vm478, %v1524, 0
      %v1665 = vsel %vm478, %v1525, 0
      %v1668 = vsel %vm478, %v1526, 0
      %v1671 = vsel %vm478, %v1527, 0
      %1673 = vmatprep.subr.mxu0 %v1602
      %1674 = vmatpush1.msra.mxu0 %v1601
      %1675 = vmatprep.subr.mxu0 %v1604
      %1676 = vmatpush1.msra.mxu0 %v1603
      %1677 = vmatprep.subr.mxu0 %v1606
      %1678 = vmatpush1.msra.mxu0 %v1605
      %1679 = vmatprep.subr.mxu0 %v1608
      %1680 = vmatpush1.msra.mxu0 %v1607
      %1681 = vmatprep.subr.mxu0 %v1610
      %1682 = vmatpush1.msra.mxu0 %v1609
      %1683 = vmatprep.subr.mxu0 %v1612
      %1684 = vmatpush1.msra.mxu0 %v1611
      %1685 = vmatprep.subr.mxu0 %v1614
      %1686 = vmatpush1.msra.mxu0 %v1613
      %1687 = vmatprep.subr.mxu0 %v1616
      %1688 = vmatpush1.msra.mxu0 %v1615
      %1689 = vmatprep.subr.mxu0 %v1618
      %1690 = vmatpush1.msra.mxu0 %v1617
      %1691 = vmatprep.subr.mxu0 %v1620
      %1692 = vmatpush1.msra.mxu0 %v1619
      %1693 = vmatprep.subr.mxu0 %v1622
      %1694 = vmatpush1.msra.mxu0 %v1621
      %1695 = vmatprep.subr.mxu0 %v1624
      %1696 = vmatpush1.msra.mxu0 %v1623
      %1697 = vmatprep.subr.mxu0 0.0
      %1698 = vmatpush1.msra.mxu0 0.0
      %1699 = vmatprep.subr.mxu0 0.0
      %1700 = vmatpush1.msra.mxu0 0.0
      %1701 = vmatprep.subr.mxu0 0.0
      %1702 = vmatpush1.msra.mxu0 0.0
      %1703 = vmatprep.subr.mxu0 0.0
      %1704 = vmatpush1.msra.mxu0 0.0
      %1705 = vmatprep.subr.mxu0 0.0
      %1706 = vmatpush1.msra.mxu0 0.0
      %1707 = vmatprep.subr.mxu0 0.0
      %1708 = vmatpush1.msra.mxu0 0.0
      %1709 = vmatprep.subr.mxu0 0.0
      %1710 = vmatpush1.msra.mxu0 0.0
      %1711 = vmatprep.subr.mxu0 0.0
      %1712 = vmatpush1.msra.mxu0 0.0
      %1713 = vmatprep.subr.mxu0 0.0
      %1714 = vmatpush1.msra.mxu0 0.0
      %1715 = vmatprep.subr.mxu0 0.0
      %1716 = vmatpush1.msra.mxu0 0.0
      %1717 = vmatprep.subr.mxu0 0.0
      %1718 = vmatpush1.msra.mxu0 0.0
      %1719 = vmatprep.subr.mxu0 0.0
      %1720 = vmatpush1.msra.mxu0 0.0
      %1721 = vmatprep.subr.mxu0 0.0
      %1722 = vmatpush1.msra.mxu0 0.0
      %1723 = vmatprep.subr.mxu0 0.0
      %1724 = vmatpush1.msra.mxu0 0.0
      %1725 = vmatprep.subr.mxu0 0.0
      %1726 = vmatpush1.msra.mxu0 0.0
      %1727 = vmatprep.subr.mxu0 0.0
      %1728 = vmatpush1.msra.mxu0 0.0
      %1729 = vmatprep.subr.mxu0 0.0
      %1730 = vmatpush1.msra.mxu0 0.0
      %1731 = vmatprep.subr.mxu0 0.0
      %1732 = vmatpush1.msra.mxu0 0.0
      %1733 = vmatprep.subr.mxu0 0.0
      %1734 = vmatpush1.msra.mxu0 0.0
      %1735 = vmatprep.subr.mxu0 0.0
      %1736 = vmatpush1.msra.mxu0 0.0
      %1737 = vmatprep.mubr.f32.mxu0 0.0
      %1738 = vmatmul.mubr.f32.gmra.mrb[0].mxu0 %v1662
      %v1739 = vpop.f32.mrb[0].mxu0
      %v1740 = vadd.f32 0.0, %v1739
      %v1741 = vpop.f32.mrb[0].mxu0
      %v1742 = vadd.f32 0.0, %v1741
      %1743 = vmatprep.mubr.f32.mxu0 0.0
      %1744 = vmatmul.mubr.f32.gmra.mrb[0].mxu0 %v1665
      %v1745 = vpop.f32.mrb[0].mxu0
      %v1746 = vadd.f32 0.0, %v1745
      %v1747 = vpop.f32.mrb[0].mxu0
      %v1748 = vadd.f32 0.0, %v1747
      %1749 = vmatprep.mubr.f32.mxu0 0.0
      %1750 = vmatmul.mubr.f32.gmra.mrb[0].mxu0 %v1668
      %v1751 = vpop.f32.mrb[0].mxu0
      %v1752 = vadd.f32 0.0, %v1751
      %v1753 = vpop.f32.mrb[0].mxu0
      %v1754 = vadd.f32 0.0, %v1753
      %1755 = vmatprep.mubr.f32.mxu0 0.0
      %1756 = vmatmul.mubr.f32.gmra.mrb[0].mxu0 %v1671
      %v1757 = vpop.f32.mrb[0].mxu0
      %v1758 = vadd.f32 0.0, %v1757
      %v1759 = vpop.f32.mrb[0].mxu0
      %v1760 = vadd.f32 0.0, %v1759
      %1761 = vdwg.mxu0
      %1762 = vmatprep.subr.mxu0 0.0
      %1763 = vmatpush1.msra.mxu0 %v1533
      %1764 = vmatprep.subr.mxu0 0.0
      %1765 = vmatpush1.msra.mxu0 %v1539
      %1766 = vmatprep.subr.mxu0 0.0
      %1767 = vmatpush1.msra.mxu0 %v1545
      %1768 = vmatprep.subr.mxu0 0.0
      %1769 = vmatpush1.msra.mxu0 %v1551
      %1770 = vmatprep.subr.mxu0 0.0
      %1771 = vmatpush1.msra.mxu0 %v1557
      %1772 = vmatprep.subr.mxu0 0.0
      %1773 = vmatpush1.msra.mxu0 %v1563
      %1774 = vmatprep.subr.mxu0 0.0
      %1775 = vmatpush1.msra.mxu0 %v1569
      %1776 = vmatprep.subr.mxu0 0.0
      %1777 = vmatpush1.msra.mxu0 %v1575
      %1778 = vmatprep.subr.mxu0 0.0
      %1779 = vmatpush1.msra.mxu0 %v1581
      %1780 = vmatprep.subr.mxu0 0.0
      %1781 = vmatpush1.msra.mxu0 %v1587
      %1782 = vmatprep.subr.mxu0 0.0
      %1783 = vmatpush1.msra.mxu0 %v1593
      %1784 = vmatprep.subr.mxu0 0.0
      %1785 = vmatpush1.msra.mxu0 %v1599
      %1786 = vmatprep.subr.mxu0 0.0
      %1787 = vmatpush1.msra.mxu0 0.0
      %1788 = vmatprep.subr.mxu0 0.0
      %1789 = vmatpush1.msra.mxu0 0.0
      %1790 = vmatprep.subr.mxu0 0.0
      %1791 = vmatpush1.msra.mxu0 0.0
      %1792 = vmatprep.subr.mxu0 0.0
      %1793 = vmatpush1.msra.mxu0 0.0
      %1794 = vmatprep.subr.mxu0 0.0
      %1795 = vmatpush1.msra.mxu0 0.0
      %1796 = vmatprep.subr.mxu0 0.0
      %1797 = vmatpush1.msra.mxu0 0.0
      %1798 = vmatprep.subr.mxu0 0.0
      %1799 = vmatpush1.msra.mxu0 0.0
      %1800 = vmatprep.subr.mxu0 0.0
      %1801 = vmatpush1.msra.mxu0 0.0
      %1802 = vmatprep.subr.mxu0 0.0
      %1803 = vmatpush1.msra.mxu0 0.0
      %1804 = vmatprep.subr.mxu0 0.0
      %1805 = vmatpush1.msra.mxu0 0.0
      %1806 = vmatprep.subr.mxu0 0.0
      %1807 = vmatpush1.msra.mxu0 0.0
      %1808 = vmatprep.subr.mxu0 0.0
      %1809 = vmatpush1.msra.mxu0 0.0
      %1810 = vmatprep.subr.mxu0 0.0
      %1811 = vmatpush1.msra.mxu0 0.0
      %1812 = vmatprep.subr.mxu0 0.0
      %1813 = vmatpush1.msra.mxu0 0.0
      %1814 = vmatprep.subr.mxu0 0.0
      %1815 = vmatpush1.msra.mxu0 0.0
      %1816 = vmatprep.subr.mxu0 0.0
      %1817 = vmatpush1.msra.mxu0 0.0
      %1818 = vmatprep.subr.mxu0 0.0
      %1819 = vmatpush1.msra.mxu0 0.0
      %1820 = vmatprep.subr.mxu0 0.0
      %1821 = vmatpush1.msra.mxu0 0.0
      %1822 = vmatprep.subr.mxu0 0.0
      %1823 = vmatpush1.msra.mxu0 0.0
      %1824 = vmatprep.subr.mxu0 0.0
      %1825 = vmatpush1.msra.mxu0 0.0
      %1826 = vmatprep.mubr.f32.mxu0 0.0
      %1827 = vmatmul.mubr.f32.gmra.mrb[0].mxu0 %v1662
      %v1828 = vpop.f32.mrb[0].mxu0
      %v1829 = vadd.f32 0.0, %v1828
      %v1830 = vpop.f32.mrb[0].mxu0
      %1831 = vmatprep.mubr.f32.mxu0 0.0
      %1832 = vmatmul.mubr.f32.gmra.mrb[0].mxu0 %v1665
      %v1833 = vpop.f32.mrb[0].mxu0
      %v1834 = vadd.f32 0.0, %v1833
      %v1835 = vpop.f32.mrb[0].mxu0
      %1836 = vmatprep.mubr.f32.mxu0 0.0
      %1837 = vmatmul.mubr.f32.gmra.mrb[0].mxu0 %v1668
      %v1838 = vpop.f32.mrb[0].mxu0
      %v1839 = vadd.f32 0.0, %v1838
      %v1840 = vpop.f32.mrb[0].mxu0
      %1841 = vmatprep.mubr.f32.mxu0 0.0
      %1842 = vmatmul.mubr.f32.gmra.mrb[0].mxu0 %v1671
      %v1843 = vpop.f32.mrb[0].mxu0
      %v1844 = vadd.f32 0.0, %v1843
      %v1845 = vpop.f32.mrb[0].mxu0
      %1846 = vdwg.mxu0
      %v1847 = vadd.f32 %v1511, %v1740
      %v1848 = vadd.f32 %v1512, %v1742
      %v1849 = vadd.f32 %v1513, %v1829
      %v1850 = vadd.f32 %v1514, %v1746
      %v1851 = vadd.f32 %v1515, %v1748
      %v1852 = vadd.f32 %v1516, %v1834
      %v1853 = vadd.f32 %v1517, %v1752
      %v1854 = vadd.f32 %v1518, %v1754
      %v1855 = vadd.f32 %v1519, %v1839
      %v1856 = vadd.f32 %v1520, %v1758
      %v1857 = vadd.f32 %v1521, %v1760
      %v1858 = vadd.f32 %v1522, %v1844
      %s1859 = scalar_lea.vmem %s1, 160
      %v1860 = vld [vmem:[%s1859] sm:$0xff]
      %v1861 = vld [vmem:[%s1859 + $0x8] sm:$0xff]
      %v1862 = vld [vmem:[%s1859 + $0x10] sm:$0xff]
      %v1863 = vld [vmem:[%s1859 + $0x18] sm:$0xff]
      %1864 = vrot.lane.b32.xlu0 %v264, 108
      %v1865 = vpop.permute.xlu0 %1864
      %1866 = vrot.lane.b32.xlu0 %v265, 108
      %v1867 = vpop.permute.xlu0 %1866
      %1868 = vrot.lane.b32.xlu0 %v266, 108
      %v1869 = vpop.permute.xlu0 %1868
      %1870 = vrot.lane.b32.xlu0 %v267, 108
      %v1871 = vpop.permute.xlu0 %1870
      %1872 = vrot.lane.b32.xlu0 %v268, 108
      %v1873 = vpop.permute.xlu0 %1872
      %1874 = vrot.lane.b32.xlu0 %v269, 108
      %v1875 = vpop.permute.xlu0 %1874
      %1876 = vrot.lane.b32.xlu0 %v270, 108
      %v1877 = vpop.permute.xlu0 %1876
      %1878 = vrot.lane.b32.xlu0 %v271, 108
      %v1879 = vpop.permute.xlu0 %1878
      %1880 = vrot.lane.b32.xlu0 %v272, 108
      %v1881 = vpop.permute.xlu0 %1880
      %1882 = vrot.lane.b32.xlu0 %v273, 108
      %v1883 = vpop.permute.xlu0 %1882
      %1884 = vrot.lane.b32.xlu0 %v274, 108
      %v1885 = vpop.permute.xlu0 %1884
      %1886 = vrot.lane.b32.xlu0 %v275, 108
      %v1887 = vpop.permute.xlu0 %1886
      %1888 = vrot.lane.b32.xlu0 %v276, 108
      %v1889 = vpop.permute.xlu0 %1888
      %1890 = vrot.lane.b32.xlu0 %v277, 108
      %v1891 = vpop.permute.xlu0 %1890
      %1892 = vrot.lane.b32.xlu0 %v278, 108
      %v1893 = vpop.permute.xlu0 %1892
      %1894 = vrot.lane.b32.xlu0 %v279, 108
      %v1895 = vpop.permute.xlu0 %1894
      %1896 = vrot.lane.b32.xlu0 %v280, 108
      %v1897 = vpop.permute.xlu0 %1896
      %1898 = vrot.lane.b32.xlu0 %v281, 108
      %v1899 = vpop.permute.xlu0 %1898
      %1900 = vrot.lane.b32.xlu0 %v282, 108
      %v1901 = vpop.permute.xlu0 %1900
      %1902 = vrot.lane.b32.xlu0 %v283, 108
      %v1903 = vpop.permute.xlu0 %1902
      %1904 = vrot.lane.b32.xlu0 %v284, 108
      %v1905 = vpop.permute.xlu0 %1904
      %1906 = vrot.lane.b32.xlu0 %v285, 108
      %v1907 = vpop.permute.xlu0 %1906
      %1908 = vrot.lane.b32.xlu0 %v286, 108
      %v1909 = vpop.permute.xlu0 %1908
      %1910 = vrot.lane.b32.xlu0 %v287, 108
      %v1911 = vpop.permute.xlu0 %1910
      %1912 = vrot.lane.b32.xlu0 %v288, 108
      %v1913 = vpop.permute.xlu0 %1912
      %1914 = vrot.lane.b32.xlu0 %v289, 108
      %v1915 = vpop.permute.xlu0 %1914
      %1916 = vrot.lane.b32.xlu0 %v290, 108
      %v1917 = vpop.permute.xlu0 %1916
      %1918 = vrot.lane.b32.xlu0 %v291, 108
      %v1919 = vpop.permute.xlu0 %1918
      %1920 = vrot.lane.b32.xlu0 %v292, 108
      %v1921 = vpop.permute.xlu0 %1920
      %1922 = vrot.lane.b32.xlu0 %v293, 108
      %v1923 = vpop.permute.xlu0 %1922
      %1924 = vrot.lane.b32.xlu0 %v294, 108
      %v1925 = vpop.permute.xlu0 %1924
      %1926 = vrot.lane.b32.xlu0 %v295, 108
      %v1927 = vpop.permute.xlu0 %1926
      %1928 = vrot.lane.b32.xlu0 %v296, 108
      %v1929 = vpop.permute.xlu0 %1928
      %1930 = vrot.lane.b32.xlu0 %v297, 108
      %v1931 = vpop.permute.xlu0 %1930
      %1932 = vrot.lane.b32.xlu0 %v298, 108
      %v1933 = vpop.permute.xlu0 %1932
      %1934 = vrot.lane.b32.xlu0 %v299, 108
      %v1935 = vpop.permute.xlu0 %1934
      %vm1936 = vcmask 883712
      %v1937 = vsel %vm1936, %v1865, %v1867
      %v1938 = vsel %vm1936, %v1867, %v1869
      %v1939 = vsel %vm1936, %v1871, %v1873
      %v1940 = vsel %vm1936, %v1873, %v1875
      %v1941 = vsel %vm1936, %v1877, %v1879
      %v1942 = vsel %vm1936, %v1879, %v1881
      %v1943 = vsel %vm1936, %v1883, %v1885
      %v1944 = vsel %vm1936, %v1885, %v1887
      %v1945 = vsel %vm1936, %v1889, %v1891
      %v1946 = vsel %vm1936, %v1891, %v1893
      %v1947 = vsel %vm1936, %v1895, %v1897
      %v1948 = vsel %vm1936, %v1897, %v1899
      %v1949 = vsel %vm1936, %v1901, %v1903
      %v1950 = vsel %vm1936, %v1903, %v1905
      %v1951 = vsel %vm1936, %v1907, %v1909
      %v1952 = vsel %vm1936, %v1909, %v1911
      %v1953 = vsel %vm1936, %v1913, %v1915
      %v1954 = vsel %vm1936, %v1915, %v1917
      %v1955 = vsel %vm1936, %v1919, %v1921
      %v1956 = vsel %vm1936, %v1921, %v1923
      %v1957 = vsel %vm1936, %v1925, %v1927
      %v1958 = vsel %vm1936, %v1927, %v1929
      %v1959 = vsel %vm1936, %v1931, %v1933
      %v1960 = vsel %vm1936, %v1933, %v1935
      %v1998 = vsel %vm478, %v1860, 0
      %v2001 = vsel %vm478, %v1861, 0
      %v2004 = vsel %vm478, %v1862, 0
      %v2007 = vsel %vm478, %v1863, 0
      %2009 = vmatprep.subr.mxu0 %v1938
      %2010 = vmatpush1.msra.mxu0 %v1937
      %2011 = vmatprep.subr.mxu0 %v1940
      %2012 = vmatpush1.msra.mxu0 %v1939
      %2013 = vmatprep.subr.mxu0 %v1942
      %2014 = vmatpush1.msra.mxu0 %v1941
      %2015 = vmatprep.subr.mxu0 %v1944
      %2016 = vmatpush1.msra.mxu0 %v1943
      %2017 = vmatprep.subr.mxu0 %v1946
      %2018 = vmatpush1.msra.mxu0 %v1945
      %2019 = vmatprep.subr.mxu0 %v1948
      %2020 = vmatpush1.msra.mxu0 %v1947
      %2021 = vmatprep.subr.mxu0 %v1950
      %2022 = vmatpush1.msra.mxu0 %v1949
      %2023 = vmatprep.subr.mxu0 %v1952
      %2024 = vmatpush1.msra.mxu0 %v1951
      %2025 = vmatprep.subr.mxu0 %v1954
      %2026 = vmatpush1.msra.mxu0 %v1953
      %2027 = vmatprep.subr.mxu0 %v1956
      %2028 = vmatpush1.msra.mxu0 %v1955
      %2029 = vmatprep.subr.mxu0 %v1958
      %2030 = vmatpush1.msra.mxu0 %v1957
      %2031 = vmatprep.subr.mxu0 %v1960
      %2032 = vmatpush1.msra.mxu0 %v1959
      %2033 = vmatprep.subr.mxu0 0.0
      %2034 = vmatpush1.msra.mxu0 0.0
      %2035 = vmatprep.subr.mxu0 0.0
      %2036 = vmatpush1.msra.mxu0 0.0
      %2037 = vmatprep.subr.mxu0 0.0
      %2038 = vmatpush1.msra.mxu0 0.0
      %2039 = vmatprep.subr.mxu0 0.0
      %2040 = vmatpush1.msra.mxu0 0.0
      %2041 = vmatprep.subr.mxu0 0.0
      %2042 = vmatpush1.msra.mxu0 0.0
      %2043 = vmatprep.subr.mxu0 0.0
      %2044 = vmatpush1.msra.mxu0 0.0
      %2045 = vmatprep.subr.mxu0 0.0
      %2046 = vmatpush1.msra.mxu0 0.0
      %2047 = vmatprep.subr.mxu0 0.0
      %2048 = vmatpush1.msra.mxu0 0.0
      %2049 = vmatprep.subr.mxu0 0.0
      %2050 = vmatpush1.msra.mxu0 0.0
      %2051 = vmatprep.subr.mxu0 0.0
      %2052 = vmatpush1.msra.mxu0 0.0
      %2053 = vmatprep.subr.mxu0 0.0
      %2054 = vmatpush1.msra.mxu0 0.0
      %2055 = vmatprep.subr.mxu0 0.0
      %2056 = vmatpush1.msra.mxu0 0.0
      %2057 = vmatprep.subr.mxu0 0.0
      %2058 = vmatpush1.msra.mxu0 0.0
      %2059 = vmatprep.subr.mxu0 0.0
      %2060 = vmatpush1.msra.mxu0 0.0
      %2061 = vmatprep.subr.mxu0 0.0
      %2062 = vmatpush1.msra.mxu0 0.0
      %2063 = vmatprep.subr.mxu0 0.0
      %2064 = vmatpush1.msra.mxu0 0.0
      %2065 = vmatprep.subr.mxu0 0.0
      %2066 = vmatpush1.msra.mxu0 0.0
      %2067 = vmatprep.subr.mxu0 0.0
      %2068 = vmatpush1.msra.mxu0 0.0
      %2069 = vmatprep.subr.mxu0 0.0
      %2070 = vmatpush1.msra.mxu0 0.0
      %2071 = vmatprep.subr.mxu0 0.0
      %2072 = vmatpush1.msra.mxu0 0.0
      %2073 = vmatprep.mubr.f32.mxu0 0.0
      %2074 = vmatmul.mubr.f32.gmra.mrb[0].mxu0 %v1998
      %v2075 = vpop.f32.mrb[0].mxu0
      %v2076 = vadd.f32 0.0, %v2075
      %v2077 = vpop.f32.mrb[0].mxu0
      %v2078 = vadd.f32 0.0, %v2077
      %2079 = vmatprep.mubr.f32.mxu0 0.0
      %2080 = vmatmul.mubr.f32.gmra.mrb[0].mxu0 %v2001
      %v2081 = vpop.f32.mrb[0].mxu0
      %v2082 = vadd.f32 0.0, %v2081
      %v2083 = vpop.f32.mrb[0].mxu0
      %v2084 = vadd.f32 0.0, %v2083
      %2085 = vmatprep.mubr.f32.mxu0 0.0
      %2086 = vmatmul.mubr.f32.gmra.mrb[0].mxu0 %v2004
      %v2087 = vpop.f32.mrb[0].mxu0
      %v2088 = vadd.f32 0.0, %v2087
      %v2089 = vpop.f32.mrb[0].mxu0
      %v2090 = vadd.f32 0.0, %v2089
      %2091 = vmatprep.mubr.f32.mxu0 0.0
      %2092 = vmatmul.mubr.f32.gmra.mrb[0].mxu0 %v2007
      %v2093 = vpop.f32.mrb[0].mxu0
      %v2094 = vadd.f32 0.0, %v2093
      %v2095 = vpop.f32.mrb[0].mxu0
      %v2096 = vadd.f32 0.0, %v2095
      %2097 = vdwg.mxu0
      %2098 = vmatprep.subr.mxu0 0.0
      %2099 = vmatpush1.msra.mxu0 %v1869
      %2100 = vmatprep.subr.mxu0 0.0
      %2101 = vmatpush1.msra.mxu0 %v1875
      %2102 = vmatprep.subr.mxu0 0.0
      %2103 = vmatpush1.msra.mxu0 %v1881
      %2104 = vmatprep.subr.mxu0 0.0
      %2105 = vmatpush1.msra.mxu0 %v1887
      %2106 = vmatprep.subr.mxu0 0.0
      %2107 = vmatpush1.msra.mxu0 %v1893
      %2108 = vmatprep.subr.mxu0 0.0
      %2109 = vmatpush1.msra.mxu0 %v1899
      %2110 = vmatprep.subr.mxu0 0.0
      %2111 = vmatpush1.msra.mxu0 %v1905
      %2112 = vmatprep.subr.mxu0 0.0
      %2113 = vmatpush1.msra.mxu0 %v1911
      %2114 = vmatprep.subr.mxu0 0.0
      %2115 = vmatpush1.msra.mxu0 %v1917
      %2116 = vmatprep.subr.mxu0 0.0
      %2117 = vmatpush1.msra.mxu0 %v1923
      %2118 = vmatprep.subr.mxu0 0.0
      %2119 = vmatpush1.msra.mxu0 %v1929
      %2120 = vmatprep.subr.mxu0 0.0
      %2121 = vmatpush1.msra.mxu0 %v1935
      %2122 = vmatprep.subr.mxu0 0.0
      %2123 = vmatpush1.msra.mxu0 0.0
      %2124 = vmatprep.subr.mxu0 0.0
      %2125 = vmatpush1.msra.mxu0 0.0
      %2126 = vmatprep.subr.mxu0 0.0
      %2127 = vmatpush1.msra.mxu0 0.0
      %2128 = vmatprep.subr.mxu0 0.0
      %2129 = vmatpush1.msra.mxu0 0.0
      %2130 = vmatprep.subr.mxu0 0.0
      %2131 = vmatpush1.msra.mxu0 0.0
      %2132 = vmatprep.subr.mxu0 0.0
      %2133 = vmatpush1.msra.mxu0 0.0
      %2134 = vmatprep.subr.mxu0 0.0
      %2135 = vmatpush1.msra.mxu0 0.0
      %2136 = vmatprep.subr.mxu0 0.0
      %2137 = vmatpush1.msra.mxu0 0.0
      %2138 = vmatprep.subr.mxu0 0.0
      %2139 = vmatpush1.msra.mxu0 0.0
      %2140 = vmatprep.subr.mxu0 0.0
      %2141 = vmatpush1.msra.mxu0 0.0
      %2142 = vmatprep.subr.mxu0 0.0
      %2143 = vmatpush1.msra.mxu0 0.0
      %2144 = vmatprep.subr.mxu0 0.0
      %2145 = vmatpush1.msra.mxu0 0.0
      %2146 = vmatprep.subr.mxu0 0.0
      %2147 = vmatpush1.msra.mxu0 0.0
      %2148 = vmatprep.subr.mxu0 0.0
      %2149 = vmatpush1.msra.mxu0 0.0
      %2150 = vmatprep.subr.mxu0 0.0
      %2151 = vmatpush1.msra.mxu0 0.0
      %2152 = vmatprep.subr.mxu0 0.0
      %2153 = vmatpush1.msra.mxu0 0.0
      %2154 = vmatprep.subr.mxu0 0.0
      %2155 = vmatpush1.msra.mxu0 0.0
      %2156 = vmatprep.subr.mxu0 0.0
      %2157 = vmatpush1.msra.mxu0 0.0
      %2158 = vmatprep.subr.mxu0 0.0
      %2159 = vmatpush1.msra.mxu0 0.0
      %2160 = vmatprep.subr.mxu0 0.0
      %2161 = vmatpush1.msra.mxu0 0.0
      %2162 = vmatprep.mubr.f32.mxu0 0.0
      %2163 = vmatmul.mubr.f32.gmra.mrb[0].mxu0 %v1998
      %v2164 = vpop.f32.mrb[0].mxu0
      %v2165 = vadd.f32 0.0, %v2164
      %v2166 = vpop.f32.mrb[0].mxu0
      %2167 = vmatprep.mubr.f32.mxu0 0.0
      %2168 = vmatmul.mubr.f32.gmra.mrb[0].mxu0 %v2001
      %v2169 = vpop.f32.mrb[0].mxu0
      %v2170 = vadd.f32 0.0, %v2169
      %v2171 = vpop.f32.mrb[0].mxu0
      %2172 = vmatprep.mubr.f32.mxu0 0.0
      %2173 = vmatmul.mubr.f32.gmra.mrb[0].mxu0 %v2004
      %v2174 = vpop.f32.mrb[0].mxu0
      %v2175 = vadd.f32 0.0, %v2174
      %v2176 = vpop.f32.mrb[0].mxu0
      %2177 = vmatprep.mubr.f32.mxu0 0.0
      %2178 = vmatmul.mubr.f32.gmra.mrb[0].mxu0 %v2007
      %v2179 = vpop.f32.mrb[0].mxu0
      %v2180 = vadd.f32 0.0, %v2179
      %v2181 = vpop.f32.mrb[0].mxu0
      %2182 = vdwg.mxu0
      %v2183 = vadd.f32 %v1847, %v2076
      %v2184 = vadd.f32 %v1848, %v2078
      %v2185 = vadd.f32 %v1849, %v2165
      %v2186 = vadd.f32 %v1850, %v2082
      %v2187 = vadd.f32 %v1851, %v2084
      %v2188 = vadd.f32 %v1852, %v2170
      %v2189 = vadd.f32 %v1853, %v2088
      %v2190 = vadd.f32 %v1854, %v2090
      %v2191 = vadd.f32 %v1855, %v2175
      %v2192 = vadd.f32 %v1856, %v2094
      %v2193 = vadd.f32 %v1857, %v2096
      %v2194 = vadd.f32 %v1858, %v2180
      %s2195 = scalar_lea.vmem %s1, 192
      %v2196 = vld [vmem:[%s2195] sm:$0xff]
      %v2197 = vld [vmem:[%s2195 + $0x8] sm:$0xff]
      %v2198 = vld [vmem:[%s2195 + $0x10] sm:$0xff]
      %v2199 = vld [vmem:[%s2195 + $0x18] sm:$0xff]
      %2200 = vrot.lane.b32.xlu0 %v264, 92
      %v2201 = vpop.permute.xlu0 %2200
      %2202 = vrot.lane.b32.xlu0 %v265, 92
      %v2203 = vpop.permute.xlu0 %2202
      %2204 = vrot.lane.b32.xlu0 %v266, 92
      %v2205 = vpop.permute.xlu0 %2204
      %2206 = vrot.lane.b32.xlu0 %v267, 92
      %v2207 = vpop.permute.xlu0 %2206
      %2208 = vrot.lane.b32.xlu0 %v268, 92
      %v2209 = vpop.permute.xlu0 %2208
      %2210 = vrot.lane.b32.xlu0 %v269, 92
      %v2211 = vpop.permute.xlu0 %2210
      %2212 = vrot.lane.b32.xlu0 %v270, 92
      %v2213 = vpop.permute.xlu0 %2212
      %2214 = vrot.lane.b32.xlu0 %v271, 92
      %v2215 = vpop.permute.xlu0 %2214
      %2216 = vrot.lane.b32.xlu0 %v272, 92
      %v2217 = vpop.permute.xlu0 %2216
      %2218 = vrot.lane.b32.xlu0 %v273, 92
      %v2219 = vpop.permute.xlu0 %2218
      %2220 = vrot.lane.b32.xlu0 %v274, 92
      %v2221 = vpop.permute.xlu0 %2220
      %2222 = vrot.lane.b32.xlu0 %v275, 92
      %v2223 = vpop.permute.xlu0 %2222
      %2224 = vrot.lane.b32.xlu0 %v276, 92
      %v2225 = vpop.permute.xlu0 %2224
      %2226 = vrot.lane.b32.xlu0 %v277, 92
      %v2227 = vpop.permute.xlu0 %2226
      %2228 = vrot.lane.b32.xlu0 %v278, 92
      %v2229 = vpop.permute.xlu0 %2228
      %2230 = vrot.lane.b32.xlu0 %v279, 92
      %v2231 = vpop.permute.xlu0 %2230
      %2232 = vrot.lane.b32.xlu0 %v280, 92
      %v2233 = vpop.permute.xlu0 %2232
      %2234 = vrot.lane.b32.xlu0 %v281, 92
      %v2235 = vpop.permute.xlu0 %2234
      %2236 = vrot.lane.b32.xlu0 %v282, 92
      %v2237 = vpop.permute.xlu0 %2236
      %2238 = vrot.lane.b32.xlu0 %v283, 92
      %v2239 = vpop.permute.xlu0 %2238
      %2240 = vrot.lane.b32.xlu0 %v284, 92
      %v2241 = vpop.permute.xlu0 %2240
      %2242 = vrot.lane.b32.xlu0 %v285, 92
      %v2243 = vpop.permute.xlu0 %2242
      %2244 = vrot.lane.b32.xlu0 %v286, 92
      %v2245 = vpop.permute.xlu0 %2244
      %2246 = vrot.lane.b32.xlu0 %v287, 92
      %v2247 = vpop.permute.xlu0 %2246
      %2248 = vrot.lane.b32.xlu0 %v288, 92
      %v2249 = vpop.permute.xlu0 %2248
      %2250 = vrot.lane.b32.xlu0 %v289, 92
      %v2251 = vpop.permute.xlu0 %2250
      %2252 = vrot.lane.b32.xlu0 %v290, 92
      %v2253 = vpop.permute.xlu0 %2252
      %2254 = vrot.lane.b32.xlu0 %v291, 92
      %v2255 = vpop.permute.xlu0 %2254
      %2256 = vrot.lane.b32.xlu0 %v292, 92
      %v2257 = vpop.permute.xlu0 %2256
      %2258 = vrot.lane.b32.xlu0 %v293, 92
      %v2259 = vpop.permute.xlu0 %2258
      %2260 = vrot.lane.b32.xlu0 %v294, 92
      %v2261 = vpop.permute.xlu0 %2260
      %2262 = vrot.lane.b32.xlu0 %v295, 92
      %v2263 = vpop.permute.xlu0 %2262
      %2264 = vrot.lane.b32.xlu0 %v296, 92
      %v2265 = vpop.permute.xlu0 %2264
      %2266 = vrot.lane.b32.xlu0 %v297, 92
      %v2267 = vpop.permute.xlu0 %2266
      %2268 = vrot.lane.b32.xlu0 %v298, 92
      %v2269 = vpop.permute.xlu0 %2268
      %2270 = vrot.lane.b32.xlu0 %v299, 92
      %v2271 = vpop.permute.xlu0 %2270
      %vm2272 = vcmask 752640
      %v2273 = vsel %vm2272, %v2201, %v2203
      %v2274 = vsel %vm2272, %v2203, %v2205
      %v2275 = vsel %vm2272, %v2207, %v2209
      %v2276 = vsel %vm2272, %v2209, %v2211
      %v2277 = vsel %vm2272, %v2213, %v2215
      %v2278 = vsel %vm2272, %v2215, %v2217
      %v2279 = vsel %vm2272, %v2219, %v2221
      %v2280 = vsel %vm2272, %v2221, %v2223
      %v2281 = vsel %vm2272, %v2225, %v2227
      %v2282 = vsel %vm2272, %v2227, %v2229
      %v2283 = vsel %vm2272, %v2231, %v2233
      %v2284 = vsel %vm2272, %v2233, %v2235
      %v2285 = vsel %vm2272, %v2237, %v2239
      %v2286 = vsel %vm2272, %v2239, %v2241
      %v2287 = vsel %vm2272, %v2243, %v2245
      %v2288 = vsel %vm2272, %v2245, %v2247
      %v2289 = vsel %vm2272, %v2249, %v2251
      %v2290 = vsel %vm2272, %v2251, %v2253
      %v2291 = vsel %vm2272, %v2255, %v2257
      %v2292 = vsel %vm2272, %v2257, %v2259
      %v2293 = vsel %vm2272, %v2261, %v2263
      %v2294 = vsel %vm2272, %v2263, %v2265
      %v2295 = vsel %vm2272, %v2267, %v2269
      %v2296 = vsel %vm2272, %v2269, %v2271
      %v2334 = vsel %vm478, %v2196, 0
      %v2337 = vsel %vm478, %v2197, 0
      %v2340 = vsel %vm478, %v2198, 0
      %v2343 = vsel %vm478, %v2199, 0
      %2345 = vmatprep.subr.mxu0 %v2274
      %2346 = vmatpush1.msra.mxu0 %v2273
      %2347 = vmatprep.subr.mxu0 %v2276
      %2348 = vmatpush1.msra.mxu0 %v2275
      %2349 = vmatprep.subr.mxu0 %v2278
      %2350 = vmatpush1.msra.mxu0 %v2277
      %2351 = vmatprep.subr.mxu0 %v2280
      %2352 = vmatpush1.msra.mxu0 %v2279
      %2353 = vmatprep.subr.mxu0 %v2282
      %2354 = vmatpush1.msra.mxu0 %v2281
      %2355 = vmatprep.subr.mxu0 %v2284
      %2356 = vmatpush1.msra.mxu0 %v2283
      %2357 = vmatprep.subr.mxu0 %v2286
      %2358 = vmatpush1.msra.mxu0 %v2285
      %2359 = vmatprep.subr.mxu0 %v2288
      %2360 = vmatpush1.msra.mxu0 %v2287
      %2361 = vmatprep.subr.mxu0 %v2290
      %2362 = vmatpush1.msra.mxu0 %v2289
      %2363 = vmatprep.subr.mxu0 %v2292
      %2364 = vmatpush1.msra.mxu0 %v2291
      %2365 = vmatprep.subr.mxu0 %v2294
      %2366 = vmatpush1.msra.mxu0 %v2293
      %2367 = vmatprep.subr.mxu0 %v2296
      %2368 = vmatpush1.msra.mxu0 %v2295
      %2369 = vmatprep.subr.mxu0 0.0
      %2370 = vmatpush1.msra.mxu0 0.0
      %2371 = vmatprep.subr.mxu0 0.0
      %2372 = vmatpush1.msra.mxu0 0.0
      %2373 = vmatprep.subr.mxu0 0.0
      %2374 = vmatpush1.msra.mxu0 0.0
      %2375 = vmatprep.subr.mxu0 0.0
      %2376 = vmatpush1.msra.mxu0 0.0
      %2377 = vmatprep.subr.mxu0 0.0
      %2378 = vmatpush1.msra.mxu0 0.0
      %2379 = vmatprep.subr.mxu0 0.0
      %2380 = vmatpush1.msra.mxu0 0.0
      %2381 = vmatprep.subr.mxu0 0.0
      %2382 = vmatpush1.msra.mxu0 0.0
      %2383 = vmatprep.subr.mxu0 0.0
      %2384 = vmatpush1.msra.mxu0 0.0
      %2385 = vmatprep.subr.mxu0 0.0
      %2386 = vmatpush1.msra.mxu0 0.0
      %2387 = vmatprep.subr.mxu0 0.0
      %2388 = vmatpush1.msra.mxu0 0.0
      %2389 = vmatprep.subr.mxu0 0.0
      %2390 = vmatpush1.msra.mxu0 0.0
      %2391 = vmatprep.subr.mxu0 0.0
      %2392 = vmatpush1.msra.mxu0 0.0
      %2393 = vmatprep.subr.mxu0 0.0
      %2394 = vmatpush1.msra.mxu0 0.0
      %2395 = vmatprep.subr.mxu0 0.0
      %2396 = vmatpush1.msra.mxu0 0.0
      %2397 = vmatprep.subr.mxu0 0.0
      %2398 = vmatpush1.msra.mxu0 0.0
      %2399 = vmatprep.subr.mxu0 0.0
      %2400 = vmatpush1.msra.mxu0 0.0
      %2401 = vmatprep.subr.mxu0 0.0
      %2402 = vmatpush1.msra.mxu0 0.0
      %2403 = vmatprep.subr.mxu0 0.0
      %2404 = vmatpush1.msra.mxu0 0.0
      %2405 = vmatprep.subr.mxu0 0.0
      %2406 = vmatpush1.msra.mxu0 0.0
      %2407 = vmatprep.subr.mxu0 0.0
      %2408 = vmatpush1.msra.mxu0 0.0
      %2409 = vmatprep.mubr.f32.mxu0 0.0
      %2410 = vmatmul.mubr.f32.gmra.mrb[0].mxu0 %v2334
      %v2411 = vpop.f32.mrb[0].mxu0
      %v2412 = vadd.f32 0.0, %v2411
      %v2413 = vpop.f32.mrb[0].mxu0
      %v2414 = vadd.f32 0.0, %v2413
      %2415 = vmatprep.mubr.f32.mxu0 0.0
      %2416 = vmatmul.mubr.f32.gmra.mrb[0].mxu0 %v2337
      %v2417 = vpop.f32.mrb[0].mxu0
      %v2418 = vadd.f32 0.0, %v2417
      %v2419 = vpop.f32.mrb[0].mxu0
      %v2420 = vadd.f32 0.0, %v2419
      %2421 = vmatprep.mubr.f32.mxu0 0.0
      %2422 = vmatmul.mubr.f32.gmra.mrb[0].mxu0 %v2340
      %v2423 = vpop.f32.mrb[0].mxu0
      %v2424 = vadd.f32 0.0, %v2423
      %v2425 = vpop.f32.mrb[0].mxu0
      %v2426 = vadd.f32 0.0, %v2425
      %2427 = vmatprep.mubr.f32.mxu0 0.0
      %2428 = vmatmul.mubr.f32.gmra.mrb[0].mxu0 %v2343
      %v2429 = vpop.f32.mrb[0].mxu0
      %v2430 = vadd.f32 0.0, %v2429
      %v2431 = vpop.f32.mrb[0].mxu0
      %v2432 = vadd.f32 0.0, %v2431
      %2433 = vdwg.mxu0
      %2434 = vmatprep.subr.mxu0 0.0
      %2435 = vmatpush1.msra.mxu0 %v2205
      %2436 = vmatprep.subr.mxu0 0.0
      %2437 = vmatpush1.msra.mxu0 %v2211
      %2438 = vmatprep.subr.mxu0 0.0
      %2439 = vmatpush1.msra.mxu0 %v2217
      %2440 = vmatprep.subr.mxu0 0.0
      %2441 = vmatpush1.msra.mxu0 %v2223
      %2442 = vmatprep.subr.mxu0 0.0
      %2443 = vmatpush1.msra.mxu0 %v2229
      %2444 = vmatprep.subr.mxu0 0.0
      %2445 = vmatpush1.msra.mxu0 %v2235
      %2446 = vmatprep.subr.mxu0 0.0
      %2447 = vmatpush1.msra.mxu0 %v2241
      %2448 = vmatprep.subr.mxu0 0.0
      %2449 = vmatpush1.msra.mxu0 %v2247
      %2450 = vmatprep.subr.mxu0 0.0
      %2451 = vmatpush1.msra.mxu0 %v2253
      %2452 = vmatprep.subr.mxu0 0.0
      %2453 = vmatpush1.msra.mxu0 %v2259
      %2454 = vmatprep.subr.mxu0 0.0
      %2455 = vmatpush1.msra.mxu0 %v2265
      %2456 = vmatprep.subr.mxu0 0.0
      %2457 = vmatpush1.msra.mxu0 %v2271
      %2458 = vmatprep.subr.mxu0 0.0
      %2459 = vmatpush1.msra.mxu0 0.0
      %2460 = vmatprep.subr.mxu0 0.0
      %2461 = vmatpush1.msra.mxu0 0.0
      %2462 = vmatprep.subr.mxu0 0.0
      %2463 = vmatpush1.msra.mxu0 0.0
      %2464 = vmatprep.subr.mxu0 0.0
      %2465 = vmatpush1.msra.mxu0 0.0
      %2466 = vmatprep.subr.mxu0 0.0
      %2467 = vmatpush1.msra.mxu0 0.0
      %2468 = vmatprep.subr.mxu0 0.0
      %2469 = vmatpush1.msra.mxu0 0.0
      %2470 = vmatprep.subr.mxu0 0.0
      %2471 = vmatpush1.msra.mxu0 0.0
      %2472 = vmatprep.subr.mxu0 0.0
      %2473 = vmatpush1.msra.mxu0 0.0
      %2474 = vmatprep.subr.mxu0 0.0
      %2475 = vmatpush1.msra.mxu0 0.0
      %2476 = vmatprep.subr.mxu0 0.0
      %2477 = vmatpush1.msra.mxu0 0.0
      %2478 = vmatprep.subr.mxu0 0.0
      %2479 = vmatpush1.msra.mxu0 0.0
      %2480 = vmatprep.subr.mxu0 0.0
      %2481 = vmatpush1.msra.mxu0 0.0
      %2482 = vmatprep.subr.mxu0 0.0
      %2483 = vmatpush1.msra.mxu0 0.0
      %2484 = vmatprep.subr.mxu0 0.0
      %2485 = vmatpush1.msra.mxu0 0.0
      %2486 = vmatprep.subr.mxu0 0.0
      %2487 = vmatpush1.msra.mxu0 0.0
      %2488 = vmatprep.subr.mxu0 0.0
      %2489 = vmatpush1.msra.mxu0 0.0
      %2490 = vmatprep.subr.mxu0 0.0
      %2491 = vmatpush1.msra.mxu0 0.0
      %2492 = vmatprep.subr.mxu0 0.0
      %2493 = vmatpush1.msra.mxu0 0.0
      %2494 = vmatprep.subr.mxu0 0.0
      %2495 = vmatpush1.msra.mxu0 0.0
      %2496 = vmatprep.subr.mxu0 0.0
      %2497 = vmatpush1.msra.mxu0 0.0
      %2498 = vmatprep.mubr.f32.mxu0 0.0
      %2499 = vmatmul.mubr.f32.gmra.mrb[0].mxu0 %v2334
      %v2500 = vpop.f32.mrb[0].mxu0
      %v2501 = vadd.f32 0.0, %v2500
      %v2502 = vpop.f32.mrb[0].mxu0
      %2503 = vmatprep.mubr.f32.mxu0 0.0
      %2504 = vmatmul.mubr.f32.gmra.mrb[0].mxu0 %v2337
      %v2505 = vpop.f32.mrb[0].mxu0
      %v2506 = vadd.f32 0.0, %v2505
      %v2507 = vpop.f32.mrb[0].mxu0
      %2508 = vmatprep.mubr.f32.mxu0 0.0
      %2509 = vmatmul.mubr.f32.gmra.mrb[0].mxu0 %v2340
      %v2510 = vpop.f32.mrb[0].mxu0
      %v2511 = vadd.f32 0.0, %v2510
      %v2512 = vpop.f32.mrb[0].mxu0
      %2513 = vmatprep.mubr.f32.mxu0 0.0
      %2514 = vmatmul.mubr.f32.gmra.mrb[0].mxu0 %v2343
      %v2515 = vpop.f32.mrb[0].mxu0
      %v2516 = vadd.f32 0.0, %v2515
      %v2517 = vpop.f32.mrb[0].mxu0
      %2518 = vdwg.mxu0
      %v2519 = vadd.f32 %v2183, %v2412
      %v2520 = vadd.f32 %v2184, %v2414
      %v2521 = vadd.f32 %v2185, %v2501
      %v2522 = vadd.f32 %v2186, %v2418
      %v2523 = vadd.f32 %v2187, %v2420
      %v2524 = vadd.f32 %v2188, %v2506
      %v2525 = vadd.f32 %v2189, %v2424
      %v2526 = vadd.f32 %v2190, %v2426
      %v2527 = vadd.f32 %v2191, %v2511
      %v2528 = vadd.f32 %v2192, %v2430
      %v2529 = vadd.f32 %v2193, %v2432
      %v2530 = vadd.f32 %v2194, %v2516
      %s2531 = scalar_lea.vmem %s1, 224
      %v2532 = vld [vmem:[%s2531] sm:$0xff]
      %v2533 = vld [vmem:[%s2531 + $0x8] sm:$0xff]
      %v2534 = vld [vmem:[%s2531 + $0x10] sm:$0xff]
      %v2535 = vld [vmem:[%s2531 + $0x18] sm:$0xff]
      %2536 = vrot.lane.b32.xlu0 %v264, 91
      %v2537 = vpop.permute.xlu0 %2536
      %2538 = vrot.lane.b32.xlu0 %v265, 91
      %v2539 = vpop.permute.xlu0 %2538
      %2540 = vrot.lane.b32.xlu0 %v266, 91
      %v2541 = vpop.permute.xlu0 %2540
      %2542 = vrot.lane.b32.xlu0 %v267, 91
      %v2543 = vpop.permute.xlu0 %2542
      %2544 = vrot.lane.b32.xlu0 %v268, 91
      %v2545 = vpop.permute.xlu0 %2544
      %2546 = vrot.lane.b32.xlu0 %v269, 91
      %v2547 = vpop.permute.xlu0 %2546
      %2548 = vrot.lane.b32.xlu0 %v270, 91
      %v2549 = vpop.permute.xlu0 %2548
      %2550 = vrot.lane.b32.xlu0 %v271, 91
      %v2551 = vpop.permute.xlu0 %2550
      %2552 = vrot.lane.b32.xlu0 %v272, 91
      %v2553 = vpop.permute.xlu0 %2552
      %2554 = vrot.lane.b32.xlu0 %v273, 91
      %v2555 = vpop.permute.xlu0 %2554
      %2556 = vrot.lane.b32.xlu0 %v274, 91
      %v2557 = vpop.permute.xlu0 %2556
      %2558 = vrot.lane.b32.xlu0 %v275, 91
      %v2559 = vpop.permute.xlu0 %2558
      %2560 = vrot.lane.b32.xlu0 %v276, 91
      %v2561 = vpop.permute.xlu0 %2560
      %2562 = vrot.lane.b32.xlu0 %v277, 91
      %v2563 = vpop.permute.xlu0 %2562
      %2564 = vrot.lane.b32.xlu0 %v278, 91
      %v2565 = vpop.permute.xlu0 %2564
      %2566 = vrot.lane.b32.xlu0 %v279, 91
      %v2567 = vpop.permute.xlu0 %2566
      %2568 = vrot.lane.b32.xlu0 %v280, 91
      %v2569 = vpop.permute.xlu0 %2568
      %2570 = vrot.lane.b32.xlu0 %v281, 91
      %v2571 = vpop.permute.xlu0 %2570
      %2572 = vrot.lane.b32.xlu0 %v282, 91
      %v2573 = vpop.permute.xlu0 %2572
      %2574 = vrot.lane.b32.xlu0 %v283, 91
      %v2575 = vpop.permute.xlu0 %2574
      %2576 = vrot.lane.b32.xlu0 %v284, 91
      %v2577 = vpop.permute.xlu0 %2576
      %2578 = vrot.lane.b32.xlu0 %v285, 91
      %v2579 = vpop.permute.xlu0 %2578
      %2580 = vrot.lane.b32.xlu0 %v286, 91
      %v2581 = vpop.permute.xlu0 %2580
      %2582 = vrot.lane.b32.xlu0 %v287, 91
      %v2583 = vpop.permute.xlu0 %2582
      %2584 = vrot.lane.b32.xlu0 %v288, 91
      %v2585 = vpop.permute.xlu0 %2584
      %2586 = vrot.lane.b32.xlu0 %v289, 91
      %v2587 = vpop.permute.xlu0 %2586
      %2588 = vrot.lane.b32.xlu0 %v290, 91
      %v2589 = vpop.permute.xlu0 %2588
      %2590 = vrot.lane.b32.xlu0 %v291, 91
      %v2591 = vpop.permute.xlu0 %2590
      %2592 = vrot.lane.b32.xlu0 %v292, 91
      %v2593 = vpop.permute.xlu0 %2592
      %2594 = vrot.lane.b32.xlu0 %v293, 91
      %v2595 = vpop.permute.xlu0 %2594
      %2596 = vrot.lane.b32.xlu0 %v294, 91
      %v2597 = vpop.permute.xlu0 %2596
      %2598 = vrot.lane.b32.xlu0 %v295, 91
      %v2599 = vpop.permute.xlu0 %2598
      %2600 = vrot.lane.b32.xlu0 %v296, 91
      %v2601 = vpop.permute.xlu0 %2600
      %2602 = vrot.lane.b32.xlu0 %v297, 91
      %v2603 = vpop.permute.xlu0 %2602
      %2604 = vrot.lane.b32.xlu0 %v298, 91
      %v2605 = vpop.permute.xlu0 %2604
      %2606 = vrot.lane.b32.xlu0 %v299, 91
      %v2607 = vpop.permute.xlu0 %2606
      %vm2608 = vcmask 744448
      %v2609 = vsel %vm2608, %v2537, %v2539
      %v2610 = vsel %vm2608, %v2539, %v2541
      %v2611 = vsel %vm2608, %v2543, %v2545
      %v2612 = vsel %vm2608, %v2545, %v2547
      %v2613 = vsel %vm2608, %v2549, %v2551
      %v2614 = vsel %vm2608, %v2551, %v2553
      %v2615 = vsel %vm2608, %v2555, %v2557
      %v2616 = vsel %vm2608, %v2557, %v2559
      %v2617 = vsel %vm2608, %v2561, %v2563
      %v2618 = vsel %vm2608, %v2563, %v2565
      %v2619 = vsel %vm2608, %v2567, %v2569
      %v2620 = vsel %vm2608, %v2569, %v2571
      %v2621 = vsel %vm2608, %v2573, %v2575
      %v2622 = vsel %vm2608, %v2575, %v2577
      %v2623 = vsel %vm2608, %v2579, %v2581
      %v2624 = vsel %vm2608, %v2581, %v2583
      %v2625 = vsel %vm2608, %v2585, %v2587
      %v2626 = vsel %vm2608, %v2587, %v2589
      %v2627 = vsel %vm2608, %v2591, %v2593
      %v2628 = vsel %vm2608, %v2593, %v2595
      %v2629 = vsel %vm2608, %v2597, %v2599
      %v2630 = vsel %vm2608, %v2599, %v2601
      %v2631 = vsel %vm2608, %v2603, %v2605
      %v2632 = vsel %vm2608, %v2605, %v2607
      %v2670 = vsel %vm478, %v2532, 0
      %v2673 = vsel %vm478, %v2533, 0
      %v2676 = vsel %vm478, %v2534, 0
      %v2679 = vsel %vm478, %v2535, 0
      %2681 = vmatprep.subr.mxu0 %v2610
      %2682 = vmatpush1.msra.mxu0 %v2609
      %2683 = vmatprep.subr.mxu0 %v2612
      %2684 = vmatpush1.msra.mxu0 %v2611
      %2685 = vmatprep.subr.mxu0 %v2614
      %2686 = vmatpush1.msra.mxu0 %v2613
      %2687 = vmatprep.subr.mxu0 %v2616
      %2688 = vmatpush1.msra.mxu0 %v2615
      %2689 = vmatprep.subr.mxu0 %v2618
      %2690 = vmatpush1.msra.mxu0 %v2617
      %2691 = vmatprep.subr.mxu0 %v2620
      %2692 = vmatpush1.msra.mxu0 %v2619
      %2693 = vmatprep.subr.mxu0 %v2622
      %2694 = vmatpush1.msra.mxu0 %v2621
      %2695 = vmatprep.subr.mxu0 %v2624
      %2696 = vmatpush1.msra.mxu0 %v2623
      %2697 = vmatprep.subr.mxu0 %v2626
      %2698 = vmatpush1.msra.mxu0 %v2625
      %2699 = vmatprep.subr.mxu0 %v2628
      %2700 = vmatpush1.msra.mxu0 %v2627
      %2701 = vmatprep.subr.mxu0 %v2630
      %2702 = vmatpush1.msra.mxu0 %v2629
      %2703 = vmatprep.subr.mxu0 %v2632
      %2704 = vmatpush1.msra.mxu0 %v2631
      %2705 = vmatprep.subr.mxu0 0.0
      %2706 = vmatpush1.msra.mxu0 0.0
      %2707 = vmatprep.subr.mxu0 0.0
      %2708 = vmatpush1.msra.mxu0 0.0
      %2709 = vmatprep.subr.mxu0 0.0
      %2710 = vmatpush1.msra.mxu0 0.0
      %2711 = vmatprep.subr.mxu0 0.0
      %2712 = vmatpush1.msra.mxu0 0.0
      %2713 = vmatprep.subr.mxu0 0.0
      %2714 = vmatpush1.msra.mxu0 0.0
      %2715 = vmatprep.subr.mxu0 0.0
      %2716 = vmatpush1.msra.mxu0 0.0
      %2717 = vmatprep.subr.mxu0 0.0
      %2718 = vmatpush1.msra.mxu0 0.0
      %2719 = vmatprep.subr.mxu0 0.0
      %2720 = vmatpush1.msra.mxu0 0.0
      %2721 = vmatprep.subr.mxu0 0.0
      %2722 = vmatpush1.msra.mxu0 0.0
      %2723 = vmatprep.subr.mxu0 0.0
      %2724 = vmatpush1.msra.mxu0 0.0
      %2725 = vmatprep.subr.mxu0 0.0
      %2726 = vmatpush1.msra.mxu0 0.0
      %2727 = vmatprep.subr.mxu0 0.0
      %2728 = vmatpush1.msra.mxu0 0.0
      %2729 = vmatprep.subr.mxu0 0.0
      %2730 = vmatpush1.msra.mxu0 0.0
      %2731 = vmatprep.subr.mxu0 0.0
      %2732 = vmatpush1.msra.mxu0 0.0
      %2733 = vmatprep.subr.mxu0 0.0
      %2734 = vmatpush1.msra.mxu0 0.0
      %2735 = vmatprep.subr.mxu0 0.0
      %2736 = vmatpush1.msra.mxu0 0.0
      %2737 = vmatprep.subr.mxu0 0.0
      %2738 = vmatpush1.msra.mxu0 0.0
      %2739 = vmatprep.subr.mxu0 0.0
      %2740 = vmatpush1.msra.mxu0 0.0
      %2741 = vmatprep.subr.mxu0 0.0
      %2742 = vmatpush1.msra.mxu0 0.0
      %2743 = vmatprep.subr.mxu0 0.0
      %2744 = vmatpush1.msra.mxu0 0.0
      %2745 = vmatprep.mubr.f32.mxu0 0.0
      %2746 = vmatmul.mubr.f32.gmra.mrb[0].mxu0 %v2670
      %v2747 = vpop.f32.mrb[0].mxu0
      %v2748 = vadd.f32 0.0, %v2747
      %v2749 = vpop.f32.mrb[0].mxu0
      %v2750 = vadd.f32 0.0, %v2749
      %2751 = vmatprep.mubr.f32.mxu0 0.0
      %2752 = vmatmul.mubr.f32.gmra.mrb[0].mxu0 %v2673
      %v2753 = vpop.f32.mrb[0].mxu0
      %v2754 = vadd.f32 0.0, %v2753
      %v2755 = vpop.f32.mrb[0].mxu0
      %v2756 = vadd.f32 0.0, %v2755
      %2757 = vmatprep.mubr.f32.mxu0 0.0
      %2758 = vmatmul.mubr.f32.gmra.mrb[0].mxu0 %v2676
      %v2759 = vpop.f32.mrb[0].mxu0
      %v2760 = vadd.f32 0.0, %v2759
      %v2761 = vpop.f32.mrb[0].mxu0
      %v2762 = vadd.f32 0.0, %v2761
      %2763 = vmatprep.mubr.f32.mxu0 0.0
      %2764 = vmatmul.mubr.f32.gmra.mrb[0].mxu0 %v2679
      %v2765 = vpop.f32.mrb[0].mxu0
      %v2766 = vadd.f32 0.0, %v2765
      %v2767 = vpop.f32.mrb[0].mxu0
      %v2768 = vadd.f32 0.0, %v2767
      %2769 = vdwg.mxu0
      %2770 = vmatprep.subr.mxu0 0.0
      %2771 = vmatpush1.msra.mxu0 %v2541
      %2772 = vmatprep.subr.mxu0 0.0
      %2773 = vmatpush1.msra.mxu0 %v2547
      %2774 = vmatprep.subr.mxu0 0.0
      %2775 = vmatpush1.msra.mxu0 %v2553
      %2776 = vmatprep.subr.mxu0 0.0
      %2777 = vmatpush1.msra.mxu0 %v2559
      %2778 = vmatprep.subr.mxu0 0.0
      %2779 = vmatpush1.msra.mxu0 %v2565
      %2780 = vmatprep.subr.mxu0 0.0
      %2781 = vmatpush1.msra.mxu0 %v2571
      %2782 = vmatprep.subr.mxu0 0.0
      %2783 = vmatpush1.msra.mxu0 %v2577
      %2784 = vmatprep.subr.mxu0 0.0
      %2785 = vmatpush1.msra.mxu0 %v2583
      %2786 = vmatprep.subr.mxu0 0.0
      %2787 = vmatpush1.msra.mxu0 %v2589
      %2788 = vmatprep.subr.mxu0 0.0
      %2789 = vmatpush1.msra.mxu0 %v2595
      %2790 = vmatprep.subr.mxu0 0.0
      %2791 = vmatpush1.msra.mxu0 %v2601
      %2792 = vmatprep.subr.mxu0 0.0
      %2793 = vmatpush1.msra.mxu0 %v2607
      %2794 = vmatprep.subr.mxu0 0.0
      %2795 = vmatpush1.msra.mxu0 0.0
      %2796 = vmatprep.subr.mxu0 0.0
      %2797 = vmatpush1.msra.mxu0 0.0
      %2798 = vmatprep.subr.mxu0 0.0
      %2799 = vmatpush1.msra.mxu0 0.0
      %2800 = vmatprep.subr.mxu0 0.0
      %2801 = vmatpush1.msra.mxu0 0.0
      %2802 = vmatprep.subr.mxu0 0.0
      %2803 = vmatpush1.msra.mxu0 0.0
      %2804 = vmatprep.subr.mxu0 0.0
      %2805 = vmatpush1.msra.mxu0 0.0
      %2806 = vmatprep.subr.mxu0 0.0
      %2807 = vmatpush1.msra.mxu0 0.0
      %2808 = vmatprep.subr.mxu0 0.0
      %2809 = vmatpush1.msra.mxu0 0.0
      %2810 = vmatprep.subr.mxu0 0.0
      %2811 = vmatpush1.msra.mxu0 0.0
      %2812 = vmatprep.subr.mxu0 0.0
      %2813 = vmatpush1.msra.mxu0 0.0
      %2814 = vmatprep.subr.mxu0 0.0
      %2815 = vmatpush1.msra.mxu0 0.0
      %2816 = vmatprep.subr.mxu0 0.0
      %2817 = vmatpush1.msra.mxu0 0.0
      %2818 = vmatprep.subr.mxu0 0.0
      %2819 = vmatpush1.msra.mxu0 0.0
      %2820 = vmatprep.subr.mxu0 0.0
      %2821 = vmatpush1.msra.mxu0 0.0
      %2822 = vmatprep.subr.mxu0 0.0
      %2823 = vmatpush1.msra.mxu0 0.0
      %2824 = vmatprep.subr.mxu0 0.0
      %2825 = vmatpush1.msra.mxu0 0.0
      %2826 = vmatprep.subr.mxu0 0.0
      %2827 = vmatpush1.msra.mxu0 0.0
      %2828 = vmatprep.subr.mxu0 0.0
      %2829 = vmatpush1.msra.mxu0 0.0
      %2830 = vmatprep.subr.mxu0 0.0
      %2831 = vmatpush1.msra.mxu0 0.0
      %2832 = vmatprep.subr.mxu0 0.0
      %2833 = vmatpush1.msra.mxu0 0.0
      %2834 = vmatprep.mubr.f32.mxu0 0.0
      %2835 = vmatmul.mubr.f32.gmra.mrb[0].mxu0 %v2670
      %v2836 = vpop.f32.mrb[0].mxu0
      %v2837 = vadd.f32 0.0, %v2836
      %v2838 = vpop.f32.mrb[0].mxu0
      %2839 = vmatprep.mubr.f32.mxu0 0.0
      %2840 = vmatmul.mubr.f32.gmra.mrb[0].mxu0 %v2673
      %v2841 = vpop.f32.mrb[0].mxu0
      %v2842 = vadd.f32 0.0, %v2841
      %v2843 = vpop.f32.mrb[0].mxu0
      %2844 = vmatprep.mubr.f32.mxu0 0.0
      %2845 = vmatmul.mubr.f32.gmra.mrb[0].mxu0 %v2676
      %v2846 = vpop.f32.mrb[0].mxu0
      %v2847 = vadd.f32 0.0, %v2846
      %v2848 = vpop.f32.mrb[0].mxu0
      %2849 = vmatprep.mubr.f32.mxu0 0.0
      %2850 = vmatmul.mubr.f32.gmra.mrb[0].mxu0 %v2679
      %v2851 = vpop.f32.mrb[0].mxu0
      %v2852 = vadd.f32 0.0, %v2851
      %v2853 = vpop.f32.mrb[0].mxu0
      %2854 = vdwg.mxu0
      %v2855 = vadd.f32 %v2519, %v2748
      %v2856 = vadd.f32 %v2520, %v2750
      %v2857 = vadd.f32 %v2521, %v2837
      %v2858 = vadd.f32 %v2522, %v2754
      %v2859 = vadd.f32 %v2523, %v2756
      %v2860 = vadd.f32 %v2524, %v2842
      %v2861 = vadd.f32 %v2525, %v2760
      %v2862 = vadd.f32 %v2526, %v2762
      %v2863 = vadd.f32 %v2527, %v2847
      %v2864 = vadd.f32 %v2528, %v2766
      %v2865 = vadd.f32 %v2529, %v2768
      %v2866 = vadd.f32 %v2530, %v2852
      %s2867 = scalar_lea.vmem %s1, 256
      %v2868 = vld [vmem:[%s2867] sm:$0xff]
      %v2869 = vld [vmem:[%s2867 + $0x8] sm:$0xff]
      %v2870 = vld [vmem:[%s2867 + $0x10] sm:$0xff]
      %v2871 = vld [vmem:[%s2867 + $0x18] sm:$0xff]
      %2872 = vrot.lane.b32.xlu0 %v264, 90
      %v2873 = vpop.permute.xlu0 %2872
      %2874 = vrot.lane.b32.xlu0 %v265, 90
      %v2875 = vpop.permute.xlu0 %2874
      %2876 = vrot.lane.b32.xlu0 %v266, 90
      %v2877 = vpop.permute.xlu0 %2876
      %2878 = vrot.lane.b32.xlu0 %v267, 90
      %v2879 = vpop.permute.xlu0 %2878
      %2880 = vrot.lane.b32.xlu0 %v268, 90
      %v2881 = vpop.permute.xlu0 %2880
      %2882 = vrot.lane.b32.xlu0 %v269, 90
      %v2883 = vpop.permute.xlu0 %2882
      %2884 = vrot.lane.b32.xlu0 %v270, 90
      %v2885 = vpop.permute.xlu0 %2884
      %2886 = vrot.lane.b32.xlu0 %v271, 90
      %v2887 = vpop.permute.xlu0 %2886
      %2888 = vrot.lane.b32.xlu0 %v272, 90
      %v2889 = vpop.permute.xlu0 %2888
      %2890 = vrot.lane.b32.xlu0 %v273, 90
      %v2891 = vpop.permute.xlu0 %2890
      %2892 = vrot.lane.b32.xlu0 %v274, 90
      %v2893 = vpop.permute.xlu0 %2892
      %2894 = vrot.lane.b32.xlu0 %v275, 90
      %v2895 = vpop.permute.xlu0 %2894
      %2896 = vrot.lane.b32.xlu0 %v276, 90
      %v2897 = vpop.permute.xlu0 %2896
      %2898 = vrot.lane.b32.xlu0 %v277, 90
      %v2899 = vpop.permute.xlu0 %2898
      %2900 = vrot.lane.b32.xlu0 %v278, 90
      %v2901 = vpop.permute.xlu0 %2900
      %2902 = vrot.lane.b32.xlu0 %v279, 90
      %v2903 = vpop.permute.xlu0 %2902
      %2904 = vrot.lane.b32.xlu0 %v280, 90
      %v2905 = vpop.permute.xlu0 %2904
      %2906 = vrot.lane.b32.xlu0 %v281, 90
      %v2907 = vpop.permute.xlu0 %2906
      %2908 = vrot.lane.b32.xlu0 %v282, 90
      %v2909 = vpop.permute.xlu0 %2908
      %2910 = vrot.lane.b32.xlu0 %v283, 90
      %v2911 = vpop.permute.xlu0 %2910
      %2912 = vrot.lane.b32.xlu0 %v284, 90
      %v2913 = vpop.permute.xlu0 %2912
      %2914 = vrot.lane.b32.xlu0 %v285, 90
      %v2915 = vpop.permute.xlu0 %2914
      %2916 = vrot.lane.b32.xlu0 %v286, 90
      %v2917 = vpop.permute.xlu0 %2916
      %2918 = vrot.lane.b32.xlu0 %v287, 90
      %v2919 = vpop.permute.xlu0 %2918
      %2920 = vrot.lane.b32.xlu0 %v288, 90
      %v2921 = vpop.permute.xlu0 %2920
      %2922 = vrot.lane.b32.xlu0 %v289, 90
      %v2923 = vpop.permute.xlu0 %2922
      %2924 = vrot.lane.b32.xlu0 %v290, 90
      %v2925 = vpop.permute.xlu0 %2924
      %2926 = vrot.lane.b32.xlu0 %v291, 90
      %v2927 = vpop.permute.xlu0 %2926
      %2928 = vrot.lane.b32.xlu0 %v292, 90
      %v2929 = vpop.permute.xlu0 %2928
      %2930 = vrot.lane.b32.xlu0 %v293, 90
      %v2931 = vpop.permute.xlu0 %2930
      %2932 = vrot.lane.b32.xlu0 %v294, 90
      %v2933 = vpop.permute.xlu0 %2932
      %2934 = vrot.lane.b32.xlu0 %v295, 90
      %v2935 = vpop.permute.xlu0 %2934
      %2936 = vrot.lane.b32.xlu0 %v296, 90
      %v2937 = vpop.permute.xlu0 %2936
      %2938 = vrot.lane.b32.xlu0 %v297, 90
      %v2939 = vpop.permute.xlu0 %2938
      %2940 = vrot.lane.b32.xlu0 %v298, 90
      %v2941 = vpop.permute.xlu0 %2940
      %2942 = vrot.lane.b32.xlu0 %v299, 90
      %v2943 = vpop.permute.xlu0 %2942
      %vm2944 = vcmask 736256
      %v2945 = vsel %vm2944, %v2873, %v2875
      %v2946 = vsel %vm2944, %v2875, %v2877
      %v2947 = vsel %vm2944, %v2879, %v2881
      %v2948 = vsel %vm2944, %v2881, %v2883
      %v2949 = vsel %vm2944, %v2885, %v2887
      %v2950 = vsel %vm2944, %v2887, %v2889
      %v2951 = vsel %vm2944, %v2891, %v2893
      %v2952 = vsel %vm2944, %v2893, %v2895
      %v2953 = vsel %vm2944, %v2897, %v2899
      %v2954 = vsel %vm2944, %v2899, %v2901
      %v2955 = vsel %vm2944, %v2903, %v2905
      %v2956 = vsel %vm2944, %v2905, %v2907
      %v2957 = vsel %vm2944, %v2909, %v2911
      %v2958 = vsel %vm2944, %v2911, %v2913
      %v2959 = vsel %vm2944, %v2915, %v2917
      %v2960 = vsel %vm2944, %v2917, %v2919
      %v2961 = vsel %vm2944, %v2921, %v2923
      %v2962 = vsel %vm2944, %v2923, %v2925
      %v2963 = vsel %vm2944, %v2927, %v2929
      %v2964 = vsel %vm2944, %v2929, %v2931
      %v2965 = vsel %vm2944, %v2933, %v2935
      %v2966 = vsel %vm2944, %v2935, %v2937
      %v2967 = vsel %vm2944, %v2939, %v2941
      %v2968 = vsel %vm2944, %v2941, %v2943
      %v3006 = vsel %vm478, %v2868, 0
      %v3009 = vsel %vm478, %v2869, 0
      %v3012 = vsel %vm478, %v2870, 0
      %v3015 = vsel %vm478, %v2871, 0
      %3017 = vmatprep.subr.mxu0 %v2946
      %3018 = vmatpush1.msra.mxu0 %v2945
      %3019 = vmatprep.subr.mxu0 %v2948
      %3020 = vmatpush1.msra.mxu0 %v2947
      %3021 = vmatprep.subr.mxu0 %v2950
      %3022 = vmatpush1.msra.mxu0 %v2949
      %3023 = vmatprep.subr.mxu0 %v2952
      %3024 = vmatpush1.msra.mxu0 %v2951
      %3025 = vmatprep.subr.mxu0 %v2954
      %3026 = vmatpush1.msra.mxu0 %v2953
      %3027 = vmatprep.subr.mxu0 %v2956
      %3028 = vmatpush1.msra.mxu0 %v2955
      %3029 = vmatprep.subr.mxu0 %v2958
      %3030 = vmatpush1.msra.mxu0 %v2957
      %3031 = vmatprep.subr.mxu0 %v2960
      %3032 = vmatpush1.msra.mxu0 %v2959
      %3033 = vmatprep.subr.mxu0 %v2962
      %3034 = vmatpush1.msra.mxu0 %v2961
      %3035 = vmatprep.subr.mxu0 %v2964
      %3036 = vmatpush1.msra.mxu0 %v2963
      %3037 = vmatprep.subr.mxu0 %v2966
      %3038 = vmatpush1.msra.mxu0 %v2965
      %3039 = vmatprep.subr.mxu0 %v2968
      %3040 = vmatpush1.msra.mxu0 %v2967
      %3041 = vmatprep.subr.mxu0 0.0
      %3042 = vmatpush1.msra.mxu0 0.0
      %3043 = vmatprep.subr.mxu0 0.0
      %3044 = vmatpush1.msra.mxu0 0.0
      %3045 = vmatprep.subr.mxu0 0.0
      %3046 = vmatpush1.msra.mxu0 0.0
      %3047 = vmatprep.subr.mxu0 0.0
      %3048 = vmatpush1.msra.mxu0 0.0
      %3049 = vmatprep.subr.mxu0 0.0
      %3050 = vmatpush1.msra.mxu0 0.0
      %3051 = vmatprep.subr.mxu0 0.0
      %3052 = vmatpush1.msra.mxu0 0.0
      %3053 = vmatprep.subr.mxu0 0.0
      %3054 = vmatpush1.msra.mxu0 0.0
      %3055 = vmatprep.subr.mxu0 0.0
      %3056 = vmatpush1.msra.mxu0 0.0
      %3057 = vmatprep.subr.mxu0 0.0
      %3058 = vmatpush1.msra.mxu0 0.0
      %3059 = vmatprep.subr.mxu0 0.0
      %3060 = vmatpush1.msra.mxu0 0.0
      %3061 = vmatprep.subr.mxu0 0.0
      %3062 = vmatpush1.msra.mxu0 0.0
      %3063 = vmatprep.subr.mxu0 0.0
      %3064 = vmatpush1.msra.mxu0 0.0
      %3065 = vmatprep.subr.mxu0 0.0
      %3066 = vmatpush1.msra.mxu0 0.0
      %3067 = vmatprep.subr.mxu0 0.0
      %3068 = vmatpush1.msra.mxu0 0.0
      %3069 = vmatprep.subr.mxu0 0.0
      %3070 = vmatpush1.msra.mxu0 0.0
      %3071 = vmatprep.subr.mxu0 0.0
      %3072 = vmatpush1.msra.mxu0 0.0
      %3073 = vmatprep.subr.mxu0 0.0
      %3074 = vmatpush1.msra.mxu0 0.0
      %3075 = vmatprep.subr.mxu0 0.0
      %3076 = vmatpush1.msra.mxu0 0.0
      %3077 = vmatprep.subr.mxu0 0.0
      %3078 = vmatpush1.msra.mxu0 0.0
      %3079 = vmatprep.subr.mxu0 0.0
      %3080 = vmatpush1.msra.mxu0 0.0
      %3081 = vmatprep.mubr.f32.mxu0 0.0
      %3082 = vmatmul.mubr.f32.gmra.mrb[0].mxu0 %v3006
      %v3083 = vpop.f32.mrb[0].mxu0
      %v3084 = vadd.f32 0.0, %v3083
      %v3085 = vpop.f32.mrb[0].mxu0
      %v3086 = vadd.f32 0.0, %v3085
      %3087 = vmatprep.mubr.f32.mxu0 0.0
      %3088 = vmatmul.mubr.f32.gmra.mrb[0].mxu0 %v3009
      %v3089 = vpop.f32.mrb[0].mxu0
      %v3090 = vadd.f32 0.0, %v3089
      %v3091 = vpop.f32.mrb[0].mxu0
      %v3092 = vadd.f32 0.0, %v3091
      %3093 = vmatprep.mubr.f32.mxu0 0.0
      %3094 = vmatmul.mubr.f32.gmra.mrb[0].mxu0 %v3012
      %v3095 = vpop.f32.mrb[0].mxu0
      %v3096 = vadd.f32 0.0, %v3095
      %v3097 = vpop.f32.mrb[0].mxu0
      %v3098 = vadd.f32 0.0, %v3097
      %3099 = vmatprep.mubr.f32.mxu0 0.0
      %3100 = vmatmul.mubr.f32.gmra.mrb[0].mxu0 %v3015
      %v3101 = vpop.f32.mrb[0].mxu0
      %v3102 = vadd.f32 0.0, %v3101
      %v3103 = vpop.f32.mrb[0].mxu0
      %v3104 = vadd.f32 0.0, %v3103
      %3105 = vdwg.mxu0
      %3106 = vmatprep.subr.mxu0 0.0
      %3107 = vmatpush1.msra.mxu0 %v2877
      %3108 = vmatprep.subr.mxu0 0.0
      %3109 = vmatpush1.msra.mxu0 %v2883
      %3110 = vmatprep.subr.mxu0 0.0
      %3111 = vmatpush1.msra.mxu0 %v2889
      %3112 = vmatprep.subr.mxu0 0.0
      %3113 = vmatpush1.msra.mxu0 %v2895
      %3114 = vmatprep.subr.mxu0 0.0
      %3115 = vmatpush1.msra.mxu0 %v2901
      %3116 = vmatprep.subr.mxu0 0.0
      %3117 = vmatpush1.msra.mxu0 %v2907
      %3118 = vmatprep.subr.mxu0 0.0
      %3119 = vmatpush1.msra.mxu0 %v2913
      %3120 = vmatprep.subr.mxu0 0.0
      %3121 = vmatpush1.msra.mxu0 %v2919
      %3122 = vmatprep.subr.mxu0 0.0
      %3123 = vmatpush1.msra.mxu0 %v2925
      %3124 = vmatprep.subr.mxu0 0.0
      %3125 = vmatpush1.msra.mxu0 %v2931
      %3126 = vmatprep.subr.mxu0 0.0
      %3127 = vmatpush1.msra.mxu0 %v2937
      %3128 = vmatprep.subr.mxu0 0.0
      %3129 = vmatpush1.msra.mxu0 %v2943
      %3130 = vmatprep.subr.mxu0 0.0
      %3131 = vmatpush1.msra.mxu0 0.0
      %3132 = vmatprep.subr.mxu0 0.0
      %3133 = vmatpush1.msra.mxu0 0.0
      %3134 = vmatprep.subr.mxu0 0.0
      %3135 = vmatpush1.msra.mxu0 0.0
      %3136 = vmatprep.subr.mxu0 0.0
      %3137 = vmatpush1.msra.mxu0 0.0
      %3138 = vmatprep.subr.mxu0 0.0
      %3139 = vmatpush1.msra.mxu0 0.0
      %3140 = vmatprep.subr.mxu0 0.0
      %3141 = vmatpush1.msra.mxu0 0.0
      %3142 = vmatprep.subr.mxu0 0.0
      %3143 = vmatpush1.msra.mxu0 0.0
      %3144 = vmatprep.subr.mxu0 0.0
      %3145 = vmatpush1.msra.mxu0 0.0
      %3146 = vmatprep.subr.mxu0 0.0
      %3147 = vmatpush1.msra.mxu0 0.0
      %3148 = vmatprep.subr.mxu0 0.0
      %3149 = vmatpush1.msra.mxu0 0.0
      %3150 = vmatprep.subr.mxu0 0.0
      %3151 = vmatpush1.msra.mxu0 0.0
      %3152 = vmatprep.subr.mxu0 0.0
      %3153 = vmatpush1.msra.mxu0 0.0
      %3154 = vmatprep.subr.mxu0 0.0
      %3155 = vmatpush1.msra.mxu0 0.0
      %3156 = vmatprep.subr.mxu0 0.0
      %3157 = vmatpush1.msra.mxu0 0.0
      %3158 = vmatprep.subr.mxu0 0.0
      %3159 = vmatpush1.msra.mxu0 0.0
      %3160 = vmatprep.subr.mxu0 0.0
      %3161 = vmatpush1.msra.mxu0 0.0
      %3162 = vmatprep.subr.mxu0 0.0
      %3163 = vmatpush1.msra.mxu0 0.0
      %3164 = vmatprep.subr.mxu0 0.0
      %3165 = vmatpush1.msra.mxu0 0.0
      %3166 = vmatprep.subr.mxu0 0.0
      %3167 = vmatpush1.msra.mxu0 0.0
      %3168 = vmatprep.subr.mxu0 0.0
      %3169 = vmatpush1.msra.mxu0 0.0
      %3170 = vmatprep.mubr.f32.mxu0 0.0
      %3171 = vmatmul.mubr.f32.gmra.mrb[0].mxu0 %v3006
      %v3172 = vpop.f32.mrb[0].mxu0
      %v3173 = vadd.f32 0.0, %v3172
      %v3174 = vpop.f32.mrb[0].mxu0
      %3175 = vmatprep.mubr.f32.mxu0 0.0
      %3176 = vmatmul.mubr.f32.gmra.mrb[0].mxu0 %v3009
      %v3177 = vpop.f32.mrb[0].mxu0
      %v3178 = vadd.f32 0.0, %v3177
      %v3179 = vpop.f32.mrb[0].mxu0
      %3180 = vmatprep.mubr.f32.mxu0 0.0
      %3181 = vmatmul.mubr.f32.gmra.mrb[0].mxu0 %v3012
      %v3182 = vpop.f32.mrb[0].mxu0
      %v3183 = vadd.f32 0.0, %v3182
      %v3184 = vpop.f32.mrb[0].mxu0
      %3185 = vmatprep.mubr.f32.mxu0 0.0
      %3186 = vmatmul.mubr.f32.gmra.mrb[0].mxu0 %v3015
      %v3187 = vpop.f32.mrb[0].mxu0
      %v3188 = vadd.f32 0.0, %v3187
      %v3189 = vpop.f32.mrb[0].mxu0
      %3190 = vdwg.mxu0
      %v3191 = vadd.f32 %v2855, %v3084
      %v3192 = vadd.f32 %v2856, %v3086
      %v3193 = vadd.f32 %v2857, %v3173
      %v3194 = vadd.f32 %v2858, %v3090
      %v3195 = vadd.f32 %v2859, %v3092
      %v3196 = vadd.f32 %v2860, %v3178
      %v3197 = vadd.f32 %v2861, %v3096
      %v3198 = vadd.f32 %v2862, %v3098
      %v3199 = vadd.f32 %v2863, %v3183
      %v3200 = vadd.f32 %v2864, %v3102
      %v3201 = vadd.f32 %v2865, %v3104
      %v3202 = vadd.f32 %v2866, %v3188
      %v3203 = vld [vmem:[%s2] sm:$0xff]
      %v3204 = vld [vmem:[%s2 + $0x8] sm:$0xff]
      %v3205 = vld [vmem:[%s2 + $0x10] sm:$0xff]
      %v3206 = vld [vmem:[%s2 + $0x18] sm:$0xff]
      %3208 = vset.pattern.permute.xlu0 0
      %3209 = vperm.xlu0 %3208, %v3203
      %v3210 = vpop.permute.xlu0 %3209
      %3213 = vset.pattern.permute.xlu0 0
      %3214 = vperm.xlu0 %3213, %v3204
      %v3215 = vpop.permute.xlu0 %3214
      %3218 = vset.pattern.permute.xlu0 0
      %3219 = vperm.xlu0 %3218, %v3205
      %v3220 = vpop.permute.xlu0 %3219
      %3223 = vset.pattern.permute.xlu0 0
      %3224 = vperm.xlu0 %3223, %v3206
      %v3225 = vpop.permute.xlu0 %3224
      %v3227 = vadd.f32 %v3191, %v3210
      %v3228 = vadd.f32 %v3192, %v3210
      %v3229 = vadd.f32 %v3193, %v3210
      %v3230 = vadd.f32 %v3194, %v3215
      %v3231 = vadd.f32 %v3195, %v3215
      %v3232 = vadd.f32 %v3196, %v3215
      %v3233 = vadd.f32 %v3197, %v3220
      %v3234 = vadd.f32 %v3198, %v3220
      %v3235 = vadd.f32 %v3199, %v3220
      %v3236 = vadd.f32 %v3200, %v3225
      %v3237 = vadd.f32 %v3201, %v3225
      %v3238 = vadd.f32 %v3202, %v3225
      %v3239 = vmax.f32 %v3227, 0.0
      %v3240 = vmax.f32 %v3228, 0.0
      %v3241 = vmax.f32 %v3229, 0.0
      %v3242 = vmax.f32 %v3230, 0.0
      %v3243 = vmax.f32 %v3231, 0.0
      %v3244 = vmax.f32 %v3232, 0.0
      %v3245 = vmax.f32 %v3233, 0.0
      %v3246 = vmax.f32 %v3234, 0.0
      %v3247 = vmax.f32 %v3235, 0.0
      %v3248 = vmax.f32 %v3236, 0.0
      %v3249 = vmax.f32 %v3237, 0.0
      %v3250 = vmax.f32 %v3238, 0.0
      %3251 = vst [vmem:[%s259] sm:$0xff] %v3239
      %3252 = vst [vmem:[%s259 + $0x8] sm:$0xff] %v3240
      %vm3253 = vcmask 556032
      %3254 = vst.msk [vmem:[%s259 + $0x10] sm:$0xff] %vm3253, %v3241
      %3255 = vst [vmem:[%s259 + $0x18] sm:$0xff] %v3242
      %3256 = vst [vmem:[%s259 + $0x20] sm:$0xff] %v3243
      %3257 = vst.msk [vmem:[%s259 + $0x28] sm:$0xff] %vm3253, %v3244
      %3258 = vst [vmem:[%s259 + $0x30] sm:$0xff] %v3245
      %3259 = vst [vmem:[%s259 + $0x38] sm:$0xff] %v3246
      %3260 = vst.msk [vmem:[%s259 + $0x40] sm:$0xff] %vm3253, %v3247
      %3261 = vst [vmem:[%s259 + $0x48] sm:$0xff] %v3248
      %3262 = vst [vmem:[%s259 + $0x50] sm:$0xff] %v3249
      %3263 = vst.msk [vmem:[%s259 + $0x58] sm:$0xff] %vm3253, %v3250
      %v3264 = vld [vmem:[%s3] sm:$0xff]
      %v3265 = vld [vmem:[%s3 + $0x8] sm:$0xff]
      %v3266 = vld [vmem:[%s3 + $0x10] sm:$0xff]
      %v3267 = vld [vmem:[%s3 + $0x18] sm:$0xff]
      %3269 = vset.pattern.permute.xlu0 0
      %3270 = vperm.xlu0 %3269, %v3264
      %v3271 = vpop.permute.xlu0 %3270
      %3274 = vset.pattern.permute.xlu0 0
      %3275 = vperm.xlu0 %3274, %v3265
      %v3276 = vpop.permute.xlu0 %3275
      %3279 = vset.pattern.permute.xlu0 0
      %3280 = vperm.xlu0 %3279, %v3266
      %v3281 = vpop.permute.xlu0 %3280
      %3284 = vset.pattern.permute.xlu0 0
      %3285 = vperm.xlu0 %3284, %v3267
      %v3286 = vpop.permute.xlu0 %3285
      %v3288 = vmul.f32 %v3239, %v3271
      %v3289 = vmul.f32 %v3240, %v3271
      %v3290 = vmul.f32 %v3241, %v3271
      %v3291 = vmul.f32 %v3242, %v3276
      %v3292 = vmul.f32 %v3243, %v3276
      %v3293 = vmul.f32 %v3244, %v3276
      %v3294 = vmul.f32 %v3245, %v3281
      %v3295 = vmul.f32 %v3246, %v3281
      %v3296 = vmul.f32 %v3247, %v3281
      %v3297 = vmul.f32 %v3248, %v3286
      %v3298 = vmul.f32 %v3249, %v3286
      %v3299 = vmul.f32 %v3250, %v3286
      %v3300 = vadd.f32 %v3288, %v3291
      %v3301 = vadd.f32 %v3300, %v3294
      %v3302 = vadd.f32 %v3301, %v3297
      %v3303 = vrot.slane %v3302, 4
      %v3304 = vadd.f32 %v3302, %v3303
      %v3305 = vrot.slane %v3304, 2
      %v3306 = vadd.f32 %v3304, %v3305
      %v3307 = vrot.slane %v3306, 1
      %v3308 = vadd.f32 %v3306, %v3307
      %v3309 = vadd.f32 %v3289, %v3292
      %v3310 = vadd.f32 %v3309, %v3295
      %v3311 = vadd.f32 %v3310, %v3298
      %v3312 = vrot.slane %v3311, 4
      %v3313 = vadd.f32 %v3311, %v3312
      %v3314 = vrot.slane %v3313, 2
      %v3315 = vadd.f32 %v3313, %v3314
      %v3316 = vrot.slane %v3315, 1
      %v3317 = vadd.f32 %v3315, %v3316
      %v3318 = vsel %vm3253, %v3290, 0.0
      %v3319 = vsel %vm3253, %v3293, 0.0
      %v3320 = vadd.f32 %v3318, %v3319
      %v3321 = vsel %vm3253, %v3296, 0.0
      %v3322 = vadd.f32 %v3320, %v3321
      %v3323 = vsel %vm3253, %v3299, 0.0
      %v3324 = vadd.f32 %v3322, %v3323
      %v3325 = vrot.slane %v3324, 4
      %v3326 = vadd.f32 %v3324, %v3325
      %v3327 = vrot.slane %v3326, 2
      %v3328 = vadd.f32 %v3326, %v3327
      %v3329 = vrot.slane %v3328, 1
      %v3330 = vadd.f32 %v3328, %v3329
      %s3331 = sld [smem:[#allocation2]]
      %v3332 = vstv %s3331
      %v3333 = vadd.f32 %v3308, %v3332
      %v3334 = vadd.f32 %v3317, %v3332
      %v3335 = vadd.f32 %v3330, %v3332
      %v3336 = vxor.u32 %v3333, 2147483648
      %v3337 = vxor.u32 %v3334, 2147483648
      %v3338 = vxor.u32 %v3335, 2147483648
      %v3339 = vmul.f32 %v3336, 1.442695
      %v3340 = vpow.pop %v3339
      %v3341 = vmul.f32 %v3337, 1.442695
      %v3342 = vpow.pop %v3341
      %v3343 = vmul.f32 %v3338, 1.442695
      %v3344 = vpow.pop %v3343
      %v3345 = vadd.f32 %v3340, 1.0
      %v3346 = vadd.f32 %v3342, 1.0
      %v3347 = vadd.f32 %v3344, 1.0
      %v3348 = vrcp.pop %v3345
      %v3349 = vmul.f32 1.0, %v3348
      %v3350 = vrcp.pop %v3346
      %v3351 = vmul.f32 1.0, %v3350
      %v3352 = vrcp.pop %v3347
      %v3353 = vmul.f32 1.0, %v3352
      %v3357 = vcombine.low %v3349, %v3351
      %v3359 = vunpack.c.l.s4 1966171168
      %v3360 = vunpack.c.0.s8 %v3359
      %v3361 = vlaneseq
      %v3362 = vshrl.u32 %v3361, 7
      %v3363 = vsub.s32 %v3360, %v3362
      %v3364 = vrot.slane %v3357, %v3363
      %v3366 = vunpack.c.l.s4 1966171168
      %v3367 = vunpack.c.0.s8 %v3366
      %v3368 = vlaneseq
      %v3369 = vshrl.u32 %v3368, 7
      %v3370 = vsub.s32 %v3367, %v3369
      %v3371 = vrot.slane %v3353, %v3370
      %v3372 = vcombine.low %v3364, %v3371
      %v3374 = vunpack.c.l.s4 1966171168
      %v3375 = vunpack.c.0.s8 %v3374
      %v3376 = vlaneseq
      %v3377 = vshrl.u32 %v3376, 7
      %v3378 = vsub.s32 %v3375, %v3377
      %v3379 = vrot.slane %v3372, %v3378
      %v3381 = vlaneseq
      %vm3382 = vcmp.ge.s32.totalorder %v3381, 0
      %vm3383 = vcmp.lt.s32.totalorder %v3381, 324
      %vm3384 = vmand %vm3382, %vm3383
      %3385 = vst.msk [vmem:[%s263] sm:$0x7] %vm3384, %v3379
      %p3386 = scmp.lt.s32.totalorder %s19, 1
      %s3387 = scalar_select %p3386, %s19, 1
      %s3388 = smul.addr %s3387, 12
      %s3389 = smul.addr %s3388, 8
      %s3390 = scalar_lea.vmem %s5, %s3389
      %p3391 = scmp.lt.s32.totalorder %s19, 1
      %s3392 = scalar_select %p3391, %s19, 1
      %s3393 = smul.addr %s3392, 3
      %s3394 = scalar_lea.vmem %s6, %s3393
      // Predicated region
      $region41: #{decoder_block_forward.5} parent=39 // pred_check
        %p3395 = pneg %p147
      $region42: #{decoder_block_forward.5} parent=39 // pred_check_branch
        %3397 = sbr.rel (%p3395) target = $region44
      $region43: #{decoder_block_forward.5} parent=39 // pred_region
        _
      $region44: #{decoder_block_forward.5} parent=39 // pred_fallthru
        _
      // Predicated region
      $region45: #{decoder_block_forward.5} parent=39 // pred_check
        %p3398 = pneg %p173
      $region46: #{decoder_block_forward.5} parent=39 // pred_check_branch
        %3400 = sbr.rel (%p3398) target = $region48
      $region47: #{decoder_block_forward.5} parent=39 // pred_region
        _
      $region48: #{decoder_block_forward.5} parent=39 // pred_fallthru
        _
    $region40: #{decoder_block_forward.5} parent=5 // pred_fallthru
      _
    %p3401 = scmp.le.s32.totalorder 2, %s14
    // Predicated region
    $region49: #{decoder_block_forward.5} parent=5 // pred_check
      %p3402 = pneg %p3401
    $region50: #{decoder_block_forward.5} parent=5 // pred_check_branch
      %3404 = sbr.rel (%p3402) target = $region52
    $region51: #{decoder_block_forward.5} parent=5 // pred_region
      %s3405 = ssub.s32 %s14, 2
      // Predicated region
      $region53: #{decoder_block_forward.5} parent=51 // pred_check
        %p3406 = pneg %p153
      $region54: #{decoder_block_forward.5} parent=51 // pred_check_branch
        %3408 = sbr.rel (%p3406) target = $region56
      $region55: #{decoder_block_forward.5} parent=51 // pred_region
        %p3409 = scmp.lt.s32.totalorder %s20, 1
        %s3410 = scalar_select %p3409, %s20, 1
        %s3411 = smul.addr %s3410, 12
        %s3412 = smul.addr %s3411, 8
        %s3413 = scalar_lea.vmem %s5, %s3412
      $region56: #{decoder_block_forward.5} parent=51 // pred_fallthru
        _
      // Predicated region
      $region57: #{decoder_block_forward.5} parent=51 // pred_check
        %p3414 = pneg %p179
      $region58: #{decoder_block_forward.5} parent=51 // pred_check_branch
        %3416 = sbr.rel (%p3414) target = $region60
      $region59: #{decoder_block_forward.5} parent=51 // pred_region
        %p3417 = scmp.lt.s32.totalorder %s20, 1
        %s3418 = scalar_select %p3417, %s20, 1
        %s3419 = smul.addr %s3418, 3
        %s3420 = scalar_lea.vmem %s6, %s3419
      $region60: #{decoder_block_forward.5} parent=51 // pred_fallthru
        _
    $region52: #{decoder_block_forward.5} parent=5 // pred_fallthru
      _
  $region6: #{decoder_block_forward.5} parent=0 // loop_footer
    %s18 = sadd.s32 1, %s14
  $region7: #{decoder_block_forward.5} parent=0 // loop_footer_branch
    %13 = sbr.rel target = $region3
  $region8: #{decoder_block_forward.5} parent=0 // loop_exit
    _

// kernel: decoder_block_forward.4
$region0: #{decoder_block_forward.4}
  #allocation0 [shape = 'u32[]', space=smem, size = 0x4, offset = 0x4, fixed_abs, tag = 'smem constant byte address 0x4 - core index']
  #allocation1 [shape = 'u32[144,128]{1,0:T(1,128)}', space=vmem, size = 0x12000, scoped, tag = 'internal scratch']
  %s0 = inlined_call_operand.vmem [shape: f32[2,96,362], index: 0, kind: input, shape index: {}]
  %s1 = inlined_call_operand.vmem [shape: f32[9,96,96], index: 1, kind: input, shape index: {}]
  %s2 = inlined_call_operand.vmem [shape: f32[96,1], index: 2, kind: input, shape index: {}]
  %s3 = inlined_call_operand.vmem [shape: f32[1,324], index: 3, kind: input, shape index: {}]
  %s4 = inlined_call_operand.vmem [shape: f32[2,96,324], index: 4, kind: output, shape index: {}]
  %s5 = sld [smem:[#allocation0]]
  $region49: #{decoder_block_forward.4} parent=0
    _
  %s7 = ssub.s32 1, %s5
  %s8 = scalar_select 0, %s7, %s5
  loop: start=0, step=1, limit=4
  $region2: #{decoder_block_forward.4} parent=0 // loop_pre_header
    _
  $region3: #{decoder_block_forward.4} parent=0 // loop_header
    %s10 = sphi 0, %s14
    %p11 = scmp.ge.s32.totalorder %s10, 4
    %s20 = sphi 0, %s22
    %s23 = sphi 0, %s20
    %s24 = sphi 0, %s23
    %s40 = sphi 0, %s24
    %s44 = sphi 0, %s44
    %s46 = sphi 0, %s44
    %s47 = sphi 0, %s46
    %s61 = sphi 0, %s47
    %s65 = sphi 0, %s65
    %s67 = sphi 0, %s65
    %s68 = sphi 0, %s67
    %s82 = sphi 0, %s68
    %s86 = sphi 0, %s86
    %s88 = sphi 0, %s86
    %s89 = sphi 0, %s88
    %s103 = sphi 0, %s89
    %s109 = sphi 0, %s111
    %s112 = sphi 0, %s109
    %s113 = sphi 0, %s112
    %s129 = sphi 0, %s113
  $region4: #{decoder_block_forward.4} parent=0 // loop_header_branch
    %13 = sbr.rel (%p11) target = $region8
  $region5: #{decoder_block_forward.4} parent=0 // loop_body
    %s15 = ssub.s32 %s10, 1
    %s16 = ssub.s32 %s10, 2
    %s17 = sadd.s32 %s10, 1
    %s18 = ssub.s32 %s10, %s17
    %p19 = scmp.eq.s32.totalorder %s18, 0
    %s21 = sadd.s32 %s20, 1
    %s22 = scalar_select %p19, %s20, %s21
    %p25 = pneg %p19
    %p26 = scmp.eq.s32.totalorder %s10, 1
    %p27 = por %p25, %p26
    %p28 = scmp.ne.s32.totalorder %s20, %s23
    %p29 = scmp.eq.s32.totalorder %s10, 0
    %p30 = por %p28, %p29
    %p31 = scmp.ne.s32.totalorder %s20, %s23
    %p32 = scmp.eq.s32.totalorder %s15, 1
    %p33 = por %p31, %p32
    %p34 = scmp.ne.s32.totalorder %s23, %s24
    %p35 = scmp.eq.s32.totalorder %s15, 0
    %p36 = por %p34, %p35
    %p37 = scmp.ne.s32.totalorder %s23, %s24
    %p38 = scmp.eq.s32.totalorder %s16, 1
    %p39 = por %p37, %p38
    %p41 = scmp.ne.s32.totalorder %s24, %s40
    %p42 = scmp.eq.s32.totalorder %s16, 0
    %p43 = por %p41, %p42
    %s45 = sadd.s32 %s44, 1
    %p48 = scmp.eq.s32.totalorder %s10, 1
    %p49 = scmp.ne.s32.totalorder %s44, %s46
    %p50 = scmp.eq.s32.totalorder %s10, 0
    %p51 = por %p49, %p50
    %p52 = scmp.ne.s32.totalorder %s44, %s46
    %p53 = scmp.eq.s32.totalorder %s15, 1
    %p54 = por %p52, %p53
    %p55 = scmp.ne.s32.totalorder %s46, %s47
    %p56 = scmp.eq.s32.totalorder %s15, 0
    %p57 = por %p55, %p56
    %p58 = scmp.ne.s32.totalorder %s46, %s47
    %p59 = scmp.eq.s32.totalorder %s16, 1
    %p60 = por %p58, %p59
    %p62 = scmp.ne.s32.totalorder %s47, %s61
    %p63 = scmp.eq.s32.totalorder %s16, 0
    %p64 = por %p62, %p63
    %s66 = sadd.s32 %s65, 1
    %p69 = scmp.eq.s32.totalorder %s10, 1
    %p70 = scmp.ne.s32.totalorder %s65, %s67
    %p71 = scmp.eq.s32.totalorder %s10, 0
    %p72 = por %p70, %p71
    %p73 = scmp.ne.s32.totalorder %s65, %s67
    %p74 = scmp.eq.s32.totalorder %s15, 1
    %p75 = por %p73, %p74
    %p76 = scmp.ne.s32.totalorder %s67, %s68
    %p77 = scmp.eq.s32.totalorder %s15, 0
    %p78 = por %p76, %p77
    %p79 = scmp.ne.s32.totalorder %s67, %s68
    %p80 = scmp.eq.s32.totalorder %s16, 1
    %p81 = por %p79, %p80
    %p83 = scmp.ne.s32.totalorder %s68, %s82
    %p84 = scmp.eq.s32.totalorder %s16, 0
    %p85 = por %p83, %p84
    %s87 = sadd.s32 %s86, 1
    %p90 = scmp.eq.s32.totalorder %s10, 1
    %p91 = scmp.ne.s32.totalorder %s86, %s88
    %p92 = scmp.eq.s32.totalorder %s10, 0
    %p93 = por %p91, %p92
    %p94 = scmp.ne.s32.totalorder %s86, %s88
    %p95 = scmp.eq.s32.totalorder %s15, 1
    %p96 = por %p94, %p95
    %p97 = scmp.ne.s32.totalorder %s88, %s89
    %p98 = scmp.eq.s32.totalorder %s15, 0
    %p99 = por %p97, %p98
    %p100 = scmp.ne.s32.totalorder %s88, %s89
    %p101 = scmp.eq.s32.totalorder %s16, 1
    %p102 = por %p100, %p101
    %p104 = scmp.ne.s32.totalorder %s89, %s103
    %p105 = scmp.eq.s32.totalorder %s16, 0
    %p106 = por %p104, %p105
    %s107 = ssub.s32 %s10, %s17
    %p108 = scmp.eq.s32.totalorder %s107, 0
    %s110 = sadd.s32 %s109, 1
    %s111 = scalar_select %p108, %s109, %s110
    %p114 = pneg %p108
    %p115 = scmp.eq.s32.totalorder %s10, 1
    %p116 = por %p114, %p115
    %p117 = scmp.ne.s32.totalorder %s109, %s112
    %p118 = scmp.eq.s32.totalorder %s10, 0
    %p119 = por %p117, %p118
    %p120 = scmp.ne.s32.totalorder %s109, %s112
    %p121 = scmp.eq.s32.totalorder %s15, 1
    %p122 = por %p120, %p121
    %p123 = scmp.ne.s32.totalorder %s112, %s113
    %p124 = scmp.eq.s32.totalorder %s15, 0
    %p125 = por %p123, %p124
    %p126 = scmp.ne.s32.totalorder %s112, %s113
    %p127 = scmp.eq.s32.totalorder %s16, 1
    %p128 = por %p126, %p127
    %p130 = scmp.ne.s32.totalorder %s113, %s129
    %p131 = scmp.eq.s32.totalorder %s16, 0
    %p132 = por %p130, %p131
    %p133 = scmp.le.s32.totalorder 1, %s10
    %p134 = scmp.lt.s32.totalorder %s10, 3
    %p135 = pnand %p133, %p134
    %p136 = pneg %p135
    // Predicated region
    $region9: #{decoder_block_forward.4} parent=5 // pred_check
      _
    $region10: #{decoder_block_forward.4} parent=5 // pred_check_branch
      %138 = sbr.rel (%p135) target = $region12
    $region11: #{decoder_block_forward.4} parent=5 // pred_region
      %s139 = ssub.s32 %s10, 1
      // Predicated region
      $region13: #{decoder_block_forward.4} parent=11 // pred_check
        %p140 = pneg %p57
      $region14: #{decoder_block_forward.4} parent=11 // pred_check_branch
        %142 = sbr.rel (%p140) target = $region16
      $region15: #{decoder_block_forward.4} parent=11 // pred_region
        _
      $region16: #{decoder_block_forward.4} parent=11 // pred_fallthru
        _
      // Predicated region
      $region17: #{decoder_block_forward.4} parent=11 // pred_check
        %p143 = pneg %p78
      $region18: #{decoder_block_forward.4} parent=11 // pred_check_branch
        %145 = sbr.rel (%p143) target = $region20
      $region19: #{decoder_block_forward.4} parent=11 // pred_region
        _
      $region20: #{decoder_block_forward.4} parent=11 // pred_fallthru
        _
      // Predicated region
      $region21: #{decoder_block_forward.4} parent=11 // pred_check
        %p146 = pneg %p99
      $region22: #{decoder_block_forward.4} parent=11 // pred_check_branch
        %148 = sbr.rel (%p146) target = $region24
      $region23: #{decoder_block_forward.4} parent=11 // pred_region
        _
      $region24: #{decoder_block_forward.4} parent=11 // pred_fallthru
        _
    $region12: #{decoder_block_forward.4} parent=5 // pred_fallthru
      _
    %p149 = scmp.lt.s32.totalorder %s10, 2
    // Predicated region
    $region25: #{decoder_block_forward.4} parent=5 // pred_check
      %p150 = pneg %p149
    $region26: #{decoder_block_forward.4} parent=5 // pred_check_branch
      %152 = sbr.rel (%p150) target = $region28
    $region27: #{decoder_block_forward.4} parent=5 // pred_region
      // Predicated region
      $region29: #{decoder_block_forward.4} parent=27 // pred_check
        %p153 = pneg %p30
      $region30: #{decoder_block_forward.4} parent=27 // pred_check_branch
        %155 = sbr.rel (%p153) target = $region32
      $region31: #{decoder_block_forward.4} parent=27 // pred_region
        %p156 = scmp.lt.s32.totalorder %s10, 1
        %s157 = scalar_select %p156, %s10, 1
        %s158 = smul.addr %s157, 36
        %s159 = smul.addr %s158, 8
        %s160 = scalar_lea.vmem %s0, %s159
      $region32: #{decoder_block_forward.4} parent=27 // pred_fallthru
        _
    $region28: #{decoder_block_forward.4} parent=5 // pred_fallthru
      _
    %p161 = scmp.le.s32.totalorder 1, %s10
    %p162 = scmp.lt.s32.totalorder %s10, 3
    %p163 = pnand %p161, %p162
    %p164 = pneg %p163
    // Predicated region
    $region33: #{decoder_block_forward.4} parent=5 // pred_check
      _
    $region34: #{decoder_block_forward.4} parent=5 // pred_check_branch
      %166 = sbr.rel (%p163) target = $region36
    $region35: #{decoder_block_forward.4} parent=5 // pred_region
      %s167 = ssub.s32 %s10, 1
      %p168 = scmp.lt.s32.totalorder %s15, 1
      %s169 = scalar_select %p168, %s15, 1
      %s170 = smul.addr %s169, 36
      %s171 = smul.addr %s170, 8
      %s172 = scalar_lea.vmem %s0, %s171
      %p173 = pneg %p36
      %p174 = pneg %p33
      %p175 = pneg %p57
      %p176 = pneg %p54
      %p177 = pneg %p78
      %p178 = pneg %p75
      %p179 = pneg %p99
      %p180 = pneg %p96
      %p181 = pneg %p125
      %p182 = pneg %p122
      %p183 = scmp.lt.s32.totalorder %s15, 1
      %s184 = scalar_select %p183, %s15, 1
      %s185 = smul.addr %s184, 36
      %s186 = smul.addr %s185, 8
      %s187 = scalar_lea.vmem %s4, %s186
      %p188 = scmp.lt.s32.totalorder %s15, 1
      %s189 = scalar_select %p188, %s15, 1
      %s190 = smul.addr %s189, 36
      %s191 = smul.addr %s190, 8
      %s192 = scalar_lea.vmem %s0, %s191
      %p193 = scmp.lt.s32.totalorder %s15, 1
      %s194 = scalar_select %p193, %s15, 1
      %s195 = smul.addr %s194, 36
      %s196 = smul.addr %s195, 8
      %s197 = scalar_lea.vmem %s4, %s196
      %v198 = vld [vmem:[%s192] sm:$0xff]
      %v199 = vld [vmem:[%s192 + $0x8] sm:$0xff]
      %v200 = vld [vmem:[%s192 + $0x10] sm:$0xff]
      %v201 = vld [vmem:[%s192 + $0x18] sm:$0xff]
      %v202 = vld [vmem:[%s192 + $0x20] sm:$0xff]
      %v203 = vld [vmem:[%s192 + $0x28] sm:$0xff]
      %v204 = vld [vmem:[%s192 + $0x30] sm:$0xff]
      %v205 = vld [vmem:[%s192 + $0x38] sm:$0xff]
      %v206 = vld [vmem:[%s192 + $0x40] sm:$0xff]
      %v207 = vld [vmem:[%s192 + $0x48] sm:$0xff]
      %v208 = vld [vmem:[%s192 + $0x50] sm:$0xff]
      %v209 = vld [vmem:[%s192 + $0x58] sm:$0xff]
      %v210 = vld [vmem:[%s192 + $0x60] sm:$0xff]
      %v211 = vld [vmem:[%s192 + $0x68] sm:$0xff]
      %v212 = vld [vmem:[%s192 + $0x70] sm:$0xff]
      %v213 = vld [vmem:[%s192 + $0x78] sm:$0xff]
      %v214 = vld [vmem:[%s192 + $0x80] sm:$0xff]
      %v215 = vld [vmem:[%s192 + $0x88] sm:$0xff]
      %v216 = vld [vmem:[%s192 + $0x90] sm:$0xff]
      %v217 = vld [vmem:[%s192 + $0x98] sm:$0xff]
      %v218 = vld [vmem:[%s192 + $0xa0] sm:$0xff]
      %v219 = vld [vmem:[%s192 + $0xa8] sm:$0xff]
      %v220 = vld [vmem:[%s192 + $0xb0] sm:$0xff]
      %v221 = vld [vmem:[%s192 + $0xb8] sm:$0xff]
      %v222 = vld [vmem:[%s192 + $0xc0] sm:$0xff]
      %v223 = vld [vmem:[%s192 + $0xc8] sm:$0xff]
      %v224 = vld [vmem:[%s192 + $0xd0] sm:$0xff]
      %v225 = vld [vmem:[%s192 + $0xd8] sm:$0xff]
      %v226 = vld [vmem:[%s192 + $0xe0] sm:$0xff]
      %v227 = vld [vmem:[%s192 + $0xe8] sm:$0xff]
      %v228 = vld [vmem:[%s192 + $0xf0] sm:$0xff]
      %v229 = vld [vmem:[%s192 + $0xf8] sm:$0xff]
      %v230 = vld [vmem:[%s192 + $0x100] sm:$0xff]
      %v231 = vld [vmem:[%s192 + $0x108] sm:$0xff]
      %v232 = vld [vmem:[%s192 + $0x110] sm:$0xff]
      %v233 = vld [vmem:[%s192 + $0x118] sm:$0xff]
      %v234 = vld [vmem:[%s1] sm:$0xff]
      %v235 = vld [vmem:[%s1 + $0x8] sm:$0xff]
      %v236 = vld [vmem:[%s1 + $0x10] sm:$0xff]
      %v237 = vld [vmem:[%s1 + $0x18] sm:$0xff]
      %v238 = vld [vmem:[%s1 + $0x20] sm:$0xff]
      %v239 = vld [vmem:[%s1 + $0x28] sm:$0xff]
      %v240 = vld [vmem:[%s1 + $0x30] sm:$0xff]
      %v241 = vld [vmem:[%s1 + $0x38] sm:$0xff]
      %v242 = vld [vmem:[%s1 + $0x40] sm:$0xff]
      %v243 = vld [vmem:[%s1 + $0x48] sm:$0xff]
      %v244 = vld [vmem:[%s1 + $0x50] sm:$0xff]
      %v245 = vld [vmem:[%s1 + $0x58] sm:$0xff]
      %s246 = scalar_lea.vmem %s1, 96
      %v247 = vld [vmem:[%s246] sm:$0xff]
      %v248 = vld [vmem:[%s246 + $0x8] sm:$0xff]
      %v249 = vld [vmem:[%s246 + $0x10] sm:$0xff]
      %v250 = vld [vmem:[%s246 + $0x18] sm:$0xff]
      %v251 = vld [vmem:[%s246 + $0x20] sm:$0xff]
      %v252 = vld [vmem:[%s246 + $0x28] sm:$0xff]
      %v253 = vld [vmem:[%s246 + $0x30] sm:$0xff]
      %v254 = vld [vmem:[%s246 + $0x38] sm:$0xff]
      %v255 = vld [vmem:[%s246 + $0x40] sm:$0xff]
      %v256 = vld [vmem:[%s246 + $0x48] sm:$0xff]
      %v257 = vld [vmem:[%s246 + $0x50] sm:$0xff]
      %v258 = vld [vmem:[%s246 + $0x58] sm:$0xff]
      %295 = vrot.lane.b32.xlu0 %v198, 127
      %v296 = vpop.permute.xlu0 %295
      %297 = vrot.lane.b32.xlu0 %v199, 127
      %v298 = vpop.permute.xlu0 %297
      %299 = vrot.lane.b32.xlu0 %v200, 127
      %v300 = vpop.permute.xlu0 %299
      %301 = vrot.lane.b32.xlu0 %v201, 127
      %v302 = vpop.permute.xlu0 %301
      %303 = vrot.lane.b32.xlu0 %v202, 127
      %v304 = vpop.permute.xlu0 %303
      %305 = vrot.lane.b32.xlu0 %v203, 127
      %v306 = vpop.permute.xlu0 %305
      %307 = vrot.lane.b32.xlu0 %v204, 127
      %v308 = vpop.permute.xlu0 %307
      %309 = vrot.lane.b32.xlu0 %v205, 127
      %v310 = vpop.permute.xlu0 %309
      %311 = vrot.lane.b32.xlu0 %v206, 127
      %v312 = vpop.permute.xlu0 %311
      %313 = vrot.lane.b32.xlu0 %v207, 127
      %v314 = vpop.permute.xlu0 %313
      %315 = vrot.lane.b32.xlu0 %v208, 127
      %v316 = vpop.permute.xlu0 %315
      %317 = vrot.lane.b32.xlu0 %v209, 127
      %v318 = vpop.permute.xlu0 %317
      %319 = vrot.lane.b32.xlu0 %v210, 127
      %v320 = vpop.permute.xlu0 %319
      %321 = vrot.lane.b32.xlu0 %v211, 127
      %v322 = vpop.permute.xlu0 %321
      %323 = vrot.lane.b32.xlu0 %v212, 127
      %v324 = vpop.permute.xlu0 %323
      %325 = vrot.lane.b32.xlu0 %v213, 127
      %v326 = vpop.permute.xlu0 %325
      %327 = vrot.lane.b32.xlu0 %v214, 127
      %v328 = vpop.permute.xlu0 %327
      %329 = vrot.lane.b32.xlu0 %v215, 127
      %v330 = vpop.permute.xlu0 %329
      %331 = vrot.lane.b32.xlu0 %v216, 127
      %v332 = vpop.permute.xlu0 %331
      %333 = vrot.lane.b32.xlu0 %v217, 127
      %v334 = vpop.permute.xlu0 %333
      %335 = vrot.lane.b32.xlu0 %v218, 127
      %v336 = vpop.permute.xlu0 %335
      %337 = vrot.lane.b32.xlu0 %v219, 127
      %v338 = vpop.permute.xlu0 %337
      %339 = vrot.lane.b32.xlu0 %v220, 127
      %v340 = vpop.permute.xlu0 %339
      %341 = vrot.lane.b32.xlu0 %v221, 127
      %v342 = vpop.permute.xlu0 %341
      %343 = vrot.lane.b32.xlu0 %v222, 127
      %v344 = vpop.permute.xlu0 %343
      %345 = vrot.lane.b32.xlu0 %v223, 127
      %v346 = vpop.permute.xlu0 %345
      %347 = vrot.lane.b32.xlu0 %v224, 127
      %v348 = vpop.permute.xlu0 %347
      %349 = vrot.lane.b32.xlu0 %v225, 127
      %v350 = vpop.permute.xlu0 %349
      %351 = vrot.lane.b32.xlu0 %v226, 127
      %v352 = vpop.permute.xlu0 %351
      %353 = vrot.lane.b32.xlu0 %v227, 127
      %v354 = vpop.permute.xlu0 %353
      %355 = vrot.lane.b32.xlu0 %v228, 127
      %v356 = vpop.permute.xlu0 %355
      %357 = vrot.lane.b32.xlu0 %v229, 127
      %v358 = vpop.permute.xlu0 %357
      %359 = vrot.lane.b32.xlu0 %v230, 127
      %v360 = vpop.permute.xlu0 %359
      %361 = vrot.lane.b32.xlu0 %v231, 127
      %v362 = vpop.permute.xlu0 %361
      %363 = vrot.lane.b32.xlu0 %v232, 127
      %v364 = vpop.permute.xlu0 %363
      %365 = vrot.lane.b32.xlu0 %v233, 127
      %v366 = vpop.permute.xlu0 %365
      %vm367 = vcmask 1039360
      %v368 = vsel %vm367, %v296, %v298
      %v369 = vsel %vm367, %v298, %v300
      %v370 = vsel %vm367, %v302, %v304
      %v371 = vsel %vm367, %v304, %v306
      %v372 = vsel %vm367, %v308, %v310
      %v373 = vsel %vm367, %v310, %v312
      %v374 = vsel %vm367, %v314, %v316
      %v375 = vsel %vm367, %v316, %v318
      %v376 = vsel %vm367, %v320, %v322
      %v377 = vsel %vm367, %v322, %v324
      %v378 = vsel %vm367, %v326, %v328
      %v379 = vsel %vm367, %v328, %v330
      %v380 = vsel %vm367, %v332, %v334
      %v381 = vsel %vm367, %v334, %v336
      %v382 = vsel %vm367, %v338, %v340
      %v383 = vsel %vm367, %v340, %v342
      %v384 = vsel %vm367, %v344, %v346
      %v385 = vsel %vm367, %v346, %v348
      %v386 = vsel %vm367, %v350, %v352
      %v387 = vsel %vm367, %v352, %v354
      %v388 = vsel %vm367, %v356, %v358
      %v389 = vsel %vm367, %v358, %v360
      %v390 = vsel %vm367, %v362, %v364
      %v391 = vsel %vm367, %v364, %v366
      %vm428 = vcmask 785408
      %v430 = vsel %vm428, %v247, 0
      %v433 = vsel %vm428, %v248, 0
      %v436 = vsel %vm428, %v249, 0
      %v439 = vsel %vm428, %v250, 0
      %v442 = vsel %vm428, %v251, 0
      %v445 = vsel %vm428, %v252, 0
      %v448 = vsel %vm428, %v253, 0
      %v451 = vsel %vm428, %v254, 0
      %v454 = vsel %vm428, %v255, 0
      %v457 = vsel %vm428, %v256, 0
      %v460 = vsel %vm428, %v257, 0
      %v463 = vsel %vm428, %v258, 0
      %465 = vmatprep.subr.mxu0 %v369
      %466 = vmatpush1.msra.mxu0 %v368
      %467 = vmatprep.subr.mxu0 %v371
      %468 = vmatpush1.msra.mxu0 %v370
      %469 = vmatprep.subr.mxu0 %v373
      %470 = vmatpush1.msra.mxu0 %v372
      %471 = vmatprep.subr.mxu0 %v375
      %472 = vmatpush1.msra.mxu0 %v374
      %473 = vmatprep.subr.mxu0 %v377
      %474 = vmatpush1.msra.mxu0 %v376
      %475 = vmatprep.subr.mxu0 %v379
      %476 = vmatpush1.msra.mxu0 %v378
      %477 = vmatprep.subr.mxu0 %v381
      %478 = vmatpush1.msra.mxu0 %v380
      %479 = vmatprep.subr.mxu0 %v383
      %480 = vmatpush1.msra.mxu0 %v382
      %481 = vmatprep.subr.mxu0 %v385
      %482 = vmatpush1.msra.mxu0 %v384
      %483 = vmatprep.subr.mxu0 %v387
      %484 = vmatpush1.msra.mxu0 %v386
      %485 = vmatprep.subr.mxu0 %v389
      %486 = vmatpush1.msra.mxu0 %v388
      %487 = vmatprep.subr.mxu0 %v391
      %488 = vmatpush1.msra.mxu0 %v390
      %489 = vmatprep.subr.mxu0 0.0
      %490 = vmatpush1.msra.mxu0 0.0
      %491 = vmatprep.subr.mxu0 0.0
      %492 = vmatpush1.msra.mxu0 0.0
      %493 = vmatprep.subr.mxu0 0.0
      %494 = vmatpush1.msra.mxu0 0.0
      %495 = vmatprep.subr.mxu0 0.0
      %496 = vmatpush1.msra.mxu0 0.0
      %497 = vmatprep.subr.mxu0 0.0
      %498 = vmatpush1.msra.mxu0 0.0
      %499 = vmatprep.subr.mxu0 0.0
      %500 = vmatpush1.msra.mxu0 0.0
      %501 = vmatprep.subr.mxu0 0.0
      %502 = vmatpush1.msra.mxu0 0.0
      %503 = vmatprep.subr.mxu0 0.0
      %504 = vmatpush1.msra.mxu0 0.0
      %505 = vmatprep.subr.mxu0 0.0
      %506 = vmatpush1.msra.mxu0 0.0
      %507 = vmatprep.subr.mxu0 0.0
      %508 = vmatpush1.msra.mxu0 0.0
      %509 = vmatprep.subr.mxu0 0.0
      %510 = vmatpush1.msra.mxu0 0.0
      %511 = vmatprep.subr.mxu0 0.0
      %512 = vmatpush1.msra.mxu0 0.0
      %513 = vmatprep.subr.mxu0 0.0
      %514 = vmatpush1.msra.mxu0 0.0
      %515 = vmatprep.subr.mxu0 0.0
      %516 = vmatpush1.msra.mxu0 0.0
      %517 = vmatprep.subr.mxu0 0.0
      %518 = vmatpush1.msra.mxu0 0.0
      %519 = vmatprep.subr.mxu0 0.0
      %520 = vmatpush1.msra.mxu0 0.0
      %521 = vmatprep.subr.mxu0 0.0
      %522 = vmatpush1.msra.mxu0 0.0
      %523 = vmatprep.subr.mxu0 0.0
      %524 = vmatpush1.msra.mxu0 0.0
      %525 = vmatprep.subr.mxu0 0.0
      %526 = vmatpush1.msra.mxu0 0.0
      %527 = vmatprep.subr.mxu0 0.0
      %528 = vmatpush1.msra.mxu0 0.0
      %529 = vmatprep.mubr.f32.mxu0 0.0
      %530 = vmatmul.mubr.f32.gmra.mrb[0].mxu0 %v430
      %v531 = vpop.f32.mrb[0].mxu0
      %v532 = vadd.f32 0.0, %v531
      %v533 = vpop.f32.mrb[0].mxu0
      %v534 = vadd.f32 0.0, %v533
      %535 = vmatprep.mubr.f32.mxu0 0.0
      %536 = vmatmul.mubr.f32.gmra.mrb[0].mxu0 %v433
      %v537 = vpop.f32.mrb[0].mxu0
      %v538 = vadd.f32 0.0, %v537
      %v539 = vpop.f32.mrb[0].mxu0
      %v540 = vadd.f32 0.0, %v539
      %541 = vmatprep.mubr.f32.mxu0 0.0
      %542 = vmatmul.mubr.f32.gmra.mrb[0].mxu0 %v436
      %v543 = vpop.f32.mrb[0].mxu0
      %v544 = vadd.f32 0.0, %v543
      %v545 = vpop.f32.mrb[0].mxu0
      %v546 = vadd.f32 0.0, %v545
      %547 = vmatprep.mubr.f32.mxu0 0.0
      %548 = vmatmul.mubr.f32.gmra.mrb[0].mxu0 %v439
      %v549 = vpop.f32.mrb[0].mxu0
      %v550 = vadd.f32 0.0, %v549
      %v551 = vpop.f32.mrb[0].mxu0
      %v552 = vadd.f32 0.0, %v551
      %553 = vmatprep.mubr.f32.mxu0 0.0
      %554 = vmatmul.mubr.f32.gmra.mrb[0].mxu0 %v442
      %v555 = vpop.f32.mrb[0].mxu0
      %v556 = vadd.f32 0.0, %v555
      %v557 = vpop.f32.mrb[0].mxu0
      %v558 = vadd.f32 0.0, %v557
      %559 = vmatprep.mubr.f32.mxu0 0.0
      %560 = vmatmul.mubr.f32.gmra.mrb[0].mxu0 %v445
      %v561 = vpop.f32.mrb[0].mxu0
      %v562 = vadd.f32 0.0, %v561
      %v563 = vpop.f32.mrb[0].mxu0
      %v564 = vadd.f32 0.0, %v563
      %565 = vmatprep.mubr.f32.mxu0 0.0
      %566 = vmatmul.mubr.f32.gmra.mrb[0].mxu0 %v448
      %v567 = vpop.f32.mrb[0].mxu0
      %v568 = vadd.f32 0.0, %v567
      %v569 = vpop.f32.mrb[0].mxu0
      %v570 = vadd.f32 0.0, %v569
      %571 = vmatprep.mubr.f32.mxu0 0.0
      %572 = vmatmul.mubr.f32.gmra.mrb[0].mxu0 %v451
      %v573 = vpop.f32.mrb[0].mxu0
      %v574 = vadd.f32 0.0, %v573
      %v575 = vpop.f32.mrb[0].mxu0
      %v576 = vadd.f32 0.0, %v575
      %577 = vmatprep.mubr.f32.mxu0 0.0
      %578 = vmatmul.mubr.f32.gmra.mrb[0].mxu0 %v454
      %v579 = vpop.f32.mrb[0].mxu0
      %v580 = vadd.f32 0.0, %v579
      %v581 = vpop.f32.mrb[0].mxu0
      %v582 = vadd.f32 0.0, %v581
      %583 = vmatprep.mubr.f32.mxu0 0.0
      %584 = vmatmul.mubr.f32.gmra.mrb[0].mxu0 %v457
      %v585 = vpop.f32.mrb[0].mxu0
      %v586 = vadd.f32 0.0, %v585
      %v587 = vpop.f32.mrb[0].mxu0
      %v588 = vadd.f32 0.0, %v587
      %589 = vmatprep.mubr.f32.mxu0 0.0
      %590 = vmatmul.mubr.f32.gmra.mrb[0].mxu0 %v460
      %v591 = vpop.f32.mrb[0].mxu0
      %v592 = vadd.f32 0.0, %v591
      %v593 = vpop.f32.mrb[0].mxu0
      %v594 = vadd.f32 0.0, %v593
      %595 = vmatprep.mubr.f32.mxu0 0.0
      %596 = vmatmul.mubr.f32.gmra.mrb[0].mxu0 %v463
      %v597 = vpop.f32.mrb[0].mxu0
      %v598 = vadd.f32 0.0, %v597
      %v599 = vpop.f32.mrb[0].mxu0
      %v600 = vadd.f32 0.0, %v599
      %601 = vdwg.mxu0
      %602 = vmatprep.subr.mxu0 0.0
      %603 = vmatpush1.msra.mxu0 %v300
      %604 = vmatprep.subr.mxu0 0.0
      %605 = vmatpush1.msra.mxu0 %v306
      %606 = vmatprep.subr.mxu0 0.0
      %607 = vmatpush1.msra.mxu0 %v312
      %608 = vmatprep.subr.mxu0 0.0
      %609 = vmatpush1.msra.mxu0 %v318
      %610 = vmatprep.subr.mxu0 0.0
      %611 = vmatpush1.msra.mxu0 %v324
      %612 = vmatprep.subr.mxu0 0.0
      %613 = vmatpush1.msra.mxu0 %v330
      %614 = vmatprep.subr.mxu0 0.0
      %615 = vmatpush1.msra.mxu0 %v336
      %616 = vmatprep.subr.mxu0 0.0
      %617 = vmatpush1.msra.mxu0 %v342
      %618 = vmatprep.subr.mxu0 0.0
      %619 = vmatpush1.msra.mxu0 %v348
      %620 = vmatprep.subr.mxu0 0.0
      %621 = vmatpush1.msra.mxu0 %v354
      %622 = vmatprep.subr.mxu0 0.0
      %623 = vmatpush1.msra.mxu0 %v360
      %624 = vmatprep.subr.mxu0 0.0
      %625 = vmatpush1.msra.mxu0 %v366
      %626 = vmatprep.subr.mxu0 0.0
      %627 = vmatpush1.msra.mxu0 0.0
      %628 = vmatprep.subr.mxu0 0.0
      %629 = vmatpush1.msra.mxu0 0.0
      %630 = vmatprep.subr.mxu0 0.0
      %631 = vmatpush1.msra.mxu0 0.0
      %632 = vmatprep.subr.mxu0 0.0
      %633 = vmatpush1.msra.mxu0 0.0
      %634 = vmatprep.subr.mxu0 0.0
      %635 = vmatpush1.msra.mxu0 0.0
      %636 = vmatprep.subr.mxu0 0.0
      %637 = vmatpush1.msra.mxu0 0.0
      %638 = vmatprep.subr.mxu0 0.0
      %639 = vmatpush1.msra.mxu0 0.0
      %640 = vmatprep.subr.mxu0 0.0
      %641 = vmatpush1.msra.mxu0 0.0
      %642 = vmatprep.subr.mxu0 0.0
      %643 = vmatpush1.msra.mxu0 0.0
      %644 = vmatprep.subr.mxu0 0.0
      %645 = vmatpush1.msra.mxu0 0.0
      %646 = vmatprep.subr.mxu0 0.0
      %647 = vmatpush1.msra.mxu0 0.0
      %648 = vmatprep.subr.mxu0 0.0
      %649 = vmatpush1.msra.mxu0 0.0
      %650 = vmatprep.subr.mxu0 0.0
      %651 = vmatpush1.msra.mxu0 0.0
      %652 = vmatprep.subr.mxu0 0.0
      %653 = vmatpush1.msra.mxu0 0.0
      %654 = vmatprep.subr.mxu0 0.0
      %655 = vmatpush1.msra.mxu0 0.0
      %656 = vmatprep.subr.mxu0 0.0
      %657 = vmatpush1.msra.mxu0 0.0
      %658 = vmatprep.subr.mxu0 0.0
      %659 = vmatpush1.msra.mxu0 0.0
      %660 = vmatprep.subr.mxu0 0.0
      %661 = vmatpush1.msra.mxu0 0.0
      %662 = vmatprep.subr.mxu0 0.0
      %663 = vmatpush1.msra.mxu0 0.0
      %664 = vmatprep.subr.mxu0 0.0
      %665 = vmatpush1.msra.mxu0 0.0
      %666 = vmatprep.mubr.f32.mxu0 0.0
      %667 = vmatmul.mubr.f32.gmra.mrb[0].mxu0 %v430
      %v668 = vpop.f32.mrb[0].mxu0
      %v669 = vadd.f32 0.0, %v668
      %v670 = vpop.f32.mrb[0].mxu0
      %671 = vmatprep.mubr.f32.mxu0 0.0
      %672 = vmatmul.mubr.f32.gmra.mrb[0].mxu0 %v433
      %v673 = vpop.f32.mrb[0].mxu0
      %v674 = vadd.f32 0.0, %v673
      %v675 = vpop.f32.mrb[0].mxu0
      %676 = vmatprep.mubr.f32.mxu0 0.0
      %677 = vmatmul.mubr.f32.gmra.mrb[0].mxu0 %v436
      %v678 = vpop.f32.mrb[0].mxu0
      %v679 = vadd.f32 0.0, %v678
      %v680 = vpop.f32.mrb[0].mxu0
      %681 = vmatprep.mubr.f32.mxu0 0.0
      %682 = vmatmul.mubr.f32.gmra.mrb[0].mxu0 %v439
      %v683 = vpop.f32.mrb[0].mxu0
      %v684 = vadd.f32 0.0, %v683
      %v685 = vpop.f32.mrb[0].mxu0
      %686 = vmatprep.mubr.f32.mxu0 0.0
      %687 = vmatmul.mubr.f32.gmra.mrb[0].mxu0 %v442
      %v688 = vpop.f32.mrb[0].mxu0
      %v689 = vadd.f32 0.0, %v688
      %v690 = vpop.f32.mrb[0].mxu0
      %691 = vmatprep.mubr.f32.mxu0 0.0
      %692 = vmatmul.mubr.f32.gmra.mrb[0].mxu0 %v445
      %v693 = vpop.f32.mrb[0].mxu0
      %v694 = vadd.f32 0.0, %v693
      %v695 = vpop.f32.mrb[0].mxu0
      %696 = vmatprep.mubr.f32.mxu0 0.0
      %697 = vmatmul.mubr.f32.gmra.mrb[0].mxu0 %v448
      %v698 = vpop.f32.mrb[0].mxu0
      %v699 = vadd.f32 0.0, %v698
      %v700 = vpop.f32.mrb[0].mxu0
      %701 = vmatprep.mubr.f32.mxu0 0.0
      %702 = vmatmul.mubr.f32.gmra.mrb[0].mxu0 %v451
      %v703 = vpop.f32.mrb[0].mxu0
      %v704 = vadd.f32 0.0, %v703
      %v705 = vpop.f32.mrb[0].mxu0
      %706 = vmatprep.mubr.f32.mxu0 0.0
      %707 = vmatmul.mubr.f32.gmra.mrb[0].mxu0 %v454
      %v708 = vpop.f32.mrb[0].mxu0
      %v709 = vadd.f32 0.0, %v708
      %v710 = vpop.f32.mrb[0].mxu0
      %711 = vmatprep.mubr.f32.mxu0 0.0
      %712 = vmatmul.mubr.f32.gmra.mrb[0].mxu0 %v457
      %v713 = vpop.f32.mrb[0].mxu0
      %v714 = vadd.f32 0.0, %v713
      %v715 = vpop.f32.mrb[0].mxu0
      %716 = vmatprep.mubr.f32.mxu0 0.0
      %717 = vmatmul.mubr.f32.gmra.mrb[0].mxu0 %v460
      %v718 = vpop.f32.mrb[0].mxu0
      %v719 = vadd.f32 0.0, %v718
      %v720 = vpop.f32.mrb[0].mxu0
      %721 = vmatprep.mubr.f32.mxu0 0.0
      %722 = vmatmul.mubr.f32.gmra.mrb[0].mxu0 %v463
      %v723 = vpop.f32.mrb[0].mxu0
      %v724 = vadd.f32 0.0, %v723
      %v725 = vpop.f32.mrb[0].mxu0
      %726 = vdwg.mxu0
      %v728 = vsel %vm428, %v234, 0
      %v731 = vsel %vm428, %v235, 0
      %v734 = vsel %vm428, %v236, 0
      %v737 = vsel %vm428, %v237, 0
      %v740 = vsel %vm428, %v238, 0
      %v743 = vsel %vm428, %v239, 0
      %v746 = vsel %vm428, %v240, 0
      %v749 = vsel %vm428, %v241, 0
      %v752 = vsel %vm428, %v242, 0
      %v755 = vsel %vm428, %v243, 0
      %v758 = vsel %vm428, %v244, 0
      %v761 = vsel %vm428, %v245, 0
      %763 = vmatprep.subr.mxu0 %v199
      %764 = vmatpush1.msra.mxu0 %v198
      %765 = vmatprep.subr.mxu0 %v202
      %766 = vmatpush1.msra.mxu0 %v201
      %767 = vmatprep.subr.mxu0 %v205
      %768 = vmatpush1.msra.mxu0 %v204
      %769 = vmatprep.subr.mxu0 %v208
      %770 = vmatpush1.msra.mxu0 %v207
      %771 = vmatprep.subr.mxu0 %v211
      %772 = vmatpush1.msra.mxu0 %v210
      %773 = vmatprep.subr.mxu0 %v214
      %774 = vmatpush1.msra.mxu0 %v213
      %775 = vmatprep.subr.mxu0 %v217
      %776 = vmatpush1.msra.mxu0 %v216
      %777 = vmatprep.subr.mxu0 %v220
      %778 = vmatpush1.msra.mxu0 %v219
      %779 = vmatprep.subr.mxu0 %v223
      %780 = vmatpush1.msra.mxu0 %v222
      %781 = vmatprep.subr.mxu0 %v226
      %782 = vmatpush1.msra.mxu0 %v225
      %783 = vmatprep.subr.mxu0 %v229
      %784 = vmatpush1.msra.mxu0 %v228
      %785 = vmatprep.subr.mxu0 %v232
      %786 = vmatpush1.msra.mxu0 %v231
      %787 = vmatprep.subr.mxu0 0.0
      %788 = vmatpush1.msra.mxu0 0.0
      %789 = vmatprep.subr.mxu0 0.0
      %790 = vmatpush1.msra.mxu0 0.0
      %791 = vmatprep.subr.mxu0 0.0
      %792 = vmatpush1.msra.mxu0 0.0
      %793 = vmatprep.subr.mxu0 0.0
      %794 = vmatpush1.msra.mxu0 0.0
      %795 = vmatprep.subr.mxu0 0.0
      %796 = vmatpush1.msra.mxu0 0.0
      %797 = vmatprep.subr.mxu0 0.0
      %798 = vmatpush1.msra.mxu0 0.0
      %799 = vmatprep.subr.mxu0 0.0
      %800 = vmatpush1.msra.mxu0 0.0
      %801 = vmatprep.subr.mxu0 0.0
      %802 = vmatpush1.msra.mxu0 0.0
      %803 = vmatprep.subr.mxu0 0.0
      %804 = vmatpush1.msra.mxu0 0.0
      %805 = vmatprep.subr.mxu0 0.0
      %806 = vmatpush1.msra.mxu0 0.0
      %807 = vmatprep.subr.mxu0 0.0
      %808 = vmatpush1.msra.mxu0 0.0
      %809 = vmatprep.subr.mxu0 0.0
      %810 = vmatpush1.msra.mxu0 0.0
      %811 = vmatprep.subr.mxu0 0.0
      %812 = vmatpush1.msra.mxu0 0.0
      %813 = vmatprep.subr.mxu0 0.0
      %814 = vmatpush1.msra.mxu0 0.0
      %815 = vmatprep.subr.mxu0 0.0
      %816 = vmatpush1.msra.mxu0 0.0
      %817 = vmatprep.subr.mxu0 0.0
      %818 = vmatpush1.msra.mxu0 0.0
      %819 = vmatprep.subr.mxu0 0.0
      %820 = vmatpush1.msra.mxu0 0.0
      %821 = vmatprep.subr.mxu0 0.0
      %822 = vmatpush1.msra.mxu0 0.0
      %823 = vmatprep.subr.mxu0 0.0
      %824 = vmatpush1.msra.mxu0 0.0
      %825 = vmatprep.subr.mxu0 0.0
      %826 = vmatpush1.msra.mxu0 0.0
      %827 = vmatprep.mubr.f32.mxu0 0.0
      %828 = vmatmul.mubr.f32.gmra.mrb[0].mxu0 %v728
      %v829 = vpop.f32.mrb[0].mxu0
      %v830 = vadd.f32 %v532, %v829
      %v831 = vpop.f32.mrb[0].mxu0
      %v832 = vadd.f32 %v534, %v831
      %833 = vmatprep.mubr.f32.mxu0 0.0
      %834 = vmatmul.mubr.f32.gmra.mrb[0].mxu0 %v731
      %v835 = vpop.f32.mrb[0].mxu0
      %v836 = vadd.f32 %v538, %v835
      %v837 = vpop.f32.mrb[0].mxu0
      %v838 = vadd.f32 %v540, %v837
      %839 = vmatprep.mubr.f32.mxu0 0.0
      %840 = vmatmul.mubr.f32.gmra.mrb[0].mxu0 %v734
      %v841 = vpop.f32.mrb[0].mxu0
      %v842 = vadd.f32 %v544, %v841
      %v843 = vpop.f32.mrb[0].mxu0
      %v844 = vadd.f32 %v546, %v843
      %845 = vmatprep.mubr.f32.mxu0 0.0
      %846 = vmatmul.mubr.f32.gmra.mrb[0].mxu0 %v737
      %v847 = vpop.f32.mrb[0].mxu0
      %v848 = vadd.f32 %v550, %v847
      %v849 = vpop.f32.mrb[0].mxu0
      %v850 = vadd.f32 %v552, %v849
      %851 = vmatprep.mubr.f32.mxu0 0.0
      %852 = vmatmul.mubr.f32.gmra.mrb[0].mxu0 %v740
      %v853 = vpop.f32.mrb[0].mxu0
      %v854 = vadd.f32 %v556, %v853
      %v855 = vpop.f32.mrb[0].mxu0
      %v856 = vadd.f32 %v558, %v855
      %857 = vmatprep.mubr.f32.mxu0 0.0
      %858 = vmatmul.mubr.f32.gmra.mrb[0].mxu0 %v743
      %v859 = vpop.f32.mrb[0].mxu0
      %v860 = vadd.f32 %v562, %v859
      %v861 = vpop.f32.mrb[0].mxu0
      %v862 = vadd.f32 %v564, %v861
      %863 = vmatprep.mubr.f32.mxu0 0.0
      %864 = vmatmul.mubr.f32.gmra.mrb[0].mxu0 %v746
      %v865 = vpop.f32.mrb[0].mxu0
      %v866 = vadd.f32 %v568, %v865
      %v867 = vpop.f32.mrb[0].mxu0
      %v868 = vadd.f32 %v570, %v867
      %869 = vmatprep.mubr.f32.mxu0 0.0
      %870 = vmatmul.mubr.f32.gmra.mrb[0].mxu0 %v749
      %v871 = vpop.f32.mrb[0].mxu0
      %v872 = vadd.f32 %v574, %v871
      %v873 = vpop.f32.mrb[0].mxu0
      %v874 = vadd.f32 %v576, %v873
      %875 = vmatprep.mubr.f32.mxu0 0.0
      %876 = vmatmul.mubr.f32.gmra.mrb[0].mxu0 %v752
      %v877 = vpop.f32.mrb[0].mxu0
      %v878 = vadd.f32 %v580, %v877
      %v879 = vpop.f32.mrb[0].mxu0
      %v880 = vadd.f32 %v582, %v879
      %881 = vmatprep.mubr.f32.mxu0 0.0
      %882 = vmatmul.mubr.f32.gmra.mrb[0].mxu0 %v755
      %v883 = vpop.f32.mrb[0].mxu0
      %v884 = vadd.f32 %v586, %v883
      %v885 = vpop.f32.mrb[0].mxu0
      %v886 = vadd.f32 %v588, %v885
      %887 = vmatprep.mubr.f32.mxu0 0.0
      %888 = vmatmul.mubr.f32.gmra.mrb[0].mxu0 %v758
      %v889 = vpop.f32.mrb[0].mxu0
      %v890 = vadd.f32 %v592, %v889
      %v891 = vpop.f32.mrb[0].mxu0
      %v892 = vadd.f32 %v594, %v891
      %893 = vmatprep.mubr.f32.mxu0 0.0
      %894 = vmatmul.mubr.f32.gmra.mrb[0].mxu0 %v761
      %v895 = vpop.f32.mrb[0].mxu0
      %v896 = vadd.f32 %v598, %v895
      %v897 = vpop.f32.mrb[0].mxu0
      %v898 = vadd.f32 %v600, %v897
      %899 = vdwg.mxu0
      %900 = vmatprep.subr.mxu0 0.0
      %901 = vmatpush1.msra.mxu0 %v200
      %902 = vmatprep.subr.mxu0 0.0
      %903 = vmatpush1.msra.mxu0 %v203
      %904 = vmatprep.subr.mxu0 0.0
      %905 = vmatpush1.msra.mxu0 %v206
      %906 = vmatprep.subr.mxu0 0.0
      %907 = vmatpush1.msra.mxu0 %v209
      %908 = vmatprep.subr.mxu0 0.0
      %909 = vmatpush1.msra.mxu0 %v212
      %910 = vmatprep.subr.mxu0 0.0
      %911 = vmatpush1.msra.mxu0 %v215
      %912 = vmatprep.subr.mxu0 0.0
      %913 = vmatpush1.msra.mxu0 %v218
      %914 = vmatprep.subr.mxu0 0.0
      %915 = vmatpush1.msra.mxu0 %v221
      %916 = vmatprep.subr.mxu0 0.0
      %917 = vmatpush1.msra.mxu0 %v224
      %918 = vmatprep.subr.mxu0 0.0
      %919 = vmatpush1.msra.mxu0 %v227
      %920 = vmatprep.subr.mxu0 0.0
      %921 = vmatpush1.msra.mxu0 %v230
      %922 = vmatprep.subr.mxu0 0.0
      %923 = vmatpush1.msra.mxu0 %v233
      %924 = vmatprep.subr.mxu0 0.0
      %925 = vmatpush1.msra.mxu0 0.0
      %926 = vmatprep.subr.mxu0 0.0
      %927 = vmatpush1.msra.mxu0 0.0
      %928 = vmatprep.subr.mxu0 0.0
      %929 = vmatpush1.msra.mxu0 0.0
      %930 = vmatprep.subr.mxu0 0.0
      %931 = vmatpush1.msra.mxu0 0.0
      %932 = vmatprep.subr.mxu0 0.0
      %933 = vmatpush1.msra.mxu0 0.0
      %934 = vmatprep.subr.mxu0 0.0
      %935 = vmatpush1.msra.mxu0 0.0
      %936 = vmatprep.subr.mxu0 0.0
      %937 = vmatpush1.msra.mxu0 0.0
      %938 = vmatprep.subr.mxu0 0.0
      %939 = vmatpush1.msra.mxu0 0.0
      %940 = vmatprep.subr.mxu0 0.0
      %941 = vmatpush1.msra.mxu0 0.0
      %942 = vmatprep.subr.mxu0 0.0
      %943 = vmatpush1.msra.mxu0 0.0
      %944 = vmatprep.subr.mxu0 0.0
      %945 = vmatpush1.msra.mxu0 0.0
      %946 = vmatprep.subr.mxu0 0.0
      %947 = vmatpush1.msra.mxu0 0.0
      %948 = vmatprep.subr.mxu0 0.0
      %949 = vmatpush1.msra.mxu0 0.0
      %950 = vmatprep.subr.mxu0 0.0
      %951 = vmatpush1.msra.mxu0 0.0
      %952 = vmatprep.subr.mxu0 0.0
      %953 = vmatpush1.msra.mxu0 0.0
      %954 = vmatprep.subr.mxu0 0.0
      %955 = vmatpush1.msra.mxu0 0.0
      %956 = vmatprep.subr.mxu0 0.0
      %957 = vmatpush1.msra.mxu0 0.0
      %958 = vmatprep.subr.mxu0 0.0
      %959 = vmatpush1.msra.mxu0 0.0
      %960 = vmatprep.subr.mxu0 0.0
      %961 = vmatpush1.msra.mxu0 0.0
      %962 = vmatprep.subr.mxu0 0.0
      %963 = vmatpush1.msra.mxu0 0.0
      %964 = vmatprep.mubr.f32.mxu0 0.0
      %965 = vmatmul.mubr.f32.gmra.mrb[0].mxu0 %v728
      %v966 = vpop.f32.mrb[0].mxu0
      %v967 = vadd.f32 %v669, %v966
      %v968 = vpop.f32.mrb[0].mxu0
      %969 = vmatprep.mubr.f32.mxu0 0.0
      %970 = vmatmul.mubr.f32.gmra.mrb[0].mxu0 %v731
      %v971 = vpop.f32.mrb[0].mxu0
      %v972 = vadd.f32 %v674, %v971
      %v973 = vpop.f32.mrb[0].mxu0
      %974 = vmatprep.mubr.f32.mxu0 0.0
      %975 = vmatmul.mubr.f32.gmra.mrb[0].mxu0 %v734
      %v976 = vpop.f32.mrb[0].mxu0
      %v977 = vadd.f32 %v679, %v976
      %v978 = vpop.f32.mrb[0].mxu0
      %979 = vmatprep.mubr.f32.mxu0 0.0
      %980 = vmatmul.mubr.f32.gmra.mrb[0].mxu0 %v737
      %v981 = vpop.f32.mrb[0].mxu0
      %v982 = vadd.f32 %v684, %v981
      %v983 = vpop.f32.mrb[0].mxu0
      %984 = vmatprep.mubr.f32.mxu0 0.0
      %985 = vmatmul.mubr.f32.gmra.mrb[0].mxu0 %v740
      %v986 = vpop.f32.mrb[0].mxu0
      %v987 = vadd.f32 %v689, %v986
      %v988 = vpop.f32.mrb[0].mxu0
      %989 = vmatprep.mubr.f32.mxu0 0.0
      %990 = vmatmul.mubr.f32.gmra.mrb[0].mxu0 %v743
      %v991 = vpop.f32.mrb[0].mxu0
      %v992 = vadd.f32 %v694, %v991
      %v993 = vpop.f32.mrb[0].mxu0
      %994 = vmatprep.mubr.f32.mxu0 0.0
      %995 = vmatmul.mubr.f32.gmra.mrb[0].mxu0 %v746
      %v996 = vpop.f32.mrb[0].mxu0
      %v997 = vadd.f32 %v699, %v996
      %v998 = vpop.f32.mrb[0].mxu0
      %999 = vmatprep.mubr.f32.mxu0 0.0
      %1000 = vmatmul.mubr.f32.gmra.mrb[0].mxu0 %v749
      %v1001 = vpop.f32.mrb[0].mxu0
      %v1002 = vadd.f32 %v704, %v1001
      %v1003 = vpop.f32.mrb[0].mxu0
      %1004 = vmatprep.mubr.f32.mxu0 0.0
      %1005 = vmatmul.mubr.f32.gmra.mrb[0].mxu0 %v752
      %v1006 = vpop.f32.mrb[0].mxu0
      %v1007 = vadd.f32 %v709, %v1006
      %v1008 = vpop.f32.mrb[0].mxu0
      %1009 = vmatprep.mubr.f32.mxu0 0.0
      %1010 = vmatmul.mubr.f32.gmra.mrb[0].mxu0 %v755
      %v1011 = vpop.f32.mrb[0].mxu0
      %v1012 = vadd.f32 %v714, %v1011
      %v1013 = vpop.f32.mrb[0].mxu0
      %1014 = vmatprep.mubr.f32.mxu0 0.0
      %1015 = vmatmul.mubr.f32.gmra.mrb[0].mxu0 %v758
      %v1016 = vpop.f32.mrb[0].mxu0
      %v1017 = vadd.f32 %v719, %v1016
      %v1018 = vpop.f32.mrb[0].mxu0
      %1019 = vmatprep.mubr.f32.mxu0 0.0
      %1020 = vmatmul.mubr.f32.gmra.mrb[0].mxu0 %v761
      %v1021 = vpop.f32.mrb[0].mxu0
      %v1022 = vadd.f32 %v724, %v1021
      %v1023 = vpop.f32.mrb[0].mxu0
      %1024 = vdwg.mxu0
      %s1025 = scalar_lea.vmem %s1, 192
      %v1026 = vld [vmem:[%s1025] sm:$0xff]
      %v1027 = vld [vmem:[%s1025 + $0x8] sm:$0xff]
      %v1028 = vld [vmem:[%s1025 + $0x10] sm:$0xff]
      %v1029 = vld [vmem:[%s1025 + $0x18] sm:$0xff]
      %v1030 = vld [vmem:[%s1025 + $0x20] sm:$0xff]
      %v1031 = vld [vmem:[%s1025 + $0x28] sm:$0xff]
      %v1032 = vld [vmem:[%s1025 + $0x30] sm:$0xff]
      %v1033 = vld [vmem:[%s1025 + $0x38] sm:$0xff]
      %v1034 = vld [vmem:[%s1025 + $0x40] sm:$0xff]
      %v1035 = vld [vmem:[%s1025 + $0x48] sm:$0xff]
      %v1036 = vld [vmem:[%s1025 + $0x50] sm:$0xff]
      %v1037 = vld [vmem:[%s1025 + $0x58] sm:$0xff]
      %1038 = vrot.lane.b32.xlu0 %v198, 126
      %v1039 = vpop.permute.xlu0 %1038
      %1040 = vrot.lane.b32.xlu0 %v199, 126
      %v1041 = vpop.permute.xlu0 %1040
      %1042 = vrot.lane.b32.xlu0 %v200, 126
      %v1043 = vpop.permute.xlu0 %1042
      %1044 = vrot.lane.b32.xlu0 %v201, 126
      %v1045 = vpop.permute.xlu0 %1044
      %1046 = vrot.lane.b32.xlu0 %v202, 126
      %v1047 = vpop.permute.xlu0 %1046
      %1048 = vrot.lane.b32.xlu0 %v203, 126
      %v1049 = vpop.permute.xlu0 %1048
      %1050 = vrot.lane.b32.xlu0 %v204, 126
      %v1051 = vpop.permute.xlu0 %1050
      %1052 = vrot.lane.b32.xlu0 %v205, 126
      %v1053 = vpop.permute.xlu0 %1052
      %1054 = vrot.lane.b32.xlu0 %v206, 126
      %v1055 = vpop.permute.xlu0 %1054
      %1056 = vrot.lane.b32.xlu0 %v207, 126
      %v1057 = vpop.permute.xlu0 %1056
      %1058 = vrot.lane.b32.xlu0 %v208, 126
      %v1059 = vpop.permute.xlu0 %1058
      %1060 = vrot.lane.b32.xlu0 %v209, 126
      %v1061 = vpop.permute.xlu0 %1060
      %1062 = vrot.lane.b32.xlu0 %v210, 126
      %v1063 = vpop.permute.xlu0 %1062
      %1064 = vrot.lane.b32.xlu0 %v211, 126
      %v1065 = vpop.permute.xlu0 %1064
      %1066 = vrot.lane.b32.xlu0 %v212, 126
      %v1067 = vpop.permute.xlu0 %1066
      %1068 = vrot.lane.b32.xlu0 %v213, 126
      %v1069 = vpop.permute.xlu0 %1068
      %1070 = vrot.lane.b32.xlu0 %v214, 126
      %v1071 = vpop.permute.xlu0 %1070
      %1072 = vrot.lane.b32.xlu0 %v215, 126
      %v1073 = vpop.permute.xlu0 %1072
      %1074 = vrot.lane.b32.xlu0 %v216, 126
      %v1075 = vpop.permute.xlu0 %1074
      %1076 = vrot.lane.b32.xlu0 %v217, 126
      %v1077 = vpop.permute.xlu0 %1076
      %1078 = vrot.lane.b32.xlu0 %v218, 126
      %v1079 = vpop.permute.xlu0 %1078
      %1080 = vrot.lane.b32.xlu0 %v219, 126
      %v1081 = vpop.permute.xlu0 %1080
      %1082 = vrot.lane.b32.xlu0 %v220, 126
      %v1083 = vpop.permute.xlu0 %1082
      %1084 = vrot.lane.b32.xlu0 %v221, 126
      %v1085 = vpop.permute.xlu0 %1084
      %1086 = vrot.lane.b32.xlu0 %v222, 126
      %v1087 = vpop.permute.xlu0 %1086
      %1088 = vrot.lane.b32.xlu0 %v223, 126
      %v1089 = vpop.permute.xlu0 %1088
      %1090 = vrot.lane.b32.xlu0 %v224, 126
      %v1091 = vpop.permute.xlu0 %1090
      %1092 = vrot.lane.b32.xlu0 %v225, 126
      %v1093 = vpop.permute.xlu0 %1092
      %1094 = vrot.lane.b32.xlu0 %v226, 126
      %v1095 = vpop.permute.xlu0 %1094
      %1096 = vrot.lane.b32.xlu0 %v227, 126
      %v1097 = vpop.permute.xlu0 %1096
      %1098 = vrot.lane.b32.xlu0 %v228, 126
      %v1099 = vpop.permute.xlu0 %1098
      %1100 = vrot.lane.b32.xlu0 %v229, 126
      %v1101 = vpop.permute.xlu0 %1100
      %1102 = vrot.lane.b32.xlu0 %v230, 126
      %v1103 = vpop.permute.xlu0 %1102
      %1104 = vrot.lane.b32.xlu0 %v231, 126
      %v1105 = vpop.permute.xlu0 %1104
      %1106 = vrot.lane.b32.xlu0 %v232, 126
      %v1107 = vpop.permute.xlu0 %1106
      %1108 = vrot.lane.b32.xlu0 %v233, 126
      %v1109 = vpop.permute.xlu0 %1108
      %vm1110 = vcmask 1031168
      %v1111 = vsel %vm1110, %v1039, %v1041
      %v1112 = vsel %vm1110, %v1041, %v1043
      %v1113 = vsel %vm1110, %v1045, %v1047
      %v1114 = vsel %vm1110, %v1047, %v1049
      %v1115 = vsel %vm1110, %v1051, %v1053
      %v1116 = vsel %vm1110, %v1053, %v1055
      %v1117 = vsel %vm1110, %v1057, %v1059
      %v1118 = vsel %vm1110, %v1059, %v1061
      %v1119 = vsel %vm1110, %v1063, %v1065
      %v1120 = vsel %vm1110, %v1065, %v1067
      %v1121 = vsel %vm1110, %v1069, %v1071
      %v1122 = vsel %vm1110, %v1071, %v1073
      %v1123 = vsel %vm1110, %v1075, %v1077
      %v1124 = vsel %vm1110, %v1077, %v1079
      %v1125 = vsel %vm1110, %v1081, %v1083
      %v1126 = vsel %vm1110, %v1083, %v1085
      %v1127 = vsel %vm1110, %v1087, %v1089
      %v1128 = vsel %vm1110, %v1089, %v1091
      %v1129 = vsel %vm1110, %v1093, %v1095
      %v1130 = vsel %vm1110, %v1095, %v1097
      %v1131 = vsel %vm1110, %v1099, %v1101
      %v1132 = vsel %vm1110, %v1101, %v1103
      %v1133 = vsel %vm1110, %v1105, %v1107
      %v1134 = vsel %vm1110, %v1107, %v1109
      %v1172 = vsel %vm428, %v1026, 0
      %v1175 = vsel %vm428, %v1027, 0
      %v1178 = vsel %vm428, %v1028, 0
      %v1181 = vsel %vm428, %v1029, 0
      %v1184 = vsel %vm428, %v1030, 0
      %v1187 = vsel %vm428, %v1031, 0
      %v1190 = vsel %vm428, %v1032, 0
      %v1193 = vsel %vm428, %v1033, 0
      %v1196 = vsel %vm428, %v1034, 0
      %v1199 = vsel %vm428, %v1035, 0
      %v1202 = vsel %vm428, %v1036, 0
      %v1205 = vsel %vm428, %v1037, 0
      %1207 = vmatprep.subr.mxu0 %v1112
      %1208 = vmatpush1.msra.mxu0 %v1111
      %1209 = vmatprep.subr.mxu0 %v1114
      %1210 = vmatpush1.msra.mxu0 %v1113
      %1211 = vmatprep.subr.mxu0 %v1116
      %1212 = vmatpush1.msra.mxu0 %v1115
      %1213 = vmatprep.subr.mxu0 %v1118
      %1214 = vmatpush1.msra.mxu0 %v1117
      %1215 = vmatprep.subr.mxu0 %v1120
      %1216 = vmatpush1.msra.mxu0 %v1119
      %1217 = vmatprep.subr.mxu0 %v1122
      %1218 = vmatpush1.msra.mxu0 %v1121
      %1219 = vmatprep.subr.mxu0 %v1124
      %1220 = vmatpush1.msra.mxu0 %v1123
      %1221 = vmatprep.subr.mxu0 %v1126
      %1222 = vmatpush1.msra.mxu0 %v1125
      %1223 = vmatprep.subr.mxu0 %v1128
      %1224 = vmatpush1.msra.mxu0 %v1127
      %1225 = vmatprep.subr.mxu0 %v1130
      %1226 = vmatpush1.msra.mxu0 %v1129
      %1227 = vmatprep.subr.mxu0 %v1132
      %1228 = vmatpush1.msra.mxu0 %v1131
      %1229 = vmatprep.subr.mxu0 %v1134
      %1230 = vmatpush1.msra.mxu0 %v1133
      %1231 = vmatprep.subr.mxu0 0.0
      %1232 = vmatpush1.msra.mxu0 0.0
      %1233 = vmatprep.subr.mxu0 0.0
      %1234 = vmatpush1.msra.mxu0 0.0
      %1235 = vmatprep.subr.mxu0 0.0
      %1236 = vmatpush1.msra.mxu0 0.0
      %1237 = vmatprep.subr.mxu0 0.0
      %1238 = vmatpush1.msra.mxu0 0.0
      %1239 = vmatprep.subr.mxu0 0.0
      %1240 = vmatpush1.msra.mxu0 0.0
      %1241 = vmatprep.subr.mxu0 0.0
      %1242 = vmatpush1.msra.mxu0 0.0
      %1243 = vmatprep.subr.mxu0 0.0
      %1244 = vmatpush1.msra.mxu0 0.0
      %1245 = vmatprep.subr.mxu0 0.0
      %1246 = vmatpush1.msra.mxu0 0.0
      %1247 = vmatprep.subr.mxu0 0.0
      %1248 = vmatpush1.msra.mxu0 0.0
      %1249 = vmatprep.subr.mxu0 0.0
      %1250 = vmatpush1.msra.mxu0 0.0
      %1251 = vmatprep.subr.mxu0 0.0
      %1252 = vmatpush1.msra.mxu0 0.0
      %1253 = vmatprep.subr.mxu0 0.0
      %1254 = vmatpush1.msra.mxu0 0.0
      %1255 = vmatprep.subr.mxu0 0.0
      %1256 = vmatpush1.msra.mxu0 0.0
      %1257 = vmatprep.subr.mxu0 0.0
      %1258 = vmatpush1.msra.mxu0 0.0
      %1259 = vmatprep.subr.mxu0 0.0
      %1260 = vmatpush1.msra.mxu0 0.0
      %1261 = vmatprep.subr.mxu0 0.0
      %1262 = vmatpush1.msra.mxu0 0.0
      %1263 = vmatprep.subr.mxu0 0.0
      %1264 = vmatpush1.msra.mxu0 0.0
      %1265 = vmatprep.subr.mxu0 0.0
      %1266 = vmatpush1.msra.mxu0 0.0
      %1267 = vmatprep.subr.mxu0 0.0
      %1268 = vmatpush1.msra.mxu0 0.0
      %1269 = vmatprep.subr.mxu0 0.0
      %1270 = vmatpush1.msra.mxu0 0.0
      %1271 = vmatprep.mubr.f32.mxu0 0.0
      %1272 = vmatmul.mubr.f32.gmra.mrb[0].mxu0 %v1172
      %v1273 = vpop.f32.mrb[0].mxu0
      %v1274 = vadd.f32 0.0, %v1273
      %v1275 = vpop.f32.mrb[0].mxu0
      %v1276 = vadd.f32 0.0, %v1275
      %1277 = vmatprep.mubr.f32.mxu0 0.0
      %1278 = vmatmul.mubr.f32.gmra.mrb[0].mxu0 %v1175
      %v1279 = vpop.f32.mrb[0].mxu0
      %v1280 = vadd.f32 0.0, %v1279
      %v1281 = vpop.f32.mrb[0].mxu0
      %v1282 = vadd.f32 0.0, %v1281
      %1283 = vmatprep.mubr.f32.mxu0 0.0
      %1284 = vmatmul.mubr.f32.gmra.mrb[0].mxu0 %v1178
      %v1285 = vpop.f32.mrb[0].mxu0
      %v1286 = vadd.f32 0.0, %v1285
      %v1287 = vpop.f32.mrb[0].mxu0
      %v1288 = vadd.f32 0.0, %v1287
      %1289 = vmatprep.mubr.f32.mxu0 0.0
      %1290 = vmatmul.mubr.f32.gmra.mrb[0].mxu0 %v1181
      %v1291 = vpop.f32.mrb[0].mxu0
      %v1292 = vadd.f32 0.0, %v1291
      %v1293 = vpop.f32.mrb[0].mxu0
      %v1294 = vadd.f32 0.0, %v1293
      %1295 = vmatprep.mubr.f32.mxu0 0.0
      %1296 = vmatmul.mubr.f32.gmra.mrb[0].mxu0 %v1184
      %v1297 = vpop.f32.mrb[0].mxu0
      %v1298 = vadd.f32 0.0, %v1297
      %v1299 = vpop.f32.mrb[0].mxu0
      %v1300 = vadd.f32 0.0, %v1299
      %1301 = vmatprep.mubr.f32.mxu0 0.0
      %1302 = vmatmul.mubr.f32.gmra.mrb[0].mxu0 %v1187
      %v1303 = vpop.f32.mrb[0].mxu0
      %v1304 = vadd.f32 0.0, %v1303
      %v1305 = vpop.f32.mrb[0].mxu0
      %v1306 = vadd.f32 0.0, %v1305
      %1307 = vmatprep.mubr.f32.mxu0 0.0
      %1308 = vmatmul.mubr.f32.gmra.mrb[0].mxu0 %v1190
      %v1309 = vpop.f32.mrb[0].mxu0
      %v1310 = vadd.f32 0.0, %v1309
      %v1311 = vpop.f32.mrb[0].mxu0
      %v1312 = vadd.f32 0.0, %v1311
      %1313 = vmatprep.mubr.f32.mxu0 0.0
      %1314 = vmatmul.mubr.f32.gmra.mrb[0].mxu0 %v1193
      %v1315 = vpop.f32.mrb[0].mxu0
      %v1316 = vadd.f32 0.0, %v1315
      %v1317 = vpop.f32.mrb[0].mxu0
      %v1318 = vadd.f32 0.0, %v1317
      %1319 = vmatprep.mubr.f32.mxu0 0.0
      %1320 = vmatmul.mubr.f32.gmra.mrb[0].mxu0 %v1196
      %v1321 = vpop.f32.mrb[0].mxu0
      %v1322 = vadd.f32 0.0, %v1321
      %v1323 = vpop.f32.mrb[0].mxu0
      %v1324 = vadd.f32 0.0, %v1323
      %1325 = vmatprep.mubr.f32.mxu0 0.0
      %1326 = vmatmul.mubr.f32.gmra.mrb[0].mxu0 %v1199
      %v1327 = vpop.f32.mrb[0].mxu0
      %v1328 = vadd.f32 0.0, %v1327
      %v1329 = vpop.f32.mrb[0].mxu0
      %v1330 = vadd.f32 0.0, %v1329
      %1331 = vmatprep.mubr.f32.mxu0 0.0
      %1332 = vmatmul.mubr.f32.gmra.mrb[0].mxu0 %v1202
      %v1333 = vpop.f32.mrb[0].mxu0
      %v1334 = vadd.f32 0.0, %v1333
      %v1335 = vpop.f32.mrb[0].mxu0
      %v1336 = vadd.f32 0.0, %v1335
      %1337 = vmatprep.mubr.f32.mxu0 0.0
      %1338 = vmatmul.mubr.f32.gmra.mrb[0].mxu0 %v1205
      %v1339 = vpop.f32.mrb[0].mxu0
      %v1340 = vadd.f32 0.0, %v1339
      %v1341 = vpop.f32.mrb[0].mxu0
      %v1342 = vadd.f32 0.0, %v1341
      %1343 = vdwg.mxu0
      %1344 = vmatprep.subr.mxu0 0.0
      %1345 = vmatpush1.msra.mxu0 %v1043
      %1346 = vmatprep.subr.mxu0 0.0
      %1347 = vmatpush1.msra.mxu0 %v1049
      %1348 = vmatprep.subr.mxu0 0.0
      %1349 = vmatpush1.msra.mxu0 %v1055
      %1350 = vmatprep.subr.mxu0 0.0
      %1351 = vmatpush1.msra.mxu0 %v1061
      %1352 = vmatprep.subr.mxu0 0.0
      %1353 = vmatpush1.msra.mxu0 %v1067
      %1354 = vmatprep.subr.mxu0 0.0
      %1355 = vmatpush1.msra.mxu0 %v1073
      %1356 = vmatprep.subr.mxu0 0.0
      %1357 = vmatpush1.msra.mxu0 %v1079
      %1358 = vmatprep.subr.mxu0 0.0
      %1359 = vmatpush1.msra.mxu0 %v1085
      %1360 = vmatprep.subr.mxu0 0.0
      %1361 = vmatpush1.msra.mxu0 %v1091
      %1362 = vmatprep.subr.mxu0 0.0
      %1363 = vmatpush1.msra.mxu0 %v1097
      %1364 = vmatprep.subr.mxu0 0.0
      %1365 = vmatpush1.msra.mxu0 %v1103
      %1366 = vmatprep.subr.mxu0 0.0
      %1367 = vmatpush1.msra.mxu0 %v1109
      %1368 = vmatprep.subr.mxu0 0.0
      %1369 = vmatpush1.msra.mxu0 0.0
      %1370 = vmatprep.subr.mxu0 0.0
      %1371 = vmatpush1.msra.mxu0 0.0
      %1372 = vmatprep.subr.mxu0 0.0
      %1373 = vmatpush1.msra.mxu0 0.0
      %1374 = vmatprep.subr.mxu0 0.0
      %1375 = vmatpush1.msra.mxu0 0.0
      %1376 = vmatprep.subr.mxu0 0.0
      %1377 = vmatpush1.msra.mxu0 0.0
      %1378 = vmatprep.subr.mxu0 0.0
      %1379 = vmatpush1.msra.mxu0 0.0
      %1380 = vmatprep.subr.mxu0 0.0
      %1381 = vmatpush1.msra.mxu0 0.0
      %1382 = vmatprep.subr.mxu0 0.0
      %1383 = vmatpush1.msra.mxu0 0.0
      %1384 = vmatprep.subr.mxu0 0.0
      %1385 = vmatpush1.msra.mxu0 0.0
      %1386 = vmatprep.subr.mxu0 0.0
      %1387 = vmatpush1.msra.mxu0 0.0
      %1388 = vmatprep.subr.mxu0 0.0
      %1389 = vmatpush1.msra.mxu0 0.0
      %1390 = vmatprep.subr.mxu0 0.0
      %1391 = vmatpush1.msra.mxu0 0.0
      %1392 = vmatprep.subr.mxu0 0.0
      %1393 = vmatpush1.msra.mxu0 0.0
      %1394 = vmatprep.subr.mxu0 0.0
      %1395 = vmatpush1.msra.mxu0 0.0
      %1396 = vmatprep.subr.mxu0 0.0
      %1397 = vmatpush1.msra.mxu0 0.0
      %1398 = vmatprep.subr.mxu0 0.0
      %1399 = vmatpush1.msra.mxu0 0.0
      %1400 = vmatprep.subr.mxu0 0.0
      %1401 = vmatpush1.msra.mxu0 0.0
      %1402 = vmatprep.subr.mxu0 0.0
      %1403 = vmatpush1.msra.mxu0 0.0
      %1404 = vmatprep.subr.mxu0 0.0
      %1405 = vmatpush1.msra.mxu0 0.0
      %1406 = vmatprep.subr.mxu0 0.0
      %1407 = vmatpush1.msra.mxu0 0.0
      %1408 = vmatprep.mubr.f32.mxu0 0.0
      %1409 = vmatmul.mubr.f32.gmra.mrb[0].mxu0 %v1172
      %v1410 = vpop.f32.mrb[0].mxu0
      %v1411 = vadd.f32 0.0, %v1410
      %v1412 = vpop.f32.mrb[0].mxu0
      %1413 = vmatprep.mubr.f32.mxu0 0.0
      %1414 = vmatmul.mubr.f32.gmra.mrb[0].mxu0 %v1175
      %v1415 = vpop.f32.mrb[0].mxu0
      %v1416 = vadd.f32 0.0, %v1415
      %v1417 = vpop.f32.mrb[0].mxu0
      %1418 = vmatprep.mubr.f32.mxu0 0.0
      %1419 = vmatmul.mubr.f32.gmra.mrb[0].mxu0 %v1178
      %v1420 = vpop.f32.mrb[0].mxu0
      %v1421 = vadd.f32 0.0, %v1420
      %v1422 = vpop.f32.mrb[0].mxu0
      %1423 = vmatprep.mubr.f32.mxu0 0.0
      %1424 = vmatmul.mubr.f32.gmra.mrb[0].mxu0 %v1181
      %v1425 = vpop.f32.mrb[0].mxu0
      %v1426 = vadd.f32 0.0, %v1425
      %v1427 = vpop.f32.mrb[0].mxu0
      %1428 = vmatprep.mubr.f32.mxu0 0.0
      %1429 = vmatmul.mubr.f32.gmra.mrb[0].mxu0 %v1184
      %v1430 = vpop.f32.mrb[0].mxu0
      %v1431 = vadd.f32 0.0, %v1430
      %v1432 = vpop.f32.mrb[0].mxu0
      %1433 = vmatprep.mubr.f32.mxu0 0.0
      %1434 = vmatmul.mubr.f32.gmra.mrb[0].mxu0 %v1187
      %v1435 = vpop.f32.mrb[0].mxu0
      %v1436 = vadd.f32 0.0, %v1435
      %v1437 = vpop.f32.mrb[0].mxu0
      %1438 = vmatprep.mubr.f32.mxu0 0.0
      %1439 = vmatmul.mubr.f32.gmra.mrb[0].mxu0 %v1190
      %v1440 = vpop.f32.mrb[0].mxu0
      %v1441 = vadd.f32 0.0, %v1440
      %v1442 = vpop.f32.mrb[0].mxu0
      %1443 = vmatprep.mubr.f32.mxu0 0.0
      %1444 = vmatmul.mubr.f32.gmra.mrb[0].mxu0 %v1193
      %v1445 = vpop.f32.mrb[0].mxu0
      %v1446 = vadd.f32 0.0, %v1445
      %v1447 = vpop.f32.mrb[0].mxu0
      %1448 = vmatprep.mubr.f32.mxu0 0.0
      %1449 = vmatmul.mubr.f32.gmra.mrb[0].mxu0 %v1196
      %v1450 = vpop.f32.mrb[0].mxu0
      %v1451 = vadd.f32 0.0, %v1450
      %v1452 = vpop.f32.mrb[0].mxu0
      %1453 = vmatprep.mubr.f32.mxu0 0.0
      %1454 = vmatmul.mubr.f32.gmra.mrb[0].mxu0 %v1199
      %v1455 = vpop.f32.mrb[0].mxu0
      %v1456 = vadd.f32 0.0, %v1455
      %v1457 = vpop.f32.mrb[0].mxu0
      %1458 = vmatprep.mubr.f32.mxu0 0.0
      %1459 = vmatmul.mubr.f32.gmra.mrb[0].mxu0 %v1202
      %v1460 = vpop.f32.mrb[0].mxu0
      %v1461 = vadd.f32 0.0, %v1460
      %v1462 = vpop.f32.mrb[0].mxu0
      %1463 = vmatprep.mubr.f32.mxu0 0.0
      %1464 = vmatmul.mubr.f32.gmra.mrb[0].mxu0 %v1205
      %v1465 = vpop.f32.mrb[0].mxu0
      %v1466 = vadd.f32 0.0, %v1465
      %v1467 = vpop.f32.mrb[0].mxu0
      %1468 = vdwg.mxu0
      %v1469 = vadd.f32 %v830, %v1274
      %v1470 = vadd.f32 %v832, %v1276
      %v1471 = vadd.f32 %v967, %v1411
      %v1472 = vadd.f32 %v836, %v1280
      %v1473 = vadd.f32 %v838, %v1282
      %v1474 = vadd.f32 %v972, %v1416
      %v1475 = vadd.f32 %v842, %v1286
      %v1476 = vadd.f32 %v844, %v1288
      %v1477 = vadd.f32 %v977, %v1421
      %v1478 = vadd.f32 %v848, %v1292
      %v1479 = vadd.f32 %v850, %v1294
      %v1480 = vadd.f32 %v982, %v1426
      %v1481 = vadd.f32 %v854, %v1298
      %v1482 = vadd.f32 %v856, %v1300
      %v1483 = vadd.f32 %v987, %v1431
      %v1484 = vadd.f32 %v860, %v1304
      %v1485 = vadd.f32 %v862, %v1306
      %v1486 = vadd.f32 %v992, %v1436
      %v1487 = vadd.f32 %v866, %v1310
      %v1488 = vadd.f32 %v868, %v1312
      %v1489 = vadd.f32 %v997, %v1441
      %v1490 = vadd.f32 %v872, %v1316
      %v1491 = vadd.f32 %v874, %v1318
      %v1492 = vadd.f32 %v1002, %v1446
      %v1493 = vadd.f32 %v878, %v1322
      %v1494 = vadd.f32 %v880, %v1324
      %v1495 = vadd.f32 %v1007, %v1451
      %v1496 = vadd.f32 %v884, %v1328
      %v1497 = vadd.f32 %v886, %v1330
      %v1498 = vadd.f32 %v1012, %v1456
      %v1499 = vadd.f32 %v890, %v1334
      %v1500 = vadd.f32 %v892, %v1336
      %v1501 = vadd.f32 %v1017, %v1461
      %v1502 = vadd.f32 %v896, %v1340
      %v1503 = vadd.f32 %v898, %v1342
      %v1504 = vadd.f32 %v1022, %v1466
      %s1505 = scalar_lea.vmem %s1, 288
      %v1506 = vld [vmem:[%s1505] sm:$0xff]
      %v1507 = vld [vmem:[%s1505 + $0x8] sm:$0xff]
      %v1508 = vld [vmem:[%s1505 + $0x10] sm:$0xff]
      %v1509 = vld [vmem:[%s1505 + $0x18] sm:$0xff]
      %v1510 = vld [vmem:[%s1505 + $0x20] sm:$0xff]
      %v1511 = vld [vmem:[%s1505 + $0x28] sm:$0xff]
      %v1512 = vld [vmem:[%s1505 + $0x30] sm:$0xff]
      %v1513 = vld [vmem:[%s1505 + $0x38] sm:$0xff]
      %v1514 = vld [vmem:[%s1505 + $0x40] sm:$0xff]
      %v1515 = vld [vmem:[%s1505 + $0x48] sm:$0xff]
      %v1516 = vld [vmem:[%s1505 + $0x50] sm:$0xff]
      %v1517 = vld [vmem:[%s1505 + $0x58] sm:$0xff]
      %1518 = vrot.lane.b32.xlu0 %v198, 110
      %v1519 = vpop.permute.xlu0 %1518
      %1520 = vrot.lane.b32.xlu0 %v199, 110
      %v1521 = vpop.permute.xlu0 %1520
      %1522 = vrot.lane.b32.xlu0 %v200, 110
      %v1523 = vpop.permute.xlu0 %1522
      %1524 = vrot.lane.b32.xlu0 %v201, 110
      %v1525 = vpop.permute.xlu0 %1524
      %1526 = vrot.lane.b32.xlu0 %v202, 110
      %v1527 = vpop.permute.xlu0 %1526
      %1528 = vrot.lane.b32.xlu0 %v203, 110
      %v1529 = vpop.permute.xlu0 %1528
      %1530 = vrot.lane.b32.xlu0 %v204, 110
      %v1531 = vpop.permute.xlu0 %1530
      %1532 = vrot.lane.b32.xlu0 %v205, 110
      %v1533 = vpop.permute.xlu0 %1532
      %1534 = vrot.lane.b32.xlu0 %v206, 110
      %v1535 = vpop.permute.xlu0 %1534
      %1536 = vrot.lane.b32.xlu0 %v207, 110
      %v1537 = vpop.permute.xlu0 %1536
      %1538 = vrot.lane.b32.xlu0 %v208, 110
      %v1539 = vpop.permute.xlu0 %1538
      %1540 = vrot.lane.b32.xlu0 %v209, 110
      %v1541 = vpop.permute.xlu0 %1540
      %1542 = vrot.lane.b32.xlu0 %v210, 110
      %v1543 = vpop.permute.xlu0 %1542
      %1544 = vrot.lane.b32.xlu0 %v211, 110
      %v1545 = vpop.permute.xlu0 %1544
      %1546 = vrot.lane.b32.xlu0 %v212, 110
      %v1547 = vpop.permute.xlu0 %1546
      %1548 = vrot.lane.b32.xlu0 %v213, 110
      %v1549 = vpop.permute.xlu0 %1548
      %1550 = vrot.lane.b32.xlu0 %v214, 110
      %v1551 = vpop.permute.xlu0 %1550
      %1552 = vrot.lane.b32.xlu0 %v215, 110
      %v1553 = vpop.permute.xlu0 %1552
      %1554 = vrot.lane.b32.xlu0 %v216, 110
      %v1555 = vpop.permute.xlu0 %1554
      %1556 = vrot.lane.b32.xlu0 %v217, 110
      %v1557 = vpop.permute.xlu0 %1556
      %1558 = vrot.lane.b32.xlu0 %v218, 110
      %v1559 = vpop.permute.xlu0 %1558
      %1560 = vrot.lane.b32.xlu0 %v219, 110
      %v1561 = vpop.permute.xlu0 %1560
      %1562 = vrot.lane.b32.xlu0 %v220, 110
      %v1563 = vpop.permute.xlu0 %1562
      %1564 = vrot.lane.b32.xlu0 %v221, 110
      %v1565 = vpop.permute.xlu0 %1564
      %1566 = vrot.lane.b32.xlu0 %v222, 110
      %v1567 = vpop.permute.xlu0 %1566
      %1568 = vrot.lane.b32.xlu0 %v223, 110
      %v1569 = vpop.permute.xlu0 %1568
      %1570 = vrot.lane.b32.xlu0 %v224, 110
      %v1571 = vpop.permute.xlu0 %1570
      %1572 = vrot.lane.b32.xlu0 %v225, 110
      %v1573 = vpop.permute.xlu0 %1572
      %1574 = vrot.lane.b32.xlu0 %v226, 110
      %v1575 = vpop.permute.xlu0 %1574
      %1576 = vrot.lane.b32.xlu0 %v227, 110
      %v1577 = vpop.permute.xlu0 %1576
      %1578 = vrot.lane.b32.xlu0 %v228, 110
      %v1579 = vpop.permute.xlu0 %1578
      %1580 = vrot.lane.b32.xlu0 %v229, 110
      %v1581 = vpop.permute.xlu0 %1580
      %1582 = vrot.lane.b32.xlu0 %v230, 110
      %v1583 = vpop.permute.xlu0 %1582
      %1584 = vrot.lane.b32.xlu0 %v231, 110
      %v1585 = vpop.permute.xlu0 %1584
      %1586 = vrot.lane.b32.xlu0 %v232, 110
      %v1587 = vpop.permute.xlu0 %1586
      %1588 = vrot.lane.b32.xlu0 %v233, 110
      %v1589 = vpop.permute.xlu0 %1588
      %vm1590 = vcmask 900096
      %v1591 = vsel %vm1590, %v1519, %v1521
      %v1592 = vsel %vm1590, %v1521, %v1523
      %v1593 = vsel %vm1590, %v1525, %v1527
      %v1594 = vsel %vm1590, %v1527, %v1529
      %v1595 = vsel %vm1590, %v1531, %v1533
      %v1596 = vsel %vm1590, %v1533, %v1535
      %v1597 = vsel %vm1590, %v1537, %v1539
      %v1598 = vsel %vm1590, %v1539, %v1541
      %v1599 = vsel %vm1590, %v1543, %v1545
      %v1600 = vsel %vm1590, %v1545, %v1547
      %v1601 = vsel %vm1590, %v1549, %v1551
      %v1602 = vsel %vm1590, %v1551, %v1553
      %v1603 = vsel %vm1590, %v1555, %v1557
      %v1604 = vsel %vm1590, %v1557, %v1559
      %v1605 = vsel %vm1590, %v1561, %v1563
      %v1606 = vsel %vm1590, %v1563, %v1565
      %v1607 = vsel %vm1590, %v1567, %v1569
      %v1608 = vsel %vm1590, %v1569, %v1571
      %v1609 = vsel %vm1590, %v1573, %v1575
      %v1610 = vsel %vm1590, %v1575, %v1577
      %v1611 = vsel %vm1590, %v1579, %v1581
      %v1612 = vsel %vm1590, %v1581, %v1583
      %v1613 = vsel %vm1590, %v1585, %v1587
      %v1614 = vsel %vm1590, %v1587, %v1589
      %v1652 = vsel %vm428, %v1506, 0
      %v1655 = vsel %vm428, %v1507, 0
      %v1658 = vsel %vm428, %v1508, 0
      %v1661 = vsel %vm428, %v1509, 0
      %v1664 = vsel %vm428, %v1510, 0
      %v1667 = vsel %vm428, %v1511, 0
      %v1670 = vsel %vm428, %v1512, 0
      %v1673 = vsel %vm428, %v1513, 0
      %v1676 = vsel %vm428, %v1514, 0
      %v1679 = vsel %vm428, %v1515, 0
      %v1682 = vsel %vm428, %v1516, 0
      %v1685 = vsel %vm428, %v1517, 0
      %1687 = vmatprep.subr.mxu0 %v1592
      %1688 = vmatpush1.msra.mxu0 %v1591
      %1689 = vmatprep.subr.mxu0 %v1594
      %1690 = vmatpush1.msra.mxu0 %v1593
      %1691 = vmatprep.subr.mxu0 %v1596
      %1692 = vmatpush1.msra.mxu0 %v1595
      %1693 = vmatprep.subr.mxu0 %v1598
      %1694 = vmatpush1.msra.mxu0 %v1597
      %1695 = vmatprep.subr.mxu0 %v1600
      %1696 = vmatpush1.msra.mxu0 %v1599
      %1697 = vmatprep.subr.mxu0 %v1602
      %1698 = vmatpush1.msra.mxu0 %v1601
      %1699 = vmatprep.subr.mxu0 %v1604
      %1700 = vmatpush1.msra.mxu0 %v1603
      %1701 = vmatprep.subr.mxu0 %v1606
      %1702 = vmatpush1.msra.mxu0 %v1605
      %1703 = vmatprep.subr.mxu0 %v1608
      %1704 = vmatpush1.msra.mxu0 %v1607
      %1705 = vmatprep.subr.mxu0 %v1610
      %1706 = vmatpush1.msra.mxu0 %v1609
      %1707 = vmatprep.subr.mxu0 %v1612
      %1708 = vmatpush1.msra.mxu0 %v1611
      %1709 = vmatprep.subr.mxu0 %v1614
      %1710 = vmatpush1.msra.mxu0 %v1613
      %1711 = vmatprep.subr.mxu0 0.0
      %1712 = vmatpush1.msra.mxu0 0.0
      %1713 = vmatprep.subr.mxu0 0.0
      %1714 = vmatpush1.msra.mxu0 0.0
      %1715 = vmatprep.subr.mxu0 0.0
      %1716 = vmatpush1.msra.mxu0 0.0
      %1717 = vmatprep.subr.mxu0 0.0
      %1718 = vmatpush1.msra.mxu0 0.0
      %1719 = vmatprep.subr.mxu0 0.0
      %1720 = vmatpush1.msra.mxu0 0.0
      %1721 = vmatprep.subr.mxu0 0.0
      %1722 = vmatpush1.msra.mxu0 0.0
      %1723 = vmatprep.subr.mxu0 0.0
      %1724 = vmatpush1.msra.mxu0 0.0
      %1725 = vmatprep.subr.mxu0 0.0
      %1726 = vmatpush1.msra.mxu0 0.0
      %1727 = vmatprep.subr.mxu0 0.0
      %1728 = vmatpush1.msra.mxu0 0.0
      %1729 = vmatprep.subr.mxu0 0.0
      %1730 = vmatpush1.msra.mxu0 0.0
      %1731 = vmatprep.subr.mxu0 0.0
      %1732 = vmatpush1.msra.mxu0 0.0
      %1733 = vmatprep.subr.mxu0 0.0
      %1734 = vmatpush1.msra.mxu0 0.0
      %1735 = vmatprep.subr.mxu0 0.0
      %1736 = vmatpush1.msra.mxu0 0.0
      %1737 = vmatprep.subr.mxu0 0.0
      %1738 = vmatpush1.msra.mxu0 0.0
      %1739 = vmatprep.subr.mxu0 0.0
      %1740 = vmatpush1.msra.mxu0 0.0
      %1741 = vmatprep.subr.mxu0 0.0
      %1742 = vmatpush1.msra.mxu0 0.0
      %1743 = vmatprep.subr.mxu0 0.0
      %1744 = vmatpush1.msra.mxu0 0.0
      %1745 = vmatprep.subr.mxu0 0.0
      %1746 = vmatpush1.msra.mxu0 0.0
      %1747 = vmatprep.subr.mxu0 0.0
      %1748 = vmatpush1.msra.mxu0 0.0
      %1749 = vmatprep.subr.mxu0 0.0
      %1750 = vmatpush1.msra.mxu0 0.0
      %1751 = vmatprep.mubr.f32.mxu0 0.0
      %1752 = vmatmul.mubr.f32.gmra.mrb[0].mxu0 %v1652
      %v1753 = vpop.f32.mrb[0].mxu0
      %v1754 = vadd.f32 0.0, %v1753
      %v1755 = vpop.f32.mrb[0].mxu0
      %v1756 = vadd.f32 0.0, %v1755
      %1757 = vmatprep.mubr.f32.mxu0 0.0
      %1758 = vmatmul.mubr.f32.gmra.mrb[0].mxu0 %v1655
      %v1759 = vpop.f32.mrb[0].mxu0
      %v1760 = vadd.f32 0.0, %v1759
      %v1761 = vpop.f32.mrb[0].mxu0
      %v1762 = vadd.f32 0.0, %v1761
      %1763 = vmatprep.mubr.f32.mxu0 0.0
      %1764 = vmatmul.mubr.f32.gmra.mrb[0].mxu0 %v1658
      %v1765 = vpop.f32.mrb[0].mxu0
      %v1766 = vadd.f32 0.0, %v1765
      %v1767 = vpop.f32.mrb[0].mxu0
      %v1768 = vadd.f32 0.0, %v1767
      %1769 = vmatprep.mubr.f32.mxu0 0.0
      %1770 = vmatmul.mubr.f32.gmra.mrb[0].mxu0 %v1661
      %v1771 = vpop.f32.mrb[0].mxu0
      %v1772 = vadd.f32 0.0, %v1771
      %v1773 = vpop.f32.mrb[0].mxu0
      %v1774 = vadd.f32 0.0, %v1773
      %1775 = vmatprep.mubr.f32.mxu0 0.0
      %1776 = vmatmul.mubr.f32.gmra.mrb[0].mxu0 %v1664
      %v1777 = vpop.f32.mrb[0].mxu0
      %v1778 = vadd.f32 0.0, %v1777
      %v1779 = vpop.f32.mrb[0].mxu0
      %v1780 = vadd.f32 0.0, %v1779
      %1781 = vmatprep.mubr.f32.mxu0 0.0
      %1782 = vmatmul.mubr.f32.gmra.mrb[0].mxu0 %v1667
      %v1783 = vpop.f32.mrb[0].mxu0
      %v1784 = vadd.f32 0.0, %v1783
      %v1785 = vpop.f32.mrb[0].mxu0
      %v1786 = vadd.f32 0.0, %v1785
      %1787 = vmatprep.mubr.f32.mxu0 0.0
      %1788 = vmatmul.mubr.f32.gmra.mrb[0].mxu0 %v1670
      %v1789 = vpop.f32.mrb[0].mxu0
      %v1790 = vadd.f32 0.0, %v1789
      %v1791 = vpop.f32.mrb[0].mxu0
      %v1792 = vadd.f32 0.0, %v1791
      %1793 = vmatprep.mubr.f32.mxu0 0.0
      %1794 = vmatmul.mubr.f32.gmra.mrb[0].mxu0 %v1673
      %v1795 = vpop.f32.mrb[0].mxu0
      %v1796 = vadd.f32 0.0, %v1795
      %v1797 = vpop.f32.mrb[0].mxu0
      %v1798 = vadd.f32 0.0, %v1797
      %1799 = vmatprep.mubr.f32.mxu0 0.0
      %1800 = vmatmul.mubr.f32.gmra.mrb[0].mxu0 %v1676
      %v1801 = vpop.f32.mrb[0].mxu0
      %v1802 = vadd.f32 0.0, %v1801
      %v1803 = vpop.f32.mrb[0].mxu0
      %v1804 = vadd.f32 0.0, %v1803
      %1805 = vmatprep.mubr.f32.mxu0 0.0
      %1806 = vmatmul.mubr.f32.gmra.mrb[0].mxu0 %v1679
      %v1807 = vpop.f32.mrb[0].mxu0
      %v1808 = vadd.f32 0.0, %v1807
      %v1809 = vpop.f32.mrb[0].mxu0
      %v1810 = vadd.f32 0.0, %v1809
      %1811 = vmatprep.mubr.f32.mxu0 0.0
      %1812 = vmatmul.mubr.f32.gmra.mrb[0].mxu0 %v1682
      %v1813 = vpop.f32.mrb[0].mxu0
      %v1814 = vadd.f32 0.0, %v1813
      %v1815 = vpop.f32.mrb[0].mxu0
      %v1816 = vadd.f32 0.0, %v1815
      %1817 = vmatprep.mubr.f32.mxu0 0.0
      %1818 = vmatmul.mubr.f32.gmra.mrb[0].mxu0 %v1685
      %v1819 = vpop.f32.mrb[0].mxu0
      %v1820 = vadd.f32 0.0, %v1819
      %v1821 = vpop.f32.mrb[0].mxu0
      %v1822 = vadd.f32 0.0, %v1821
      %1823 = vdwg.mxu0
      %1824 = vmatprep.subr.mxu0 0.0
      %1825 = vmatpush1.msra.mxu0 %v1523
      %1826 = vmatprep.subr.mxu0 0.0
      %1827 = vmatpush1.msra.mxu0 %v1529
      %1828 = vmatprep.subr.mxu0 0.0
      %1829 = vmatpush1.msra.mxu0 %v1535
      %1830 = vmatprep.subr.mxu0 0.0
      %1831 = vmatpush1.msra.mxu0 %v1541
      %1832 = vmatprep.subr.mxu0 0.0
      %1833 = vmatpush1.msra.mxu0 %v1547
      %1834 = vmatprep.subr.mxu0 0.0
      %1835 = vmatpush1.msra.mxu0 %v1553
      %1836 = vmatprep.subr.mxu0 0.0
      %1837 = vmatpush1.msra.mxu0 %v1559
      %1838 = vmatprep.subr.mxu0 0.0
      %1839 = vmatpush1.msra.mxu0 %v1565
      %1840 = vmatprep.subr.mxu0 0.0
      %1841 = vmatpush1.msra.mxu0 %v1571
      %1842 = vmatprep.subr.mxu0 0.0
      %1843 = vmatpush1.msra.mxu0 %v1577
      %1844 = vmatprep.subr.mxu0 0.0
      %1845 = vmatpush1.msra.mxu0 %v1583
      %1846 = vmatprep.subr.mxu0 0.0
      %1847 = vmatpush1.msra.mxu0 %v1589
      %1848 = vmatprep.subr.mxu0 0.0
      %1849 = vmatpush1.msra.mxu0 0.0
      %1850 = vmatprep.subr.mxu0 0.0
      %1851 = vmatpush1.msra.mxu0 0.0
      %1852 = vmatprep.subr.mxu0 0.0
      %1853 = vmatpush1.msra.mxu0 0.0
      %1854 = vmatprep.subr.mxu0 0.0
      %1855 = vmatpush1.msra.mxu0 0.0
      %1856 = vmatprep.subr.mxu0 0.0
      %1857 = vmatpush1.msra.mxu0 0.0
      %1858 = vmatprep.subr.mxu0 0.0
      %1859 = vmatpush1.msra.mxu0 0.0
      %1860 = vmatprep.subr.mxu0 0.0
      %1861 = vmatpush1.msra.mxu0 0.0
      %1862 = vmatprep.subr.mxu0 0.0
      %1863 = vmatpush1.msra.mxu0 0.0
      %1864 = vmatprep.subr.mxu0 0.0
      %1865 = vmatpush1.msra.mxu0 0.0
      %1866 = vmatprep.subr.mxu0 0.0
      %1867 = vmatpush1.msra.mxu0 0.0
      %1868 = vmatprep.subr.mxu0 0.0
      %1869 = vmatpush1.msra.mxu0 0.0
      %1870 = vmatprep.subr.mxu0 0.0
      %1871 = vmatpush1.msra.mxu0 0.0
      %1872 = vmatprep.subr.mxu0 0.0
      %1873 = vmatpush1.msra.mxu0 0.0
      %1874 = vmatprep.subr.mxu0 0.0
      %1875 = vmatpush1.msra.mxu0 0.0
      %1876 = vmatprep.subr.mxu0 0.0
      %1877 = vmatpush1.msra.mxu0 0.0
      %1878 = vmatprep.subr.mxu0 0.0
      %1879 = vmatpush1.msra.mxu0 0.0
      %1880 = vmatprep.subr.mxu0 0.0
      %1881 = vmatpush1.msra.mxu0 0.0
      %1882 = vmatprep.subr.mxu0 0.0
      %1883 = vmatpush1.msra.mxu0 0.0
      %1884 = vmatprep.subr.mxu0 0.0
      %1885 = vmatpush1.msra.mxu0 0.0
      %1886 = vmatprep.subr.mxu0 0.0
      %1887 = vmatpush1.msra.mxu0 0.0
      %1888 = vmatprep.mubr.f32.mxu0 0.0
      %1889 = vmatmul.mubr.f32.gmra.mrb[0].mxu0 %v1652
      %v1890 = vpop.f32.mrb[0].mxu0
      %v1891 = vadd.f32 0.0, %v1890
      %v1892 = vpop.f32.mrb[0].mxu0
      %1893 = vmatprep.mubr.f32.mxu0 0.0
      %1894 = vmatmul.mubr.f32.gmra.mrb[0].mxu0 %v1655
      %v1895 = vpop.f32.mrb[0].mxu0
      %v1896 = vadd.f32 0.0, %v1895
      %v1897 = vpop.f32.mrb[0].mxu0
      %1898 = vmatprep.mubr.f32.mxu0 0.0
      %1899 = vmatmul.mubr.f32.gmra.mrb[0].mxu0 %v1658
      %v1900 = vpop.f32.mrb[0].mxu0
      %v1901 = vadd.f32 0.0, %v1900
      %v1902 = vpop.f32.mrb[0].mxu0
      %1903 = vmatprep.mubr.f32.mxu0 0.0
      %1904 = vmatmul.mubr.f32.gmra.mrb[0].mxu0 %v1661
      %v1905 = vpop.f32.mrb[0].mxu0
      %v1906 = vadd.f32 0.0, %v1905
      %v1907 = vpop.f32.mrb[0].mxu0
      %1908 = vmatprep.mubr.f32.mxu0 0.0
      %1909 = vmatmul.mubr.f32.gmra.mrb[0].mxu0 %v1664
      %v1910 = vpop.f32.mrb[0].mxu0
      %v1911 = vadd.f32 0.0, %v1910
      %v1912 = vpop.f32.mrb[0].mxu0
      %1913 = vmatprep.mubr.f32.mxu0 0.0
      %1914 = vmatmul.mubr.f32.gmra.mrb[0].mxu0 %v1667
      %v1915 = vpop.f32.mrb[0].mxu0
      %v1916 = vadd.f32 0.0, %v1915
      %v1917 = vpop.f32.mrb[0].mxu0
      %1918 = vmatprep.mubr.f32.mxu0 0.0
      %1919 = vmatmul.mubr.f32.gmra.mrb[0].mxu0 %v1670
      %v1920 = vpop.f32.mrb[0].mxu0
      %v1921 = vadd.f32 0.0, %v1920
      %v1922 = vpop.f32.mrb[0].mxu0
      %1923 = vmatprep.mubr.f32.mxu0 0.0
      %1924 = vmatmul.mubr.f32.gmra.mrb[0].mxu0 %v1673
      %v1925 = vpop.f32.mrb[0].mxu0
      %v1926 = vadd.f32 0.0, %v1925
      %v1927 = vpop.f32.mrb[0].mxu0
      %1928 = vmatprep.mubr.f32.mxu0 0.0
      %1929 = vmatmul.mubr.f32.gmra.mrb[0].mxu0 %v1676
      %v1930 = vpop.f32.mrb[0].mxu0
      %v1931 = vadd.f32 0.0, %v1930
      %v1932 = vpop.f32.mrb[0].mxu0
      %1933 = vmatprep.mubr.f32.mxu0 0.0
      %1934 = vmatmul.mubr.f32.gmra.mrb[0].mxu0 %v1679
      %v1935 = vpop.f32.mrb[0].mxu0
      %v1936 = vadd.f32 0.0, %v1935
      %v1937 = vpop.f32.mrb[0].mxu0
      %1938 = vmatprep.mubr.f32.mxu0 0.0
      %1939 = vmatmul.mubr.f32.gmra.mrb[0].mxu0 %v1682
      %v1940 = vpop.f32.mrb[0].mxu0
      %v1941 = vadd.f32 0.0, %v1940
      %v1942 = vpop.f32.mrb[0].mxu0
      %1943 = vmatprep.mubr.f32.mxu0 0.0
      %1944 = vmatmul.mubr.f32.gmra.mrb[0].mxu0 %v1685
      %v1945 = vpop.f32.mrb[0].mxu0
      %v1946 = vadd.f32 0.0, %v1945
      %v1947 = vpop.f32.mrb[0].mxu0
      %1948 = vdwg.mxu0
      %v1949 = vadd.f32 %v1469, %v1754
      %v1950 = vadd.f32 %v1470, %v1756
      %v1951 = vadd.f32 %v1471, %v1891
      %v1952 = vadd.f32 %v1472, %v1760
      %v1953 = vadd.f32 %v1473, %v1762
      %v1954 = vadd.f32 %v1474, %v1896
      %v1955 = vadd.f32 %v1475, %v1766
      %v1956 = vadd.f32 %v1476, %v1768
      %v1957 = vadd.f32 %v1477, %v1901
      %v1958 = vadd.f32 %v1478, %v1772
      %v1959 = vadd.f32 %v1479, %v1774
      %v1960 = vadd.f32 %v1480, %v1906
      %v1961 = vadd.f32 %v1481, %v1778
      %v1962 = vadd.f32 %v1482, %v1780
      %v1963 = vadd.f32 %v1483, %v1911
      %v1964 = vadd.f32 %v1484, %v1784
      %v1965 = vadd.f32 %v1485, %v1786
      %v1966 = vadd.f32 %v1486, %v1916
      %v1967 = vadd.f32 %v1487, %v1790
      %v1968 = vadd.f32 %v1488, %v1792
      %v1969 = vadd.f32 %v1489, %v1921
      %v1970 = vadd.f32 %v1490, %v1796
      %v1971 = vadd.f32 %v1491, %v1798
      %v1972 = vadd.f32 %v1492, %v1926
      %v1973 = vadd.f32 %v1493, %v1802
      %v1974 = vadd.f32 %v1494, %v1804
      %v1975 = vadd.f32 %v1495, %v1931
      %v1976 = vadd.f32 %v1496, %v1808
      %v1977 = vadd.f32 %v1497, %v1810
      %v1978 = vadd.f32 %v1498, %v1936
      %v1979 = vadd.f32 %v1499, %v1814
      %v1980 = vadd.f32 %v1500, %v1816
      %v1981 = vadd.f32 %v1501, %v1941
      %v1982 = vadd.f32 %v1502, %v1820
      %v1983 = vadd.f32 %v1503, %v1822
      %v1984 = vadd.f32 %v1504, %v1946
      %s1985 = scalar_lea.vmem %s1, 384
      %v1986 = vld [vmem:[%s1985] sm:$0xff]
      %v1987 = vld [vmem:[%s1985 + $0x8] sm:$0xff]
      %v1988 = vld [vmem:[%s1985 + $0x10] sm:$0xff]
      %v1989 = vld [vmem:[%s1985 + $0x18] sm:$0xff]
      %v1990 = vld [vmem:[%s1985 + $0x20] sm:$0xff]
      %v1991 = vld [vmem:[%s1985 + $0x28] sm:$0xff]
      %v1992 = vld [vmem:[%s1985 + $0x30] sm:$0xff]
      %v1993 = vld [vmem:[%s1985 + $0x38] sm:$0xff]
      %v1994 = vld [vmem:[%s1985 + $0x40] sm:$0xff]
      %v1995 = vld [vmem:[%s1985 + $0x48] sm:$0xff]
      %v1996 = vld [vmem:[%s1985 + $0x50] sm:$0xff]
      %v1997 = vld [vmem:[%s1985 + $0x58] sm:$0xff]
      %1998 = vrot.lane.b32.xlu0 %v198, 109
      %v1999 = vpop.permute.xlu0 %1998
      %2000 = vrot.lane.b32.xlu0 %v199, 109
      %v2001 = vpop.permute.xlu0 %2000
      %2002 = vrot.lane.b32.xlu0 %v200, 109
      %v2003 = vpop.permute.xlu0 %2002
      %2004 = vrot.lane.b32.xlu0 %v201, 109
      %v2005 = vpop.permute.xlu0 %2004
      %2006 = vrot.lane.b32.xlu0 %v202, 109
      %v2007 = vpop.permute.xlu0 %2006
      %2008 = vrot.lane.b32.xlu0 %v203, 109
      %v2009 = vpop.permute.xlu0 %2008
      %2010 = vrot.lane.b32.xlu0 %v204, 109
      %v2011 = vpop.permute.xlu0 %2010
      %2012 = vrot.lane.b32.xlu0 %v205, 109
      %v2013 = vpop.permute.xlu0 %2012
      %2014 = vrot.lane.b32.xlu0 %v206, 109
      %v2015 = vpop.permute.xlu0 %2014
      %2016 = vrot.lane.b32.xlu0 %v207, 109
      %v2017 = vpop.permute.xlu0 %2016
      %2018 = vrot.lane.b32.xlu0 %v208, 109
      %v2019 = vpop.permute.xlu0 %2018
      %2020 = vrot.lane.b32.xlu0 %v209, 109
      %v2021 = vpop.permute.xlu0 %2020
      %2022 = vrot.lane.b32.xlu0 %v210, 109
      %v2023 = vpop.permute.xlu0 %2022
      %2024 = vrot.lane.b32.xlu0 %v211, 109
      %v2025 = vpop.permute.xlu0 %2024
      %2026 = vrot.lane.b32.xlu0 %v212, 109
      %v2027 = vpop.permute.xlu0 %2026
      %2028 = vrot.lane.b32.xlu0 %v213, 109
      %v2029 = vpop.permute.xlu0 %2028
      %2030 = vrot.lane.b32.xlu0 %v214, 109
      %v2031 = vpop.permute.xlu0 %2030
      %2032 = vrot.lane.b32.xlu0 %v215, 109
      %v2033 = vpop.permute.xlu0 %2032
      %2034 = vrot.lane.b32.xlu0 %v216, 109
      %v2035 = vpop.permute.xlu0 %2034
      %2036 = vrot.lane.b32.xlu0 %v217, 109
      %v2037 = vpop.permute.xlu0 %2036
      %2038 = vrot.lane.b32.xlu0 %v218, 109
      %v2039 = vpop.permute.xlu0 %2038
      %2040 = vrot.lane.b32.xlu0 %v219, 109
      %v2041 = vpop.permute.xlu0 %2040
      %2042 = vrot.lane.b32.xlu0 %v220, 109
      %v2043 = vpop.permute.xlu0 %2042
      %2044 = vrot.lane.b32.xlu0 %v221, 109
      %v2045 = vpop.permute.xlu0 %2044
      %2046 = vrot.lane.b32.xlu0 %v222, 109
      %v2047 = vpop.permute.xlu0 %2046
      %2048 = vrot.lane.b32.xlu0 %v223, 109
      %v2049 = vpop.permute.xlu0 %2048
      %2050 = vrot.lane.b32.xlu0 %v224, 109
      %v2051 = vpop.permute.xlu0 %2050
      %2052 = vrot.lane.b32.xlu0 %v225, 109
      %v2053 = vpop.permute.xlu0 %2052
      %2054 = vrot.lane.b32.xlu0 %v226, 109
      %v2055 = vpop.permute.xlu0 %2054
      %2056 = vrot.lane.b32.xlu0 %v227, 109
      %v2057 = vpop.permute.xlu0 %2056
      %2058 = vrot.lane.b32.xlu0 %v228, 109
      %v2059 = vpop.permute.xlu0 %2058
      %2060 = vrot.lane.b32.xlu0 %v229, 109
      %v2061 = vpop.permute.xlu0 %2060
      %2062 = vrot.lane.b32.xlu0 %v230, 109
      %v2063 = vpop.permute.xlu0 %2062
      %2064 = vrot.lane.b32.xlu0 %v231, 109
      %v2065 = vpop.permute.xlu0 %2064
      %2066 = vrot.lane.b32.xlu0 %v232, 109
      %v2067 = vpop.permute.xlu0 %2066
      %2068 = vrot.lane.b32.xlu0 %v233, 109
      %v2069 = vpop.permute.xlu0 %2068
      %vm2070 = vcmask 891904
      %v2071 = vsel %vm2070, %v1999, %v2001
      %v2072 = vsel %vm2070, %v2001, %v2003
      %v2073 = vsel %vm2070, %v2005, %v2007
      %v2074 = vsel %vm2070, %v2007, %v2009
      %v2075 = vsel %vm2070, %v2011, %v2013
      %v2076 = vsel %vm2070, %v2013, %v2015
      %v2077 = vsel %vm2070, %v2017, %v2019
      %v2078 = vsel %vm2070, %v2019, %v2021
      %v2079 = vsel %vm2070, %v2023, %v2025
      %v2080 = vsel %vm2070, %v2025, %v2027
      %v2081 = vsel %vm2070, %v2029, %v2031
      %v2082 = vsel %vm2070, %v2031, %v2033
      %v2083 = vsel %vm2070, %v2035, %v2037
      %v2084 = vsel %vm2070, %v2037, %v2039
      %v2085 = vsel %vm2070, %v2041, %v2043
      %v2086 = vsel %vm2070, %v2043, %v2045
      %v2087 = vsel %vm2070, %v2047, %v2049
      %v2088 = vsel %vm2070, %v2049, %v2051
      %v2089 = vsel %vm2070, %v2053, %v2055
      %v2090 = vsel %vm2070, %v2055, %v2057
      %v2091 = vsel %vm2070, %v2059, %v2061
      %v2092 = vsel %vm2070, %v2061, %v2063
      %v2093 = vsel %vm2070, %v2065, %v2067
      %v2094 = vsel %vm2070, %v2067, %v2069
      %v2132 = vsel %vm428, %v1986, 0
      %v2135 = vsel %vm428, %v1987, 0
      %v2138 = vsel %vm428, %v1988, 0
      %v2141 = vsel %vm428, %v1989, 0
      %v2144 = vsel %vm428, %v1990, 0
      %v2147 = vsel %vm428, %v1991, 0
      %v2150 = vsel %vm428, %v1992, 0
      %v2153 = vsel %vm428, %v1993, 0
      %v2156 = vsel %vm428, %v1994, 0
      %v2159 = vsel %vm428, %v1995, 0
      %v2162 = vsel %vm428, %v1996, 0
      %v2165 = vsel %vm428, %v1997, 0
      %2167 = vmatprep.subr.mxu0 %v2072
      %2168 = vmatpush1.msra.mxu0 %v2071
      %2169 = vmatprep.subr.mxu0 %v2074
      %2170 = vmatpush1.msra.mxu0 %v2073
      %2171 = vmatprep.subr.mxu0 %v2076
      %2172 = vmatpush1.msra.mxu0 %v2075
      %2173 = vmatprep.subr.mxu0 %v2078
      %2174 = vmatpush1.msra.mxu0 %v2077
      %2175 = vmatprep.subr.mxu0 %v2080
      %2176 = vmatpush1.msra.mxu0 %v2079
      %2177 = vmatprep.subr.mxu0 %v2082
      %2178 = vmatpush1.msra.mxu0 %v2081
      %2179 = vmatprep.subr.mxu0 %v2084
      %2180 = vmatpush1.msra.mxu0 %v2083
      %2181 = vmatprep.subr.mxu0 %v2086
      %2182 = vmatpush1.msra.mxu0 %v2085
      %2183 = vmatprep.subr.mxu0 %v2088
      %2184 = vmatpush1.msra.mxu0 %v2087
      %2185 = vmatprep.subr.mxu0 %v2090
      %2186 = vmatpush1.msra.mxu0 %v2089
      %2187 = vmatprep.subr.mxu0 %v2092
      %2188 = vmatpush1.msra.mxu0 %v2091
      %2189 = vmatprep.subr.mxu0 %v2094
      %2190 = vmatpush1.msra.mxu0 %v2093
      %2191 = vmatprep.subr.mxu0 0.0
      %2192 = vmatpush1.msra.mxu0 0.0
      %2193 = vmatprep.subr.mxu0 0.0
      %2194 = vmatpush1.msra.mxu0 0.0
      %2195 = vmatprep.subr.mxu0 0.0
      %2196 = vmatpush1.msra.mxu0 0.0
      %2197 = vmatprep.subr.mxu0 0.0
      %2198 = vmatpush1.msra.mxu0 0.0
      %2199 = vmatprep.subr.mxu0 0.0
      %2200 = vmatpush1.msra.mxu0 0.0
      %2201 = vmatprep.subr.mxu0 0.0
      %2202 = vmatpush1.msra.mxu0 0.0
      %2203 = vmatprep.subr.mxu0 0.0
      %2204 = vmatpush1.msra.mxu0 0.0
      %2205 = vmatprep.subr.mxu0 0.0
      %2206 = vmatpush1.msra.mxu0 0.0
      %2207 = vmatprep.subr.mxu0 0.0
      %2208 = vmatpush1.msra.mxu0 0.0
      %2209 = vmatprep.subr.mxu0 0.0
      %2210 = vmatpush1.msra.mxu0 0.0
      %2211 = vmatprep.subr.mxu0 0.0
      %2212 = vmatpush1.msra.mxu0 0.0
      %2213 = vmatprep.subr.mxu0 0.0
      %2214 = vmatpush1.msra.mxu0 0.0
      %2215 = vmatprep.subr.mxu0 0.0
      %2216 = vmatpush1.msra.mxu0 0.0
      %2217 = vmatprep.subr.mxu0 0.0
      %2218 = vmatpush1.msra.mxu0 0.0
      %2219 = vmatprep.subr.mxu0 0.0
      %2220 = vmatpush1.msra.mxu0 0.0
      %2221 = vmatprep.subr.mxu0 0.0
      %2222 = vmatpush1.msra.mxu0 0.0
      %2223 = vmatprep.subr.mxu0 0.0
      %2224 = vmatpush1.msra.mxu0 0.0
      %2225 = vmatprep.subr.mxu0 0.0
      %2226 = vmatpush1.msra.mxu0 0.0
      %2227 = vmatprep.subr.mxu0 0.0
      %2228 = vmatpush1.msra.mxu0 0.0
      %2229 = vmatprep.subr.mxu0 0.0
      %2230 = vmatpush1.msra.mxu0 0.0
      %2231 = vmatprep.mubr.f32.mxu0 0.0
      %2232 = vmatmul.mubr.f32.gmra.mrb[0].mxu0 %v2132
      %v2233 = vpop.f32.mrb[0].mxu0
      %v2234 = vadd.f32 0.0, %v2233
      %v2235 = vpop.f32.mrb[0].mxu0
      %v2236 = vadd.f32 0.0, %v2235
      %2237 = vmatprep.mubr.f32.mxu0 0.0
      %2238 = vmatmul.mubr.f32.gmra.mrb[0].mxu0 %v2135
      %v2239 = vpop.f32.mrb[0].mxu0
      %v2240 = vadd.f32 0.0, %v2239
      %v2241 = vpop.f32.mrb[0].mxu0
      %v2242 = vadd.f32 0.0, %v2241
      %2243 = vmatprep.mubr.f32.mxu0 0.0
      %2244 = vmatmul.mubr.f32.gmra.mrb[0].mxu0 %v2138
      %v2245 = vpop.f32.mrb[0].mxu0
      %v2246 = vadd.f32 0.0, %v2245
      %v2247 = vpop.f32.mrb[0].mxu0
      %v2248 = vadd.f32 0.0, %v2247
      %2249 = vmatprep.mubr.f32.mxu0 0.0
      %2250 = vmatmul.mubr.f32.gmra.mrb[0].mxu0 %v2141
      %v2251 = vpop.f32.mrb[0].mxu0
      %v2252 = vadd.f32 0.0, %v2251
      %v2253 = vpop.f32.mrb[0].mxu0
      %v2254 = vadd.f32 0.0, %v2253
      %2255 = vmatprep.mubr.f32.mxu0 0.0
      %2256 = vmatmul.mubr.f32.gmra.mrb[0].mxu0 %v2144
      %v2257 = vpop.f32.mrb[0].mxu0
      %v2258 = vadd.f32 0.0, %v2257
      %v2259 = vpop.f32.mrb[0].mxu0
      %v2260 = vadd.f32 0.0, %v2259
      %2261 = vmatprep.mubr.f32.mxu0 0.0
      %2262 = vmatmul.mubr.f32.gmra.mrb[0].mxu0 %v2147
      %v2263 = vpop.f32.mrb[0].mxu0
      %v2264 = vadd.f32 0.0, %v2263
      %v2265 = vpop.f32.mrb[0].mxu0
      %v2266 = vadd.f32 0.0, %v2265
      %2267 = vmatprep.mubr.f32.mxu0 0.0
      %2268 = vmatmul.mubr.f32.gmra.mrb[0].mxu0 %v2150
      %v2269 = vpop.f32.mrb[0].mxu0
      %v2270 = vadd.f32 0.0, %v2269
      %v2271 = vpop.f32.mrb[0].mxu0
      %v2272 = vadd.f32 0.0, %v2271
      %2273 = vmatprep.mubr.f32.mxu0 0.0
      %2274 = vmatmul.mubr.f32.gmra.mrb[0].mxu0 %v2153
      %v2275 = vpop.f32.mrb[0].mxu0
      %v2276 = vadd.f32 0.0, %v2275
      %v2277 = vpop.f32.mrb[0].mxu0
      %v2278 = vadd.f32 0.0, %v2277
      %2279 = vmatprep.mubr.f32.mxu0 0.0
      %2280 = vmatmul.mubr.f32.gmra.mrb[0].mxu0 %v2156
      %v2281 = vpop.f32.mrb[0].mxu0
      %v2282 = vadd.f32 0.0, %v2281
      %v2283 = vpop.f32.mrb[0].mxu0
      %v2284 = vadd.f32 0.0, %v2283
      %2285 = vmatprep.mubr.f32.mxu0 0.0
      %2286 = vmatmul.mubr.f32.gmra.mrb[0].mxu0 %v2159
      %v2287 = vpop.f32.mrb[0].mxu0
      %v2288 = vadd.f32 0.0, %v2287
      %v2289 = vpop.f32.mrb[0].mxu0
      %v2290 = vadd.f32 0.0, %v2289
      %2291 = vmatprep.mubr.f32.mxu0 0.0
      %2292 = vmatmul.mubr.f32.gmra.mrb[0].mxu0 %v2162
      %v2293 = vpop.f32.mrb[0].mxu0
      %v2294 = vadd.f32 0.0, %v2293
      %v2295 = vpop.f32.mrb[0].mxu0
      %v2296 = vadd.f32 0.0, %v2295
      %2297 = vmatprep.mubr.f32.mxu0 0.0
      %2298 = vmatmul.mubr.f32.gmra.mrb[0].mxu0 %v2165
      %v2299 = vpop.f32.mrb[0].mxu0
      %v2300 = vadd.f32 0.0, %v2299
      %v2301 = vpop.f32.mrb[0].mxu0
      %v2302 = vadd.f32 0.0, %v2301
      %2303 = vdwg.mxu0
      %2304 = vmatprep.subr.mxu0 0.0
      %2305 = vmatpush1.msra.mxu0 %v2003
      %2306 = vmatprep.subr.mxu0 0.0
      %2307 = vmatpush1.msra.mxu0 %v2009
      %2308 = vmatprep.subr.mxu0 0.0
      %2309 = vmatpush1.msra.mxu0 %v2015
      %2310 = vmatprep.subr.mxu0 0.0
      %2311 = vmatpush1.msra.mxu0 %v2021
      %2312 = vmatprep.subr.mxu0 0.0
      %2313 = vmatpush1.msra.mxu0 %v2027
      %2314 = vmatprep.subr.mxu0 0.0
      %2315 = vmatpush1.msra.mxu0 %v2033
      %2316 = vmatprep.subr.mxu0 0.0
      %2317 = vmatpush1.msra.mxu0 %v2039
      %2318 = vmatprep.subr.mxu0 0.0
      %2319 = vmatpush1.msra.mxu0 %v2045
      %2320 = vmatprep.subr.mxu0 0.0
      %2321 = vmatpush1.msra.mxu0 %v2051
      %2322 = vmatprep.subr.mxu0 0.0
      %2323 = vmatpush1.msra.mxu0 %v2057
      %2324 = vmatprep.subr.mxu0 0.0
      %2325 = vmatpush1.msra.mxu0 %v2063
      %2326 = vmatprep.subr.mxu0 0.0
      %2327 = vmatpush1.msra.mxu0 %v2069
      %2328 = vmatprep.subr.mxu0 0.0
      %2329 = vmatpush1.msra.mxu0 0.0
      %2330 = vmatprep.subr.mxu0 0.0
      %2331 = vmatpush1.msra.mxu0 0.0
      %2332 = vmatprep.subr.mxu0 0.0
      %2333 = vmatpush1.msra.mxu0 0.0
      %2334 = vmatprep.subr.mxu0 0.0
      %2335 = vmatpush1.msra.mxu0 0.0
      %2336 = vmatprep.subr.mxu0 0.0
      %2337 = vmatpush1.msra.mxu0 0.0
      %2338 = vmatprep.subr.mxu0 0.0
      %2339 = vmatpush1.msra.mxu0 0.0
      %2340 = vmatprep.subr.mxu0 0.0
      %2341 = vmatpush1.msra.mxu0 0.0
      %2342 = vmatprep.subr.mxu0 0.0
      %2343 = vmatpush1.msra.mxu0 0.0
      %2344 = vmatprep.subr.mxu0 0.0
      %2345 = vmatpush1.msra.mxu0 0.0
      %2346 = vmatprep.subr.mxu0 0.0
      %2347 = vmatpush1.msra.mxu0 0.0
      %2348 = vmatprep.subr.mxu0 0.0
      %2349 = vmatpush1.msra.mxu0 0.0
      %2350 = vmatprep.subr.mxu0 0.0
      %2351 = vmatpush1.msra.mxu0 0.0
      %2352 = vmatprep.subr.mxu0 0.0
      %2353 = vmatpush1.msra.mxu0 0.0
      %2354 = vmatprep.subr.mxu0 0.0
      %2355 = vmatpush1.msra.mxu0 0.0
      %2356 = vmatprep.subr.mxu0 0.0
      %2357 = vmatpush1.msra.mxu0 0.0
      %2358 = vmatprep.subr.mxu0 0.0
      %2359 = vmatpush1.msra.mxu0 0.0
      %2360 = vmatprep.subr.mxu0 0.0
      %2361 = vmatpush1.msra.mxu0 0.0
      %2362 = vmatprep.subr.mxu0 0.0
      %2363 = vmatpush1.msra.mxu0 0.0
      %2364 = vmatprep.subr.mxu0 0.0
      %2365 = vmatpush1.msra.mxu0 0.0
      %2366 = vmatprep.subr.mxu0 0.0
      %2367 = vmatpush1.msra.mxu0 0.0
      %2368 = vmatprep.mubr.f32.mxu0 0.0
      %2369 = vmatmul.mubr.f32.gmra.mrb[0].mxu0 %v2132
      %v2370 = vpop.f32.mrb[0].mxu0
      %v2371 = vadd.f32 0.0, %v2370
      %v2372 = vpop.f32.mrb[0].mxu0
      %2373 = vmatprep.mubr.f32.mxu0 0.0
      %2374 = vmatmul.mubr.f32.gmra.mrb[0].mxu0 %v2135
      %v2375 = vpop.f32.mrb[0].mxu0
      %v2376 = vadd.f32 0.0, %v2375
      %v2377 = vpop.f32.mrb[0].mxu0
      %2378 = vmatprep.mubr.f32.mxu0 0.0
      %2379 = vmatmul.mubr.f32.gmra.mrb[0].mxu0 %v2138
      %v2380 = vpop.f32.mrb[0].mxu0
      %v2381 = vadd.f32 0.0, %v2380
      %v2382 = vpop.f32.mrb[0].mxu0
      %2383 = vmatprep.mubr.f32.mxu0 0.0
      %2384 = vmatmul.mubr.f32.gmra.mrb[0].mxu0 %v2141
      %v2385 = vpop.f32.mrb[0].mxu0
      %v2386 = vadd.f32 0.0, %v2385
      %v2387 = vpop.f32.mrb[0].mxu0
      %2388 = vmatprep.mubr.f32.mxu0 0.0
      %2389 = vmatmul.mubr.f32.gmra.mrb[0].mxu0 %v2144
      %v2390 = vpop.f32.mrb[0].mxu0
      %v2391 = vadd.f32 0.0, %v2390
      %v2392 = vpop.f32.mrb[0].mxu0
      %2393 = vmatprep.mubr.f32.mxu0 0.0
      %2394 = vmatmul.mubr.f32.gmra.mrb[0].mxu0 %v2147
      %v2395 = vpop.f32.mrb[0].mxu0
      %v2396 = vadd.f32 0.0, %v2395
      %v2397 = vpop.f32.mrb[0].mxu0
      %2398 = vmatprep.mubr.f32.mxu0 0.0
      %2399 = vmatmul.mubr.f32.gmra.mrb[0].mxu0 %v2150
      %v2400 = vpop.f32.mrb[0].mxu0
      %v2401 = vadd.f32 0.0, %v2400
      %v2402 = vpop.f32.mrb[0].mxu0
      %2403 = vmatprep.mubr.f32.mxu0 0.0
      %2404 = vmatmul.mubr.f32.gmra.mrb[0].mxu0 %v2153
      %v2405 = vpop.f32.mrb[0].mxu0
      %v2406 = vadd.f32 0.0, %v2405
      %v2407 = vpop.f32.mrb[0].mxu0
      %2408 = vmatprep.mubr.f32.mxu0 0.0
      %2409 = vmatmul.mubr.f32.gmra.mrb[0].mxu0 %v2156
      %v2410 = vpop.f32.mrb[0].mxu0
      %v2411 = vadd.f32 0.0, %v2410
      %v2412 = vpop.f32.mrb[0].mxu0
      %2413 = vmatprep.mubr.f32.mxu0 0.0
      %2414 = vmatmul.mubr.f32.gmra.mrb[0].mxu0 %v2159
      %v2415 = vpop.f32.mrb[0].mxu0
      %v2416 = vadd.f32 0.0, %v2415
      %v2417 = vpop.f32.mrb[0].mxu0
      %2418 = vmatprep.mubr.f32.mxu0 0.0
      %2419 = vmatmul.mubr.f32.gmra.mrb[0].mxu0 %v2162
      %v2420 = vpop.f32.mrb[0].mxu0
      %v2421 = vadd.f32 0.0, %v2420
      %v2422 = vpop.f32.mrb[0].mxu0
      %2423 = vmatprep.mubr.f32.mxu0 0.0
      %2424 = vmatmul.mubr.f32.gmra.mrb[0].mxu0 %v2165
      %v2425 = vpop.f32.mrb[0].mxu0
      %v2426 = vadd.f32 0.0, %v2425
      %v2427 = vpop.f32.mrb[0].mxu0
      %2428 = vdwg.mxu0
      %v2429 = vadd.f32 %v1949, %v2234
      %v2430 = vadd.f32 %v1950, %v2236
      %v2431 = vadd.f32 %v1951, %v2371
      %v2432 = vadd.f32 %v1952, %v2240
      %v2433 = vadd.f32 %v1953, %v2242
      %v2434 = vadd.f32 %v1954, %v2376
      %v2435 = vadd.f32 %v1955, %v2246
      %v2436 = vadd.f32 %v1956, %v2248
      %v2437 = vadd.f32 %v1957, %v2381
      %v2438 = vadd.f32 %v1958, %v2252
      %v2439 = vadd.f32 %v1959, %v2254
      %v2440 = vadd.f32 %v1960, %v2386
      %v2441 = vadd.f32 %v1961, %v2258
      %v2442 = vadd.f32 %v1962, %v2260
      %v2443 = vadd.f32 %v1963, %v2391
      %v2444 = vadd.f32 %v1964, %v2264
      %v2445 = vadd.f32 %v1965, %v2266
      %v2446 = vadd.f32 %v1966, %v2396
      %v2447 = vadd.f32 %v1967, %v2270
      %v2448 = vadd.f32 %v1968, %v2272
      %v2449 = vadd.f32 %v1969, %v2401
      %v2450 = vadd.f32 %v1970, %v2276
      %v2451 = vadd.f32 %v1971, %v2278
      %v2452 = vadd.f32 %v1972, %v2406
      %v2453 = vadd.f32 %v1973, %v2282
      %v2454 = vadd.f32 %v1974, %v2284
      %v2455 = vadd.f32 %v1975, %v2411
      %v2456 = vadd.f32 %v1976, %v2288
      %v2457 = vadd.f32 %v1977, %v2290
      %v2458 = vadd.f32 %v1978, %v2416
      %v2459 = vadd.f32 %v1979, %v2294
      %v2460 = vadd.f32 %v1980, %v2296
      %v2461 = vadd.f32 %v1981, %v2421
      %v2462 = vadd.f32 %v1982, %v2300
      %v2463 = vadd.f32 %v1983, %v2302
      %v2464 = vadd.f32 %v1984, %v2426
      %s2465 = scalar_lea.vmem %s1, 480
      %v2466 = vld [vmem:[%s2465] sm:$0xff]
      %v2467 = vld [vmem:[%s2465 + $0x8] sm:$0xff]
      %v2468 = vld [vmem:[%s2465 + $0x10] sm:$0xff]
      %v2469 = vld [vmem:[%s2465 + $0x18] sm:$0xff]
      %v2470 = vld [vmem:[%s2465 + $0x20] sm:$0xff]
      %v2471 = vld [vmem:[%s2465 + $0x28] sm:$0xff]
      %v2472 = vld [vmem:[%s2465 + $0x30] sm:$0xff]
      %v2473 = vld [vmem:[%s2465 + $0x38] sm:$0xff]
      %v2474 = vld [vmem:[%s2465 + $0x40] sm:$0xff]
      %v2475 = vld [vmem:[%s2465 + $0x48] sm:$0xff]
      %v2476 = vld [vmem:[%s2465 + $0x50] sm:$0xff]
      %v2477 = vld [vmem:[%s2465 + $0x58] sm:$0xff]
      %2478 = vrot.lane.b32.xlu0 %v198, 108
      %v2479 = vpop.permute.xlu0 %2478
      %2480 = vrot.lane.b32.xlu0 %v199, 108
      %v2481 = vpop.permute.xlu0 %2480
      %2482 = vrot.lane.b32.xlu0 %v200, 108
      %v2483 = vpop.permute.xlu0 %2482
      %2484 = vrot.lane.b32.xlu0 %v201, 108
      %v2485 = vpop.permute.xlu0 %2484
      %2486 = vrot.lane.b32.xlu0 %v202, 108
      %v2487 = vpop.permute.xlu0 %2486
      %2488 = vrot.lane.b32.xlu0 %v203, 108
      %v2489 = vpop.permute.xlu0 %2488
      %2490 = vrot.lane.b32.xlu0 %v204, 108
      %v2491 = vpop.permute.xlu0 %2490
      %2492 = vrot.lane.b32.xlu0 %v205, 108
      %v2493 = vpop.permute.xlu0 %2492
      %2494 = vrot.lane.b32.xlu0 %v206, 108
      %v2495 = vpop.permute.xlu0 %2494
      %2496 = vrot.lane.b32.xlu0 %v207, 108
      %v2497 = vpop.permute.xlu0 %2496
      %2498 = vrot.lane.b32.xlu0 %v208, 108
      %v2499 = vpop.permute.xlu0 %2498
      %2500 = vrot.lane.b32.xlu0 %v209, 108
      %v2501 = vpop.permute.xlu0 %2500
      %2502 = vrot.lane.b32.xlu0 %v210, 108
      %v2503 = vpop.permute.xlu0 %2502
      %2504 = vrot.lane.b32.xlu0 %v211, 108
      %v2505 = vpop.permute.xlu0 %2504
      %2506 = vrot.lane.b32.xlu0 %v212, 108
      %v2507 = vpop.permute.xlu0 %2506
      %2508 = vrot.lane.b32.xlu0 %v213, 108
      %v2509 = vpop.permute.xlu0 %2508
      %2510 = vrot.lane.b32.xlu0 %v214, 108
      %v2511 = vpop.permute.xlu0 %2510
      %2512 = vrot.lane.b32.xlu0 %v215, 108
      %v2513 = vpop.permute.xlu0 %2512
      %2514 = vrot.lane.b32.xlu0 %v216, 108
      %v2515 = vpop.permute.xlu0 %2514
      %2516 = vrot.lane.b32.xlu0 %v217, 108
      %v2517 = vpop.permute.xlu0 %2516
      %2518 = vrot.lane.b32.xlu0 %v218, 108
      %v2519 = vpop.permute.xlu0 %2518
      %2520 = vrot.lane.b32.xlu0 %v219, 108
      %v2521 = vpop.permute.xlu0 %2520
      %2522 = vrot.lane.b32.xlu0 %v220, 108
      %v2523 = vpop.permute.xlu0 %2522
      %2524 = vrot.lane.b32.xlu0 %v221, 108
      %v2525 = vpop.permute.xlu0 %2524
      %2526 = vrot.lane.b32.xlu0 %v222, 108
      %v2527 = vpop.permute.xlu0 %2526
      %2528 = vrot.lane.b32.xlu0 %v223, 108
      %v2529 = vpop.permute.xlu0 %2528
      %2530 = vrot.lane.b32.xlu0 %v224, 108
      %v2531 = vpop.permute.xlu0 %2530
      %2532 = vrot.lane.b32.xlu0 %v225, 108
      %v2533 = vpop.permute.xlu0 %2532
      %2534 = vrot.lane.b32.xlu0 %v226, 108
      %v2535 = vpop.permute.xlu0 %2534
      %2536 = vrot.lane.b32.xlu0 %v227, 108
      %v2537 = vpop.permute.xlu0 %2536
      %2538 = vrot.lane.b32.xlu0 %v228, 108
      %v2539 = vpop.permute.xlu0 %2538
      %2540 = vrot.lane.b32.xlu0 %v229, 108
      %v2541 = vpop.permute.xlu0 %2540
      %2542 = vrot.lane.b32.xlu0 %v230, 108
      %v2543 = vpop.permute.xlu0 %2542
      %2544 = vrot.lane.b32.xlu0 %v231, 108
      %v2545 = vpop.permute.xlu0 %2544
      %2546 = vrot.lane.b32.xlu0 %v232, 108
      %v2547 = vpop.permute.xlu0 %2546
      %2548 = vrot.lane.b32.xlu0 %v233, 108
      %v2549 = vpop.permute.xlu0 %2548
      %vm2550 = vcmask 883712
      %v2551 = vsel %vm2550, %v2479, %v2481
      %v2552 = vsel %vm2550, %v2481, %v2483
      %v2553 = vsel %vm2550, %v2485, %v2487
      %v2554 = vsel %vm2550, %v2487, %v2489
      %v2555 = vsel %vm2550, %v2491, %v2493
      %v2556 = vsel %vm2550, %v2493, %v2495
      %v2557 = vsel %vm2550, %v2497, %v2499
      %v2558 = vsel %vm2550, %v2499, %v2501
      %v2559 = vsel %vm2550, %v2503, %v2505
      %v2560 = vsel %vm2550, %v2505, %v2507
      %v2561 = vsel %vm2550, %v2509, %v2511
      %v2562 = vsel %vm2550, %v2511, %v2513
      %v2563 = vsel %vm2550, %v2515, %v2517
      %v2564 = vsel %vm2550, %v2517, %v2519
      %v2565 = vsel %vm2550, %v2521, %v2523
      %v2566 = vsel %vm2550, %v2523, %v2525
      %v2567 = vsel %vm2550, %v2527, %v2529
      %v2568 = vsel %vm2550, %v2529, %v2531
      %v2569 = vsel %vm2550, %v2533, %v2535
      %v2570 = vsel %vm2550, %v2535, %v2537
      %v2571 = vsel %vm2550, %v2539, %v2541
      %v2572 = vsel %vm2550, %v2541, %v2543
      %v2573 = vsel %vm2550, %v2545, %v2547
      %v2574 = vsel %vm2550, %v2547, %v2549
      %v2612 = vsel %vm428, %v2466, 0
      %v2615 = vsel %vm428, %v2467, 0
      %v2618 = vsel %vm428, %v2468, 0
      %v2621 = vsel %vm428, %v2469, 0
      %v2624 = vsel %vm428, %v2470, 0
      %v2627 = vsel %vm428, %v2471, 0
      %v2630 = vsel %vm428, %v2472, 0
      %v2633 = vsel %vm428, %v2473, 0
      %v2636 = vsel %vm428, %v2474, 0
      %v2639 = vsel %vm428, %v2475, 0
      %v2642 = vsel %vm428, %v2476, 0
      %v2645 = vsel %vm428, %v2477, 0
      %2647 = vmatprep.subr.mxu0 %v2552
      %2648 = vmatpush1.msra.mxu0 %v2551
      %2649 = vmatprep.subr.mxu0 %v2554
      %2650 = vmatpush1.msra.mxu0 %v2553
      %2651 = vmatprep.subr.mxu0 %v2556
      %2652 = vmatpush1.msra.mxu0 %v2555
      %2653 = vmatprep.subr.mxu0 %v2558
      %2654 = vmatpush1.msra.mxu0 %v2557
      %2655 = vmatprep.subr.mxu0 %v2560
      %2656 = vmatpush1.msra.mxu0 %v2559
      %2657 = vmatprep.subr.mxu0 %v2562
      %2658 = vmatpush1.msra.mxu0 %v2561
      %2659 = vmatprep.subr.mxu0 %v2564
      %2660 = vmatpush1.msra.mxu0 %v2563
      %2661 = vmatprep.subr.mxu0 %v2566
      %2662 = vmatpush1.msra.mxu0 %v2565
      %2663 = vmatprep.subr.mxu0 %v2568
      %2664 = vmatpush1.msra.mxu0 %v2567
      %2665 = vmatprep.subr.mxu0 %v2570
      %2666 = vmatpush1.msra.mxu0 %v2569
      %2667 = vmatprep.subr.mxu0 %v2572
      %2668 = vmatpush1.msra.mxu0 %v2571
      %2669 = vmatprep.subr.mxu0 %v2574
      %2670 = vmatpush1.msra.mxu0 %v2573
      %2671 = vmatprep.subr.mxu0 0.0
      %2672 = vmatpush1.msra.mxu0 0.0
      %2673 = vmatprep.subr.mxu0 0.0
      %2674 = vmatpush1.msra.mxu0 0.0
      %2675 = vmatprep.subr.mxu0 0.0
      %2676 = vmatpush1.msra.mxu0 0.0
      %2677 = vmatprep.subr.mxu0 0.0
      %2678 = vmatpush1.msra.mxu0 0.0
      %2679 = vmatprep.subr.mxu0 0.0
      %2680 = vmatpush1.msra.mxu0 0.0
      %2681 = vmatprep.subr.mxu0 0.0
      %2682 = vmatpush1.msra.mxu0 0.0
      %2683 = vmatprep.subr.mxu0 0.0
      %2684 = vmatpush1.msra.mxu0 0.0
      %2685 = vmatprep.subr.mxu0 0.0
      %2686 = vmatpush1.msra.mxu0 0.0
      %2687 = vmatprep.subr.mxu0 0.0
      %2688 = vmatpush1.msra.mxu0 0.0
      %2689 = vmatprep.subr.mxu0 0.0
      %2690 = vmatpush1.msra.mxu0 0.0
      %2691 = vmatprep.subr.mxu0 0.0
      %2692 = vmatpush1.msra.mxu0 0.0
      %2693 = vmatprep.subr.mxu0 0.0
      %2694 = vmatpush1.msra.mxu0 0.0
      %2695 = vmatprep.subr.mxu0 0.0
      %2696 = vmatpush1.msra.mxu0 0.0
      %2697 = vmatprep.subr.mxu0 0.0
      %2698 = vmatpush1.msra.mxu0 0.0
      %2699 = vmatprep.subr.mxu0 0.0
      %2700 = vmatpush1.msra.mxu0 0.0
      %2701 = vmatprep.subr.mxu0 0.0
      %2702 = vmatpush1.msra.mxu0 0.0
      %2703 = vmatprep.subr.mxu0 0.0
      %2704 = vmatpush1.msra.mxu0 0.0
      %2705 = vmatprep.subr.mxu0 0.0
      %2706 = vmatpush1.msra.mxu0 0.0
      %2707 = vmatprep.subr.mxu0 0.0
      %2708 = vmatpush1.msra.mxu0 0.0
      %2709 = vmatprep.subr.mxu0 0.0
      %2710 = vmatpush1.msra.mxu0 0.0
      %2711 = vmatprep.mubr.f32.mxu0 0.0
      %2712 = vmatmul.mubr.f32.gmra.mrb[0].mxu0 %v2612
      %v2713 = vpop.f32.mrb[0].mxu0
      %v2714 = vadd.f32 0.0, %v2713
      %v2715 = vpop.f32.mrb[0].mxu0
      %v2716 = vadd.f32 0.0, %v2715
      %2717 = vmatprep.mubr.f32.mxu0 0.0
      %2718 = vmatmul.mubr.f32.gmra.mrb[0].mxu0 %v2615
      %v2719 = vpop.f32.mrb[0].mxu0
      %v2720 = vadd.f32 0.0, %v2719
      %v2721 = vpop.f32.mrb[0].mxu0
      %v2722 = vadd.f32 0.0, %v2721
      %2723 = vmatprep.mubr.f32.mxu0 0.0
      %2724 = vmatmul.mubr.f32.gmra.mrb[0].mxu0 %v2618
      %v2725 = vpop.f32.mrb[0].mxu0
      %v2726 = vadd.f32 0.0, %v2725
      %v2727 = vpop.f32.mrb[0].mxu0
      %v2728 = vadd.f32 0.0, %v2727
      %2729 = vmatprep.mubr.f32.mxu0 0.0
      %2730 = vmatmul.mubr.f32.gmra.mrb[0].mxu0 %v2621
      %v2731 = vpop.f32.mrb[0].mxu0
      %v2732 = vadd.f32 0.0, %v2731
      %v2733 = vpop.f32.mrb[0].mxu0
      %v2734 = vadd.f32 0.0, %v2733
      %2735 = vmatprep.mubr.f32.mxu0 0.0
      %2736 = vmatmul.mubr.f32.gmra.mrb[0].mxu0 %v2624
      %v2737 = vpop.f32.mrb[0].mxu0
      %v2738 = vadd.f32 0.0, %v2737
      %v2739 = vpop.f32.mrb[0].mxu0
      %v2740 = vadd.f32 0.0, %v2739
      %2741 = vmatprep.mubr.f32.mxu0 0.0
      %2742 = vmatmul.mubr.f32.gmra.mrb[0].mxu0 %v2627
      %v2743 = vpop.f32.mrb[0].mxu0
      %v2744 = vadd.f32 0.0, %v2743
      %v2745 = vpop.f32.mrb[0].mxu0
      %v2746 = vadd.f32 0.0, %v2745
      %2747 = vmatprep.mubr.f32.mxu0 0.0
      %2748 = vmatmul.mubr.f32.gmra.mrb[0].mxu0 %v2630
      %v2749 = vpop.f32.mrb[0].mxu0
      %v2750 = vadd.f32 0.0, %v2749
      %v2751 = vpop.f32.mrb[0].mxu0
      %v2752 = vadd.f32 0.0, %v2751
      %2753 = vmatprep.mubr.f32.mxu0 0.0
      %2754 = vmatmul.mubr.f32.gmra.mrb[0].mxu0 %v2633
      %v2755 = vpop.f32.mrb[0].mxu0
      %v2756 = vadd.f32 0.0, %v2755
      %v2757 = vpop.f32.mrb[0].mxu0
      %v2758 = vadd.f32 0.0, %v2757
      %2759 = vmatprep.mubr.f32.mxu0 0.0
      %2760 = vmatmul.mubr.f32.gmra.mrb[0].mxu0 %v2636
      %v2761 = vpop.f32.mrb[0].mxu0
      %v2762 = vadd.f32 0.0, %v2761
      %v2763 = vpop.f32.mrb[0].mxu0
      %v2764 = vadd.f32 0.0, %v2763
      %2765 = vmatprep.mubr.f32.mxu0 0.0
      %2766 = vmatmul.mubr.f32.gmra.mrb[0].mxu0 %v2639
      %v2767 = vpop.f32.mrb[0].mxu0
      %v2768 = vadd.f32 0.0, %v2767
      %v2769 = vpop.f32.mrb[0].mxu0
      %v2770 = vadd.f32 0.0, %v2769
      %2771 = vmatprep.mubr.f32.mxu0 0.0
      %2772 = vmatmul.mubr.f32.gmra.mrb[0].mxu0 %v2642
      %v2773 = vpop.f32.mrb[0].mxu0
      %v2774 = vadd.f32 0.0, %v2773
      %v2775 = vpop.f32.mrb[0].mxu0
      %v2776 = vadd.f32 0.0, %v2775
      %2777 = vmatprep.mubr.f32.mxu0 0.0
      %2778 = vmatmul.mubr.f32.gmra.mrb[0].mxu0 %v2645
      %v2779 = vpop.f32.mrb[0].mxu0
      %v2780 = vadd.f32 0.0, %v2779
      %v2781 = vpop.f32.mrb[0].mxu0
      %v2782 = vadd.f32 0.0, %v2781
      %2783 = vdwg.mxu0
      %2784 = vmatprep.subr.mxu0 0.0
      %2785 = vmatpush1.msra.mxu0 %v2483
      %2786 = vmatprep.subr.mxu0 0.0
      %2787 = vmatpush1.msra.mxu0 %v2489
      %2788 = vmatprep.subr.mxu0 0.0
      %2789 = vmatpush1.msra.mxu0 %v2495
      %2790 = vmatprep.subr.mxu0 0.0
      %2791 = vmatpush1.msra.mxu0 %v2501
      %2792 = vmatprep.subr.mxu0 0.0
      %2793 = vmatpush1.msra.mxu0 %v2507
      %2794 = vmatprep.subr.mxu0 0.0
      %2795 = vmatpush1.msra.mxu0 %v2513
      %2796 = vmatprep.subr.mxu0 0.0
      %2797 = vmatpush1.msra.mxu0 %v2519
      %2798 = vmatprep.subr.mxu0 0.0
      %2799 = vmatpush1.msra.mxu0 %v2525
      %2800 = vmatprep.subr.mxu0 0.0
      %2801 = vmatpush1.msra.mxu0 %v2531
      %2802 = vmatprep.subr.mxu0 0.0
      %2803 = vmatpush1.msra.mxu0 %v2537
      %2804 = vmatprep.subr.mxu0 0.0
      %2805 = vmatpush1.msra.mxu0 %v2543
      %2806 = vmatprep.subr.mxu0 0.0
      %2807 = vmatpush1.msra.mxu0 %v2549
      %2808 = vmatprep.subr.mxu0 0.0
      %2809 = vmatpush1.msra.mxu0 0.0
      %2810 = vmatprep.subr.mxu0 0.0
      %2811 = vmatpush1.msra.mxu0 0.0
      %2812 = vmatprep.subr.mxu0 0.0
      %2813 = vmatpush1.msra.mxu0 0.0
      %2814 = vmatprep.subr.mxu0 0.0
      %2815 = vmatpush1.msra.mxu0 0.0
      %2816 = vmatprep.subr.mxu0 0.0
      %2817 = vmatpush1.msra.mxu0 0.0
      %2818 = vmatprep.subr.mxu0 0.0
      %2819 = vmatpush1.msra.mxu0 0.0
      %2820 = vmatprep.subr.mxu0 0.0
      %2821 = vmatpush1.msra.mxu0 0.0
      %2822 = vmatprep.subr.mxu0 0.0
      %2823 = vmatpush1.msra.mxu0 0.0
      %2824 = vmatprep.subr.mxu0 0.0
      %2825 = vmatpush1.msra.mxu0 0.0
      %2826 = vmatprep.subr.mxu0 0.0
      %2827 = vmatpush1.msra.mxu0 0.0
      %2828 = vmatprep.subr.mxu0 0.0
      %2829 = vmatpush1.msra.mxu0 0.0
      %2830 = vmatprep.subr.mxu0 0.0
      %2831 = vmatpush1.msra.mxu0 0.0
      %2832 = vmatprep.subr.mxu0 0.0
      %2833 = vmatpush1.msra.mxu0 0.0
      %2834 = vmatprep.subr.mxu0 0.0
      %2835 = vmatpush1.msra.mxu0 0.0
      %2836 = vmatprep.subr.mxu0 0.0
      %2837 = vmatpush1.msra.mxu0 0.0
      %2838 = vmatprep.subr.mxu0 0.0
      %2839 = vmatpush1.msra.mxu0 0.0
      %2840 = vmatprep.subr.mxu0 0.0
      %2841 = vmatpush1.msra.mxu0 0.0
      %2842 = vmatprep.subr.mxu0 0.0
      %2843 = vmatpush1.msra.mxu0 0.0
      %2844 = vmatprep.subr.mxu0 0.0
      %2845 = vmatpush1.msra.mxu0 0.0
      %2846 = vmatprep.subr.mxu0 0.0
      %2847 = vmatpush1.msra.mxu0 0.0
      %2848 = vmatprep.mubr.f32.mxu0 0.0
      %2849 = vmatmul.mubr.f32.gmra.mrb[0].mxu0 %v2612
      %v2850 = vpop.f32.mrb[0].mxu0
      %v2851 = vadd.f32 0.0, %v2850
      %v2852 = vpop.f32.mrb[0].mxu0
      %2853 = vmatprep.mubr.f32.mxu0 0.0
      %2854 = vmatmul.mubr.f32.gmra.mrb[0].mxu0 %v2615
      %v2855 = vpop.f32.mrb[0].mxu0
      %v2856 = vadd.f32 0.0, %v2855
      %v2857 = vpop.f32.mrb[0].mxu0
      %2858 = vmatprep.mubr.f32.mxu0 0.0
      %2859 = vmatmul.mubr.f32.gmra.mrb[0].mxu0 %v2618
      %v2860 = vpop.f32.mrb[0].mxu0
      %v2861 = vadd.f32 0.0, %v2860
      %v2862 = vpop.f32.mrb[0].mxu0
      %2863 = vmatprep.mubr.f32.mxu0 0.0
      %2864 = vmatmul.mubr.f32.gmra.mrb[0].mxu0 %v2621
      %v2865 = vpop.f32.mrb[0].mxu0
      %v2866 = vadd.f32 0.0, %v2865
      %v2867 = vpop.f32.mrb[0].mxu0
      %2868 = vmatprep.mubr.f32.mxu0 0.0
      %2869 = vmatmul.mubr.f32.gmra.mrb[0].mxu0 %v2624
      %v2870 = vpop.f32.mrb[0].mxu0
      %v2871 = vadd.f32 0.0, %v2870
      %v2872 = vpop.f32.mrb[0].mxu0
      %2873 = vmatprep.mubr.f32.mxu0 0.0
      %2874 = vmatmul.mubr.f32.gmra.mrb[0].mxu0 %v2627
      %v2875 = vpop.f32.mrb[0].mxu0
      %v2876 = vadd.f32 0.0, %v2875
      %v2877 = vpop.f32.mrb[0].mxu0
      %2878 = vmatprep.mubr.f32.mxu0 0.0
      %2879 = vmatmul.mubr.f32.gmra.mrb[0].mxu0 %v2630
      %v2880 = vpop.f32.mrb[0].mxu0
      %v2881 = vadd.f32 0.0, %v2880
      %v2882 = vpop.f32.mrb[0].mxu0
      %2883 = vmatprep.mubr.f32.mxu0 0.0
      %2884 = vmatmul.mubr.f32.gmra.mrb[0].mxu0 %v2633
      %v2885 = vpop.f32.mrb[0].mxu0
      %v2886 = vadd.f32 0.0, %v2885
      %v2887 = vpop.f32.mrb[0].mxu0
      %2888 = vmatprep.mubr.f32.mxu0 0.0
      %2889 = vmatmul.mubr.f32.gmra.mrb[0].mxu0 %v2636
      %v2890 = vpop.f32.mrb[0].mxu0
      %v2891 = vadd.f32 0.0, %v2890
      %v2892 = vpop.f32.mrb[0].mxu0
      %2893 = vmatprep.mubr.f32.mxu0 0.0
      %2894 = vmatmul.mubr.f32.gmra.mrb[0].mxu0 %v2639
      %v2895 = vpop.f32.mrb[0].mxu0
      %v2896 = vadd.f32 0.0, %v2895
      %v2897 = vpop.f32.mrb[0].mxu0
      %2898 = vmatprep.mubr.f32.mxu0 0.0
      %2899 = vmatmul.mubr.f32.gmra.mrb[0].mxu0 %v2642
      %v2900 = vpop.f32.mrb[0].mxu0
      %v2901 = vadd.f32 0.0, %v2900
      %v2902 = vpop.f32.mrb[0].mxu0
      %2903 = vmatprep.mubr.f32.mxu0 0.0
      %2904 = vmatmul.mubr.f32.gmra.mrb[0].mxu0 %v2645
      %v2905 = vpop.f32.mrb[0].mxu0
      %v2906 = vadd.f32 0.0, %v2905
      %v2907 = vpop.f32.mrb[0].mxu0
      %2908 = vdwg.mxu0
      %v2909 = vadd.f32 %v2429, %v2714
      %v2910 = vadd.f32 %v2430, %v2716
      %v2911 = vadd.f32 %v2431, %v2851
      %v2912 = vadd.f32 %v2432, %v2720
      %v2913 = vadd.f32 %v2433, %v2722
      %v2914 = vadd.f32 %v2434, %v2856
      %v2915 = vadd.f32 %v2435, %v2726
      %v2916 = vadd.f32 %v2436, %v2728
      %v2917 = vadd.f32 %v2437, %v2861
      %v2918 = vadd.f32 %v2438, %v2732
      %v2919 = vadd.f32 %v2439, %v2734
      %v2920 = vadd.f32 %v2440, %v2866
      %v2921 = vadd.f32 %v2441, %v2738
      %v2922 = vadd.f32 %v2442, %v2740
      %v2923 = vadd.f32 %v2443, %v2871
      %v2924 = vadd.f32 %v2444, %v2744
      %v2925 = vadd.f32 %v2445, %v2746
      %v2926 = vadd.f32 %v2446, %v2876
      %v2927 = vadd.f32 %v2447, %v2750
      %v2928 = vadd.f32 %v2448, %v2752
      %v2929 = vadd.f32 %v2449, %v2881
      %v2930 = vadd.f32 %v2450, %v2756
      %v2931 = vadd.f32 %v2451, %v2758
      %v2932 = vadd.f32 %v2452, %v2886
      %v2933 = vadd.f32 %v2453, %v2762
      %v2934 = vadd.f32 %v2454, %v2764
      %v2935 = vadd.f32 %v2455, %v2891
      %v2936 = vadd.f32 %v2456, %v2768
      %v2937 = vadd.f32 %v2457, %v2770
      %v2938 = vadd.f32 %v2458, %v2896
      %v2939 = vadd.f32 %v2459, %v2774
      %v2940 = vadd.f32 %v2460, %v2776
      %v2941 = vadd.f32 %v2461, %v2901
      %v2942 = vadd.f32 %v2462, %v2780
      %v2943 = vadd.f32 %v2463, %v2782
      %v2944 = vadd.f32 %v2464, %v2906
      %s2945 = scalar_lea.vmem %s1, 576
      %v2946 = vld [vmem:[%s2945] sm:$0xff]
      %v2947 = vld [vmem:[%s2945 + $0x8] sm:$0xff]
      %v2948 = vld [vmem:[%s2945 + $0x10] sm:$0xff]
      %v2949 = vld [vmem:[%s2945 + $0x18] sm:$0xff]
      %v2950 = vld [vmem:[%s2945 + $0x20] sm:$0xff]
      %v2951 = vld [vmem:[%s2945 + $0x28] sm:$0xff]
      %v2952 = vld [vmem:[%s2945 + $0x30] sm:$0xff]
      %v2953 = vld [vmem:[%s2945 + $0x38] sm:$0xff]
      %v2954 = vld [vmem:[%s2945 + $0x40] sm:$0xff]
      %v2955 = vld [vmem:[%s2945 + $0x48] sm:$0xff]
      %v2956 = vld [vmem:[%s2945 + $0x50] sm:$0xff]
      %v2957 = vld [vmem:[%s2945 + $0x58] sm:$0xff]
      %2958 = vrot.lane.b32.xlu0 %v198, 92
      %v2959 = vpop.permute.xlu0 %2958
      %2960 = vrot.lane.b32.xlu0 %v199, 92
      %v2961 = vpop.permute.xlu0 %2960
      %2962 = vrot.lane.b32.xlu0 %v200, 92
      %v2963 = vpop.permute.xlu0 %2962
      %2964 = vrot.lane.b32.xlu0 %v201, 92
      %v2965 = vpop.permute.xlu0 %2964
      %2966 = vrot.lane.b32.xlu0 %v202, 92
      %v2967 = vpop.permute.xlu0 %2966
      %2968 = vrot.lane.b32.xlu0 %v203, 92
      %v2969 = vpop.permute.xlu0 %2968
      %2970 = vrot.lane.b32.xlu0 %v204, 92
      %v2971 = vpop.permute.xlu0 %2970
      %2972 = vrot.lane.b32.xlu0 %v205, 92
      %v2973 = vpop.permute.xlu0 %2972
      %2974 = vrot.lane.b32.xlu0 %v206, 92
      %v2975 = vpop.permute.xlu0 %2974
      %2976 = vrot.lane.b32.xlu0 %v207, 92
      %v2977 = vpop.permute.xlu0 %2976
      %2978 = vrot.lane.b32.xlu0 %v208, 92
      %v2979 = vpop.permute.xlu0 %2978
      %2980 = vrot.lane.b32.xlu0 %v209, 92
      %v2981 = vpop.permute.xlu0 %2980
      %2982 = vrot.lane.b32.xlu0 %v210, 92
      %v2983 = vpop.permute.xlu0 %2982
      %2984 = vrot.lane.b32.xlu0 %v211, 92
      %v2985 = vpop.permute.xlu0 %2984
      %2986 = vrot.lane.b32.xlu0 %v212, 92
      %v2987 = vpop.permute.xlu0 %2986
      %2988 = vrot.lane.b32.xlu0 %v213, 92
      %v2989 = vpop.permute.xlu0 %2988
      %2990 = vrot.lane.b32.xlu0 %v214, 92
      %v2991 = vpop.permute.xlu0 %2990
      %2992 = vrot.lane.b32.xlu0 %v215, 92
      %v2993 = vpop.permute.xlu0 %2992
      %2994 = vrot.lane.b32.xlu0 %v216, 92
      %v2995 = vpop.permute.xlu0 %2994
      %2996 = vrot.lane.b32.xlu0 %v217, 92
      %v2997 = vpop.permute.xlu0 %2996
      %2998 = vrot.lane.b32.xlu0 %v218, 92
      %v2999 = vpop.permute.xlu0 %2998
      %3000 = vrot.lane.b32.xlu0 %v219, 92
      %v3001 = vpop.permute.xlu0 %3000
      %3002 = vrot.lane.b32.xlu0 %v220, 92
      %v3003 = vpop.permute.xlu0 %3002
      %3004 = vrot.lane.b32.xlu0 %v221, 92
      %v3005 = vpop.permute.xlu0 %3004
      %3006 = vrot.lane.b32.xlu0 %v222, 92
      %v3007 = vpop.permute.xlu0 %3006
      %3008 = vrot.lane.b32.xlu0 %v223, 92
      %v3009 = vpop.permute.xlu0 %3008
      %3010 = vrot.lane.b32.xlu0 %v224, 92
      %v3011 = vpop.permute.xlu0 %3010
      %3012 = vrot.lane.b32.xlu0 %v225, 92
      %v3013 = vpop.permute.xlu0 %3012
      %3014 = vrot.lane.b32.xlu0 %v226, 92
      %v3015 = vpop.permute.xlu0 %3014
      %3016 = vrot.lane.b32.xlu0 %v227, 92
      %v3017 = vpop.permute.xlu0 %3016
      %3018 = vrot.lane.b32.xlu0 %v228, 92
      %v3019 = vpop.permute.xlu0 %3018
      %3020 = vrot.lane.b32.xlu0 %v229, 92
      %v3021 = vpop.permute.xlu0 %3020
      %3022 = vrot.lane.b32.xlu0 %v230, 92
      %v3023 = vpop.permute.xlu0 %3022
      %3024 = vrot.lane.b32.xlu0 %v231, 92
      %v3025 = vpop.permute.xlu0 %3024
      %3026 = vrot.lane.b32.xlu0 %v232, 92
      %v3027 = vpop.permute.xlu0 %3026
      %3028 = vrot.lane.b32.xlu0 %v233, 92
      %v3029 = vpop.permute.xlu0 %3028
      %vm3030 = vcmask 752640
      %v3031 = vsel %vm3030, %v2959, %v2961
      %v3032 = vsel %vm3030, %v2961, %v2963
      %v3033 = vsel %vm3030, %v2965, %v2967
      %v3034 = vsel %vm3030, %v2967, %v2969
      %v3035 = vsel %vm3030, %v2971, %v2973
      %v3036 = vsel %vm3030, %v2973, %v2975
      %v3037 = vsel %vm3030, %v2977, %v2979
      %v3038 = vsel %vm3030, %v2979, %v2981
      %v3039 = vsel %vm3030, %v2983, %v2985
      %v3040 = vsel %vm3030, %v2985, %v2987
      %v3041 = vsel %vm3030, %v2989, %v2991
      %v3042 = vsel %vm3030, %v2991, %v2993
      %v3043 = vsel %vm3030, %v2995, %v2997
      %v3044 = vsel %vm3030, %v2997, %v2999
      %v3045 = vsel %vm3030, %v3001, %v3003
      %v3046 = vsel %vm3030, %v3003, %v3005
      %v3047 = vsel %vm3030, %v3007, %v3009
      %v3048 = vsel %vm3030, %v3009, %v3011
      %v3049 = vsel %vm3030, %v3013, %v3015
      %v3050 = vsel %vm3030, %v3015, %v3017
      %v3051 = vsel %vm3030, %v3019, %v3021
      %v3052 = vsel %vm3030, %v3021, %v3023
      %v3053 = vsel %vm3030, %v3025, %v3027
      %v3054 = vsel %vm3030, %v3027, %v3029
      %v3092 = vsel %vm428, %v2946, 0
      %v3095 = vsel %vm428, %v2947, 0
      %v3098 = vsel %vm428, %v2948, 0
      %v3101 = vsel %vm428, %v2949, 0
      %v3104 = vsel %vm428, %v2950, 0
      %v3107 = vsel %vm428, %v2951, 0
      %v3110 = vsel %vm428, %v2952, 0
      %v3113 = vsel %vm428, %v2953, 0
      %v3116 = vsel %vm428, %v2954, 0
      %v3119 = vsel %vm428, %v2955, 0
      %v3122 = vsel %vm428, %v2956, 0
      %v3125 = vsel %vm428, %v2957, 0
      %3127 = vmatprep.subr.mxu0 %v3032
      %3128 = vmatpush1.msra.mxu0 %v3031
      %3129 = vmatprep.subr.mxu0 %v3034
      %3130 = vmatpush1.msra.mxu0 %v3033
      %3131 = vmatprep.subr.mxu0 %v3036
      %3132 = vmatpush1.msra.mxu0 %v3035
      %3133 = vmatprep.subr.mxu0 %v3038
      %3134 = vmatpush1.msra.mxu0 %v3037
      %3135 = vmatprep.subr.mxu0 %v3040
      %3136 = vmatpush1.msra.mxu0 %v3039
      %3137 = vmatprep.subr.mxu0 %v3042
      %3138 = vmatpush1.msra.mxu0 %v3041
      %3139 = vmatprep.subr.mxu0 %v3044
      %3140 = vmatpush1.msra.mxu0 %v3043
      %3141 = vmatprep.subr.mxu0 %v3046
      %3142 = vmatpush1.msra.mxu0 %v3045
      %3143 = vmatprep.subr.mxu0 %v3048
      %3144 = vmatpush1.msra.mxu0 %v3047
      %3145 = vmatprep.subr.mxu0 %v3050
      %3146 = vmatpush1.msra.mxu0 %v3049
      %3147 = vmatprep.subr.mxu0 %v3052
      %3148 = vmatpush1.msra.mxu0 %v3051
      %3149 = vmatprep.subr.mxu0 %v3054
      %3150 = vmatpush1.msra.mxu0 %v3053
      %3151 = vmatprep.subr.mxu0 0.0
      %3152 = vmatpush1.msra.mxu0 0.0
      %3153 = vmatprep.subr.mxu0 0.0
      %3154 = vmatpush1.msra.mxu0 0.0
      %3155 = vmatprep.subr.mxu0 0.0
      %3156 = vmatpush1.msra.mxu0 0.0
      %3157 = vmatprep.subr.mxu0 0.0
      %3158 = vmatpush1.msra.mxu0 0.0
      %3159 = vmatprep.subr.mxu0 0.0
      %3160 = vmatpush1.msra.mxu0 0.0
      %3161 = vmatprep.subr.mxu0 0.0
      %3162 = vmatpush1.msra.mxu0 0.0
      %3163 = vmatprep.subr.mxu0 0.0
      %3164 = vmatpush1.msra.mxu0 0.0
      %3165 = vmatprep.subr.mxu0 0.0
      %3166 = vmatpush1.msra.mxu0 0.0
      %3167 = vmatprep.subr.mxu0 0.0
      %3168 = vmatpush1.msra.mxu0 0.0
      %3169 = vmatprep.subr.mxu0 0.0
      %3170 = vmatpush1.msra.mxu0 0.0
      %3171 = vmatprep.subr.mxu0 0.0
      %3172 = vmatpush1.msra.mxu0 0.0
      %3173 = vmatprep.subr.mxu0 0.0
      %3174 = vmatpush1.msra.mxu0 0.0
      %3175 = vmatprep.subr.mxu0 0.0
      %3176 = vmatpush1.msra.mxu0 0.0
      %3177 = vmatprep.subr.mxu0 0.0
      %3178 = vmatpush1.msra.mxu0 0.0
      %3179 = vmatprep.subr.mxu0 0.0
      %3180 = vmatpush1.msra.mxu0 0.0
      %3181 = vmatprep.subr.mxu0 0.0
      %3182 = vmatpush1.msra.mxu0 0.0
      %3183 = vmatprep.subr.mxu0 0.0
      %3184 = vmatpush1.msra.mxu0 0.0
      %3185 = vmatprep.subr.mxu0 0.0
      %3186 = vmatpush1.msra.mxu0 0.0
      %3187 = vmatprep.subr.mxu0 0.0
      %3188 = vmatpush1.msra.mxu0 0.0
      %3189 = vmatprep.subr.mxu0 0.0
      %3190 = vmatpush1.msra.mxu0 0.0
      %3191 = vmatprep.mubr.f32.mxu0 0.0
      %3192 = vmatmul.mubr.f32.gmra.mrb[0].mxu0 %v3092
      %v3193 = vpop.f32.mrb[0].mxu0
      %v3194 = vadd.f32 0.0, %v3193
      %v3195 = vpop.f32.mrb[0].mxu0
      %v3196 = vadd.f32 0.0, %v3195
      %3197 = vmatprep.mubr.f32.mxu0 0.0
      %3198 = vmatmul.mubr.f32.gmra.mrb[0].mxu0 %v3095
      %v3199 = vpop.f32.mrb[0].mxu0
      %v3200 = vadd.f32 0.0, %v3199
      %v3201 = vpop.f32.mrb[0].mxu0
      %v3202 = vadd.f32 0.0, %v3201
      %3203 = vmatprep.mubr.f32.mxu0 0.0
      %3204 = vmatmul.mubr.f32.gmra.mrb[0].mxu0 %v3098
      %v3205 = vpop.f32.mrb[0].mxu0
      %v3206 = vadd.f32 0.0, %v3205
      %v3207 = vpop.f32.mrb[0].mxu0
      %v3208 = vadd.f32 0.0, %v3207
      %3209 = vmatprep.mubr.f32.mxu0 0.0
      %3210 = vmatmul.mubr.f32.gmra.mrb[0].mxu0 %v3101
      %v3211 = vpop.f32.mrb[0].mxu0
      %v3212 = vadd.f32 0.0, %v3211
      %v3213 = vpop.f32.mrb[0].mxu0
      %v3214 = vadd.f32 0.0, %v3213
      %3215 = vmatprep.mubr.f32.mxu0 0.0
      %3216 = vmatmul.mubr.f32.gmra.mrb[0].mxu0 %v3104
      %v3217 = vpop.f32.mrb[0].mxu0
      %v3218 = vadd.f32 0.0, %v3217
      %v3219 = vpop.f32.mrb[0].mxu0
      %v3220 = vadd.f32 0.0, %v3219
      %3221 = vmatprep.mubr.f32.mxu0 0.0
      %3222 = vmatmul.mubr.f32.gmra.mrb[0].mxu0 %v3107
      %v3223 = vpop.f32.mrb[0].mxu0
      %v3224 = vadd.f32 0.0, %v3223
      %v3225 = vpop.f32.mrb[0].mxu0
      %v3226 = vadd.f32 0.0, %v3225
      %3227 = vmatprep.mubr.f32.mxu0 0.0
      %3228 = vmatmul.mubr.f32.gmra.mrb[0].mxu0 %v3110
      %v3229 = vpop.f32.mrb[0].mxu0
      %v3230 = vadd.f32 0.0, %v3229
      %v3231 = vpop.f32.mrb[0].mxu0
      %v3232 = vadd.f32 0.0, %v3231
      %3233 = vmatprep.mubr.f32.mxu0 0.0
      %3234 = vmatmul.mubr.f32.gmra.mrb[0].mxu0 %v3113
      %v3235 = vpop.f32.mrb[0].mxu0
      %v3236 = vadd.f32 0.0, %v3235
      %v3237 = vpop.f32.mrb[0].mxu0
      %v3238 = vadd.f32 0.0, %v3237
      %3239 = vmatprep.mubr.f32.mxu0 0.0
      %3240 = vmatmul.mubr.f32.gmra.mrb[0].mxu0 %v3116
      %v3241 = vpop.f32.mrb[0].mxu0
      %v3242 = vadd.f32 0.0, %v3241
      %v3243 = vpop.f32.mrb[0].mxu0
      %v3244 = vadd.f32 0.0, %v3243
      %3245 = vmatprep.mubr.f32.mxu0 0.0
      %3246 = vmatmul.mubr.f32.gmra.mrb[0].mxu0 %v3119
      %v3247 = vpop.f32.mrb[0].mxu0
      %v3248 = vadd.f32 0.0, %v3247
      %v3249 = vpop.f32.mrb[0].mxu0
      %v3250 = vadd.f32 0.0, %v3249
      %3251 = vmatprep.mubr.f32.mxu0 0.0
      %3252 = vmatmul.mubr.f32.gmra.mrb[0].mxu0 %v3122
      %v3253 = vpop.f32.mrb[0].mxu0
      %v3254 = vadd.f32 0.0, %v3253
      %v3255 = vpop.f32.mrb[0].mxu0
      %v3256 = vadd.f32 0.0, %v3255
      %3257 = vmatprep.mubr.f32.mxu0 0.0
      %3258 = vmatmul.mubr.f32.gmra.mrb[0].mxu0 %v3125
      %v3259 = vpop.f32.mrb[0].mxu0
      %v3260 = vadd.f32 0.0, %v3259
      %v3261 = vpop.f32.mrb[0].mxu0
      %v3262 = vadd.f32 0.0, %v3261
      %3263 = vdwg.mxu0
      %3264 = vmatprep.subr.mxu0 0.0
      %3265 = vmatpush1.msra.mxu0 %v2963
      %3266 = vmatprep.subr.mxu0 0.0
      %3267 = vmatpush1.msra.mxu0 %v2969
      %3268 = vmatprep.subr.mxu0 0.0
      %3269 = vmatpush1.msra.mxu0 %v2975
      %3270 = vmatprep.subr.mxu0 0.0
      %3271 = vmatpush1.msra.mxu0 %v2981
      %3272 = vmatprep.subr.mxu0 0.0
      %3273 = vmatpush1.msra.mxu0 %v2987
      %3274 = vmatprep.subr.mxu0 0.0
      %3275 = vmatpush1.msra.mxu0 %v2993
      %3276 = vmatprep.subr.mxu0 0.0
      %3277 = vmatpush1.msra.mxu0 %v2999
      %3278 = vmatprep.subr.mxu0 0.0
      %3279 = vmatpush1.msra.mxu0 %v3005
      %3280 = vmatprep.subr.mxu0 0.0
      %3281 = vmatpush1.msra.mxu0 %v3011
      %3282 = vmatprep.subr.mxu0 0.0
      %3283 = vmatpush1.msra.mxu0 %v3017
      %3284 = vmatprep.subr.mxu0 0.0
      %3285 = vmatpush1.msra.mxu0 %v3023
      %3286 = vmatprep.subr.mxu0 0.0
      %3287 = vmatpush1.msra.mxu0 %v3029
      %3288 = vmatprep.subr.mxu0 0.0
      %3289 = vmatpush1.msra.mxu0 0.0
      %3290 = vmatprep.subr.mxu0 0.0
      %3291 = vmatpush1.msra.mxu0 0.0
      %3292 = vmatprep.subr.mxu0 0.0
      %3293 = vmatpush1.msra.mxu0 0.0
      %3294 = vmatprep.subr.mxu0 0.0
      %3295 = vmatpush1.msra.mxu0 0.0
      %3296 = vmatprep.subr.mxu0 0.0
      %3297 = vmatpush1.msra.mxu0 0.0
      %3298 = vmatprep.subr.mxu0 0.0
      %3299 = vmatpush1.msra.mxu0 0.0
      %3300 = vmatprep.subr.mxu0 0.0
      %3301 = vmatpush1.msra.mxu0 0.0
      %3302 = vmatprep.subr.mxu0 0.0
      %3303 = vmatpush1.msra.mxu0 0.0
      %3304 = vmatprep.subr.mxu0 0.0
      %3305 = vmatpush1.msra.mxu0 0.0
      %3306 = vmatprep.subr.mxu0 0.0
      %3307 = vmatpush1.msra.mxu0 0.0
      %3308 = vmatprep.subr.mxu0 0.0
      %3309 = vmatpush1.msra.mxu0 0.0
      %3310 = vmatprep.subr.mxu0 0.0
      %3311 = vmatpush1.msra.mxu0 0.0
      %3312 = vmatprep.subr.mxu0 0.0
      %3313 = vmatpush1.msra.mxu0 0.0
      %3314 = vmatprep.subr.mxu0 0.0
      %3315 = vmatpush1.msra.mxu0 0.0
      %3316 = vmatprep.subr.mxu0 0.0
      %3317 = vmatpush1.msra.mxu0 0.0
      %3318 = vmatprep.subr.mxu0 0.0
      %3319 = vmatpush1.msra.mxu0 0.0
      %3320 = vmatprep.subr.mxu0 0.0
      %3321 = vmatpush1.msra.mxu0 0.0
      %3322 = vmatprep.subr.mxu0 0.0
      %3323 = vmatpush1.msra.mxu0 0.0
      %3324 = vmatprep.subr.mxu0 0.0
      %3325 = vmatpush1.msra.mxu0 0.0
      %3326 = vmatprep.subr.mxu0 0.0
      %3327 = vmatpush1.msra.mxu0 0.0
      %3328 = vmatprep.mubr.f32.mxu0 0.0
      %3329 = vmatmul.mubr.f32.gmra.mrb[0].mxu0 %v3092
      %v3330 = vpop.f32.mrb[0].mxu0
      %v3331 = vadd.f32 0.0, %v3330
      %v3332 = vpop.f32.mrb[0].mxu0
      %3333 = vmatprep.mubr.f32.mxu0 0.0
      %3334 = vmatmul.mubr.f32.gmra.mrb[0].mxu0 %v3095
      %v3335 = vpop.f32.mrb[0].mxu0
      %v3336 = vadd.f32 0.0, %v3335
      %v3337 = vpop.f32.mrb[0].mxu0
      %3338 = vmatprep.mubr.f32.mxu0 0.0
      %3339 = vmatmul.mubr.f32.gmra.mrb[0].mxu0 %v3098
      %v3340 = vpop.f32.mrb[0].mxu0
      %v3341 = vadd.f32 0.0, %v3340
      %v3342 = vpop.f32.mrb[0].mxu0
      %3343 = vmatprep.mubr.f32.mxu0 0.0
      %3344 = vmatmul.mubr.f32.gmra.mrb[0].mxu0 %v3101
      %v3345 = vpop.f32.mrb[0].mxu0
      %v3346 = vadd.f32 0.0, %v3345
      %v3347 = vpop.f32.mrb[0].mxu0
      %3348 = vmatprep.mubr.f32.mxu0 0.0
      %3349 = vmatmul.mubr.f32.gmra.mrb[0].mxu0 %v3104
      %v3350 = vpop.f32.mrb[0].mxu0
      %v3351 = vadd.f32 0.0, %v3350
      %v3352 = vpop.f32.mrb[0].mxu0
      %3353 = vmatprep.mubr.f32.mxu0 0.0
      %3354 = vmatmul.mubr.f32.gmra.mrb[0].mxu0 %v3107
      %v3355 = vpop.f32.mrb[0].mxu0
      %v3356 = vadd.f32 0.0, %v3355
      %v3357 = vpop.f32.mrb[0].mxu0
      %3358 = vmatprep.mubr.f32.mxu0 0.0
      %3359 = vmatmul.mubr.f32.gmra.mrb[0].mxu0 %v3110
      %v3360 = vpop.f32.mrb[0].mxu0
      %v3361 = vadd.f32 0.0, %v3360
      %v3362 = vpop.f32.mrb[0].mxu0
      %3363 = vmatprep.mubr.f32.mxu0 0.0
      %3364 = vmatmul.mubr.f32.gmra.mrb[0].mxu0 %v3113
      %v3365 = vpop.f32.mrb[0].mxu0
      %v3366 = vadd.f32 0.0, %v3365
      %v3367 = vpop.f32.mrb[0].mxu0
      %3368 = vmatprep.mubr.f32.mxu0 0.0
      %3369 = vmatmul.mubr.f32.gmra.mrb[0].mxu0 %v3116
      %v3370 = vpop.f32.mrb[0].mxu0
      %v3371 = vadd.f32 0.0, %v3370
      %v3372 = vpop.f32.mrb[0].mxu0
      %3373 = vmatprep.mubr.f32.mxu0 0.0
      %3374 = vmatmul.mubr.f32.gmra.mrb[0].mxu0 %v3119
      %v3375 = vpop.f32.mrb[0].mxu0
      %v3376 = vadd.f32 0.0, %v3375
      %v3377 = vpop.f32.mrb[0].mxu0
      %3378 = vmatprep.mubr.f32.mxu0 0.0
      %3379 = vmatmul.mubr.f32.gmra.mrb[0].mxu0 %v3122
      %v3380 = vpop.f32.mrb[0].mxu0
      %v3381 = vadd.f32 0.0, %v3380
      %v3382 = vpop.f32.mrb[0].mxu0
      %3383 = vmatprep.mubr.f32.mxu0 0.0
      %3384 = vmatmul.mubr.f32.gmra.mrb[0].mxu0 %v3125
      %v3385 = vpop.f32.mrb[0].mxu0
      %v3386 = vadd.f32 0.0, %v3385
      %v3387 = vpop.f32.mrb[0].mxu0
      %3388 = vdwg.mxu0
      %v3389 = vadd.f32 %v2909, %v3194
      %v3390 = vadd.f32 %v2910, %v3196
      %v3391 = vadd.f32 %v2911, %v3331
      %v3392 = vadd.f32 %v2912, %v3200
      %v3393 = vadd.f32 %v2913, %v3202
      %v3394 = vadd.f32 %v2914, %v3336
      %v3395 = vadd.f32 %v2915, %v3206
      %v3396 = vadd.f32 %v2916, %v3208
      %v3397 = vadd.f32 %v2917, %v3341
      %v3398 = vadd.f32 %v2918, %v3212
      %v3399 = vadd.f32 %v2919, %v3214
      %v3400 = vadd.f32 %v2920, %v3346
      %v3401 = vadd.f32 %v2921, %v3218
      %v3402 = vadd.f32 %v2922, %v3220
      %v3403 = vadd.f32 %v2923, %v3351
      %v3404 = vadd.f32 %v2924, %v3224
      %v3405 = vadd.f32 %v2925, %v3226
      %v3406 = vadd.f32 %v2926, %v3356
      %v3407 = vadd.f32 %v2927, %v3230
      %v3408 = vadd.f32 %v2928, %v3232
      %v3409 = vadd.f32 %v2929, %v3361
      %v3410 = vadd.f32 %v2930, %v3236
      %v3411 = vadd.f32 %v2931, %v3238
      %v3412 = vadd.f32 %v2932, %v3366
      %v3413 = vadd.f32 %v2933, %v3242
      %v3414 = vadd.f32 %v2934, %v3244
      %v3415 = vadd.f32 %v2935, %v3371
      %v3416 = vadd.f32 %v2936, %v3248
      %v3417 = vadd.f32 %v2937, %v3250
      %v3418 = vadd.f32 %v2938, %v3376
      %v3419 = vadd.f32 %v2939, %v3254
      %v3420 = vadd.f32 %v2940, %v3256
      %v3421 = vadd.f32 %v2941, %v3381
      %v3422 = vadd.f32 %v2942, %v3260
      %v3423 = vadd.f32 %v2943, %v3262
      %v3424 = vadd.f32 %v2944, %v3386
      %s3425 = scalar_lea.vmem %s1, 672
      %v3426 = vld [vmem:[%s3425] sm:$0xff]
      %v3427 = vld [vmem:[%s3425 + $0x8] sm:$0xff]
      %v3428 = vld [vmem:[%s3425 + $0x10] sm:$0xff]
      %v3429 = vld [vmem:[%s3425 + $0x18] sm:$0xff]
      %v3430 = vld [vmem:[%s3425 + $0x20] sm:$0xff]
      %v3431 = vld [vmem:[%s3425 + $0x28] sm:$0xff]
      %v3432 = vld [vmem:[%s3425 + $0x30] sm:$0xff]
      %v3433 = vld [vmem:[%s3425 + $0x38] sm:$0xff]
      %v3434 = vld [vmem:[%s3425 + $0x40] sm:$0xff]
      %v3435 = vld [vmem:[%s3425 + $0x48] sm:$0xff]
      %v3436 = vld [vmem:[%s3425 + $0x50] sm:$0xff]
      %v3437 = vld [vmem:[%s3425 + $0x58] sm:$0xff]
      %3438 = vrot.lane.b32.xlu0 %v198, 91
      %v3439 = vpop.permute.xlu0 %3438
      %3440 = vrot.lane.b32.xlu0 %v199, 91
      %v3441 = vpop.permute.xlu0 %3440
      %3442 = vrot.lane.b32.xlu0 %v200, 91
      %v3443 = vpop.permute.xlu0 %3442
      %3444 = vrot.lane.b32.xlu0 %v201, 91
      %v3445 = vpop.permute.xlu0 %3444
      %3446 = vrot.lane.b32.xlu0 %v202, 91
      %v3447 = vpop.permute.xlu0 %3446
      %3448 = vrot.lane.b32.xlu0 %v203, 91
      %v3449 = vpop.permute.xlu0 %3448
      %3450 = vrot.lane.b32.xlu0 %v204, 91
      %v3451 = vpop.permute.xlu0 %3450
      %3452 = vrot.lane.b32.xlu0 %v205, 91
      %v3453 = vpop.permute.xlu0 %3452
      %3454 = vrot.lane.b32.xlu0 %v206, 91
      %v3455 = vpop.permute.xlu0 %3454
      %3456 = vrot.lane.b32.xlu0 %v207, 91
      %v3457 = vpop.permute.xlu0 %3456
      %3458 = vrot.lane.b32.xlu0 %v208, 91
      %v3459 = vpop.permute.xlu0 %3458
      %3460 = vrot.lane.b32.xlu0 %v209, 91
      %v3461 = vpop.permute.xlu0 %3460
      %3462 = vrot.lane.b32.xlu0 %v210, 91
      %v3463 = vpop.permute.xlu0 %3462
      %3464 = vrot.lane.b32.xlu0 %v211, 91
      %v3465 = vpop.permute.xlu0 %3464
      %3466 = vrot.lane.b32.xlu0 %v212, 91
      %v3467 = vpop.permute.xlu0 %3466
      %3468 = vrot.lane.b32.xlu0 %v213, 91
      %v3469 = vpop.permute.xlu0 %3468
      %3470 = vrot.lane.b32.xlu0 %v214, 91
      %v3471 = vpop.permute.xlu0 %3470
      %3472 = vrot.lane.b32.xlu0 %v215, 91
      %v3473 = vpop.permute.xlu0 %3472
      %3474 = vrot.lane.b32.xlu0 %v216, 91
      %v3475 = vpop.permute.xlu0 %3474
      %3476 = vrot.lane.b32.xlu0 %v217, 91
      %v3477 = vpop.permute.xlu0 %3476
      %3478 = vrot.lane.b32.xlu0 %v218, 91
      %v3479 = vpop.permute.xlu0 %3478
      %3480 = vrot.lane.b32.xlu0 %v219, 91
      %v3481 = vpop.permute.xlu0 %3480
      %3482 = vrot.lane.b32.xlu0 %v220, 91
      %v3483 = vpop.permute.xlu0 %3482
      %3484 = vrot.lane.b32.xlu0 %v221, 91
      %v3485 = vpop.permute.xlu0 %3484
      %3486 = vrot.lane.b32.xlu0 %v222, 91
      %v3487 = vpop.permute.xlu0 %3486
      %3488 = vrot.lane.b32.xlu0 %v223, 91
      %v3489 = vpop.permute.xlu0 %3488
      %3490 = vrot.lane.b32.xlu0 %v224, 91
      %v3491 = vpop.permute.xlu0 %3490
      %3492 = vrot.lane.b32.xlu0 %v225, 91
      %v3493 = vpop.permute.xlu0 %3492
      %3494 = vrot.lane.b32.xlu0 %v226, 91
      %v3495 = vpop.permute.xlu0 %3494
      %3496 = vrot.lane.b32.xlu0 %v227, 91
      %v3497 = vpop.permute.xlu0 %3496
      %3498 = vrot.lane.b32.xlu0 %v228, 91
      %v3499 = vpop.permute.xlu0 %3498
      %3500 = vrot.lane.b32.xlu0 %v229, 91
      %v3501 = vpop.permute.xlu0 %3500
      %3502 = vrot.lane.b32.xlu0 %v230, 91
      %v3503 = vpop.permute.xlu0 %3502
      %3504 = vrot.lane.b32.xlu0 %v231, 91
      %v3505 = vpop.permute.xlu0 %3504
      %3506 = vrot.lane.b32.xlu0 %v232, 91
      %v3507 = vpop.permute.xlu0 %3506
      %3508 = vrot.lane.b32.xlu0 %v233, 91
      %v3509 = vpop.permute.xlu0 %3508
      %vm3510 = vcmask 744448
      %v3511 = vsel %vm3510, %v3439, %v3441
      %v3512 = vsel %vm3510, %v3441, %v3443
      %v3513 = vsel %vm3510, %v3445, %v3447
      %v3514 = vsel %vm3510, %v3447, %v3449
      %v3515 = vsel %vm3510, %v3451, %v3453
      %v3516 = vsel %vm3510, %v3453, %v3455
      %v3517 = vsel %vm3510, %v3457, %v3459
      %v3518 = vsel %vm3510, %v3459, %v3461
      %v3519 = vsel %vm3510, %v3463, %v3465
      %v3520 = vsel %vm3510, %v3465, %v3467
      %v3521 = vsel %vm3510, %v3469, %v3471
      %v3522 = vsel %vm3510, %v3471, %v3473
      %v3523 = vsel %vm3510, %v3475, %v3477
      %v3524 = vsel %vm3510, %v3477, %v3479
      %v3525 = vsel %vm3510, %v3481, %v3483
      %v3526 = vsel %vm3510, %v3483, %v3485
      %v3527 = vsel %vm3510, %v3487, %v3489
      %v3528 = vsel %vm3510, %v3489, %v3491
      %v3529 = vsel %vm3510, %v3493, %v3495
      %v3530 = vsel %vm3510, %v3495, %v3497
      %v3531 = vsel %vm3510, %v3499, %v3501
      %v3532 = vsel %vm3510, %v3501, %v3503
      %v3533 = vsel %vm3510, %v3505, %v3507
      %v3534 = vsel %vm3510, %v3507, %v3509
      %v3572 = vsel %vm428, %v3426, 0
      %v3575 = vsel %vm428, %v3427, 0
      %v3578 = vsel %vm428, %v3428, 0
      %v3581 = vsel %vm428, %v3429, 0
      %v3584 = vsel %vm428, %v3430, 0
      %v3587 = vsel %vm428, %v3431, 0
      %v3590 = vsel %vm428, %v3432, 0
      %v3593 = vsel %vm428, %v3433, 0
      %v3596 = vsel %vm428, %v3434, 0
      %v3599 = vsel %vm428, %v3435, 0
      %v3602 = vsel %vm428, %v3436, 0
      %v3605 = vsel %vm428, %v3437, 0
      %3607 = vmatprep.subr.mxu0 %v3512
      %3608 = vmatpush1.msra.mxu0 %v3511
      %3609 = vmatprep.subr.mxu0 %v3514
      %3610 = vmatpush1.msra.mxu0 %v3513
      %3611 = vmatprep.subr.mxu0 %v3516
      %3612 = vmatpush1.msra.mxu0 %v3515
      %3613 = vmatprep.subr.mxu0 %v3518
      %3614 = vmatpush1.msra.mxu0 %v3517
      %3615 = vmatprep.subr.mxu0 %v3520
      %3616 = vmatpush1.msra.mxu0 %v3519
      %3617 = vmatprep.subr.mxu0 %v3522
      %3618 = vmatpush1.msra.mxu0 %v3521
      %3619 = vmatprep.subr.mxu0 %v3524
      %3620 = vmatpush1.msra.mxu0 %v3523
      %3621 = vmatprep.subr.mxu0 %v3526
      %3622 = vmatpush1.msra.mxu0 %v3525
      %3623 = vmatprep.subr.mxu0 %v3528
      %3624 = vmatpush1.msra.mxu0 %v3527
      %3625 = vmatprep.subr.mxu0 %v3530
      %3626 = vmatpush1.msra.mxu0 %v3529
      %3627 = vmatprep.subr.mxu0 %v3532
      %3628 = vmatpush1.msra.mxu0 %v3531
      %3629 = vmatprep.subr.mxu0 %v3534
      %3630 = vmatpush1.msra.mxu0 %v3533
      %3631 = vmatprep.subr.mxu0 0.0
      %3632 = vmatpush1.msra.mxu0 0.0
      %3633 = vmatprep.subr.mxu0 0.0
      %3634 = vmatpush1.msra.mxu0 0.0
      %3635 = vmatprep.subr.mxu0 0.0
      %3636 = vmatpush1.msra.mxu0 0.0
      %3637 = vmatprep.subr.mxu0 0.0
      %3638 = vmatpush1.msra.mxu0 0.0
      %3639 = vmatprep.subr.mxu0 0.0
      %3640 = vmatpush1.msra.mxu0 0.0
      %3641 = vmatprep.subr.mxu0 0.0
      %3642 = vmatpush1.msra.mxu0 0.0
      %3643 = vmatprep.subr.mxu0 0.0
      %3644 = vmatpush1.msra.mxu0 0.0
      %3645 = vmatprep.subr.mxu0 0.0
      %3646 = vmatpush1.msra.mxu0 0.0
      %3647 = vmatprep.subr.mxu0 0.0
      %3648 = vmatpush1.msra.mxu0 0.0
      %3649 = vmatprep.subr.mxu0 0.0
      %3650 = vmatpush1.msra.mxu0 0.0
      %3651 = vmatprep.subr.mxu0 0.0
      %3652 = vmatpush1.msra.mxu0 0.0
      %3653 = vmatprep.subr.mxu0 0.0
      %3654 = vmatpush1.msra.mxu0 0.0
      %3655 = vmatprep.subr.mxu0 0.0
      %3656 = vmatpush1.msra.mxu0 0.0
      %3657 = vmatprep.subr.mxu0 0.0
      %3658 = vmatpush1.msra.mxu0 0.0
      %3659 = vmatprep.subr.mxu0 0.0
      %3660 = vmatpush1.msra.mxu0 0.0
      %3661 = vmatprep.subr.mxu0 0.0
      %3662 = vmatpush1.msra.mxu0 0.0
      %3663 = vmatprep.subr.mxu0 0.0
      %3664 = vmatpush1.msra.mxu0 0.0
      %3665 = vmatprep.subr.mxu0 0.0
      %3666 = vmatpush1.msra.mxu0 0.0
      %3667 = vmatprep.subr.mxu0 0.0
      %3668 = vmatpush1.msra.mxu0 0.0
      %3669 = vmatprep.subr.mxu0 0.0
      %3670 = vmatpush1.msra.mxu0 0.0
      %3671 = vmatprep.mubr.f32.mxu0 0.0
      %3672 = vmatmul.mubr.f32.gmra.mrb[0].mxu0 %v3572
      %v3673 = vpop.f32.mrb[0].mxu0
      %v3674 = vadd.f32 0.0, %v3673
      %v3675 = vpop.f32.mrb[0].mxu0
      %v3676 = vadd.f32 0.0, %v3675
      %3677 = vmatprep.mubr.f32.mxu0 0.0
      %3678 = vmatmul.mubr.f32.gmra.mrb[0].mxu0 %v3575
      %v3679 = vpop.f32.mrb[0].mxu0
      %v3680 = vadd.f32 0.0, %v3679
      %v3681 = vpop.f32.mrb[0].mxu0
      %v3682 = vadd.f32 0.0, %v3681
      %3683 = vmatprep.mubr.f32.mxu0 0.0
      %3684 = vmatmul.mubr.f32.gmra.mrb[0].mxu0 %v3578
      %v3685 = vpop.f32.mrb[0].mxu0
      %v3686 = vadd.f32 0.0, %v3685
      %v3687 = vpop.f32.mrb[0].mxu0
      %v3688 = vadd.f32 0.0, %v3687
      %3689 = vmatprep.mubr.f32.mxu0 0.0
      %3690 = vmatmul.mubr.f32.gmra.mrb[0].mxu0 %v3581
      %v3691 = vpop.f32.mrb[0].mxu0
      %v3692 = vadd.f32 0.0, %v3691
      %v3693 = vpop.f32.mrb[0].mxu0
      %v3694 = vadd.f32 0.0, %v3693
      %3695 = vmatprep.mubr.f32.mxu0 0.0
      %3696 = vmatmul.mubr.f32.gmra.mrb[0].mxu0 %v3584
      %v3697 = vpop.f32.mrb[0].mxu0
      %v3698 = vadd.f32 0.0, %v3697
      %v3699 = vpop.f32.mrb[0].mxu0
      %v3700 = vadd.f32 0.0, %v3699
      %3701 = vmatprep.mubr.f32.mxu0 0.0
      %3702 = vmatmul.mubr.f32.gmra.mrb[0].mxu0 %v3587
      %v3703 = vpop.f32.mrb[0].mxu0
      %v3704 = vadd.f32 0.0, %v3703
      %v3705 = vpop.f32.mrb[0].mxu0
      %v3706 = vadd.f32 0.0, %v3705
      %3707 = vmatprep.mubr.f32.mxu0 0.0
      %3708 = vmatmul.mubr.f32.gmra.mrb[0].mxu0 %v3590
      %v3709 = vpop.f32.mrb[0].mxu0
      %v3710 = vadd.f32 0.0, %v3709
      %v3711 = vpop.f32.mrb[0].mxu0
      %v3712 = vadd.f32 0.0, %v3711
      %3713 = vmatprep.mubr.f32.mxu0 0.0
      %3714 = vmatmul.mubr.f32.gmra.mrb[0].mxu0 %v3593
      %v3715 = vpop.f32.mrb[0].mxu0
      %v3716 = vadd.f32 0.0, %v3715
      %v3717 = vpop.f32.mrb[0].mxu0
      %v3718 = vadd.f32 0.0, %v3717
      %3719 = vmatprep.mubr.f32.mxu0 0.0
      %3720 = vmatmul.mubr.f32.gmra.mrb[0].mxu0 %v3596
      %v3721 = vpop.f32.mrb[0].mxu0
      %v3722 = vadd.f32 0.0, %v3721
      %v3723 = vpop.f32.mrb[0].mxu0
      %v3724 = vadd.f32 0.0, %v3723
      %3725 = vmatprep.mubr.f32.mxu0 0.0
      %3726 = vmatmul.mubr.f32.gmra.mrb[0].mxu0 %v3599
      %v3727 = vpop.f32.mrb[0].mxu0
      %v3728 = vadd.f32 0.0, %v3727
      %v3729 = vpop.f32.mrb[0].mxu0
      %v3730 = vadd.f32 0.0, %v3729
      %3731 = vmatprep.mubr.f32.mxu0 0.0
      %3732 = vmatmul.mubr.f32.gmra.mrb[0].mxu0 %v3602
      %v3733 = vpop.f32.mrb[0].mxu0
      %v3734 = vadd.f32 0.0, %v3733
      %v3735 = vpop.f32.mrb[0].mxu0
      %v3736 = vadd.f32 0.0, %v3735
      %3737 = vmatprep.mubr.f32.mxu0 0.0
      %3738 = vmatmul.mubr.f32.gmra.mrb[0].mxu0 %v3605
      %v3739 = vpop.f32.mrb[0].mxu0
      %v3740 = vadd.f32 0.0, %v3739
      %v3741 = vpop.f32.mrb[0].mxu0
      %v3742 = vadd.f32 0.0, %v3741
      %3743 = vdwg.mxu0
      %3744 = vmatprep.subr.mxu0 0.0
      %3745 = vmatpush1.msra.mxu0 %v3443
      %3746 = vmatprep.subr.mxu0 0.0
      %3747 = vmatpush1.msra.mxu0 %v3449
      %3748 = vmatprep.subr.mxu0 0.0
      %3749 = vmatpush1.msra.mxu0 %v3455
      %3750 = vmatprep.subr.mxu0 0.0
      %3751 = vmatpush1.msra.mxu0 %v3461
      %3752 = vmatprep.subr.mxu0 0.0
      %3753 = vmatpush1.msra.mxu0 %v3467
      %3754 = vmatprep.subr.mxu0 0.0
      %3755 = vmatpush1.msra.mxu0 %v3473
      %3756 = vmatprep.subr.mxu0 0.0
      %3757 = vmatpush1.msra.mxu0 %v3479
      %3758 = vmatprep.subr.mxu0 0.0
      %3759 = vmatpush1.msra.mxu0 %v3485
      %3760 = vmatprep.subr.mxu0 0.0
      %3761 = vmatpush1.msra.mxu0 %v3491
      %3762 = vmatprep.subr.mxu0 0.0
      %3763 = vmatpush1.msra.mxu0 %v3497
      %3764 = vmatprep.subr.mxu0 0.0
      %3765 = vmatpush1.msra.mxu0 %v3503
      %3766 = vmatprep.subr.mxu0 0.0
      %3767 = vmatpush1.msra.mxu0 %v3509
      %3768 = vmatprep.subr.mxu0 0.0
      %3769 = vmatpush1.msra.mxu0 0.0
      %3770 = vmatprep.subr.mxu0 0.0
      %3771 = vmatpush1.msra.mxu0 0.0
      %3772 = vmatprep.subr.mxu0 0.0
      %3773 = vmatpush1.msra.mxu0 0.0
      %3774 = vmatprep.subr.mxu0 0.0
      %3775 = vmatpush1.msra.mxu0 0.0
      %3776 = vmatprep.subr.mxu0 0.0
      %3777 = vmatpush1.msra.mxu0 0.0
      %3778 = vmatprep.subr.mxu0 0.0
      %3779 = vmatpush1.msra.mxu0 0.0
      %3780 = vmatprep.subr.mxu0 0.0
      %3781 = vmatpush1.msra.mxu0 0.0
      %3782 = vmatprep.subr.mxu0 0.0
      %3783 = vmatpush1.msra.mxu0 0.0
      %3784 = vmatprep.subr.mxu0 0.0
      %3785 = vmatpush1.msra.mxu0 0.0
      %3786 = vmatprep.subr.mxu0 0.0
      %3787 = vmatpush1.msra.mxu0 0.0
      %3788 = vmatprep.subr.mxu0 0.0
      %3789 = vmatpush1.msra.mxu0 0.0
      %3790 = vmatprep.subr.mxu0 0.0
      %3791 = vmatpush1.msra.mxu0 0.0
      %3792 = vmatprep.subr.mxu0 0.0
      %3793 = vmatpush1.msra.mxu0 0.0
      %3794 = vmatprep.subr.mxu0 0.0
      %3795 = vmatpush1.msra.mxu0 0.0
      %3796 = vmatprep.subr.mxu0 0.0
      %3797 = vmatpush1.msra.mxu0 0.0
      %3798 = vmatprep.subr.mxu0 0.0
      %3799 = vmatpush1.msra.mxu0 0.0
      %3800 = vmatprep.subr.mxu0 0.0
      %3801 = vmatpush1.msra.mxu0 0.0
      %3802 = vmatprep.subr.mxu0 0.0
      %3803 = vmatpush1.msra.mxu0 0.0
      %3804 = vmatprep.subr.mxu0 0.0
      %3805 = vmatpush1.msra.mxu0 0.0
      %3806 = vmatprep.subr.mxu0 0.0
      %3807 = vmatpush1.msra.mxu0 0.0
      %3808 = vmatprep.mubr.f32.mxu0 0.0
      %3809 = vmatmul.mubr.f32.gmra.mrb[0].mxu0 %v3572
      %v3810 = vpop.f32.mrb[0].mxu0
      %v3811 = vadd.f32 0.0, %v3810
      %v3812 = vpop.f32.mrb[0].mxu0
      %3813 = vmatprep.mubr.f32.mxu0 0.0
      %3814 = vmatmul.mubr.f32.gmra.mrb[0].mxu0 %v3575
      %v3815 = vpop.f32.mrb[0].mxu0
      %v3816 = vadd.f32 0.0, %v3815
      %v3817 = vpop.f32.mrb[0].mxu0
      %3818 = vmatprep.mubr.f32.mxu0 0.0
      %3819 = vmatmul.mubr.f32.gmra.mrb[0].mxu0 %v3578
      %v3820 = vpop.f32.mrb[0].mxu0
      %v3821 = vadd.f32 0.0, %v3820
      %v3822 = vpop.f32.mrb[0].mxu0
      %3823 = vmatprep.mubr.f32.mxu0 0.0
      %3824 = vmatmul.mubr.f32.gmra.mrb[0].mxu0 %v3581
      %v3825 = vpop.f32.mrb[0].mxu0
      %v3826 = vadd.f32 0.0, %v3825
      %v3827 = vpop.f32.mrb[0].mxu0
      %3828 = vmatprep.mubr.f32.mxu0 0.0
      %3829 = vmatmul.mubr.f32.gmra.mrb[0].mxu0 %v3584
      %v3830 = vpop.f32.mrb[0].mxu0
      %v3831 = vadd.f32 0.0, %v3830
      %v3832 = vpop.f32.mrb[0].mxu0
      %3833 = vmatprep.mubr.f32.mxu0 0.0
      %3834 = vmatmul.mubr.f32.gmra.mrb[0].mxu0 %v3587
      %v3835 = vpop.f32.mrb[0].mxu0
      %v3836 = vadd.f32 0.0, %v3835
      %v3837 = vpop.f32.mrb[0].mxu0
      %3838 = vmatprep.mubr.f32.mxu0 0.0
      %3839 = vmatmul.mubr.f32.gmra.mrb[0].mxu0 %v3590
      %v3840 = vpop.f32.mrb[0].mxu0
      %v3841 = vadd.f32 0.0, %v3840
      %v3842 = vpop.f32.mrb[0].mxu0
      %3843 = vmatprep.mubr.f32.mxu0 0.0
      %3844 = vmatmul.mubr.f32.gmra.mrb[0].mxu0 %v3593
      %v3845 = vpop.f32.mrb[0].mxu0
      %v3846 = vadd.f32 0.0, %v3845
      %v3847 = vpop.f32.mrb[0].mxu0
      %3848 = vmatprep.mubr.f32.mxu0 0.0
      %3849 = vmatmul.mubr.f32.gmra.mrb[0].mxu0 %v3596
      %v3850 = vpop.f32.mrb[0].mxu0
      %v3851 = vadd.f32 0.0, %v3850
      %v3852 = vpop.f32.mrb[0].mxu0
      %3853 = vmatprep.mubr.f32.mxu0 0.0
      %3854 = vmatmul.mubr.f32.gmra.mrb[0].mxu0 %v3599
      %v3855 = vpop.f32.mrb[0].mxu0
      %v3856 = vadd.f32 0.0, %v3855
      %v3857 = vpop.f32.mrb[0].mxu0
      %3858 = vmatprep.mubr.f32.mxu0 0.0
      %3859 = vmatmul.mubr.f32.gmra.mrb[0].mxu0 %v3602
      %v3860 = vpop.f32.mrb[0].mxu0
      %v3861 = vadd.f32 0.0, %v3860
      %v3862 = vpop.f32.mrb[0].mxu0
      %3863 = vmatprep.mubr.f32.mxu0 0.0
      %3864 = vmatmul.mubr.f32.gmra.mrb[0].mxu0 %v3605
      %v3865 = vpop.f32.mrb[0].mxu0
      %v3866 = vadd.f32 0.0, %v3865
      %v3867 = vpop.f32.mrb[0].mxu0
      %3868 = vdwg.mxu0
      %v3869 = vadd.f32 %v3389, %v3674
      %v3870 = vadd.f32 %v3390, %v3676
      %v3871 = vadd.f32 %v3391, %v3811
      %v3872 = vadd.f32 %v3392, %v3680
      %v3873 = vadd.f32 %v3393, %v3682
      %v3874 = vadd.f32 %v3394, %v3816
      %v3875 = vadd.f32 %v3395, %v3686
      %v3876 = vadd.f32 %v3396, %v3688
      %v3877 = vadd.f32 %v3397, %v3821
      %v3878 = vadd.f32 %v3398, %v3692
      %v3879 = vadd.f32 %v3399, %v3694
      %v3880 = vadd.f32 %v3400, %v3826
      %v3881 = vadd.f32 %v3401, %v3698
      %v3882 = vadd.f32 %v3402, %v3700
      %v3883 = vadd.f32 %v3403, %v3831
      %v3884 = vadd.f32 %v3404, %v3704
      %v3885 = vadd.f32 %v3405, %v3706
      %v3886 = vadd.f32 %v3406, %v3836
      %v3887 = vadd.f32 %v3407, %v3710
      %v3888 = vadd.f32 %v3408, %v3712
      %v3889 = vadd.f32 %v3409, %v3841
      %v3890 = vadd.f32 %v3410, %v3716
      %v3891 = vadd.f32 %v3411, %v3718
      %v3892 = vadd.f32 %v3412, %v3846
      %v3893 = vadd.f32 %v3413, %v3722
      %v3894 = vadd.f32 %v3414, %v3724
      %v3895 = vadd.f32 %v3415, %v3851
      %v3896 = vadd.f32 %v3416, %v3728
      %v3897 = vadd.f32 %v3417, %v3730
      %v3898 = vadd.f32 %v3418, %v3856
      %v3899 = vadd.f32 %v3419, %v3734
      %v3900 = vadd.f32 %v3420, %v3736
      %v3901 = vadd.f32 %v3421, %v3861
      %v3902 = vadd.f32 %v3422, %v3740
      %v3903 = vadd.f32 %v3423, %v3742
      %v3904 = vadd.f32 %v3424, %v3866
      %s3905 = scalar_lea.vmem %s1, 768
      %v3906 = vld [vmem:[%s3905] sm:$0xff]
      %v3907 = vld [vmem:[%s3905 + $0x8] sm:$0xff]
      %v3908 = vld [vmem:[%s3905 + $0x10] sm:$0xff]
      %v3909 = vld [vmem:[%s3905 + $0x18] sm:$0xff]
      %v3910 = vld [vmem:[%s3905 + $0x20] sm:$0xff]
      %v3911 = vld [vmem:[%s3905 + $0x28] sm:$0xff]
      %v3912 = vld [vmem:[%s3905 + $0x30] sm:$0xff]
      %v3913 = vld [vmem:[%s3905 + $0x38] sm:$0xff]
      %v3914 = vld [vmem:[%s3905 + $0x40] sm:$0xff]
      %v3915 = vld [vmem:[%s3905 + $0x48] sm:$0xff]
      %v3916 = vld [vmem:[%s3905 + $0x50] sm:$0xff]
      %v3917 = vld [vmem:[%s3905 + $0x58] sm:$0xff]
      %3918 = vrot.lane.b32.xlu0 %v198, 90
      %v3919 = vpop.permute.xlu0 %3918
      %3920 = vrot.lane.b32.xlu0 %v199, 90
      %v3921 = vpop.permute.xlu0 %3920
      %3922 = vrot.lane.b32.xlu0 %v200, 90
      %v3923 = vpop.permute.xlu0 %3922
      %3924 = vrot.lane.b32.xlu0 %v201, 90
      %v3925 = vpop.permute.xlu0 %3924
      %3926 = vrot.lane.b32.xlu0 %v202, 90
      %v3927 = vpop.permute.xlu0 %3926
      %3928 = vrot.lane.b32.xlu0 %v203, 90
      %v3929 = vpop.permute.xlu0 %3928
      %3930 = vrot.lane.b32.xlu0 %v204, 90
      %v3931 = vpop.permute.xlu0 %3930
      %3932 = vrot.lane.b32.xlu0 %v205, 90
      %v3933 = vpop.permute.xlu0 %3932
      %3934 = vrot.lane.b32.xlu0 %v206, 90
      %v3935 = vpop.permute.xlu0 %3934
      %3936 = vrot.lane.b32.xlu0 %v207, 90
      %v3937 = vpop.permute.xlu0 %3936
      %3938 = vrot.lane.b32.xlu0 %v208, 90
      %v3939 = vpop.permute.xlu0 %3938
      %3940 = vrot.lane.b32.xlu0 %v209, 90
      %v3941 = vpop.permute.xlu0 %3940
      %3942 = vrot.lane.b32.xlu0 %v210, 90
      %v3943 = vpop.permute.xlu0 %3942
      %3944 = vrot.lane.b32.xlu0 %v211, 90
      %v3945 = vpop.permute.xlu0 %3944
      %3946 = vrot.lane.b32.xlu0 %v212, 90
      %v3947 = vpop.permute.xlu0 %3946
      %3948 = vrot.lane.b32.xlu0 %v213, 90
      %v3949 = vpop.permute.xlu0 %3948
      %3950 = vrot.lane.b32.xlu0 %v214, 90
      %v3951 = vpop.permute.xlu0 %3950
      %3952 = vrot.lane.b32.xlu0 %v215, 90
      %v3953 = vpop.permute.xlu0 %3952
      %3954 = vrot.lane.b32.xlu0 %v216, 90
      %v3955 = vpop.permute.xlu0 %3954
      %3956 = vrot.lane.b32.xlu0 %v217, 90
      %v3957 = vpop.permute.xlu0 %3956
      %3958 = vrot.lane.b32.xlu0 %v218, 90
      %v3959 = vpop.permute.xlu0 %3958
      %3960 = vrot.lane.b32.xlu0 %v219, 90
      %v3961 = vpop.permute.xlu0 %3960
      %3962 = vrot.lane.b32.xlu0 %v220, 90
      %v3963 = vpop.permute.xlu0 %3962
      %3964 = vrot.lane.b32.xlu0 %v221, 90
      %v3965 = vpop.permute.xlu0 %3964
      %3966 = vrot.lane.b32.xlu0 %v222, 90
      %v3967 = vpop.permute.xlu0 %3966
      %3968 = vrot.lane.b32.xlu0 %v223, 90
      %v3969 = vpop.permute.xlu0 %3968
      %3970 = vrot.lane.b32.xlu0 %v224, 90
      %v3971 = vpop.permute.xlu0 %3970
      %3972 = vrot.lane.b32.xlu0 %v225, 90
      %v3973 = vpop.permute.xlu0 %3972
      %3974 = vrot.lane.b32.xlu0 %v226, 90
      %v3975 = vpop.permute.xlu0 %3974
      %3976 = vrot.lane.b32.xlu0 %v227, 90
      %v3977 = vpop.permute.xlu0 %3976
      %3978 = vrot.lane.b32.xlu0 %v228, 90
      %v3979 = vpop.permute.xlu0 %3978
      %3980 = vrot.lane.b32.xlu0 %v229, 90
      %v3981 = vpop.permute.xlu0 %3980
      %3982 = vrot.lane.b32.xlu0 %v230, 90
      %v3983 = vpop.permute.xlu0 %3982
      %3984 = vrot.lane.b32.xlu0 %v231, 90
      %v3985 = vpop.permute.xlu0 %3984
      %3986 = vrot.lane.b32.xlu0 %v232, 90
      %v3987 = vpop.permute.xlu0 %3986
      %3988 = vrot.lane.b32.xlu0 %v233, 90
      %v3989 = vpop.permute.xlu0 %3988
      %vm3990 = vcmask 736256
      %v3991 = vsel %vm3990, %v3919, %v3921
      %v3992 = vsel %vm3990, %v3921, %v3923
      %v3993 = vsel %vm3990, %v3925, %v3927
      %v3994 = vsel %vm3990, %v3927, %v3929
      %v3995 = vsel %vm3990, %v3931, %v3933
      %v3996 = vsel %vm3990, %v3933, %v3935
      %v3997 = vsel %vm3990, %v3937, %v3939
      %v3998 = vsel %vm3990, %v3939, %v3941
      %v3999 = vsel %vm3990, %v3943, %v3945
      %v4000 = vsel %vm3990, %v3945, %v3947
      %v4001 = vsel %vm3990, %v3949, %v3951
      %v4002 = vsel %vm3990, %v3951, %v3953
      %v4003 = vsel %vm3990, %v3955, %v3957
      %v4004 = vsel %vm3990, %v3957, %v3959
      %v4005 = vsel %vm3990, %v3961, %v3963
      %v4006 = vsel %vm3990, %v3963, %v3965
      %v4007 = vsel %vm3990, %v3967, %v3969
      %v4008 = vsel %vm3990, %v3969, %v3971
      %v4009 = vsel %vm3990, %v3973, %v3975
      %v4010 = vsel %vm3990, %v3975, %v3977
      %v4011 = vsel %vm3990, %v3979, %v3981
      %v4012 = vsel %vm3990, %v3981, %v3983
      %v4013 = vsel %vm3990, %v3985, %v3987
      %v4014 = vsel %vm3990, %v3987, %v3989
      %v4052 = vsel %vm428, %v3906, 0
      %v4055 = vsel %vm428, %v3907, 0
      %v4058 = vsel %vm428, %v3908, 0
      %v4061 = vsel %vm428, %v3909, 0
      %v4064 = vsel %vm428, %v3910, 0
      %v4067 = vsel %vm428, %v3911, 0
      %v4070 = vsel %vm428, %v3912, 0
      %v4073 = vsel %vm428, %v3913, 0
      %v4076 = vsel %vm428, %v3914, 0
      %v4079 = vsel %vm428, %v3915, 0
      %v4082 = vsel %vm428, %v3916, 0
      %v4085 = vsel %vm428, %v3917, 0
      %4087 = vmatprep.subr.mxu0 %v3992
      %4088 = vmatpush1.msra.mxu0 %v3991
      %4089 = vmatprep.subr.mxu0 %v3994
      %4090 = vmatpush1.msra.mxu0 %v3993
      %4091 = vmatprep.subr.mxu0 %v3996
      %4092 = vmatpush1.msra.mxu0 %v3995
      %4093 = vmatprep.subr.mxu0 %v3998
      %4094 = vmatpush1.msra.mxu0 %v3997
      %4095 = vmatprep.subr.mxu0 %v4000
      %4096 = vmatpush1.msra.mxu0 %v3999
      %4097 = vmatprep.subr.mxu0 %v4002
      %4098 = vmatpush1.msra.mxu0 %v4001
      %4099 = vmatprep.subr.mxu0 %v4004
      %4100 = vmatpush1.msra.mxu0 %v4003
      %4101 = vmatprep.subr.mxu0 %v4006
      %4102 = vmatpush1.msra.mxu0 %v4005
      %4103 = vmatprep.subr.mxu0 %v4008
      %4104 = vmatpush1.msra.mxu0 %v4007
      %4105 = vmatprep.subr.mxu0 %v4010
      %4106 = vmatpush1.msra.mxu0 %v4009
      %4107 = vmatprep.subr.mxu0 %v4012
      %4108 = vmatpush1.msra.mxu0 %v4011
      %4109 = vmatprep.subr.mxu0 %v4014
      %4110 = vmatpush1.msra.mxu0 %v4013
      %4111 = vmatprep.subr.mxu0 0.0
      %4112 = vmatpush1.msra.mxu0 0.0
      %4113 = vmatprep.subr.mxu0 0.0
      %4114 = vmatpush1.msra.mxu0 0.0
      %4115 = vmatprep.subr.mxu0 0.0
      %4116 = vmatpush1.msra.mxu0 0.0
      %4117 = vmatprep.subr.mxu0 0.0
      %4118 = vmatpush1.msra.mxu0 0.0
      %4119 = vmatprep.subr.mxu0 0.0
      %4120 = vmatpush1.msra.mxu0 0.0
      %4121 = vmatprep.subr.mxu0 0.0
      %4122 = vmatpush1.msra.mxu0 0.0
      %4123 = vmatprep.subr.mxu0 0.0
      %4124 = vmatpush1.msra.mxu0 0.0
      %4125 = vmatprep.subr.mxu0 0.0
      %4126 = vmatpush1.msra.mxu0 0.0
      %4127 = vmatprep.subr.mxu0 0.0
      %4128 = vmatpush1.msra.mxu0 0.0
      %4129 = vmatprep.subr.mxu0 0.0
      %4130 = vmatpush1.msra.mxu0 0.0
      %4131 = vmatprep.subr.mxu0 0.0
      %4132 = vmatpush1.msra.mxu0 0.0
      %4133 = vmatprep.subr.mxu0 0.0
      %4134 = vmatpush1.msra.mxu0 0.0
      %4135 = vmatprep.subr.mxu0 0.0
      %4136 = vmatpush1.msra.mxu0 0.0
      %4137 = vmatprep.subr.mxu0 0.0
      %4138 = vmatpush1.msra.mxu0 0.0
      %4139 = vmatprep.subr.mxu0 0.0
      %4140 = vmatpush1.msra.mxu0 0.0
      %4141 = vmatprep.subr.mxu0 0.0
      %4142 = vmatpush1.msra.mxu0 0.0
      %4143 = vmatprep.subr.mxu0 0.0
      %4144 = vmatpush1.msra.mxu0 0.0
      %4145 = vmatprep.subr.mxu0 0.0
      %4146 = vmatpush1.msra.mxu0 0.0
      %4147 = vmatprep.subr.mxu0 0.0
      %4148 = vmatpush1.msra.mxu0 0.0
      %4149 = vmatprep.subr.mxu0 0.0
      %4150 = vmatpush1.msra.mxu0 0.0
      %4151 = vmatprep.mubr.f32.mxu0 0.0
      %4152 = vmatmul.mubr.f32.gmra.mrb[0].mxu0 %v4052
      %v4153 = vpop.f32.mrb[0].mxu0
      %v4154 = vadd.f32 0.0, %v4153
      %v4155 = vpop.f32.mrb[0].mxu0
      %v4156 = vadd.f32 0.0, %v4155
      %4157 = vmatprep.mubr.f32.mxu0 0.0
      %4158 = vmatmul.mubr.f32.gmra.mrb[0].mxu0 %v4055
      %v4159 = vpop.f32.mrb[0].mxu0
      %v4160 = vadd.f32 0.0, %v4159
      %v4161 = vpop.f32.mrb[0].mxu0
      %v4162 = vadd.f32 0.0, %v4161
      %4163 = vmatprep.mubr.f32.mxu0 0.0
      %4164 = vmatmul.mubr.f32.gmra.mrb[0].mxu0 %v4058
      %v4165 = vpop.f32.mrb[0].mxu0
      %v4166 = vadd.f32 0.0, %v4165
      %v4167 = vpop.f32.mrb[0].mxu0
      %v4168 = vadd.f32 0.0, %v4167
      %4169 = vmatprep.mubr.f32.mxu0 0.0
      %4170 = vmatmul.mubr.f32.gmra.mrb[0].mxu0 %v4061
      %v4171 = vpop.f32.mrb[0].mxu0
      %v4172 = vadd.f32 0.0, %v4171
      %v4173 = vpop.f32.mrb[0].mxu0
      %v4174 = vadd.f32 0.0, %v4173
      %4175 = vmatprep.mubr.f32.mxu0 0.0
      %4176 = vmatmul.mubr.f32.gmra.mrb[0].mxu0 %v4064
      %v4177 = vpop.f32.mrb[0].mxu0
      %v4178 = vadd.f32 0.0, %v4177
      %v4179 = vpop.f32.mrb[0].mxu0
      %v4180 = vadd.f32 0.0, %v4179
      %4181 = vmatprep.mubr.f32.mxu0 0.0
      %4182 = vmatmul.mubr.f32.gmra.mrb[0].mxu0 %v4067
      %v4183 = vpop.f32.mrb[0].mxu0
      %v4184 = vadd.f32 0.0, %v4183
      %v4185 = vpop.f32.mrb[0].mxu0
      %v4186 = vadd.f32 0.0, %v4185
      %4187 = vmatprep.mubr.f32.mxu0 0.0
      %4188 = vmatmul.mubr.f32.gmra.mrb[0].mxu0 %v4070
      %v4189 = vpop.f32.mrb[0].mxu0
      %v4190 = vadd.f32 0.0, %v4189
      %v4191 = vpop.f32.mrb[0].mxu0
      %v4192 = vadd.f32 0.0, %v4191
      %4193 = vmatprep.mubr.f32.mxu0 0.0
      %4194 = vmatmul.mubr.f32.gmra.mrb[0].mxu0 %v4073
      %v4195 = vpop.f32.mrb[0].mxu0
      %v4196 = vadd.f32 0.0, %v4195
      %v4197 = vpop.f32.mrb[0].mxu0
      %v4198 = vadd.f32 0.0, %v4197
      %4199 = vmatprep.mubr.f32.mxu0 0.0
      %4200 = vmatmul.mubr.f32.gmra.mrb[0].mxu0 %v4076
      %v4201 = vpop.f32.mrb[0].mxu0
      %v4202 = vadd.f32 0.0, %v4201
      %v4203 = vpop.f32.mrb[0].mxu0
      %v4204 = vadd.f32 0.0, %v4203
      %4205 = vmatprep.mubr.f32.mxu0 0.0
      %4206 = vmatmul.mubr.f32.gmra.mrb[0].mxu0 %v4079
      %v4207 = vpop.f32.mrb[0].mxu0
      %v4208 = vadd.f32 0.0, %v4207
      %v4209 = vpop.f32.mrb[0].mxu0
      %v4210 = vadd.f32 0.0, %v4209
      %4211 = vmatprep.mubr.f32.mxu0 0.0
      %4212 = vmatmul.mubr.f32.gmra.mrb[0].mxu0 %v4082
      %v4213 = vpop.f32.mrb[0].mxu0
      %v4214 = vadd.f32 0.0, %v4213
      %v4215 = vpop.f32.mrb[0].mxu0
      %v4216 = vadd.f32 0.0, %v4215
      %4217 = vmatprep.mubr.f32.mxu0 0.0
      %4218 = vmatmul.mubr.f32.gmra.mrb[0].mxu0 %v4085
      %v4219 = vpop.f32.mrb[0].mxu0
      %v4220 = vadd.f32 0.0, %v4219
      %v4221 = vpop.f32.mrb[0].mxu0
      %v4222 = vadd.f32 0.0, %v4221
      %4223 = vdwg.mxu0
      %4224 = vmatprep.subr.mxu0 0.0
      %4225 = vmatpush1.msra.mxu0 %v3923
      %4226 = vmatprep.subr.mxu0 0.0
      %4227 = vmatpush1.msra.mxu0 %v3929
      %4228 = vmatprep.subr.mxu0 0.0
      %4229 = vmatpush1.msra.mxu0 %v3935
      %4230 = vmatprep.subr.mxu0 0.0
      %4231 = vmatpush1.msra.mxu0 %v3941
      %4232 = vmatprep.subr.mxu0 0.0
      %4233 = vmatpush1.msra.mxu0 %v3947
      %4234 = vmatprep.subr.mxu0 0.0
      %4235 = vmatpush1.msra.mxu0 %v3953
      %4236 = vmatprep.subr.mxu0 0.0
      %4237 = vmatpush1.msra.mxu0 %v3959
      %4238 = vmatprep.subr.mxu0 0.0
      %4239 = vmatpush1.msra.mxu0 %v3965
      %4240 = vmatprep.subr.mxu0 0.0
      %4241 = vmatpush1.msra.mxu0 %v3971
      %4242 = vmatprep.subr.mxu0 0.0
      %4243 = vmatpush1.msra.mxu0 %v3977
      %4244 = vmatprep.subr.mxu0 0.0
      %4245 = vmatpush1.msra.mxu0 %v3983
      %4246 = vmatprep.subr.mxu0 0.0
      %4247 = vmatpush1.msra.mxu0 %v3989
      %4248 = vmatprep.subr.mxu0 0.0
      %4249 = vmatpush1.msra.mxu0 0.0
      %4250 = vmatprep.subr.mxu0 0.0
      %4251 = vmatpush1.msra.mxu0 0.0
      %4252 = vmatprep.subr.mxu0 0.0
      %4253 = vmatpush1.msra.mxu0 0.0
      %4254 = vmatprep.subr.mxu0 0.0
      %4255 = vmatpush1.msra.mxu0 0.0
      %4256 = vmatprep.subr.mxu0 0.0
      %4257 = vmatpush1.msra.mxu0 0.0
      %4258 = vmatprep.subr.mxu0 0.0
      %4259 = vmatpush1.msra.mxu0 0.0
      %4260 = vmatprep.subr.mxu0 0.0
      %4261 = vmatpush1.msra.mxu0 0.0
      %4262 = vmatprep.subr.mxu0 0.0
      %4263 = vmatpush1.msra.mxu0 0.0
      %4264 = vmatprep.subr.mxu0 0.0
      %4265 = vmatpush1.msra.mxu0 0.0
      %4266 = vmatprep.subr.mxu0 0.0
      %4267 = vmatpush1.msra.mxu0 0.0
      %4268 = vmatprep.subr.mxu0 0.0
      %4269 = vmatpush1.msra.mxu0 0.0
      %4270 = vmatprep.subr.mxu0 0.0
      %4271 = vmatpush1.msra.mxu0 0.0
      %4272 = vmatprep.subr.mxu0 0.0
      %4273 = vmatpush1.msra.mxu0 0.0
      %4274 = vmatprep.subr.mxu0 0.0
      %4275 = vmatpush1.msra.mxu0 0.0
      %4276 = vmatprep.subr.mxu0 0.0
      %4277 = vmatpush1.msra.mxu0 0.0
      %4278 = vmatprep.subr.mxu0 0.0
      %4279 = vmatpush1.msra.mxu0 0.0
      %4280 = vmatprep.subr.mxu0 0.0
      %4281 = vmatpush1.msra.mxu0 0.0
      %4282 = vmatprep.subr.mxu0 0.0
      %4283 = vmatpush1.msra.mxu0 0.0
      %4284 = vmatprep.subr.mxu0 0.0
      %4285 = vmatpush1.msra.mxu0 0.0
      %4286 = vmatprep.subr.mxu0 0.0
      %4287 = vmatpush1.msra.mxu0 0.0
      %4288 = vmatprep.mubr.f32.mxu0 0.0
      %4289 = vmatmul.mubr.f32.gmra.mrb[0].mxu0 %v4052
      %v4290 = vpop.f32.mrb[0].mxu0
      %v4291 = vadd.f32 0.0, %v4290
      %v4292 = vpop.f32.mrb[0].mxu0
      %4293 = vmatprep.mubr.f32.mxu0 0.0
      %4294 = vmatmul.mubr.f32.gmra.mrb[0].mxu0 %v4055
      %v4295 = vpop.f32.mrb[0].mxu0
      %v4296 = vadd.f32 0.0, %v4295
      %v4297 = vpop.f32.mrb[0].mxu0
      %4298 = vmatprep.mubr.f32.mxu0 0.0
      %4299 = vmatmul.mubr.f32.gmra.mrb[0].mxu0 %v4058
      %v4300 = vpop.f32.mrb[0].mxu0
      %v4301 = vadd.f32 0.0, %v4300
      %v4302 = vpop.f32.mrb[0].mxu0
      %4303 = vmatprep.mubr.f32.mxu0 0.0
      %4304 = vmatmul.mubr.f32.gmra.mrb[0].mxu0 %v4061
      %v4305 = vpop.f32.mrb[0].mxu0
      %v4306 = vadd.f32 0.0, %v4305
      %v4307 = vpop.f32.mrb[0].mxu0
      %4308 = vmatprep.mubr.f32.mxu0 0.0
      %4309 = vmatmul.mubr.f32.gmra.mrb[0].mxu0 %v4064
      %v4310 = vpop.f32.mrb[0].mxu0
      %v4311 = vadd.f32 0.0, %v4310
      %v4312 = vpop.f32.mrb[0].mxu0
      %4313 = vmatprep.mubr.f32.mxu0 0.0
      %4314 = vmatmul.mubr.f32.gmra.mrb[0].mxu0 %v4067
      %v4315 = vpop.f32.mrb[0].mxu0
      %v4316 = vadd.f32 0.0, %v4315
      %v4317 = vpop.f32.mrb[0].mxu0
      %4318 = vmatprep.mubr.f32.mxu0 0.0
      %4319 = vmatmul.mubr.f32.gmra.mrb[0].mxu0 %v4070
      %v4320 = vpop.f32.mrb[0].mxu0
      %v4321 = vadd.f32 0.0, %v4320
      %v4322 = vpop.f32.mrb[0].mxu0
      %4323 = vmatprep.mubr.f32.mxu0 0.0
      %4324 = vmatmul.mubr.f32.gmra.mrb[0].mxu0 %v4073
      %v4325 = vpop.f32.mrb[0].mxu0
      %v4326 = vadd.f32 0.0, %v4325
      %v4327 = vpop.f32.mrb[0].mxu0
      %4328 = vmatprep.mubr.f32.mxu0 0.0
      %4329 = vmatmul.mubr.f32.gmra.mrb[0].mxu0 %v4076
      %v4330 = vpop.f32.mrb[0].mxu0
      %v4331 = vadd.f32 0.0, %v4330
      %v4332 = vpop.f32.mrb[0].mxu0
      %4333 = vmatprep.mubr.f32.mxu0 0.0
      %4334 = vmatmul.mubr.f32.gmra.mrb[0].mxu0 %v4079
      %v4335 = vpop.f32.mrb[0].mxu0
      %v4336 = vadd.f32 0.0, %v4335
      %v4337 = vpop.f32.mrb[0].mxu0
      %4338 = vmatprep.mubr.f32.mxu0 0.0
      %4339 = vmatmul.mubr.f32.gmra.mrb[0].mxu0 %v4082
      %v4340 = vpop.f32.mrb[0].mxu0
      %v4341 = vadd.f32 0.0, %v4340
      %v4342 = vpop.f32.mrb[0].mxu0
      %4343 = vmatprep.mubr.f32.mxu0 0.0
      %4344 = vmatmul.mubr.f32.gmra.mrb[0].mxu0 %v4085
      %v4345 = vpop.f32.mrb[0].mxu0
      %v4346 = vadd.f32 0.0, %v4345
      %v4347 = vpop.f32.mrb[0].mxu0
      %4348 = vdwg.mxu0
      %v4349 = vadd.f32 %v3869, %v4154
      %v4350 = vadd.f32 %v3870, %v4156
      %v4351 = vadd.f32 %v3871, %v4291
      %v4352 = vadd.f32 %v3872, %v4160
      %v4353 = vadd.f32 %v3873, %v4162
      %v4354 = vadd.f32 %v3874, %v4296
      %v4355 = vadd.f32 %v3875, %v4166
      %v4356 = vadd.f32 %v3876, %v4168
      %v4357 = vadd.f32 %v3877, %v4301
      %v4358 = vadd.f32 %v3878, %v4172
      %v4359 = vadd.f32 %v3879, %v4174
      %v4360 = vadd.f32 %v3880, %v4306
      %v4361 = vadd.f32 %v3881, %v4178
      %v4362 = vadd.f32 %v3882, %v4180
      %v4363 = vadd.f32 %v3883, %v4311
      %v4364 = vadd.f32 %v3884, %v4184
      %v4365 = vadd.f32 %v3885, %v4186
      %v4366 = vadd.f32 %v3886, %v4316
      %v4367 = vadd.f32 %v3887, %v4190
      %v4368 = vadd.f32 %v3888, %v4192
      %v4369 = vadd.f32 %v3889, %v4321
      %v4370 = vadd.f32 %v3890, %v4196
      %v4371 = vadd.f32 %v3891, %v4198
      %v4372 = vadd.f32 %v3892, %v4326
      %v4373 = vadd.f32 %v3893, %v4202
      %v4374 = vadd.f32 %v3894, %v4204
      %v4375 = vadd.f32 %v3895, %v4331
      %v4376 = vadd.f32 %v3896, %v4208
      %v4377 = vadd.f32 %v3897, %v4210
      %v4378 = vadd.f32 %v3898, %v4336
      %v4379 = vadd.f32 %v3899, %v4214
      %v4380 = vadd.f32 %v3900, %v4216
      %v4381 = vadd.f32 %v3901, %v4341
      %v4382 = vadd.f32 %v3902, %v4220
      %v4383 = vadd.f32 %v3903, %v4222
      %v4384 = vadd.f32 %v3904, %v4346
      %v4385 = vld [vmem:[%s2] sm:$0xff]
      %v4386 = vld [vmem:[%s2 + $0x8] sm:$0xff]
      %v4387 = vld [vmem:[%s2 + $0x10] sm:$0xff]
      %v4388 = vld [vmem:[%s2 + $0x18] sm:$0xff]
      %v4389 = vld [vmem:[%s2 + $0x20] sm:$0xff]
      %v4390 = vld [vmem:[%s2 + $0x28] sm:$0xff]
      %v4391 = vld [vmem:[%s2 + $0x30] sm:$0xff]
      %v4392 = vld [vmem:[%s2 + $0x38] sm:$0xff]
      %v4393 = vld [vmem:[%s2 + $0x40] sm:$0xff]
      %v4394 = vld [vmem:[%s2 + $0x48] sm:$0xff]
      %v4395 = vld [vmem:[%s2 + $0x50] sm:$0xff]
      %v4396 = vld [vmem:[%s2 + $0x58] sm:$0xff]
      %4398 = vset.pattern.permute.xlu0 0
      %4399 = vperm.xlu0 %4398, %v4385
      %v4400 = vpop.permute.xlu0 %4399
      %4403 = vset.pattern.permute.xlu0 0
      %4404 = vperm.xlu0 %4403, %v4386
      %v4405 = vpop.permute.xlu0 %4404
      %4408 = vset.pattern.permute.xlu0 0
      %4409 = vperm.xlu0 %4408, %v4387
      %v4410 = vpop.permute.xlu0 %4409
      %4413 = vset.pattern.permute.xlu0 0
      %4414 = vperm.xlu0 %4413, %v4388
      %v4415 = vpop.permute.xlu0 %4414
      %4418 = vset.pattern.permute.xlu0 0
      %4419 = vperm.xlu0 %4418, %v4389
      %v4420 = vpop.permute.xlu0 %4419
      %4423 = vset.pattern.permute.xlu0 0
      %4424 = vperm.xlu0 %4423, %v4390
      %v4425 = vpop.permute.xlu0 %4424
      %4428 = vset.pattern.permute.xlu0 0
      %4429 = vperm.xlu0 %4428, %v4391
      %v4430 = vpop.permute.xlu0 %4429
      %4433 = vset.pattern.permute.xlu0 0
      %4434 = vperm.xlu0 %4433, %v4392
      %v4435 = vpop.permute.xlu0 %4434
      %4438 = vset.pattern.permute.xlu0 0
      %4439 = vperm.xlu0 %4438, %v4393
      %v4440 = vpop.permute.xlu0 %4439
      %4443 = vset.pattern.permute.xlu0 0
      %4444 = vperm.xlu0 %4443, %v4394
      %v4445 = vpop.permute.xlu0 %4444
      %4448 = vset.pattern.permute.xlu0 0
      %4449 = vperm.xlu0 %4448, %v4395
      %v4450 = vpop.permute.xlu0 %4449
      %4453 = vset.pattern.permute.xlu0 0
      %4454 = vperm.xlu0 %4453, %v4396
      %v4455 = vpop.permute.xlu0 %4454
      %v4457 = vadd.f32 %v4349, %v4400
      %v4458 = vadd.f32 %v4350, %v4400
      %v4459 = vadd.f32 %v4351, %v4400
      %v4460 = vadd.f32 %v4352, %v4405
      %v4461 = vadd.f32 %v4353, %v4405
      %v4462 = vadd.f32 %v4354, %v4405
      %v4463 = vadd.f32 %v4355, %v4410
      %v4464 = vadd.f32 %v4356, %v4410
      %v4465 = vadd.f32 %v4357, %v4410
      %v4466 = vadd.f32 %v4358, %v4415
      %v4467 = vadd.f32 %v4359, %v4415
      %v4468 = vadd.f32 %v4360, %v4415
      %v4469 = vadd.f32 %v4361, %v4420
      %v4470 = vadd.f32 %v4362, %v4420
      %v4471 = vadd.f32 %v4363, %v4420
      %v4472 = vadd.f32 %v4364, %v4425
      %v4473 = vadd.f32 %v4365, %v4425
      %v4474 = vadd.f32 %v4366, %v4425
      %v4475 = vadd.f32 %v4367, %v4430
      %v4476 = vadd.f32 %v4368, %v4430
      %v4477 = vadd.f32 %v4369, %v4430
      %v4478 = vadd.f32 %v4370, %v4435
      %v4479 = vadd.f32 %v4371, %v4435
      %v4480 = vadd.f32 %v4372, %v4435
      %v4481 = vadd.f32 %v4373, %v4440
      %v4482 = vadd.f32 %v4374, %v4440
      %v4483 = vadd.f32 %v4375, %v4440
      %v4484 = vadd.f32 %v4376, %v4445
      %v4485 = vadd.f32 %v4377, %v4445
      %v4486 = vadd.f32 %v4378, %v4445
      %v4487 = vadd.f32 %v4379, %v4450
      %v4488 = vadd.f32 %v4380, %v4450
      %v4489 = vadd.f32 %v4381, %v4450
      %v4490 = vadd.f32 %v4382, %v4455
      %v4491 = vadd.f32 %v4383, %v4455
      %v4492 = vadd.f32 %v4384, %v4455
      %v4493 = vmax.f32 %v4457, 0.0
      %v4494 = vmax.f32 %v4458, 0.0
      %v4495 = vmax.f32 %v4459, 0.0
      %v4496 = vmax.f32 %v4460, 0.0
      %v4497 = vmax.f32 %v4461, 0.0
      %v4498 = vmax.f32 %v4462, 0.0
      %v4499 = vmax.f32 %v4463, 0.0
      %v4500 = vmax.f32 %v4464, 0.0
      %v4501 = vmax.f32 %v4465, 0.0
      %v4502 = vmax.f32 %v4466, 0.0
      %v4503 = vmax.f32 %v4467, 0.0
      %v4504 = vmax.f32 %v4468, 0.0
      %v4505 = vmax.f32 %v4469, 0.0
      %v4506 = vmax.f32 %v4470, 0.0
      %v4507 = vmax.f32 %v4471, 0.0
      %v4508 = vmax.f32 %v4472, 0.0
      %v4509 = vmax.f32 %v4473, 0.0
      %v4510 = vmax.f32 %v4474, 0.0
      %v4511 = vmax.f32 %v4475, 0.0
      %v4512 = vmax.f32 %v4476, 0.0
      %v4513 = vmax.f32 %v4477, 0.0
      %v4514 = vmax.f32 %v4478, 0.0
      %v4515 = vmax.f32 %v4479, 0.0
      %v4516 = vmax.f32 %v4480, 0.0
      %v4517 = vmax.f32 %v4481, 0.0
      %v4518 = vmax.f32 %v4482, 0.0
      %v4519 = vmax.f32 %v4483, 0.0
      %v4520 = vmax.f32 %v4484, 0.0
      %v4521 = vmax.f32 %v4485, 0.0
      %v4522 = vmax.f32 %v4486, 0.0
      %v4523 = vmax.f32 %v4487, 0.0
      %v4524 = vmax.f32 %v4488, 0.0
      %v4525 = vmax.f32 %v4489, 0.0
      %v4526 = vmax.f32 %v4490, 0.0
      %v4527 = vmax.f32 %v4491, 0.0
      %v4528 = vmax.f32 %v4492, 0.0
      %v4529 = vld [vmem:[%s3] sm:$0x7]
      %v4531 = vlaneseq
      %v4532 = vshrl.u32 %v4531, 7
      %v4533 = vsub.s32 0, %v4532
      %v4534 = vrot.slane %v4529, %v4533
      %v4535 = vlaneseq
      %v4536 = vshrl.u32 %v4535, 7
      %v4537 = vsub.s32 1, %v4536
      %v4538 = vrot.slane %v4529, %v4537
      %v4539 = vlaneseq
      %v4540 = vshrl.u32 %v4539, 7
      %v4541 = vsub.s32 2, %v4540
      %v4542 = vrot.slane %v4529, %v4541
      %v4546 = vmul.f32 %v4493, %v4534
      %v4547 = vmul.f32 %v4494, %v4538
      %v4548 = vmul.f32 %v4495, %v4542
      %v4549 = vmul.f32 %v4496, %v4534
      %v4550 = vmul.f32 %v4497, %v4538
      %v4551 = vmul.f32 %v4498, %v4542
      %v4552 = vmul.f32 %v4499, %v4534
      %v4553 = vmul.f32 %v4500, %v4538
      %v4554 = vmul.f32 %v4501, %v4542
      %v4555 = vmul.f32 %v4502, %v4534
      %v4556 = vmul.f32 %v4503, %v4538
      %v4557 = vmul.f32 %v4504, %v4542
      %v4558 = vmul.f32 %v4505, %v4534
      %v4559 = vmul.f32 %v4506, %v4538
      %v4560 = vmul.f32 %v4507, %v4542
      %v4561 = vmul.f32 %v4508, %v4534
      %v4562 = vmul.f32 %v4509, %v4538
      %v4563 = vmul.f32 %v4510, %v4542
      %v4564 = vmul.f32 %v4511, %v4534
      %v4565 = vmul.f32 %v4512, %v4538
      %v4566 = vmul.f32 %v4513, %v4542
      %v4567 = vmul.f32 %v4514, %v4534
      %v4568 = vmul.f32 %v4515, %v4538
      %v4569 = vmul.f32 %v4516, %v4542
      %v4570 = vmul.f32 %v4517, %v4534
      %v4571 = vmul.f32 %v4518, %v4538
      %v4572 = vmul.f32 %v4519, %v4542
      %v4573 = vmul.f32 %v4520, %v4534
      %v4574 = vmul.f32 %v4521, %v4538
      %v4575 = vmul.f32 %v4522, %v4542
      %v4576 = vmul.f32 %v4523, %v4534
      %v4577 = vmul.f32 %v4524, %v4538
      %v4578 = vmul.f32 %v4525, %v4542
      %v4579 = vmul.f32 %v4526, %v4534
      %v4580 = vmul.f32 %v4527, %v4538
      %v4581 = vmul.f32 %v4528, %v4542
      %4582 = vst [vmem:[%s197] sm:$0xff] %v4546
      %4583 = vst [vmem:[%s197 + $0x8] sm:$0xff] %v4547
      %vm4584 = vcmask 556032
      %4585 = vst.msk [vmem:[%s197 + $0x10] sm:$0xff] %vm4584, %v4548
      %4586 = vst [vmem:[%s197 + $0x18] sm:$0xff] %v4549
      %4587 = vst [vmem:[%s197 + $0x20] sm:$0xff] %v4550
      %4588 = vst.msk [vmem:[%s197 + $0x28] sm:$0xff] %vm4584, %v4551
      %4589 = vst [vmem:[%s197 + $0x30] sm:$0xff] %v4552
      %4590 = vst [vmem:[%s197 + $0x38] sm:$0xff] %v4553
      %4591 = vst.msk [vmem:[%s197 + $0x40] sm:$0xff] %vm4584, %v4554
      %4592 = vst [vmem:[%s197 + $0x48] sm:$0xff] %v4555
      %4593 = vst [vmem:[%s197 + $0x50] sm:$0xff] %v4556
      %4594 = vst.msk [vmem:[%s197 + $0x58] sm:$0xff] %vm4584, %v4557
      %4595 = vst [vmem:[%s197 + $0x60] sm:$0xff] %v4558
      %4596 = vst [vmem:[%s197 + $0x68] sm:$0xff] %v4559
      %4597 = vst.msk [vmem:[%s197 + $0x70] sm:$0xff] %vm4584, %v4560
      %4598 = vst [vmem:[%s197 + $0x78] sm:$0xff] %v4561
      %4599 = vst [vmem:[%s197 + $0x80] sm:$0xff] %v4562
      %4600 = vst.msk [vmem:[%s197 + $0x88] sm:$0xff] %vm4584, %v4563
      %4601 = vst [vmem:[%s197 + $0x90] sm:$0xff] %v4564
      %4602 = vst [vmem:[%s197 + $0x98] sm:$0xff] %v4565
      %4603 = vst.msk [vmem:[%s197 + $0xa0] sm:$0xff] %vm4584, %v4566
      %4604 = vst [vmem:[%s197 + $0xa8] sm:$0xff] %v4567
      %4605 = vst [vmem:[%s197 + $0xb0] sm:$0xff] %v4568
      %4606 = vst.msk [vmem:[%s197 + $0xb8] sm:$0xff] %vm4584, %v4569
      %4607 = vst [vmem:[%s197 + $0xc0] sm:$0xff] %v4570
      %4608 = vst [vmem:[%s197 + $0xc8] sm:$0xff] %v4571
      %4609 = vst.msk [vmem:[%s197 + $0xd0] sm:$0xff] %vm4584, %v4572
      %4610 = vst [vmem:[%s197 + $0xd8] sm:$0xff] %v4573
      %4611 = vst [vmem:[%s197 + $0xe0] sm:$0xff] %v4574
      %4612 = vst.msk [vmem:[%s197 + $0xe8] sm:$0xff] %vm4584, %v4575
      %4613 = vst [vmem:[%s197 + $0xf0] sm:$0xff] %v4576
      %4614 = vst [vmem:[%s197 + $0xf8] sm:$0xff] %v4577
      %4615 = vst.msk [vmem:[%s197 + $0x100] sm:$0xff] %vm4584, %v4578
      %4616 = vst [vmem:[%s197 + $0x108] sm:$0xff] %v4579
      %4617 = vst [vmem:[%s197 + $0x110] sm:$0xff] %v4580
      %4618 = vst.msk [vmem:[%s197 + $0x118] sm:$0xff] %vm4584, %v4581
      %p4619 = scmp.lt.s32.totalorder %s15, 1
      %s4620 = scalar_select %p4619, %s15, 1
      %s4621 = smul.addr %s4620, 36
      %s4622 = smul.addr %s4621, 8
      %s4623 = scalar_lea.vmem %s4, %s4622
      // Predicated region
      $region37: #{decoder_block_forward.4} parent=35 // pred_check
        %p4624 = pneg %p122
      $region38: #{decoder_block_forward.4} parent=35 // pred_check_branch
        %4626 = sbr.rel (%p4624) target = $region40
      $region39: #{decoder_block_forward.4} parent=35 // pred_region
        _
      $region40: #{decoder_block_forward.4} parent=35 // pred_fallthru
        _
    $region36: #{decoder_block_forward.4} parent=5 // pred_fallthru
      _
    %p4627 = scmp.le.s32.totalorder 2, %s10
    // Predicated region
    $region41: #{decoder_block_forward.4} parent=5 // pred_check
      %p4628 = pneg %p4627
    $region42: #{decoder_block_forward.4} parent=5 // pred_check_branch
      %4630 = sbr.rel (%p4628) target = $region44
    $region43: #{decoder_block_forward.4} parent=5 // pred_region
      %s4631 = ssub.s32 %s10, 2
      // Predicated region
      $region45: #{decoder_block_forward.4} parent=43 // pred_check
        %p4632 = pneg %p128
      $region46: #{decoder_block_forward.4} parent=43 // pred_check_branch
        %4634 = sbr.rel (%p4632) target = $region48
      $region47: #{decoder_block_forward.4} parent=43 // pred_region
        %p4635 = scmp.lt.s32.totalorder %s16, 1
        %s4636 = scalar_select %p4635, %s16, 1
        %s4637 = smul.addr %s4636, 36
        %s4638 = smul.addr %s4637, 8
        %s4639 = scalar_lea.vmem %s4, %s4638
      $region48: #{decoder_block_forward.4} parent=43 // pred_fallthru
        _
    $region44: #{decoder_block_forward.4} parent=5 // pred_fallthru
      _
  $region6: #{decoder_block_forward.4} parent=0 // loop_footer
    %s14 = sadd.s32 1, %s10
  $region7: #{decoder_block_forward.4} parent=0 // loop_footer_branch
    %9 = sbr.rel target = $region3
  $region8: #{decoder_block_forward.4} parent=0 // loop_exit
    _

</llo_original>
